<compile_context>
chip_gen: v7x
topology: tpu7x:2x2x1
jax: 0.10.0
libtpu: 0.0.40
codegen_flags: <defaults>
</compile_context>

<pallas_src>
import functools
import numpy as np
import jax
import jax.numpy as jnp
from jax import lax
from jax.experimental import pallas as pl
from jax.experimental.pallas import tpu as pltpu


# ----------------------------------------------------------------------------
# Kernel 1: tiled matmul + bias + LeakyReLU (conv stages via im2col).
# ----------------------------------------------------------------------------
def _mm_lrelu_kernel(x_ref, w_ref, b_ref, o_ref):
    y = jnp.dot(x_ref[...], w_ref[...], preferred_element_type=jnp.float32)
    y = y + b_ref[...]
    o_ref[...] = jnp.where(y >= 0.0, y, 0.01 * y)   # PyTorch LeakyReLU default


def matmul_bias_lrelu(x, w, b, tm=512):
    """leaky_relu(x @ w + b); x:(M,K) f32, w:(K,N) f32, b:(N,) f32.

    bf16 operands / f32 accumulation; M tiled with a parallel grid when large.
    """
    M, K = x.shape
    N = w.shape[1]
    xb = x.astype(jnp.bfloat16)
    wb = w.astype(jnp.bfloat16)
    b2 = b.reshape(1, N).astype(jnp.float32)
    if M <= tm:
        mp, bm, gm = M, M, 1
    else:
        gm = pl.cdiv(M, tm)
        mp, bm = gm * tm, tm
        if mp != M:
            xb = jnp.pad(xb, ((0, mp - M), (0, 0)))
    y = pl.pallas_call(
        _mm_lrelu_kernel,
        out_shape=jax.ShapeDtypeStruct((mp, N), jnp.float32),
        grid=(gm,),
        in_specs=[
            pl.BlockSpec((bm, K), lambda i: (i, 0)),
            pl.BlockSpec((K, N), lambda i: (0, 0)),
            pl.BlockSpec((1, N), lambda i: (0, 0)),
        ],
        out_specs=pl.BlockSpec((bm, N), lambda i: (i, 0)),
        compiler_params=pltpu.CompilerParams(dimension_semantics=("parallel",)),
    )(xb, wb, b2)
    return y[:M] if mp != M else y


# ----------------------------------------------------------------------------
# Conv2d (valid padding) = im2col (NHWC glue) + Pallas matmul + LeakyReLU
# ----------------------------------------------------------------------------
def _im2col_nhwc(x, kh, kw, stride):
    # x: (N, H, W, C) -> (N*OH*OW, C*kh*kw); feature order c*(kh*kw)+i*kw+j
    # matches PyTorch weight.reshape(OC, C*kh*kw).
    N, H, W, C = x.shape
    OH = (H - kh) // stride + 1
    OW = (W - kw) // stride + 1
    cols = [x[:, i:i + stride * OH:stride, j:j + stride * OW:stride, :]
            for i in range(kh) for j in range(kw)]
    patches = jnp.stack(cols, axis=-1)                 # (N, OH, OW, C, kh*kw)
    return patches.reshape(N * OH * OW, C * kh * kw), OH, OW


def conv2d_lrelu_nhwc(x, w, b, stride):
    """nn.Conv2d(padding=0)+LeakyReLU; x NHWC, w in PyTorch (OC,C,kh,kw) layout."""
    OC, C, kh, kw = w.shape
    N = x.shape[0]
    patches, OH, OW = _im2col_nhwc(x, kh, kw, stride)
    w2 = w.reshape(OC, C * kh * kw).T                  # (C*kh*kw, OC)
    y = matmul_bias_lrelu(patches, w2, b)              # (N*OH*OW, OC)
    return y.reshape(N, OH, OW, OC)                    # stay NHWC


# ----------------------------------------------------------------------------
# Kernel 2: fused graph encoder (node2edge/mlp2 -> edge2node/mlp3 ->
# node2edge+skip/mlp4 -> per-node fc_out + softmax -> iter_node2node loop).
# One grid step per batch element; all weights VMEM-resident.
# ----------------------------------------------------------------------------
def _graph_kernel(x_ref, rr_ref, rs_ref, rrt_ref, rst_ref, p_ref, pt_ref, q_ref,
                  w2a_ref, w2b_ref, b2_ref, w3_ref, b3_ref,
                  w4a_ref, w4b_ref, w4c_ref, b4_ref,
                  fcwt_ref, fcb_ref,
                  new_ref, neb_ref, m1a_ref, m1b_ref, m1bias_ref, m2_ref, m2b_ref,
                  o_ref, c_scr,
                  *, S, E, T, seq, rel_rate):
    dot = lambda a, b: jnp.dot(a, b, preferred_element_type=jnp.float32)
    relu = lambda v: jnp.maximum(v, 0.0)

    x = x_ref[0]                                   # (S, H) conv features
    rr, rs = rr_ref[...], rs_ref[...]              # (E, S)
    rrt, rst = rrt_ref[...], rst_ref[...]          # (S, E)

    # node2edge + mlp2   (1/S folded into w2a/w2b; split-K replaces concat)
    h2 = relu(dot(dot(rr, x), w2a_ref[...]) +
              dot(dot(rs, x), w2b_ref[...]) + b2_ref[...])        # (E, H)
    x_skip = h2

    # edge2node + mlp3   (1/S folded into w3)
    xn = relu(dot(dot(rrt, h2), w3_ref[...]) + b3_ref[...])       # (S, H)

    # node2edge + skip + mlp4   (1/S folded into w4a/w4b only)
    h4 = relu(dot(dot(rr, xn), w4a_ref[...]) +
              dot(dot(rs, xn), w4b_ref[...]) +
              dot(x_skip, w4c_ref[...]) + b4_ref[...])            # (E, H)

    # per-node fc_out heads on the VPU: c[e, j] = <h4[e, :], W_{e//(S-1)}[.,j]>
    for j in range(S - 1):
        c_scr[:, j:j + 1] = jnp.sum(h4 * fcwt_ref[j], axis=-1, keepdims=True)
    logits = dot(pt_ref[...], c_scr[...]) + fcb_ref[...]          # (S, S-1)

    # softmax over last axis, * rel_rate, then unflatten to per-edge column
    m = jnp.max(logits, axis=-1, keepdims=True)
    ex = jnp.exp(logits - m)
    sm = (ex / jnp.sum(ex, axis=-1, keepdims=True)) * rel_rate    # (S, S-1)
    edges = jnp.sum(dot(p_ref[...], sm) * q_ref[...],
                    axis=-1, keepdims=True)                       # (E, 1)

    rr_w = edges * rr                                             # (E, S)
    rs_w = edges * rs                                             # (E, S)

    # iter_node2node: entire sequence_num-iteration loop stays in VMEM/vregs
    row0 = lax.broadcasted_iota(jnp.int32, (seq, T), 0) == 0
    xc = jnp.where(row0, 1.0, 0.0).astype(jnp.float32)            # x[:,0,:]=1
    msgs = jnp.zeros((seq, T), jnp.float32)
    for _ in range(seq):
        xc = relu(dot(xc, new_ref[...]) + neb_ref[...])           # node_embed
        recv = dot(rr_w, xc)                                      # (E, T)
        send = dot(rs_w, xc)                                      # (E, T)
        hm = relu(dot(recv, m1a_ref[...]) + dot(send, m1b_ref[...]) + m1bias_ref[...])
        msg = relu(dot(hm, m2_ref[...]) + m2b_ref[...])           # (E, T)
        xc = dot(rst, edges * msg)          # == (edges * rel_send).T @ msg -> (S, T)
        msgs = msgs + xc
    # transform_x[:, 0, :] = 0 ; transform_x[:, 1:, :] = all_msgs[:, 1:, :]
    o_ref[0] = jnp.where(row0, 0.0, msgs)


def _full_spec(a):
    n = a.ndim
    return pl.BlockSpec(a.shape, lambda b, n=n: (0,) * n)


# ----------------------------------------------------------------------------
# Parameters (deterministic xavier-normal-like; Linear bias = 0.1)
# ----------------------------------------------------------------------------
def _xavier(key, fan_in, fan_out, shape):
    std = float(np.sqrt(2.0 / (fan_in + fan_out)))
    return jax.random.normal(key, shape, jnp.float32) * std


def init_params(key, H, T, S):
    ks = jax.random.split(key, 12)
    fill = lambda shape, v: jnp.full(shape, v, jnp.float32)
    p = {}
    # mnist_conv: Conv2d(1,16,4,2) -> Conv2d(16,8,4,2) -> Conv2d(8,4,3,1)
    p["conv1_w"] = _xavier(ks[0], 1 * 16, 16 * 16, (16, 1, 4, 4));  p["conv1_b"] = fill((16,), 0.05)
    p["conv2_w"] = _xavier(ks[1], 16 * 16, 8 * 16, (8, 16, 4, 4));  p["conv2_b"] = fill((8,), 0.05)
    p["conv3_w"] = _xavier(ks[2], 8 * 9, 4 * 9, (4, 8, 3, 3));      p["conv3_b"] = fill((4,), 0.05)
    # SLPs (Linear + ReLU assumed)
    p["mlp2_w"] = _xavier(ks[3], 2 * H, H, (2 * H, H)); p["mlp2_b"] = fill((H,), 0.1)
    p["mlp3_w"] = _xavier(ks[4], H, H, (H, H));         p["mlp3_b"] = fill((H,), 0.1)
    p["mlp4_w"] = _xavier(ks[5], 3 * H, H, (3 * H, H)); p["mlp4_b"] = fill((H,), 0.1)
    # per-node output heads stacked: (S, H*(S-1), S-1), bias (S, S-1)
    p["fc_out_w"] = jnp.stack(
        [_xavier(jax.random.fold_in(ks[6], i), H * (S - 1), S - 1,
                 (H * (S - 1), S - 1)) for i in range(S)], axis=0)
    p["fc_out_b"] = fill((S, S - 1), 0.1)
    # message-passing nets
    p["msg_fc1_w1"] = _xavier(ks[7], 2 * T, T, (2 * T, T)); p["msg_fc1_b1"] = fill((T,), 0.1)
    p["msg_fc1_w2"] = _xavier(ks[8], T, T, (T, T));         p["msg_fc1_b2"] = fill((T,), 0.1)
    p["node_embed_w"] = _xavier(ks[9], T, T, (T, T));       p["node_embed_b"] = fill((T,), 0.1)
    return p


# ----------------------------------------------------------------------------
# Encoder_graph.forward
# ----------------------------------------------------------------------------
def encoder_graph_forward(params, inputs, rel_rec, rel_send, rel_full,
                          sequence_num=5, rel_rate=1.0):
    del rel_full  # unused by the PyTorch forward as well
    B, S = inputs.shape[0], inputs.shape[1]
    E = rel_rec.shape[0]
    H = params["mlp3_w"].shape[0]
    T = params["node_embed_w"].shape[0]
    assert E == S * (S - 1), "module assumes a fully-connected graph w/o self-loops"

    # --- conv feature extractor (mlp1 applied per node), NHWC throughout ----
    x = inputs.reshape((B * S,) + inputs.shape[2:])       # (B*S, 1, IMG, IMG)
    x = jnp.transpose(x, (0, 2, 3, 1))                    # -> NHWC
    x = conv2d_lrelu_nhwc(x, params["conv1_w"], params["conv1_b"], 2)
    x = conv2d_lrelu_nhwc(x, params["conv2_w"], params["conv2_b"], 2)
    x = conv2d_lrelu_nhwc(x, params["conv3_w"], params["conv3_b"], 1)
    # flatten in PyTorch (C,H,W) order to match x.view(B, S, -1)
    x = jnp.transpose(x, (0, 3, 1, 2)).reshape(B, S, H)   # (B, S, H)

    # --- kernel-ready weights: split K-halves, fold 1/S normalizations ------
    inv_s = 1.0 / S
    w2a = params["mlp2_w"][:H] * inv_s
    w2b = params["mlp2_w"][H:] * inv_s
    w3 = params["mlp3_w"] * inv_s
    w4a = params["mlp4_w"][:H] * inv_s
    w4b = params["mlp4_w"][H:2 * H] * inv_s
    w4c = params["mlp4_w"][2 * H:]                        # skip half: unscaled
    # fc_out heads: (S, H*(S-1), S-1) -> (S-1_out, E, H) for VPU evaluation
    fcwt = params["fc_out_w"].reshape(S, S - 1, H, S - 1) \
                             .reshape(E, H, S - 1).transpose(2, 0, 1)
    fcb = params["fc_out_b"]                              # (S, S-1)
    m1a = params["msg_fc1_w1"][:T]
    m1b = params["msg_fc1_w1"][T:]

    rrt = rel_rec.T                                       # (S, E)
    rst = rel_send.T                                      # (S, E)
    # flatten selectors for `edges = softmax(out).view(B, -1)`
    e_idx = np.arange(E)
    P = jnp.asarray(np.eye(S, dtype=np.float32)[e_idx // (S - 1)])      # (E, S)
    Q = jnp.asarray(np.eye(S - 1, dtype=np.float32)[e_idx % (S - 1)])   # (E, S-1)
    Pt = P.T                                              # (S, E)

    r1 = lambda v: v.reshape(1, -1)
    ins = [x,
           rel_rec, rel_send, rrt, rst, P, Pt, Q,
           w2a, w2b, r1(params["mlp2_b"]),
           w3, r1(params["mlp3_b"]),
           w4a, w4b, w4c, r1(params["mlp4_b"]),
           fcwt, fcb,
           params["node_embed_w"], r1(params["node_embed_b"]),
           m1a, m1b, r1(params["msg_fc1_b1"]),
           params["msg_fc1_w2"], r1(params["msg_fc1_b2"])]
    in_specs = [pl.BlockSpec((1, S, H), lambda b: (b, 0, 0))] \
             + [_full_spec(a) for a in ins[1:]]

    out = pl.pallas_call(
        functools.partial(_graph_kernel, S=S, E=E, T=T,
                          seq=int(sequence_num), rel_rate=float(rel_rate)),
        out_shape=jax.ShapeDtypeStruct((B, sequence_num, T), jnp.float32),
        grid=(B,),
        in_specs=in_specs,
        out_specs=pl.BlockSpec((1, sequence_num, T), lambda b: (b, 0, 0)),
        scratch_shapes=[pltpu.VMEM((E, S - 1), jnp.float32)],
        compiler_params=pltpu.CompilerParams(dimension_semantics=("parallel",)),
    )(*ins)
    return out                                            # (B, sequence_num, T)


# ----------------------------------------------------------------------------
if __name__ == "__main__":
    key = jax.random.PRNGKey(0)

    B = 2            # batch
    S = 5            # sequence_len == number of graph nodes == sequence_num
    IMG = 28         # mnist-like image -> mnist_conv features = 4*3*3 = 36
    H = 36           # hidden_size implied by mnist_conv feature size
    T = 32           # transform_hidden

    params = init_params(key, H, T, S)

    inputs = jax.random.normal(jax.random.fold_in(key, 99),
                               (B, S, 1, IMG, IMG), jnp.float32)

    # fully-connected graph without self-loops: one-hot rel matrices (E, S)
    off = np.ones((S, S)) - np.eye(S)
    recv_idx, send_idx = np.where(off)
    rel_rec = jnp.asarray(np.eye(S)[recv_idx], jnp.float32)    # (E, S)
    rel_send = jnp.asarray(np.eye(S)[send_idx], jnp.float32)   # (E, S)
    rel_full = jnp.ones((rel_rec.shape[0], S), jnp.float32)    # unused in forward

    fwd = jax.jit(functools.partial(encoder_graph_forward,
                                    sequence_num=S, rel_rate=1.0))
    out = jax.block_until_ready(fwd(params, inputs, rel_rec, rel_send, rel_full))

    assert out.shape == (B, S, T)
    assert bool(jnp.all(jnp.isfinite(out)))
    print("KERNEL_OK")
</pallas_src>

<mosaic_0001>
module attributes {stable_mosaic.version = 11 : i64} {
  func.func @_mm_lrelu_kernel(%arg0: i32, %arg1: memref<512x16xbf16, #tpu.memory_space<vmem>>, %arg2: memref<16x16xbf16, #tpu.memory_space<vmem>>, %arg3: memref<1x16xf32, #tpu.memory_space<vmem>>, %arg4: memref<512x16xf32, #tpu.memory_space<vmem>>) attributes {dimension_semantics = [#tpu.dimension_semantics<parallel>], iteration_bounds = array<i64: 4>, scalar_prefetch = 0 : i64, scratch_operands = 0 : i64, tpu.core_type = #tpu.core_type<tc>, window_params = [{transform_indices = @transform_0, window_bounds = array<i64: 512, 16>}, {pipeline_mode = #tpu.pipeline_mode<synchronous>, transform_indices = @transform_1, window_bounds = array<i64: 16, 16>}, {pipeline_mode = #tpu.pipeline_mode<synchronous>, transform_indices = @transform_2, window_bounds = array<i64: 1, 16>}, {transform_indices = @transform_3, window_bounds = array<i64: 512, 16>}]} {
    %c0 = arith.constant 0 : index
    %c0_0 = arith.constant 0 : index
    %0 = vector.load %arg1[%c0, %c0_0] : memref<512x16xbf16, #tpu.memory_space<vmem>>, vector<512x16xbf16>
    %c0_1 = arith.constant 0 : index
    %c0_2 = arith.constant 0 : index
    %1 = vector.load %arg2[%c0_1, %c0_2] : memref<16x16xbf16, #tpu.memory_space<vmem>>, vector<16x16xbf16>
    %cst = arith.constant dense<0.000000e+00> : vector<512x16xf32>
    %2 = tpu.matmul %0, %1, %cst {dimension_numbers = #tpu.dot_dimension_numbers<[1], [0], [0], [1], [0, 0, 1, 1], [], []>} : vector<512x16xbf16>, vector<16x16xbf16>, vector<512x16xf32> -> vector<512x16xf32>
    %c0_3 = arith.constant 0 : index
    %c0_4 = arith.constant 0 : index
    %3 = vector.load %arg3[%c0_3, %c0_4] : memref<1x16xf32, #tpu.memory_space<vmem>>, vector<1x16xf32>
    %4 = vector.broadcast %3 : vector<1x16xf32> to vector<512x16xf32>
    %5 = arith.addf %2, %4 : vector<512x16xf32>
    %cst_5 = arith.constant 0.000000e+00 : f32
    %6 = vector.broadcast %cst_5 : f32 to vector<512x16xf32>
    %7 = arith.cmpf oge, %5, %6 : vector<512x16xf32>
    %cst_6 = arith.constant 0.00999999977 : f32
    %8 = vector.broadcast %cst_6 : f32 to vector<512x16xf32>
    %9 = arith.mulf %8, %5 : vector<512x16xf32>
    %10 = arith.select %7, %5, %9 : vector<512x16xi1>, vector<512x16xf32>
    %c0_7 = arith.constant 0 : index
    %c0_8 = arith.constant 0 : index
    %11 = vector.load %arg4[%c0_7, %c0_8] : memref<512x16xf32, #tpu.memory_space<vmem>>, vector<512x16xf32>
    tpu.vector_store %arg4[%c0_7, %c0_8], %10 {strides = array<i32>} : memref<512x16xf32, #tpu.memory_space<vmem>>, vector<512x16xf32>,
    return
  }
  func.func @transform_0(%arg0: i32) -> (i32, i32) {
    %c0_i32 = arith.constant 0 : i32
    %c0_i32_0 = arith.constant 0 : i32
    return %arg0, %c0_i32 : i32, i32
  }
  func.func @transform_1(%arg0: i32) -> (i32, i32) {
    %c0_i32 = arith.constant 0 : i32
    %c0_i32_0 = arith.constant 0 : i32
    %c0_i32_1 = arith.constant 0 : i32
    return %c0_i32, %c0_i32_0 : i32, i32
  }
  func.func @transform_2(%arg0: i32) -> (i32, i32) {
    %c0_i32 = arith.constant 0 : i32
    %c0_i32_0 = arith.constant 0 : i32
    %c0_i32_1 = arith.constant 0 : i32
    return %c0_i32, %c0_i32_0 : i32, i32
  }
  func.func @transform_3(%arg0: i32) -> (i32, i32) {
    %c0_i32 = arith.constant 0 : i32
    %c0_i32_0 = arith.constant 0 : i32
    return %arg0, %c0_i32 : i32, i32
  }
}

module attributes {stable_mosaic.version = 11 : i64} {
  func.func @_mm_lrelu_kernel(%arg0: i32, %arg1: memref<250x256xbf16, #tpu.memory_space<vmem>>, %arg2: memref<256x8xbf16, #tpu.memory_space<vmem>>, %arg3: memref<1x8xf32, #tpu.memory_space<vmem>>, %arg4: memref<250x8xf32, #tpu.memory_space<vmem>>) attributes {dimension_semantics = [#tpu.dimension_semantics<parallel>], iteration_bounds = array<i64: 1>, scalar_prefetch = 0 : i64, scratch_operands = 0 : i64, tpu.core_type = #tpu.core_type<tc>, window_params = [{transform_indices = @transform_0, window_bounds = array<i64: 250, 256>}, {pipeline_mode = #tpu.pipeline_mode<synchronous>, transform_indices = @transform_1, window_bounds = array<i64: 256, 8>}, {pipeline_mode = #tpu.pipeline_mode<synchronous>, transform_indices = @transform_2, window_bounds = array<i64: 1, 8>}, {transform_indices = @transform_3, window_bounds = array<i64: 250, 8>}]} {
    %c0 = arith.constant 0 : index
    %c0_0 = arith.constant 0 : index
    %0 = vector.load %arg1[%c0, %c0_0] : memref<250x256xbf16, #tpu.memory_space<vmem>>, vector<250x256xbf16>
    %c0_1 = arith.constant 0 : index
    %c0_2 = arith.constant 0 : index
    %1 = vector.load %arg2[%c0_1, %c0_2] : memref<256x8xbf16, #tpu.memory_space<vmem>>, vector<256x8xbf16>
    %cst = arith.constant dense<0.000000e+00> : vector<250x8xf32>
    %2 = tpu.matmul %0, %1, %cst {dimension_numbers = #tpu.dot_dimension_numbers<[1], [0], [0], [1], [0, 0, 1, 1], [], []>} : vector<250x256xbf16>, vector<256x8xbf16>, vector<250x8xf32> -> vector<250x8xf32>
    %c0_3 = arith.constant 0 : index
    %c0_4 = arith.constant 0 : index
    %3 = vector.load %arg3[%c0_3, %c0_4] : memref<1x8xf32, #tpu.memory_space<vmem>>, vector<1x8xf32>
    %4 = vector.broadcast %3 : vector<1x8xf32> to vector<250x8xf32>
    %5 = arith.addf %2, %4 : vector<250x8xf32>
    %cst_5 = arith.constant 0.000000e+00 : f32
    %6 = vector.broadcast %cst_5 : f32 to vector<250x8xf32>
    %7 = arith.cmpf oge, %5, %6 : vector<250x8xf32>
    %cst_6 = arith.constant 0.00999999977 : f32
    %8 = vector.broadcast %cst_6 : f32 to vector<250x8xf32>
    %9 = arith.mulf %8, %5 : vector<250x8xf32>
    %10 = arith.select %7, %5, %9 : vector<250x8xi1>, vector<250x8xf32>
    %c0_7 = arith.constant 0 : index
    %c0_8 = arith.constant 0 : index
    %11 = vector.load %arg4[%c0_7, %c0_8] : memref<250x8xf32, #tpu.memory_space<vmem>>, vector<250x8xf32>
    tpu.vector_store %arg4[%c0_7, %c0_8], %10 {strides = array<i32>} : memref<250x8xf32, #tpu.memory_space<vmem>>, vector<250x8xf32>,
    return
  }
  func.func @transform_0(%arg0: i32) -> (i32, i32) {
    %c0_i32 = arith.constant 0 : i32
    %c0_i32_0 = arith.constant 0 : i32
    return %arg0, %c0_i32 : i32, i32
  }
  func.func @transform_1(%arg0: i32) -> (i32, i32) {
    %c0_i32 = arith.constant 0 : i32
    %c0_i32_0 = arith.constant 0 : i32
    %c0_i32_1 = arith.constant 0 : i32
    return %c0_i32, %c0_i32_0 : i32, i32
  }
  func.func @transform_2(%arg0: i32) -> (i32, i32) {
    %c0_i32 = arith.constant 0 : i32
    %c0_i32_0 = arith.constant 0 : i32
    %c0_i32_1 = arith.constant 0 : i32
    return %c0_i32, %c0_i32_0 : i32, i32
  }
  func.func @transform_3(%arg0: i32) -> (i32, i32) {
    %c0_i32 = arith.constant 0 : i32
    %c0_i32_0 = arith.constant 0 : i32
    return %arg0, %c0_i32 : i32, i32
  }
}

module attributes {stable_mosaic.version = 11 : i64} {
  func.func @_mm_lrelu_kernel(%arg0: i32, %arg1: memref<90x72xbf16, #tpu.memory_space<vmem>>, %arg2: memref<72x4xbf16, #tpu.memory_space<vmem>>, %arg3: memref<1x4xf32, #tpu.memory_space<vmem>>, %arg4: memref<90x4xf32, #tpu.memory_space<vmem>>) attributes {dimension_semantics = [#tpu.dimension_semantics<parallel>], iteration_bounds = array<i64: 1>, scalar_prefetch = 0 : i64, scratch_operands = 0 : i64, tpu.core_type = #tpu.core_type<tc>, window_params = [{transform_indices = @transform_0, window_bounds = array<i64: 90, 72>}, {pipeline_mode = #tpu.pipeline_mode<synchronous>, transform_indices = @transform_1, window_bounds = array<i64: 72, 4>}, {pipeline_mode = #tpu.pipeline_mode<synchronous>, transform_indices = @transform_2, window_bounds = array<i64: 1, 4>}, {transform_indices = @transform_3, window_bounds = array<i64: 90, 4>}]} {
    %c0 = arith.constant 0 : index
    %c0_0 = arith.constant 0 : index
    %0 = vector.load %arg1[%c0, %c0_0] : memref<90x72xbf16, #tpu.memory_space<vmem>>, vector<90x72xbf16>
    %c0_1 = arith.constant 0 : index
    %c0_2 = arith.constant 0 : index
    %1 = vector.load %arg2[%c0_1, %c0_2] : memref<72x4xbf16, #tpu.memory_space<vmem>>, vector<72x4xbf16>
    %cst = arith.constant dense<0.000000e+00> : vector<90x4xf32>
    %2 = tpu.matmul %0, %1, %cst {dimension_numbers = #tpu.dot_dimension_numbers<[1], [0], [0], [1], [0, 0, 1, 1], [], []>} : vector<90x72xbf16>, vector<72x4xbf16>, vector<90x4xf32> -> vector<90x4xf32>
    %c0_3 = arith.constant 0 : index
    %c0_4 = arith.constant 0 : index
    %3 = vector.load %arg3[%c0_3, %c0_4] : memref<1x4xf32, #tpu.memory_space<vmem>>, vector<1x4xf32>
    %4 = vector.broadcast %3 : vector<1x4xf32> to vector<90x4xf32>
    %5 = arith.addf %2, %4 : vector<90x4xf32>
    %cst_5 = arith.constant 0.000000e+00 : f32
    %6 = vector.broadcast %cst_5 : f32 to vector<90x4xf32>
    %7 = arith.cmpf oge, %5, %6 : vector<90x4xf32>
    %cst_6 = arith.constant 0.00999999977 : f32
    %8 = vector.broadcast %cst_6 : f32 to vector<90x4xf32>
    %9 = arith.mulf %8, %5 : vector<90x4xf32>
    %10 = arith.select %7, %5, %9 : vector<90x4xi1>, vector<90x4xf32>
    %c0_7 = arith.constant 0 : index
    %c0_8 = arith.constant 0 : index
    %11 = vector.load %arg4[%c0_7, %c0_8] : memref<90x4xf32, #tpu.memory_space<vmem>>, vector<90x4xf32>
    tpu.vector_store %arg4[%c0_7, %c0_8], %10 {strides = array<i32>} : memref<90x4xf32, #tpu.memory_space<vmem>>, vector<90x4xf32>,
    return
  }
  func.func @transform_0(%arg0: i32) -> (i32, i32) {
    %c0_i32 = arith.constant 0 : i32
    %c0_i32_0 = arith.constant 0 : i32
    return %arg0, %c0_i32 : i32, i32
  }
  func.func @transform_1(%arg0: i32) -> (i32, i32) {
    %c0_i32 = arith.constant 0 : i32
    %c0_i32_0 = arith.constant 0 : i32
    %c0_i32_1 = arith.constant 0 : i32
    return %c0_i32, %c0_i32_0 : i32, i32
  }
  func.func @transform_2(%arg0: i32) -> (i32, i32) {
    %c0_i32 = arith.constant 0 : i32
    %c0_i32_0 = arith.constant 0 : i32
    %c0_i32_1 = arith.constant 0 : i32
    return %c0_i32, %c0_i32_0 : i32, i32
  }
  func.func @transform_3(%arg0: i32) -> (i32, i32) {
    %c0_i32 = arith.constant 0 : i32
    %c0_i32_0 = arith.constant 0 : i32
    return %arg0, %c0_i32 : i32, i32
  }
}

module attributes {stable_mosaic.version = 11 : i64} {
  func.func @_graph_kernel(%arg0: i32, %arg1: memref<1x5x36xf32, #tpu.memory_space<vmem>>, %arg2: memref<20x5xf32, #tpu.memory_space<vmem>>, %arg3: memref<20x5xf32, #tpu.memory_space<vmem>>, %arg4: memref<5x20xf32, #tpu.memory_space<vmem>>, %arg5: memref<5x20xf32, #tpu.memory_space<vmem>>, %arg6: memref<20x5xf32, #tpu.memory_space<vmem>>, %arg7: memref<5x20xf32, #tpu.memory_space<vmem>>, %arg8: memref<20x4xf32, #tpu.memory_space<vmem>>, %arg9: memref<36x36xf32, #tpu.memory_space<vmem>>, %arg10: memref<36x36xf32, #tpu.memory_space<vmem>>, %arg11: memref<1x36xf32, #tpu.memory_space<vmem>>, %arg12: memref<36x36xf32, #tpu.memory_space<vmem>>, %arg13: memref<1x36xf32, #tpu.memory_space<vmem>>, %arg14: memref<36x36xf32, #tpu.memory_space<vmem>>, %arg15: memref<36x36xf32, #tpu.memory_space<vmem>>, %arg16: memref<36x36xf32, #tpu.memory_space<vmem>>, %arg17: memref<1x36xf32, #tpu.memory_space<vmem>>, %arg18: memref<4x20x36xf32, #tpu.memory_space<vmem>>, %arg19: memref<5x4xf32, #tpu.memory_space<vmem>>, %arg20: memref<32x32xf32, #tpu.memory_space<vmem>>, %arg21: memref<1x32xf32, #tpu.memory_space<vmem>>, %arg22: memref<32x32xf32, #tpu.memory_space<vmem>>, %arg23: memref<32x32xf32, #tpu.memory_space<vmem>>, %arg24: memref<1x32xf32, #tpu.memory_space<vmem>>, %arg25: memref<32x32xf32, #tpu.memory_space<vmem>>, %arg26: memref<1x32xf32, #tpu.memory_space<vmem>>, %arg27: memref<1x5x32xf32, #tpu.memory_space<vmem>>, %arg28: memref<20x4xf32, #tpu.memory_space<vmem>>) attributes {dimension_semantics = [#tpu.dimension_semantics<parallel>], iteration_bounds = array<i64: 2>, scalar_prefetch = 0 : i64, scratch_operands = 1 : i64, tpu.core_type = #tpu.core_type<tc>, window_params = [{transform_indices = @transform_0, window_bounds = array<i64: 1, 5, 36>}, {pipeline_mode = #tpu.pipeline_mode<synchronous>, transform_indices = @transform_1, window_bounds = array<i64: 20, 5>}, {pipeline_mode = #tpu.pipeline_mode<synchronous>, transform_indices = @transform_2, window_bounds = array<i64: 20, 5>}, {pipeline_mode = #tpu.pipeline_mode<synchronous>, transform_indices = @transform_3, window_bounds = array<i64: 5, 20>}, {pipeline_mode = #tpu.pipeline_mode<synchronous>, transform_indices = @transform_4, window_bounds = array<i64: 5, 20>}, {pipeline_mode = #tpu.pipeline_mode<synchronous>, transform_indices = @transform_5, window_bounds = array<i64: 20, 5>}, {pipeline_mode = #tpu.pipeline_mode<synchronous>, transform_indices = @transform_6, window_bounds = array<i64: 5, 20>}, {pipeline_mode = #tpu.pipeline_mode<synchronous>, transform_indices = @transform_7, window_bounds = array<i64: 20, 4>}, {pipeline_mode = #tpu.pipeline_mode<synchronous>, transform_indices = @transform_8, window_bounds = array<i64: 36, 36>}, {pipeline_mode = #tpu.pipeline_mode<synchronous>, transform_indices = @transform_9, window_bounds = array<i64: 36, 36>}, {pipeline_mode = #tpu.pipeline_mode<synchronous>, transform_indices = @transform_10, window_bounds = array<i64: 1, 36>}, {pipeline_mode = #tpu.pipeline_mode<synchronous>, transform_indices = @transform_11, window_bounds = array<i64: 36, 36>}, {pipeline_mode = #tpu.pipeline_mode<synchronous>, transform_indices = @transform_12, window_bounds = array<i64: 1, 36>}, {pipeline_mode = #tpu.pipeline_mode<synchronous>, transform_indices = @transform_13, window_bounds = array<i64: 36, 36>}, {pipeline_mode = #tpu.pipeline_mode<synchronous>, transform_indices = @transform_14, window_bounds = array<i64: 36, 36>}, {pipeline_mode = #tpu.pipeline_mode<synchronous>, transform_indices = @transform_15, window_bounds = array<i64: 36, 36>}, {pipeline_mode = #tpu.pipeline_mode<synchronous>, transform_indices = @transform_16, window_bounds = array<i64: 1, 36>}, {pipeline_mode = #tpu.pipeline_mode<synchronous>, transform_indices = @transform_17, window_bounds = array<i64: 4, 20, 36>}, {pipeline_mode = #tpu.pipeline_mode<synchronous>, transform_indices = @transform_18, window_bounds = array<i64: 5, 4>}, {pipeline_mode = #tpu.pipeline_mode<synchronous>, transform_indices = @transform_19, window_bounds = array<i64: 32, 32>}, {pipeline_mode = #tpu.pipeline_mode<synchronous>, transform_indices = @transform_20, window_bounds = array<i64: 1, 32>}, {pipeline_mode = #tpu.pipeline_mode<synchronous>, transform_indices = @transform_21, window_bounds = array<i64: 32, 32>}, {pipeline_mode = #tpu.pipeline_mode<synchronous>, transform_indices = @transform_22, window_bounds = array<i64: 32, 32>}, {pipeline_mode = #tpu.pipeline_mode<synchronous>, transform_indices = @transform_23, window_bounds = array<i64: 1, 32>}, {pipeline_mode = #tpu.pipeline_mode<synchronous>, transform_indices = @transform_24, window_bounds = array<i64: 32, 32>}, {pipeline_mode = #tpu.pipeline_mode<synchronous>, transform_indices = @transform_25, window_bounds = array<i64: 1, 32>}, {transform_indices = @transform_26, window_bounds = array<i64: 1, 5, 32>}]} {
    %c0 = arith.constant 0 : index
    %c0_0 = arith.constant 0 : index
    %c0_1 = arith.constant 0 : index
    %0 = vector.load %arg1[%c0, %c0_0, %c0_1] : memref<1x5x36xf32, #tpu.memory_space<vmem>>, vector<1x5x36xf32>
    %1 = vector.shape_cast %0 : vector<1x5x36xf32> to vector<5x36xf32>
    %c0_2 = arith.constant 0 : index
    %c0_3 = arith.constant 0 : index
    %2 = vector.load %arg2[%c0_2, %c0_3] : memref<20x5xf32, #tpu.memory_space<vmem>>, vector<20x5xf32>
    %c0_4 = arith.constant 0 : index
    %c0_5 = arith.constant 0 : index
    %3 = vector.load %arg3[%c0_4, %c0_5] : memref<20x5xf32, #tpu.memory_space<vmem>>, vector<20x5xf32>
    %c0_6 = arith.constant 0 : index
    %c0_7 = arith.constant 0 : index
    %4 = vector.load %arg4[%c0_6, %c0_7] : memref<5x20xf32, #tpu.memory_space<vmem>>, vector<5x20xf32>
    %c0_8 = arith.constant 0 : index
    %c0_9 = arith.constant 0 : index
    %5 = vector.load %arg5[%c0_8, %c0_9] : memref<5x20xf32, #tpu.memory_space<vmem>>, vector<5x20xf32>
    %cst = arith.constant dense<0.000000e+00> : vector<20x36xf32>
    %6 = tpu.matmul %2, %1, %cst {dimension_numbers = #tpu.dot_dimension_numbers<[1], [0], [0], [1], [0, 0, 1, 1], [], []>} : vector<20x5xf32>, vector<5x36xf32>, vector<20x36xf32> -> vector<20x36xf32>
    %c0_10 = arith.constant 0 : index
    %c0_11 = arith.constant 0 : index
    %7 = vector.load %arg9[%c0_10, %c0_11] : memref<36x36xf32, #tpu.memory_space<vmem>>, vector<36x36xf32>
    %cst_12 = arith.constant dense<0.000000e+00> : vector<20x36xf32>
    %8 = tpu.matmul %6, %7, %cst_12 {dimension_numbers = #tpu.dot_dimension_numbers<[1], [0], [0], [1], [0, 0, 1, 1], [], []>} : vector<20x36xf32>, vector<36x36xf32>, vector<20x36xf32> -> vector<20x36xf32>
    %cst_13 = arith.constant dense<0.000000e+00> : vector<20x36xf32>
    %9 = tpu.matmul %3, %1, %cst_13 {dimension_numbers = #tpu.dot_dimension_numbers<[1], [0], [0], [1], [0, 0, 1, 1], [], []>} : vector<20x5xf32>, vector<5x36xf32>, vector<20x36xf32> -> vector<20x36xf32>
    %c0_14 = arith.constant 0 : index
    %c0_15 = arith.constant 0 : index
    %10 = vector.load %arg10[%c0_14, %c0_15] : memref<36x36xf32, #tpu.memory_space<vmem>>, vector<36x36xf32>
    %cst_16 = arith.constant dense<0.000000e+00> : vector<20x36xf32>
    %11 = tpu.matmul %9, %10, %cst_16 {dimension_numbers = #tpu.dot_dimension_numbers<[1], [0], [0], [1], [0, 0, 1, 1], [], []>} : vector<20x36xf32>, vector<36x36xf32>, vector<20x36xf32> -> vector<20x36xf32>
    %12 = arith.addf %8, %11 : vector<20x36xf32>
    %c0_17 = arith.constant 0 : index
    %c0_18 = arith.constant 0 : index
    %13 = vector.load %arg11[%c0_17, %c0_18] : memref<1x36xf32, #tpu.memory_space<vmem>>, vector<1x36xf32>
    %14 = vector.broadcast %13 : vector<1x36xf32> to vector<20x36xf32>
    %15 = arith.addf %12, %14 : vector<20x36xf32>
    %cst_19 = arith.constant 0.000000e+00 : f32
    %16 = vector.broadcast %cst_19 : f32 to vector<20x36xf32>
    %17 = arith.maximumf %15, %16 : vector<20x36xf32>
    %cst_20 = arith.constant dense<0.000000e+00> : vector<5x36xf32>
    %18 = tpu.matmul %4, %17, %cst_20 {dimension_numbers = #tpu.dot_dimension_numbers<[1], [0], [0], [1], [0, 0, 1, 1], [], []>} : vector<5x20xf32>, vector<20x36xf32>, vector<5x36xf32> -> vector<5x36xf32>
    %c0_21 = arith.constant 0 : index
    %c0_22 = arith.constant 0 : index
    %19 = vector.load %arg12[%c0_21, %c0_22] : memref<36x36xf32, #tpu.memory_space<vmem>>, vector<36x36xf32>
    %cst_23 = arith.constant dense<0.000000e+00> : vector<5x36xf32>
    %20 = tpu.matmul %18, %19, %cst_23 {dimension_numbers = #tpu.dot_dimension_numbers<[1], [0], [0], [1], [0, 0, 1, 1], [], []>} : vector<5x36xf32>, vector<36x36xf32>, vector<5x36xf32> -> vector<5x36xf32>
    %c0_24 = arith.constant 0 : index
    %c0_25 = arith.constant 0 : index
    %21 = vector.load %arg13[%c0_24, %c0_25] : memref<1x36xf32, #tpu.memory_space<vmem>>, vector<1x36xf32>
    %22 = vector.broadcast %21 : vector<1x36xf32> to vector<5x36xf32>
    %23 = arith.addf %20, %22 : vector<5x36xf32>
    %cst_26 = arith.constant 0.000000e+00 : f32
    %24 = vector.broadcast %cst_26 : f32 to vector<5x36xf32>
    %25 = arith.maximumf %23, %24 : vector<5x36xf32>
    %cst_27 = arith.constant dense<0.000000e+00> : vector<20x36xf32>
    %26 = tpu.matmul %2, %25, %cst_27 {dimension_numbers = #tpu.dot_dimension_numbers<[1], [0], [0], [1], [0, 0, 1, 1], [], []>} : vector<20x5xf32>, vector<5x36xf32>, vector<20x36xf32> -> vector<20x36xf32>
    %c0_28 = arith.constant 0 : index
    %c0_29 = arith.constant 0 : index
    %27 = vector.load %arg14[%c0_28, %c0_29] : memref<36x36xf32, #tpu.memory_space<vmem>>, vector<36x36xf32>
    %cst_30 = arith.constant dense<0.000000e+00> : vector<20x36xf32>
    %28 = tpu.matmul %26, %27, %cst_30 {dimension_numbers = #tpu.dot_dimension_numbers<[1], [0], [0], [1], [0, 0, 1, 1], [], []>} : vector<20x36xf32>, vector<36x36xf32>, vector<20x36xf32> -> vector<20x36xf32>
    %cst_31 = arith.constant dense<0.000000e+00> : vector<20x36xf32>
    %29 = tpu.matmul %3, %25, %cst_31 {dimension_numbers = #tpu.dot_dimension_numbers<[1], [0], [0], [1], [0, 0, 1, 1], [], []>} : vector<20x5xf32>, vector<5x36xf32>, vector<20x36xf32> -> vector<20x36xf32>
    %c0_32 = arith.constant 0 : index
    %c0_33 = arith.constant 0 : index
    %30 = vector.load %arg15[%c0_32, %c0_33] : memref<36x36xf32, #tpu.memory_space<vmem>>, vector<36x36xf32>
    %cst_34 = arith.constant dense<0.000000e+00> : vector<20x36xf32>
    %31 = tpu.matmul %29, %30, %cst_34 {dimension_numbers = #tpu.dot_dimension_numbers<[1], [0], [0], [1], [0, 0, 1, 1], [], []>} : vector<20x36xf32>, vector<36x36xf32>, vector<20x36xf32> -> vector<20x36xf32>
    %32 = arith.addf %28, %31 : vector<20x36xf32>
    %c0_35 = arith.constant 0 : index
    %c0_36 = arith.constant 0 : index
    %33 = vector.load %arg16[%c0_35, %c0_36] : memref<36x36xf32, #tpu.memory_space<vmem>>, vector<36x36xf32>
    %cst_37 = arith.constant dense<0.000000e+00> : vector<20x36xf32>
    %34 = tpu.matmul %17, %33, %cst_37 {dimension_numbers = #tpu.dot_dimension_numbers<[1], [0], [0], [1], [0, 0, 1, 1], [], []>} : vector<20x36xf32>, vector<36x36xf32>, vector<20x36xf32> -> vector<20x36xf32>
    %35 = arith.addf %32, %34 : vector<20x36xf32>
    %c0_38 = arith.constant 0 : index
    %c0_39 = arith.constant 0 : index
    %36 = vector.load %arg17[%c0_38, %c0_39] : memref<1x36xf32, #tpu.memory_space<vmem>>, vector<1x36xf32>
    %37 = vector.broadcast %36 : vector<1x36xf32> to vector<20x36xf32>
    %38 = arith.addf %35, %37 : vector<20x36xf32>
    %cst_40 = arith.constant 0.000000e+00 : f32
    %39 = vector.broadcast %cst_40 : f32 to vector<20x36xf32>
    %40 = arith.maximumf %38, %39 : vector<20x36xf32>
    %c0_41 = arith.constant 0 : index
    %c0_42 = arith.constant 0 : index
    %c0_43 = arith.constant 0 : index
    %41 = vector.load %arg18[%c0_41, %c0_42, %c0_43] : memref<4x20x36xf32, #tpu.memory_space<vmem>>, vector<1x20x36xf32>
    %42 = vector.shape_cast %41 : vector<1x20x36xf32> to vector<20x36xf32>
    %43 = arith.mulf %40, %42 : vector<20x36xf32>
    %cst_44 = arith.constant dense<0.000000e+00> : vector<20xf32>
    %44 = vector.multi_reduction <add>, %43, %cst_44 [1] : vector<20x36xf32> to vector<20xf32>
    %45 = vector.shape_cast %44 : vector<20xf32> to vector<20x1xf32>
    %c0_45 = arith.constant 0 : index
    %c0_46 = arith.constant 0 : index
    %46 = vector.load %arg28[%c0_45, %c0_46] : memref<20x4xf32, #tpu.memory_space<vmem>>, vector<20x1xf32>
    tpu.vector_store %arg28[%c0_45, %c0_46], %45 {strides = array<i32>} : memref<20x4xf32, #tpu.memory_space<vmem>>, vector<20x1xf32>,
    %c1 = arith.constant 1 : index
    %c0_47 = arith.constant 0 : index
    %c0_48 = arith.constant 0 : index
    %47 = vector.load %arg18[%c1, %c0_47, %c0_48] : memref<4x20x36xf32, #tpu.memory_space<vmem>>, vector<1x20x36xf32>
    %48 = vector.shape_cast %47 : vector<1x20x36xf32> to vector<20x36xf32>
    %49 = arith.mulf %40, %48 : vector<20x36xf32>
    %cst_49 = arith.constant dense<0.000000e+00> : vector<20xf32>
    %50 = vector.multi_reduction <add>, %49, %cst_49 [1] : vector<20x36xf32> to vector<20xf32>
    %51 = vector.shape_cast %50 : vector<20xf32> to vector<20x1xf32>
    %c0_50 = arith.constant 0 : index
    %c1_51 = arith.constant 1 : index
    %52 = vector.load %arg28[%c0_50, %c1_51] : memref<20x4xf32, #tpu.memory_space<vmem>>, vector<20x1xf32>
    tpu.vector_store %arg28[%c0_50, %c1_51], %51 {strides = array<i32>} : memref<20x4xf32, #tpu.memory_space<vmem>>, vector<20x1xf32>,
    %c2 = arith.constant 2 : index
    %c0_52 = arith.constant 0 : index
    %c0_53 = arith.constant 0 : index
    %53 = vector.load %arg18[%c2, %c0_52, %c0_53] : memref<4x20x36xf32, #tpu.memory_space<vmem>>, vector<1x20x36xf32>
    %54 = vector.shape_cast %53 : vector<1x20x36xf32> to vector<20x36xf32>
    %55 = arith.mulf %40, %54 : vector<20x36xf32>
    %cst_54 = arith.constant dense<0.000000e+00> : vector<20xf32>
    %56 = vector.multi_reduction <add>, %55, %cst_54 [1] : vector<20x36xf32> to vector<20xf32>
    %57 = vector.shape_cast %56 : vector<20xf32> to vector<20x1xf32>
    %c0_55 = arith.constant 0 : index
    %c2_56 = arith.constant 2 : index
    %58 = vector.load %arg28[%c0_55, %c2_56] : memref<20x4xf32, #tpu.memory_space<vmem>>, vector<20x1xf32>
    tpu.vector_store %arg28[%c0_55, %c2_56], %57 {strides = array<i32>} : memref<20x4xf32, #tpu.memory_space<vmem>>, vector<20x1xf32>,
    %c3 = arith.constant 3 : index
    %c0_57 = arith.constant 0 : index
    %c0_58 = arith.constant 0 : index
    %59 = vector.load %arg18[%c3, %c0_57, %c0_58] : memref<4x20x36xf32, #tpu.memory_space<vmem>>, vector<1x20x36xf32>
    %60 = vector.shape_cast %59 : vector<1x20x36xf32> to vector<20x36xf32>
    %61 = arith.mulf %40, %60 : vector<20x36xf32>
    %cst_59 = arith.constant dense<0.000000e+00> : vector<20xf32>
    %62 = vector.multi_reduction <add>, %61, %cst_59 [1] : vector<20x36xf32> to vector<20xf32>
    %63 = vector.shape_cast %62 : vector<20xf32> to vector<20x1xf32>
    %c0_60 = arith.constant 0 : index
    %c3_61 = arith.constant 3 : index
    %64 = vector.load %arg28[%c0_60, %c3_61] : memref<20x4xf32, #tpu.memory_space<vmem>>, vector<20x1xf32>
    tpu.vector_store %arg28[%c0_60, %c3_61], %63 {strides = array<i32>} : memref<20x4xf32, #tpu.memory_space<vmem>>, vector<20x1xf32>,
    %c0_62 = arith.constant 0 : index
    %c0_63 = arith.constant 0 : index
    %65 = vector.load %arg7[%c0_62, %c0_63] : memref<5x20xf32, #tpu.memory_space<vmem>>, vector<5x20xf32>
    %c0_64 = arith.constant 0 : index
    %c0_65 = arith.constant 0 : index
    %66 = vector.load %arg28[%c0_64, %c0_65] : memref<20x4xf32, #tpu.memory_space<vmem>>, vector<20x4xf32>
    %cst_66 = arith.constant dense<0.000000e+00> : vector<5x4xf32>
    %67 = tpu.matmul %65, %66, %cst_66 {dimension_numbers = #tpu.dot_dimension_numbers<[1], [0], [0], [1], [0, 0, 1, 1], [], []>} : vector<5x20xf32>, vector<20x4xf32>, vector<5x4xf32> -> vector<5x4xf32>
    %c0_67 = arith.constant 0 : index
    %c0_68 = arith.constant 0 : index
    %68 = vector.load %arg19[%c0_67, %c0_68] : memref<5x4xf32, #tpu.memory_space<vmem>>, vector<5x4xf32>
    %69 = arith.addf %67, %68 : vector<5x4xf32>
    %cst_69 = arith.constant dense<0xFF800000> : vector<5xf32>
    %70 = vector.multi_reduction <maximumf>, %69, %cst_69 [1] : vector<5x4xf32> to vector<5xf32>
    %71 = vector.shape_cast %70 : vector<5xf32> to vector<5x1xf32>
    %72 = vector.broadcast %71 : vector<5x1xf32> to vector<5x4xf32>
    %73 = arith.subf %69, %72 : vector<5x4xf32>
    %74 = math.exp %73 : vector<5x4xf32>
    %cst_70 = arith.constant dense<0.000000e+00> : vector<5xf32>
    %75 = vector.multi_reduction <add>, %74, %cst_70 [1] : vector<5x4xf32> to vector<5xf32>
    %76 = vector.shape_cast %75 : vector<5xf32> to vector<5x1xf32>
    %77 = vector.broadcast %76 : vector<5x1xf32> to vector<5x4xf32>
    %78 = arith.divf %74, %77 : vector<5x4xf32>
    %cst_71 = arith.constant 1.000000e+00 : f32
    %79 = vector.broadcast %cst_71 : f32 to vector<5x4xf32>
    %80 = arith.mulf %78, %79 : vector<5x4xf32>
    %c0_72 = arith.constant 0 : index
    %c0_73 = arith.constant 0 : index
    %81 = vector.load %arg6[%c0_72, %c0_73] : memref<20x5xf32, #tpu.memory_space<vmem>>, vector<20x5xf32>
    %cst_74 = arith.constant dense<0.000000e+00> : vector<20x4xf32>
    %82 = tpu.matmul %81, %80, %cst_74 {dimension_numbers = #tpu.dot_dimension_numbers<[1], [0], [0], [1], [0, 0, 1, 1], [], []>} : vector<20x5xf32>, vector<5x4xf32>, vector<20x4xf32> -> vector<20x4xf32>
    %c0_75 = arith.constant 0 : index
    %c0_76 = arith.constant 0 : index
    %83 = vector.load %arg8[%c0_75, %c0_76] : memref<20x4xf32, #tpu.memory_space<vmem>>, vector<20x4xf32>
    %84 = arith.mulf %82, %83 : vector<20x4xf32>
    %cst_77 = arith.constant dense<0.000000e+00> : vector<20xf32>
    %85 = vector.multi_reduction <add>, %84, %cst_77 [1] : vector<20x4xf32> to vector<20xf32>
    %86 = vector.shape_cast %85 : vector<20xf32> to vector<20x1xf32>
    %87 = vector.broadcast %86 : vector<20x1xf32> to vector<20x5xf32>
    %88 = arith.mulf %87, %2 : vector<20x5xf32>
    %89 = vector.broadcast %86 : vector<20x1xf32> to vector<20x5xf32>
    %90 = arith.mulf %89, %3 : vector<20x5xf32>
    %91 = tpu.iota {dimensions = array<i32: 0>} : vector<5x32xi32>
    %c0_i32 = arith.constant 0 : i32
    %92 = vector.broadcast %c0_i32 : i32 to vector<5x32xi32>
    %93 = arith.cmpi eq, %91, %92 : vector<5x32xi32>
    %cst_78 = arith.constant 1.000000e+00 : f32
    %cst_79 = arith.constant 0.000000e+00 : f32
    %94 = vector.broadcast %cst_78 : f32 to vector<5x32xf32>
    %95 = vector.broadcast %cst_79 : f32 to vector<5x32xf32>
    %96 = arith.select %93, %94, %95 : vector<5x32xi1>, vector<5x32xf32>
    %cst_80 = arith.constant 0.000000e+00 : f32
    %97 = vector.broadcast %cst_80 : f32 to vector<5x32xf32>
    %c0_81 = arith.constant 0 : index
    %c0_82 = arith.constant 0 : index
    %98 = vector.load %arg20[%c0_81, %c0_82] : memref<32x32xf32, #tpu.memory_space<vmem>>, vector<32x32xf32>
    %cst_83 = arith.constant dense<0.000000e+00> : vector<5x32xf32>
    %99 = tpu.matmul %96, %98, %cst_83 {dimension_numbers = #tpu.dot_dimension_numbers<[1], [0], [0], [1], [0, 0, 1, 1], [], []>} : vector<5x32xf32>, vector<32x32xf32>, vector<5x32xf32> -> vector<5x32xf32>
    %c0_84 = arith.constant 0 : index
    %c0_85 = arith.constant 0 : index
    %100 = vector.load %arg21[%c0_84, %c0_85] : memref<1x32xf32, #tpu.memory_space<vmem>>, vector<1x32xf32>
    %101 = vector.broadcast %100 : vector<1x32xf32> to vector<5x32xf32>
    %102 = arith.addf %99, %101 : vector<5x32xf32>
    %cst_86 = arith.constant 0.000000e+00 : f32
    %103 = vector.broadcast %cst_86 : f32 to vector<5x32xf32>
    %104 = arith.maximumf %102, %103 : vector<5x32xf32>
    %cst_87 = arith.constant dense<0.000000e+00> : vector<20x32xf32>
    %105 = tpu.matmul %88, %104, %cst_87 {dimension_numbers = #tpu.dot_dimension_numbers<[1], [0], [0], [1], [0, 0, 1, 1], [], []>} : vector<20x5xf32>, vector<5x32xf32>, vector<20x32xf32> -> vector<20x32xf32>
    %cst_88 = arith.constant dense<0.000000e+00> : vector<20x32xf32>
    %106 = tpu.matmul %90, %104, %cst_88 {dimension_numbers = #tpu.dot_dimension_numbers<[1], [0], [0], [1], [0, 0, 1, 1], [], []>} : vector<20x5xf32>, vector<5x32xf32>, vector<20x32xf32> -> vector<20x32xf32>
    %c0_89 = arith.constant 0 : index
    %c0_90 = arith.constant 0 : index
    %107 = vector.load %arg22[%c0_89, %c0_90] : memref<32x32xf32, #tpu.memory_space<vmem>>, vector<32x32xf32>
    %cst_91 = arith.constant dense<0.000000e+00> : vector<20x32xf32>
    %108 = tpu.matmul %105, %107, %cst_91 {dimension_numbers = #tpu.dot_dimension_numbers<[1], [0], [0], [1], [0, 0, 1, 1], [], []>} : vector<20x32xf32>, vector<32x32xf32>, vector<20x32xf32> -> vector<20x32xf32>
    %c0_92 = arith.constant 0 : index
    %c0_93 = arith.constant 0 : index
    %109 = vector.load %arg23[%c0_92, %c0_93] : memref<32x32xf32, #tpu.memory_space<vmem>>, vector<32x32xf32>
    %cst_94 = arith.constant dense<0.000000e+00> : vector<20x32xf32>
    %110 = tpu.matmul %106, %109, %cst_94 {dimension_numbers = #tpu.dot_dimension_numbers<[1], [0], [0], [1], [0, 0, 1, 1], [], []>} : vector<20x32xf32>, vector<32x32xf32>, vector<20x32xf32> -> vector<20x32xf32>
    %111 = arith.addf %108, %110 : vector<20x32xf32>
    %c0_95 = arith.constant 0 : index
    %c0_96 = arith.constant 0 : index
    %112 = vector.load %arg24[%c0_95, %c0_96] : memref<1x32xf32, #tpu.memory_space<vmem>>, vector<1x32xf32>
    %113 = vector.broadcast %112 : vector<1x32xf32> to vector<20x32xf32>
    %114 = arith.addf %111, %113 : vector<20x32xf32>
    %cst_97 = arith.constant 0.000000e+00 : f32
    %115 = vector.broadcast %cst_97 : f32 to vector<20x32xf32>
    %116 = arith.maximumf %114, %115 : vector<20x32xf32>
    %c0_98 = arith.constant 0 : index
    %c0_99 = arith.constant 0 : index
    %117 = vector.load %arg25[%c0_98, %c0_99] : memref<32x32xf32, #tpu.memory_space<vmem>>, vector<32x32xf32>
    %cst_100 = arith.constant dense<0.000000e+00> : vector<20x32xf32>
    %118 = tpu.matmul %116, %117, %cst_100 {dimension_numbers = #tpu.dot_dimension_numbers<[1], [0], [0], [1], [0, 0, 1, 1], [], []>} : vector<20x32xf32>, vector<32x32xf32>, vector<20x32xf32> -> vector<20x32xf32>
    %c0_101 = arith.constant 0 : index
    %c0_102 = arith.constant 0 : index
    %119 = vector.load %arg26[%c0_101, %c0_102] : memref<1x32xf32, #tpu.memory_space<vmem>>, vector<1x32xf32>
    %120 = vector.broadcast %119 : vector<1x32xf32> to vector<20x32xf32>
    %121 = arith.addf %118, %120 : vector<20x32xf32>
    %cst_103 = arith.constant 0.000000e+00 : f32
    %122 = vector.broadcast %cst_103 : f32 to vector<20x32xf32>
    %123 = arith.maximumf %121, %122 : vector<20x32xf32>
    %124 = vector.broadcast %86 : vector<20x1xf32> to vector<20x32xf32>
    %125 = arith.mulf %124, %123 : vector<20x32xf32>
    %cst_104 = arith.constant dense<0.000000e+00> : vector<5x32xf32>
    %126 = tpu.matmul %5, %125, %cst_104 {dimension_numbers = #tpu.dot_dimension_numbers<[1], [0], [0], [1], [0, 0, 1, 1], [], []>} : vector<5x20xf32>, vector<20x32xf32>, vector<5x32xf32> -> vector<5x32xf32>
    %127 = arith.addf %97, %126 : vector<5x32xf32>
    %c0_105 = arith.constant 0 : index
    %c0_106 = arith.constant 0 : index
    %128 = vector.load %arg20[%c0_105, %c0_106] : memref<32x32xf32, #tpu.memory_space<vmem>>, vector<32x32xf32>
    %cst_107 = arith.constant dense<0.000000e+00> : vector<5x32xf32>
    %129 = tpu.matmul %126, %128, %cst_107 {dimension_numbers = #tpu.dot_dimension_numbers<[1], [0], [0], [1], [0, 0, 1, 1], [], []>} : vector<5x32xf32>, vector<32x32xf32>, vector<5x32xf32> -> vector<5x32xf32>
    %c0_108 = arith.constant 0 : index
    %c0_109 = arith.constant 0 : index
    %130 = vector.load %arg21[%c0_108, %c0_109] : memref<1x32xf32, #tpu.memory_space<vmem>>, vector<1x32xf32>
    %131 = vector.broadcast %130 : vector<1x32xf32> to vector<5x32xf32>
    %132 = arith.addf %129, %131 : vector<5x32xf32>
    %cst_110 = arith.constant 0.000000e+00 : f32
    %133 = vector.broadcast %cst_110 : f32 to vector<5x32xf32>
    %134 = arith.maximumf %132, %133 : vector<5x32xf32>
    %cst_111 = arith.constant dense<0.000000e+00> : vector<20x32xf32>
    %135 = tpu.matmul %88, %134, %cst_111 {dimension_numbers = #tpu.dot_dimension_numbers<[1], [0], [0], [1], [0, 0, 1, 1], [], []>} : vector<20x5xf32>, vector<5x32xf32>, vector<20x32xf32> -> vector<20x32xf32>
    %cst_112 = arith.constant dense<0.000000e+00> : vector<20x32xf32>
    %136 = tpu.matmul %90, %134, %cst_112 {dimension_numbers = #tpu.dot_dimension_numbers<[1], [0], [0], [1], [0, 0, 1, 1], [], []>} : vector<20x5xf32>, vector<5x32xf32>, vector<20x32xf32> -> vector<20x32xf32>
    %c0_113 = arith.constant 0 : index
    %c0_114 = arith.constant 0 : index
    %137 = vector.load %arg22[%c0_113, %c0_114] : memref<32x32xf32, #tpu.memory_space<vmem>>, vector<32x32xf32>
    %cst_115 = arith.constant dense<0.000000e+00> : vector<20x32xf32>
    %138 = tpu.matmul %135, %137, %cst_115 {dimension_numbers = #tpu.dot_dimension_numbers<[1], [0], [0], [1], [0, 0, 1, 1], [], []>} : vector<20x32xf32>, vector<32x32xf32>, vector<20x32xf32> -> vector<20x32xf32>
    %c0_116 = arith.constant 0 : index
    %c0_117 = arith.constant 0 : index
    %139 = vector.load %arg23[%c0_116, %c0_117] : memref<32x32xf32, #tpu.memory_space<vmem>>, vector<32x32xf32>
    %cst_118 = arith.constant dense<0.000000e+00> : vector<20x32xf32>
    %140 = tpu.matmul %136, %139, %cst_118 {dimension_numbers = #tpu.dot_dimension_numbers<[1], [0], [0], [1], [0, 0, 1, 1], [], []>} : vector<20x32xf32>, vector<32x32xf32>, vector<20x32xf32> -> vector<20x32xf32>
    %141 = arith.addf %138, %140 : vector<20x32xf32>
    %c0_119 = arith.constant 0 : index
    %c0_120 = arith.constant 0 : index
    %142 = vector.load %arg24[%c0_119, %c0_120] : memref<1x32xf32, #tpu.memory_space<vmem>>, vector<1x32xf32>
    %143 = vector.broadcast %142 : vector<1x32xf32> to vector<20x32xf32>
    %144 = arith.addf %141, %143 : vector<20x32xf32>
    %cst_121 = arith.constant 0.000000e+00 : f32
    %145 = vector.broadcast %cst_121 : f32 to vector<20x32xf32>
    %146 = arith.maximumf %144, %145 : vector<20x32xf32>
    %c0_122 = arith.constant 0 : index
    %c0_123 = arith.constant 0 : index
    %147 = vector.load %arg25[%c0_122, %c0_123] : memref<32x32xf32, #tpu.memory_space<vmem>>, vector<32x32xf32>
    %cst_124 = arith.constant dense<0.000000e+00> : vector<20x32xf32>
    %148 = tpu.matmul %146, %147, %cst_124 {dimension_numbers = #tpu.dot_dimension_numbers<[1], [0], [0], [1], [0, 0, 1, 1], [], []>} : vector<20x32xf32>, vector<32x32xf32>, vector<20x32xf32> -> vector<20x32xf32>
    %c0_125 = arith.constant 0 : index
    %c0_126 = arith.constant 0 : index
    %149 = vector.load %arg26[%c0_125, %c0_126] : memref<1x32xf32, #tpu.memory_space<vmem>>, vector<1x32xf32>
    %150 = vector.broadcast %149 : vector<1x32xf32> to vector<20x32xf32>
    %151 = arith.addf %148, %150 : vector<20x32xf32>
    %cst_127 = arith.constant 0.000000e+00 : f32
    %152 = vector.broadcast %cst_127 : f32 to vector<20x32xf32>
    %153 = arith.maximumf %151, %152 : vector<20x32xf32>
    %154 = vector.broadcast %86 : vector<20x1xf32> to vector<20x32xf32>
    %155 = arith.mulf %154, %153 : vector<20x32xf32>
    %cst_128 = arith.constant dense<0.000000e+00> : vector<5x32xf32>
    %156 = tpu.matmul %5, %155, %cst_128 {dimension_numbers = #tpu.dot_dimension_numbers<[1], [0], [0], [1], [0, 0, 1, 1], [], []>} : vector<5x20xf32>, vector<20x32xf32>, vector<5x32xf32> -> vector<5x32xf32>
    %157 = arith.addf %127, %156 : vector<5x32xf32>
    %c0_129 = arith.constant 0 : index
    %c0_130 = arith.constant 0 : index
    %158 = vector.load %arg20[%c0_129, %c0_130] : memref<32x32xf32, #tpu.memory_space<vmem>>, vector<32x32xf32>
    %cst_131 = arith.constant dense<0.000000e+00> : vector<5x32xf32>
    %159 = tpu.matmul %156, %158, %cst_131 {dimension_numbers = #tpu.dot_dimension_numbers<[1], [0], [0], [1], [0, 0, 1, 1], [], []>} : vector<5x32xf32>, vector<32x32xf32>, vector<5x32xf32> -> vector<5x32xf32>
    %c0_132 = arith.constant 0 : index
    %c0_133 = arith.constant 0 : index
    %160 = vector.load %arg21[%c0_132, %c0_133] : memref<1x32xf32, #tpu.memory_space<vmem>>, vector<1x32xf32>
    %161 = vector.broadcast %160 : vector<1x32xf32> to vector<5x32xf32>
    %162 = arith.addf %159, %161 : vector<5x32xf32>
    %cst_134 = arith.constant 0.000000e+00 : f32
    %163 = vector.broadcast %cst_134 : f32 to vector<5x32xf32>
    %164 = arith.maximumf %162, %163 : vector<5x32xf32>
    %cst_135 = arith.constant dense<0.000000e+00> : vector<20x32xf32>
    %165 = tpu.matmul %88, %164, %cst_135 {dimension_numbers = #tpu.dot_dimension_numbers<[1], [0], [0], [1], [0, 0, 1, 1], [], []>} : vector<20x5xf32>, vector<5x32xf32>, vector<20x32xf32> -> vector<20x32xf32>
    %cst_136 = arith.constant dense<0.000000e+00> : vector<20x32xf32>
    %166 = tpu.matmul %90, %164, %cst_136 {dimension_numbers = #tpu.dot_dimension_numbers<[1], [0], [0], [1], [0, 0, 1, 1], [], []>} : vector<20x5xf32>, vector<5x32xf32>, vector<20x32xf32> -> vector<20x32xf32>
    %c0_137 = arith.constant 0 : index
    %c0_138 = arith.constant 0 : index
    %167 = vector.load %arg22[%c0_137, %c0_138] : memref<32x32xf32, #tpu.memory_space<vmem>>, vector<32x32xf32>
    %cst_139 = arith.constant dense<0.000000e+00> : vector<20x32xf32>
    %168 = tpu.matmul %165, %167, %cst_139 {dimension_numbers = #tpu.dot_dimension_numbers<[1], [0], [0], [1], [0, 0, 1, 1], [], []>} : vector<20x32xf32>, vector<32x32xf32>, vector<20x32xf32> -> vector<20x32xf32>
    %c0_140 = arith.constant 0 : index
    %c0_141 = arith.constant 0 : index
    %169 = vector.load %arg23[%c0_140, %c0_141] : memref<32x32xf32, #tpu.memory_space<vmem>>, vector<32x32xf32>
    %cst_142 = arith.constant dense<0.000000e+00> : vector<20x32xf32>
    %170 = tpu.matmul %166, %169, %cst_142 {dimension_numbers = #tpu.dot_dimension_numbers<[1], [0], [0], [1], [0, 0, 1, 1], [], []>} : vector<20x32xf32>, vector<32x32xf32>, vector<20x32xf32> -> vector<20x32xf32>
    %171 = arith.addf %168, %170 : vector<20x32xf32>
    %c0_143 = arith.constant 0 : index
    %c0_144 = arith.constant 0 : index
    %172 = vector.load %arg24[%c0_143, %c0_144] : memref<1x32xf32, #tpu.memory_space<vmem>>, vector<1x32xf32>
    %173 = vector.broadcast %172 : vector<1x32xf32> to vector<20x32xf32>
    %174 = arith.addf %171, %173 : vector<20x32xf32>
    %cst_145 = arith.constant 0.000000e+00 : f32
    %175 = vector.broadcast %cst_145 : f32 to vector<20x32xf32>
    %176 = arith.maximumf %174, %175 : vector<20x32xf32>
    %c0_146 = arith.constant 0 : index
    %c0_147 = arith.constant 0 : index
    %177 = vector.load %arg25[%c0_146, %c0_147] : memref<32x32xf32, #tpu.memory_space<vmem>>, vector<32x32xf32>
    %cst_148 = arith.constant dense<0.000000e+00> : vector<20x32xf32>
    %178 = tpu.matmul %176, %177, %cst_148 {dimension_numbers = #tpu.dot_dimension_numbers<[1], [0], [0], [1], [0, 0, 1, 1], [], []>} : vector<20x32xf32>, vector<32x32xf32>, vector<20x32xf32> -> vector<20x32xf32>
    %c0_149 = arith.constant 0 : index
    %c0_150 = arith.constant 0 : index
    %179 = vector.load %arg26[%c0_149, %c0_150] : memref<1x32xf32, #tpu.memory_space<vmem>>, vector<1x32xf32>
    %180 = vector.broadcast %179 : vector<1x32xf32> to vector<20x32xf32>
    %181 = arith.addf %178, %180 : vector<20x32xf32>
    %cst_151 = arith.constant 0.000000e+00 : f32
    %182 = vector.broadcast %cst_151 : f32 to vector<20x32xf32>
    %183 = arith.maximumf %181, %182 : vector<20x32xf32>
    %184 = vector.broadcast %86 : vector<20x1xf32> to vector<20x32xf32>
    %185 = arith.mulf %184, %183 : vector<20x32xf32>
    %cst_152 = arith.constant dense<0.000000e+00> : vector<5x32xf32>
    %186 = tpu.matmul %5, %185, %cst_152 {dimension_numbers = #tpu.dot_dimension_numbers<[1], [0], [0], [1], [0, 0, 1, 1], [], []>} : vector<5x20xf32>, vector<20x32xf32>, vector<5x32xf32> -> vector<5x32xf32>
    %187 = arith.addf %157, %186 : vector<5x32xf32>
    %c0_153 = arith.constant 0 : index
    %c0_154 = arith.constant 0 : index
    %188 = vector.load %arg20[%c0_153, %c0_154] : memref<32x32xf32, #tpu.memory_space<vmem>>, vector<32x32xf32>
    %cst_155 = arith.constant dense<0.000000e+00> : vector<5x32xf32>
    %189 = tpu.matmul %186, %188, %cst_155 {dimension_numbers = #tpu.dot_dimension_numbers<[1], [0], [0], [1], [0, 0, 1, 1], [], []>} : vector<5x32xf32>, vector<32x32xf32>, vector<5x32xf32> -> vector<5x32xf32>
    %c0_156 = arith.constant 0 : index
    %c0_157 = arith.constant 0 : index
    %190 = vector.load %arg21[%c0_156, %c0_157] : memref<1x32xf32, #tpu.memory_space<vmem>>, vector<1x32xf32>
    %191 = vector.broadcast %190 : vector<1x32xf32> to vector<5x32xf32>
    %192 = arith.addf %189, %191 : vector<5x32xf32>
    %cst_158 = arith.constant 0.000000e+00 : f32
    %193 = vector.broadcast %cst_158 : f32 to vector<5x32xf32>
    %194 = arith.maximumf %192, %193 : vector<5x32xf32>
    %cst_159 = arith.constant dense<0.000000e+00> : vector<20x32xf32>
    %195 = tpu.matmul %88, %194, %cst_159 {dimension_numbers = #tpu.dot_dimension_numbers<[1], [0], [0], [1], [0, 0, 1, 1], [], []>} : vector<20x5xf32>, vector<5x32xf32>, vector<20x32xf32> -> vector<20x32xf32>
    %cst_160 = arith.constant dense<0.000000e+00> : vector<20x32xf32>
    %196 = tpu.matmul %90, %194, %cst_160 {dimension_numbers = #tpu.dot_dimension_numbers<[1], [0], [0], [1], [0, 0, 1, 1], [], []>} : vector<20x5xf32>, vector<5x32xf32>, vector<20x32xf32> -> vector<20x32xf32>
    %c0_161 = arith.constant 0 : index
    %c0_162 = arith.constant 0 : index
    %197 = vector.load %arg22[%c0_161, %c0_162] : memref<32x32xf32, #tpu.memory_space<vmem>>, vector<32x32xf32>
    %cst_163 = arith.constant dense<0.000000e+00> : vector<20x32xf32>
    %198 = tpu.matmul %195, %197, %cst_163 {dimension_numbers = #tpu.dot_dimension_numbers<[1], [0], [0], [1], [0, 0, 1, 1], [], []>} : vector<20x32xf32>, vector<32x32xf32>, vector<20x32xf32> -> vector<20x32xf32>
    %c0_164 = arith.constant 0 : index
    %c0_165 = arith.constant 0 : index
    %199 = vector.load %arg23[%c0_164, %c0_165] : memref<32x32xf32, #tpu.memory_space<vmem>>, vector<32x32xf32>
    %cst_166 = arith.constant dense<0.000000e+00> : vector<20x32xf32>
    %200 = tpu.matmul %196, %199, %cst_166 {dimension_numbers = #tpu.dot_dimension_numbers<[1], [0], [0], [1], [0, 0, 1, 1], [], []>} : vector<20x32xf32>, vector<32x32xf32>, vector<20x32xf32> -> vector<20x32xf32>
    %201 = arith.addf %198, %200 : vector<20x32xf32>
    %c0_167 = arith.constant 0 : index
    %c0_168 = arith.constant 0 : index
    %202 = vector.load %arg24[%c0_167, %c0_168] : memref<1x32xf32, #tpu.memory_space<vmem>>, vector<1x32xf32>
    %203 = vector.broadcast %202 : vector<1x32xf32> to vector<20x32xf32>
    %204 = arith.addf %201, %203 : vector<20x32xf32>
    %cst_169 = arith.constant 0.000000e+00 : f32
    %205 = vector.broadcast %cst_169 : f32 to vector<20x32xf32>
    %206 = arith.maximumf %204, %205 : vector<20x32xf32>
    %c0_170 = arith.constant 0 : index
    %c0_171 = arith.constant 0 : index
    %207 = vector.load %arg25[%c0_170, %c0_171] : memref<32x32xf32, #tpu.memory_space<vmem>>, vector<32x32xf32>
    %cst_172 = arith.constant dense<0.000000e+00> : vector<20x32xf32>
    %208 = tpu.matmul %206, %207, %cst_172 {dimension_numbers = #tpu.dot_dimension_numbers<[1], [0], [0], [1], [0, 0, 1, 1], [], []>} : vector<20x32xf32>, vector<32x32xf32>, vector<20x32xf32> -> vector<20x32xf32>
    %c0_173 = arith.constant 0 : index
    %c0_174 = arith.constant 0 : index
    %209 = vector.load %arg26[%c0_173, %c0_174] : memref<1x32xf32, #tpu.memory_space<vmem>>, vector<1x32xf32>
    %210 = vector.broadcast %209 : vector<1x32xf32> to vector<20x32xf32>
    %211 = arith.addf %208, %210 : vector<20x32xf32>
    %cst_175 = arith.constant 0.000000e+00 : f32
    %212 = vector.broadcast %cst_175 : f32 to vector<20x32xf32>
    %213 = arith.maximumf %211, %212 : vector<20x32xf32>
    %214 = vector.broadcast %86 : vector<20x1xf32> to vector<20x32xf32>
    %215 = arith.mulf %214, %213 : vector<20x32xf32>
    %cst_176 = arith.constant dense<0.000000e+00> : vector<5x32xf32>
    %216 = tpu.matmul %5, %215, %cst_176 {dimension_numbers = #tpu.dot_dimension_numbers<[1], [0], [0], [1], [0, 0, 1, 1], [], []>} : vector<5x20xf32>, vector<20x32xf32>, vector<5x32xf32> -> vector<5x32xf32>
    %217 = arith.addf %187, %216 : vector<5x32xf32>
    %c0_177 = arith.constant 0 : index
    %c0_178 = arith.constant 0 : index
    %218 = vector.load %arg20[%c0_177, %c0_178] : memref<32x32xf32, #tpu.memory_space<vmem>>, vector<32x32xf32>
    %cst_179 = arith.constant dense<0.000000e+00> : vector<5x32xf32>
    %219 = tpu.matmul %216, %218, %cst_179 {dimension_numbers = #tpu.dot_dimension_numbers<[1], [0], [0], [1], [0, 0, 1, 1], [], []>} : vector<5x32xf32>, vector<32x32xf32>, vector<5x32xf32> -> vector<5x32xf32>
    %c0_180 = arith.constant 0 : index
    %c0_181 = arith.constant 0 : index
    %220 = vector.load %arg21[%c0_180, %c0_181] : memref<1x32xf32, #tpu.memory_space<vmem>>, vector<1x32xf32>
    %221 = vector.broadcast %220 : vector<1x32xf32> to vector<5x32xf32>
    %222 = arith.addf %219, %221 : vector<5x32xf32>
    %cst_182 = arith.constant 0.000000e+00 : f32
    %223 = vector.broadcast %cst_182 : f32 to vector<5x32xf32>
    %224 = arith.maximumf %222, %223 : vector<5x32xf32>
    %cst_183 = arith.constant dense<0.000000e+00> : vector<20x32xf32>
    %225 = tpu.matmul %88, %224, %cst_183 {dimension_numbers = #tpu.dot_dimension_numbers<[1], [0], [0], [1], [0, 0, 1, 1], [], []>} : vector<20x5xf32>, vector<5x32xf32>, vector<20x32xf32> -> vector<20x32xf32>
    %cst_184 = arith.constant dense<0.000000e+00> : vector<20x32xf32>
    %226 = tpu.matmul %90, %224, %cst_184 {dimension_numbers = #tpu.dot_dimension_numbers<[1], [0], [0], [1], [0, 0, 1, 1], [], []>} : vector<20x5xf32>, vector<5x32xf32>, vector<20x32xf32> -> vector<20x32xf32>
    %c0_185 = arith.constant 0 : index
    %c0_186 = arith.constant 0 : index
    %227 = vector.load %arg22[%c0_185, %c0_186] : memref<32x32xf32, #tpu.memory_space<vmem>>, vector<32x32xf32>
    %cst_187 = arith.constant dense<0.000000e+00> : vector<20x32xf32>
    %228 = tpu.matmul %225, %227, %cst_187 {dimension_numbers = #tpu.dot_dimension_numbers<[1], [0], [0], [1], [0, 0, 1, 1], [], []>} : vector<20x32xf32>, vector<32x32xf32>, vector<20x32xf32> -> vector<20x32xf32>
    %c0_188 = arith.constant 0 : index
    %c0_189 = arith.constant 0 : index
    %229 = vector.load %arg23[%c0_188, %c0_189] : memref<32x32xf32, #tpu.memory_space<vmem>>, vector<32x32xf32>
    %cst_190 = arith.constant dense<0.000000e+00> : vector<20x32xf32>
    %230 = tpu.matmul %226, %229, %cst_190 {dimension_numbers = #tpu.dot_dimension_numbers<[1], [0], [0], [1], [0, 0, 1, 1], [], []>} : vector<20x32xf32>, vector<32x32xf32>, vector<20x32xf32> -> vector<20x32xf32>
    %231 = arith.addf %228, %230 : vector<20x32xf32>
    %c0_191 = arith.constant 0 : index
    %c0_192 = arith.constant 0 : index
    %232 = vector.load %arg24[%c0_191, %c0_192] : memref<1x32xf32, #tpu.memory_space<vmem>>, vector<1x32xf32>
    %233 = vector.broadcast %232 : vector<1x32xf32> to vector<20x32xf32>
    %234 = arith.addf %231, %233 : vector<20x32xf32>
    %cst_193 = arith.constant 0.000000e+00 : f32
    %235 = vector.broadcast %cst_193 : f32 to vector<20x32xf32>
    %236 = arith.maximumf %234, %235 : vector<20x32xf32>
    %c0_194 = arith.constant 0 : index
    %c0_195 = arith.constant 0 : index
    %237 = vector.load %arg25[%c0_194, %c0_195] : memref<32x32xf32, #tpu.memory_space<vmem>>, vector<32x32xf32>
    %cst_196 = arith.constant dense<0.000000e+00> : vector<20x32xf32>
    %238 = tpu.matmul %236, %237, %cst_196 {dimension_numbers = #tpu.dot_dimension_numbers<[1], [0], [0], [1], [0, 0, 1, 1], [], []>} : vector<20x32xf32>, vector<32x32xf32>, vector<20x32xf32> -> vector<20x32xf32>
    %c0_197 = arith.constant 0 : index
    %c0_198 = arith.constant 0 : index
    %239 = vector.load %arg26[%c0_197, %c0_198] : memref<1x32xf32, #tpu.memory_space<vmem>>, vector<1x32xf32>
    %240 = vector.broadcast %239 : vector<1x32xf32> to vector<20x32xf32>
    %241 = arith.addf %238, %240 : vector<20x32xf32>
    %cst_199 = arith.constant 0.000000e+00 : f32
    %242 = vector.broadcast %cst_199 : f32 to vector<20x32xf32>
    %243 = arith.maximumf %241, %242 : vector<20x32xf32>
    %244 = vector.broadcast %86 : vector<20x1xf32> to vector<20x32xf32>
    %245 = arith.mulf %244, %243 : vector<20x32xf32>
    %cst_200 = arith.constant dense<0.000000e+00> : vector<5x32xf32>
    %246 = tpu.matmul %5, %245, %cst_200 {dimension_numbers = #tpu.dot_dimension_numbers<[1], [0], [0], [1], [0, 0, 1, 1], [], []>} : vector<5x20xf32>, vector<20x32xf32>, vector<5x32xf32> -> vector<5x32xf32>
    %247 = arith.addf %217, %246 : vector<5x32xf32>
    %cst_201 = arith.constant 0.000000e+00 : f32
    %248 = vector.broadcast %cst_201 : f32 to vector<5x32xf32>
    %249 = arith.select %93, %248, %247 : vector<5x32xi1>, vector<5x32xf32>
    %c0_202 = arith.constant 0 : index
    %c0_203 = arith.constant 0 : index
    %c0_204 = arith.constant 0 : index
    %250 = vector.load %arg27[%c0_202, %c0_203, %c0_204] : memref<1x5x32xf32, #tpu.memory_space<vmem>>, vector<1x5x32xf32>
    %251 = vector.shape_cast %250 : vector<1x5x32xf32> to vector<5x32xf32>
    %252 = vector.shape_cast %249 : vector<5x32xf32> to vector<1x5x32xf32>
    tpu.vector_store %arg27[%c0_202, %c0_203, %c0_204], %252 {strides = array<i32>} : memref<1x5x32xf32, #tpu.memory_space<vmem>>, vector<1x5x32xf32>,
    return
  }
  func.func @transform_0(%arg0: i32) -> (i32, i32, i32) {
    %c0_i32 = arith.constant 0 : i32
    %c0_i32_0 = arith.constant 0 : i32
    %c0_i32_1 = arith.constant 0 : i32
    return %arg0, %c0_i32, %c0_i32_0 : i32, i32, i32
  }
  func.func @transform_1(%arg0: i32) -> (i32, i32) {
    %c0_i32 = arith.constant 0 : i32
    %c0_i32_0 = arith.constant 0 : i32
    %c0_i32_1 = arith.constant 0 : i32
    return %c0_i32, %c0_i32_0 : i32, i32
  }
  func.func @transform_2(%arg0: i32) -> (i32, i32) {
    %c0_i32 = arith.constant 0 : i32
    %c0_i32_0 = arith.constant 0 : i32
    %c0_i32_1 = arith.constant 0 : i32
    return %c0_i32, %c0_i32_0 : i32, i32
  }
  func.func @transform_3(%arg0: i32) -> (i32, i32) {
    %c0_i32 = arith.constant 0 : i32
    %c0_i32_0 = arith.constant 0 : i32
    %c0_i32_1 = arith.constant 0 : i32
    return %c0_i32, %c0_i32_0 : i32, i32
  }
  func.func @transform_4(%arg0: i32) -> (i32, i32) {
    %c0_i32 = arith.constant 0 : i32
    %c0_i32_0 = arith.constant 0 : i32
    %c0_i32_1 = arith.constant 0 : i32
    return %c0_i32, %c0_i32_0 : i32, i32
  }
  func.func @transform_5(%arg0: i32) -> (i32, i32) {
    %c0_i32 = arith.constant 0 : i32
    %c0_i32_0 = arith.constant 0 : i32
    %c0_i32_1 = arith.constant 0 : i32
    return %c0_i32, %c0_i32_0 : i32, i32
  }
  func.func @transform_6(%arg0: i32) -> (i32, i32) {
    %c0_i32 = arith.constant 0 : i32
    %c0_i32_0 = arith.constant 0 : i32
    %c0_i32_1 = arith.constant 0 : i32
    return %c0_i32, %c0_i32_0 : i32, i32
  }
  func.func @transform_7(%arg0: i32) -> (i32, i32) {
    %c0_i32 = arith.constant 0 : i32
    %c0_i32_0 = arith.constant 0 : i32
    %c0_i32_1 = arith.constant 0 : i32
    return %c0_i32, %c0_i32_0 : i32, i32
  }
  func.func @transform_8(%arg0: i32) -> (i32, i32) {
    %c0_i32 = arith.constant 0 : i32
    %c0_i32_0 = arith.constant 0 : i32
    %c0_i32_1 = arith.constant 0 : i32
    return %c0_i32, %c0_i32_0 : i32, i32
  }
  func.func @transform_9(%arg0: i32) -> (i32, i32) {
    %c0_i32 = arith.constant 0 : i32
    %c0_i32_0 = arith.constant 0 : i32
    %c0_i32_1 = arith.constant 0 : i32
    return %c0_i32, %c0_i32_0 : i32, i32
  }
  func.func @transform_10(%arg0: i32) -> (i32, i32) {
    %c0_i32 = arith.constant 0 : i32
    %c0_i32_0 = arith.constant 0 : i32
    %c0_i32_1 = arith.constant 0 : i32
    return %c0_i32, %c0_i32_0 : i32, i32
  }
  func.func @transform_11(%arg0: i32) -> (i32, i32) {
    %c0_i32 = arith.constant 0 : i32
    %c0_i32_0 = arith.constant 0 : i32
    %c0_i32_1 = arith.constant 0 : i32
    return %c0_i32, %c0_i32_0 : i32, i32
  }
  func.func @transform_12(%arg0: i32) -> (i32, i32) {
    %c0_i32 = arith.constant 0 : i32
    %c0_i32_0 = arith.constant 0 : i32
    %c0_i32_1 = arith.constant 0 : i32
    return %c0_i32, %c0_i32_0 : i32, i32
  }
  func.func @transform_13(%arg0: i32) -> (i32, i32) {
    %c0_i32 = arith.constant 0 : i32
    %c0_i32_0 = arith.constant 0 : i32
    %c0_i32_1 = arith.constant 0 : i32
    return %c0_i32, %c0_i32_0 : i32, i32
  }
  func.func @transform_14(%arg0: i32) -> (i32, i32) {
    %c0_i32 = arith.constant 0 : i32
    %c0_i32_0 = arith.constant 0 : i32
    %c0_i32_1 = arith.constant 0 : i32
    return %c0_i32, %c0_i32_0 : i32, i32
  }
  func.func @transform_15(%arg0: i32) -> (i32, i32) {
    %c0_i32 = arith.constant 0 : i32
    %c0_i32_0 = arith.constant 0 : i32
    %c0_i32_1 = arith.constant 0 : i32
    return %c0_i32, %c0_i32_0 : i32, i32
  }
  func.func @transform_16(%arg0: i32) -> (i32, i32) {
    %c0_i32 = arith.constant 0 : i32
    %c0_i32_0 = arith.constant 0 : i32
    %c0_i32_1 = arith.constant 0 : i32
    return %c0_i32, %c0_i32_0 : i32, i32
  }
  func.func @transform_17(%arg0: i32) -> (i32, i32, i32) {
    %c0_i32 = arith.constant 0 : i32
    %c0_i32_0 = arith.constant 0 : i32
    %c0_i32_1 = arith.constant 0 : i32
    %c0_i32_2 = arith.constant 0 : i32
    return %c0_i32, %c0_i32_0, %c0_i32_1 : i32, i32, i32
  }
  func.func @transform_18(%arg0: i32) -> (i32, i32) {
    %c0_i32 = arith.constant 0 : i32
    %c0_i32_0 = arith.constant 0 : i32
    %c0_i32_1 = arith.constant 0 : i32
    return %c0_i32, %c0_i32_0 : i32, i32
  }
  func.func @transform_19(%arg0: i32) -> (i32, i32) {
    %c0_i32 = arith.constant 0 : i32
    %c0_i32_0 = arith.constant 0 : i32
    %c0_i32_1 = arith.constant 0 : i32
    return %c0_i32, %c0_i32_0 : i32, i32
  }
  func.func @transform_20(%arg0: i32) -> (i32, i32) {
    %c0_i32 = arith.constant 0 : i32
    %c0_i32_0 = arith.constant 0 : i32
    %c0_i32_1 = arith.constant 0 : i32
    return %c0_i32, %c0_i32_0 : i32, i32
  }
  func.func @transform_21(%arg0: i32) -> (i32, i32) {
    %c0_i32 = arith.constant 0 : i32
    %c0_i32_0 = arith.constant 0 : i32
    %c0_i32_1 = arith.constant 0 : i32
    return %c0_i32, %c0_i32_0 : i32, i32
  }
  func.func @transform_22(%arg0: i32) -> (i32, i32) {
    %c0_i32 = arith.constant 0 : i32
    %c0_i32_0 = arith.constant 0 : i32
    %c0_i32_1 = arith.constant 0 : i32
    return %c0_i32, %c0_i32_0 : i32, i32
  }
  func.func @transform_23(%arg0: i32) -> (i32, i32) {
    %c0_i32 = arith.constant 0 : i32
    %c0_i32_0 = arith.constant 0 : i32
    %c0_i32_1 = arith.constant 0 : i32
    return %c0_i32, %c0_i32_0 : i32, i32
  }
  func.func @transform_24(%arg0: i32) -> (i32, i32) {
    %c0_i32 = arith.constant 0 : i32
    %c0_i32_0 = arith.constant 0 : i32
    %c0_i32_1 = arith.constant 0 : i32
    return %c0_i32, %c0_i32_0 : i32, i32
  }
  func.func @transform_25(%arg0: i32) -> (i32, i32) {
    %c0_i32 = arith.constant 0 : i32
    %c0_i32_0 = arith.constant 0 : i32
    %c0_i32_1 = arith.constant 0 : i32
    return %c0_i32, %c0_i32_0 : i32, i32
  }
  func.func @transform_26(%arg0: i32) -> (i32, i32, i32) {
    %c0_i32 = arith.constant 0 : i32
    %c0_i32_0 = arith.constant 0 : i32
    %c0_i32_1 = arith.constant 0 : i32
    return %arg0, %c0_i32, %c0_i32_0 : i32, i32, i32
  }
}

</mosaic_0001>

<llo_original>
// kernel: encoder_graph_forward.4
$region0: #{encoder_graph_forward.4}
  #allocation0 [shape = 'u32[]', space=smem, size = 0x4, offset = 0x4, fixed_abs, tag = 'smem constant byte address 0x4 - core index']
  #allocation1 [shape = 'u32[144,128]{1,0:T(1,128)}', space=vmem, size = 0x12000, scoped, tag = 'internal scratch']
  %s0 = inlined_call_operand.vmem [shape: bf16[2048,16], index: 0, kind: input, shape index: {}]
  %s1 = inlined_call_operand.vmem [shape: bf16[16,16], index: 1, kind: input, shape index: {}]
  %s2 = inlined_call_operand.vmem [shape: f32[1,16], index: 2, kind: input, shape index: {}]
  %s3 = inlined_call_operand.vmem [shape: f32[2048,16], index: 3, kind: output, shape index: {}]
  %s4 = sld [smem:[#allocation0]]
  $region45: #{encoder_graph_forward.4} parent=0
    _
  %s6 = ssub.s32 1, %s4
  %s7 = scalar_select 0, %s6, %s4
  loop: start=0, step=1, limit=6
  $region2: #{encoder_graph_forward.4} parent=0 // loop_pre_header
    _
  $region3: #{encoder_graph_forward.4} parent=0 // loop_header
    %s9 = sphi 0, %s13
    %p10 = scmp.ge.s32.totalorder %s9, 6
    %s19 = sphi 0, %s21
    %s22 = sphi 0, %s19
    %s23 = sphi 0, %s22
    %s39 = sphi 0, %s23
    %s43 = sphi 0, %s43
    %s45 = sphi 0, %s43
    %s46 = sphi 0, %s45
    %s60 = sphi 0, %s46
    %s64 = sphi 0, %s64
    %s66 = sphi 0, %s64
    %s67 = sphi 0, %s66
    %s81 = sphi 0, %s67
    %s87 = sphi 0, %s89
    %s90 = sphi 0, %s87
    %s91 = sphi 0, %s90
    %s107 = sphi 0, %s91
  $region4: #{encoder_graph_forward.4} parent=0 // loop_header_branch
    %12 = sbr.rel (%p10) target = $region8
  $region5: #{encoder_graph_forward.4} parent=0 // loop_body
    %s14 = ssub.s32 %s9, 1
    %s15 = ssub.s32 %s9, 2
    %s16 = sadd.s32 %s9, 1
    %s17 = ssub.s32 %s9, %s16
    %p18 = scmp.eq.s32.totalorder %s17, 0
    %s20 = sadd.s32 %s19, 1
    %s21 = scalar_select %p18, %s19, %s20
    %p24 = pneg %p18
    %p25 = scmp.eq.s32.totalorder %s9, 3
    %p26 = por %p24, %p25
    %p27 = scmp.ne.s32.totalorder %s19, %s22
    %p28 = scmp.eq.s32.totalorder %s9, 0
    %p29 = por %p27, %p28
    %p30 = scmp.ne.s32.totalorder %s19, %s22
    %p31 = scmp.eq.s32.totalorder %s14, 3
    %p32 = por %p30, %p31
    %p33 = scmp.ne.s32.totalorder %s22, %s23
    %p34 = scmp.eq.s32.totalorder %s14, 0
    %p35 = por %p33, %p34
    %p36 = scmp.ne.s32.totalorder %s22, %s23
    %p37 = scmp.eq.s32.totalorder %s15, 3
    %p38 = por %p36, %p37
    %p40 = scmp.ne.s32.totalorder %s23, %s39
    %p41 = scmp.eq.s32.totalorder %s15, 0
    %p42 = por %p40, %p41
    %s44 = sadd.s32 %s43, 1
    %p47 = scmp.eq.s32.totalorder %s9, 3
    %p48 = scmp.ne.s32.totalorder %s43, %s45
    %p49 = scmp.eq.s32.totalorder %s9, 0
    %p50 = por %p48, %p49
    %p51 = scmp.ne.s32.totalorder %s43, %s45
    %p52 = scmp.eq.s32.totalorder %s14, 3
    %p53 = por %p51, %p52
    %p54 = scmp.ne.s32.totalorder %s45, %s46
    %p55 = scmp.eq.s32.totalorder %s14, 0
    %p56 = por %p54, %p55
    %p57 = scmp.ne.s32.totalorder %s45, %s46
    %p58 = scmp.eq.s32.totalorder %s15, 3
    %p59 = por %p57, %p58
    %p61 = scmp.ne.s32.totalorder %s46, %s60
    %p62 = scmp.eq.s32.totalorder %s15, 0
    %p63 = por %p61, %p62
    %s65 = sadd.s32 %s64, 1
    %p68 = scmp.eq.s32.totalorder %s9, 3
    %p69 = scmp.ne.s32.totalorder %s64, %s66
    %p70 = scmp.eq.s32.totalorder %s9, 0
    %p71 = por %p69, %p70
    %p72 = scmp.ne.s32.totalorder %s64, %s66
    %p73 = scmp.eq.s32.totalorder %s14, 3
    %p74 = por %p72, %p73
    %p75 = scmp.ne.s32.totalorder %s66, %s67
    %p76 = scmp.eq.s32.totalorder %s14, 0
    %p77 = por %p75, %p76
    %p78 = scmp.ne.s32.totalorder %s66, %s67
    %p79 = scmp.eq.s32.totalorder %s15, 3
    %p80 = por %p78, %p79
    %p82 = scmp.ne.s32.totalorder %s67, %s81
    %p83 = scmp.eq.s32.totalorder %s15, 0
    %p84 = por %p82, %p83
    %s85 = ssub.s32 %s9, %s16
    %p86 = scmp.eq.s32.totalorder %s85, 0
    %s88 = sadd.s32 %s87, 1
    %s89 = scalar_select %p86, %s87, %s88
    %p92 = pneg %p86
    %p93 = scmp.eq.s32.totalorder %s9, 3
    %p94 = por %p92, %p93
    %p95 = scmp.ne.s32.totalorder %s87, %s90
    %p96 = scmp.eq.s32.totalorder %s9, 0
    %p97 = por %p95, %p96
    %p98 = scmp.ne.s32.totalorder %s87, %s90
    %p99 = scmp.eq.s32.totalorder %s14, 3
    %p100 = por %p98, %p99
    %p101 = scmp.ne.s32.totalorder %s90, %s91
    %p102 = scmp.eq.s32.totalorder %s14, 0
    %p103 = por %p101, %p102
    %p104 = scmp.ne.s32.totalorder %s90, %s91
    %p105 = scmp.eq.s32.totalorder %s15, 3
    %p106 = por %p104, %p105
    %p108 = scmp.ne.s32.totalorder %s91, %s107
    %p109 = scmp.eq.s32.totalorder %s15, 0
    %p110 = por %p108, %p109
    %p111 = scmp.le.s32.totalorder 1, %s9
    %p112 = scmp.lt.s32.totalorder %s9, 5
    %p113 = pnand %p111, %p112
    %p114 = pneg %p113
    // Predicated region
    $region9: #{encoder_graph_forward.4} parent=5 // pred_check
      _
    $region10: #{encoder_graph_forward.4} parent=5 // pred_check_branch
      %116 = sbr.rel (%p113) target = $region12
    $region11: #{encoder_graph_forward.4} parent=5 // pred_region
      %s117 = ssub.s32 %s9, 1
      // Predicated region
      $region13: #{encoder_graph_forward.4} parent=11 // pred_check
        %p118 = pneg %p56
      $region14: #{encoder_graph_forward.4} parent=11 // pred_check_branch
        %120 = sbr.rel (%p118) target = $region16
      $region15: #{encoder_graph_forward.4} parent=11 // pred_region
        _
      $region16: #{encoder_graph_forward.4} parent=11 // pred_fallthru
        _
      // Predicated region
      $region17: #{encoder_graph_forward.4} parent=11 // pred_check
        %p121 = pneg %p77
      $region18: #{encoder_graph_forward.4} parent=11 // pred_check_branch
        %123 = sbr.rel (%p121) target = $region20
      $region19: #{encoder_graph_forward.4} parent=11 // pred_region
        _
      $region20: #{encoder_graph_forward.4} parent=11 // pred_fallthru
        _
    $region12: #{encoder_graph_forward.4} parent=5 // pred_fallthru
      _
    %p124 = scmp.lt.s32.totalorder %s9, 4
    // Predicated region
    $region21: #{encoder_graph_forward.4} parent=5 // pred_check
      %p125 = pneg %p124
    $region22: #{encoder_graph_forward.4} parent=5 // pred_check_branch
      %127 = sbr.rel (%p125) target = $region24
    $region23: #{encoder_graph_forward.4} parent=5 // pred_region
      // Predicated region
      $region25: #{encoder_graph_forward.4} parent=23 // pred_check
        %p128 = pneg %p29
      $region26: #{encoder_graph_forward.4} parent=23 // pred_check_branch
        %130 = sbr.rel (%p128) target = $region28
      $region27: #{encoder_graph_forward.4} parent=23 // pred_region
        %s131 = smul.u32 64, %s9
        %p132 = scmp.lt.s32.totalorder %s131, 255
        %s133 = scalar_select %p132, %s131, 255
        %s134 = smul.addr %s133, 4
        %s135 = scalar_lea.vmem %s0, %s134
        %s136 = smul.u32 64, %s9
      $region28: #{encoder_graph_forward.4} parent=23 // pred_fallthru
        _
    $region24: #{encoder_graph_forward.4} parent=5 // pred_fallthru
      _
    %p137 = scmp.le.s32.totalorder 1, %s9
    %p138 = scmp.lt.s32.totalorder %s9, 5
    %p139 = pnand %p137, %p138
    %p140 = pneg %p139
    // Predicated region
    $region29: #{encoder_graph_forward.4} parent=5 // pred_check
      _
    $region30: #{encoder_graph_forward.4} parent=5 // pred_check_branch
      %142 = sbr.rel (%p139) target = $region32
    $region31: #{encoder_graph_forward.4} parent=5 // pred_region
      %s143 = ssub.s32 %s9, 1
      %s144 = smul.u32 64, %s14
      %p145 = scmp.lt.s32.totalorder %s144, 255
      %s146 = scalar_select %p145, %s144, 255
      %s147 = smul.addr %s146, 4
      %s148 = scalar_lea.vmem %s0, %s147
      %p149 = pneg %p35
      %p150 = pneg %p32
      %p151 = pneg %p56
      %p152 = pneg %p53
      %p153 = pneg %p77
      %p154 = pneg %p74
      %p155 = pneg %p103
      %p156 = pneg %p100
      %s157 = smul.u32 64, %s14
      %p158 = scmp.lt.s32.totalorder %s157, 255
      %s159 = scalar_select %p158, %s157, 255
      %s160 = smul.addr %s159, 8
      %s161 = scalar_lea.vmem %s3, %s160
      %s162 = smul.u32 64, %s14
      %p163 = scmp.lt.s32.totalorder %s162, 255
      %s164 = scalar_select %p163, %s162, 255
      %s165 = smul.addr %s164, 4
      %s166 = scalar_lea.vmem %s0, %s165
      %s167 = smul.u32 64, %s14
      %s168 = smul.u32 64, %s14
      %p169 = scmp.lt.s32.totalorder %s168, 255
      %s170 = scalar_select %p169, %s168, 255
      %s171 = smul.addr %s170, 8
      %s172 = scalar_lea.vmem %s3, %s171
      %s173 = smul.u32 64, %s14
      %v175 = vld [vmem:[%s166] sm:$0xf]
      %v176 = vld [vmem:[%s166 + $0x4] sm:$0xf]
      %v177 = vld [vmem:[%s166 + $0x8] sm:$0xf]
      %v178 = vld [vmem:[%s166 + $0xc] sm:$0xf]
      %v179 = vld [vmem:[%s166 + $0x10] sm:$0xf]
      %v180 = vld [vmem:[%s166 + $0x14] sm:$0xf]
      %v181 = vld [vmem:[%s166 + $0x18] sm:$0xf]
      %v182 = vld [vmem:[%s166 + $0x1c] sm:$0xf]
      %v183 = vld [vmem:[%s166 + $0x20] sm:$0xf]
      %v184 = vld [vmem:[%s166 + $0x24] sm:$0xf]
      %v185 = vld [vmem:[%s166 + $0x28] sm:$0xf]
      %v186 = vld [vmem:[%s166 + $0x2c] sm:$0xf]
      %v187 = vld [vmem:[%s166 + $0x30] sm:$0xf]
      %v188 = vld [vmem:[%s166 + $0x34] sm:$0xf]
      %v189 = vld [vmem:[%s166 + $0x38] sm:$0xf]
      %v190 = vld [vmem:[%s166 + $0x3c] sm:$0xf]
      %v191 = vld [vmem:[%s166 + $0x40] sm:$0xf]
      %v192 = vld [vmem:[%s166 + $0x44] sm:$0xf]
      %v193 = vld [vmem:[%s166 + $0x48] sm:$0xf]
      %v194 = vld [vmem:[%s166 + $0x4c] sm:$0xf]
      %v195 = vld [vmem:[%s166 + $0x50] sm:$0xf]
      %v196 = vld [vmem:[%s166 + $0x54] sm:$0xf]
      %v197 = vld [vmem:[%s166 + $0x58] sm:$0xf]
      %v198 = vld [vmem:[%s166 + $0x5c] sm:$0xf]
      %v199 = vld [vmem:[%s166 + $0x60] sm:$0xf]
      %v200 = vld [vmem:[%s166 + $0x64] sm:$0xf]
      %v201 = vld [vmem:[%s166 + $0x68] sm:$0xf]
      %v202 = vld [vmem:[%s166 + $0x6c] sm:$0xf]
      %v203 = vld [vmem:[%s166 + $0x70] sm:$0xf]
      %v204 = vld [vmem:[%s166 + $0x74] sm:$0xf]
      %v205 = vld [vmem:[%s166 + $0x78] sm:$0xf]
      %v206 = vld [vmem:[%s166 + $0x7c] sm:$0xf]
      %v207 = vld [vmem:[%s166 + $0x80] sm:$0xf]
      %v208 = vld [vmem:[%s166 + $0x84] sm:$0xf]
      %v209 = vld [vmem:[%s166 + $0x88] sm:$0xf]
      %v210 = vld [vmem:[%s166 + $0x8c] sm:$0xf]
      %v211 = vld [vmem:[%s166 + $0x90] sm:$0xf]
      %v212 = vld [vmem:[%s166 + $0x94] sm:$0xf]
      %v213 = vld [vmem:[%s166 + $0x98] sm:$0xf]
      %v214 = vld [vmem:[%s166 + $0x9c] sm:$0xf]
      %v215 = vld [vmem:[%s166 + $0xa0] sm:$0xf]
      %v216 = vld [vmem:[%s166 + $0xa4] sm:$0xf]
      %v217 = vld [vmem:[%s166 + $0xa8] sm:$0xf]
      %v218 = vld [vmem:[%s166 + $0xac] sm:$0xf]
      %v219 = vld [vmem:[%s166 + $0xb0] sm:$0xf]
      %v220 = vld [vmem:[%s166 + $0xb4] sm:$0xf]
      %v221 = vld [vmem:[%s166 + $0xb8] sm:$0xf]
      %v222 = vld [vmem:[%s166 + $0xbc] sm:$0xf]
      %v223 = vld [vmem:[%s166 + $0xc0] sm:$0xf]
      %v224 = vld [vmem:[%s166 + $0xc4] sm:$0xf]
      %v225 = vld [vmem:[%s166 + $0xc8] sm:$0xf]
      %v226 = vld [vmem:[%s166 + $0xcc] sm:$0xf]
      %v227 = vld [vmem:[%s166 + $0xd0] sm:$0xf]
      %v228 = vld [vmem:[%s166 + $0xd4] sm:$0xf]
      %v229 = vld [vmem:[%s166 + $0xd8] sm:$0xf]
      %v230 = vld [vmem:[%s166 + $0xdc] sm:$0xf]
      %v231 = vld [vmem:[%s166 + $0xe0] sm:$0xf]
      %v232 = vld [vmem:[%s166 + $0xe4] sm:$0xf]
      %v233 = vld [vmem:[%s166 + $0xe8] sm:$0xf]
      %v234 = vld [vmem:[%s166 + $0xec] sm:$0xf]
      %v235 = vld [vmem:[%s166 + $0xf0] sm:$0xf]
      %v236 = vld [vmem:[%s166 + $0xf4] sm:$0xf]
      %v237 = vld [vmem:[%s166 + $0xf8] sm:$0xf]
      %v238 = vld [vmem:[%s166 + $0xfc] sm:$0xf]
      %v239 = vld [vmem:[%s1] sm:$0xf]
      %v240 = vld [vmem:[%s1 + $0x4] sm:$0xf]
      %v241 = vld [vmem:[%s2] sm:$0x1]
      %v243 = vlaneseq
      %v244 = vshrl.u32 %v243, 7
      %v245 = vsub.s32 0, %v244
      %v246 = vrot.slane %v241, %v245
      %v312 = vunpack.c.l.b16 %v175
      %v313 = vunpack.c.l.b16 %v176
      %v314 = vunpack.c.l.b16 %v177
      %v315 = vunpack.c.l.b16 %v178
      %v316 = vunpack.c.l.b16 %v179
      %v317 = vunpack.c.l.b16 %v180
      %v318 = vunpack.c.l.b16 %v181
      %v319 = vunpack.c.l.b16 %v182
      %v320 = vunpack.c.l.b16 %v183
      %v321 = vunpack.c.l.b16 %v184
      %v322 = vunpack.c.l.b16 %v185
      %v323 = vunpack.c.l.b16 %v186
      %v324 = vunpack.c.l.b16 %v187
      %v325 = vunpack.c.l.b16 %v188
      %v326 = vunpack.c.l.b16 %v189
      %v327 = vunpack.c.l.b16 %v190
      %v328 = vunpack.c.l.b16 %v191
      %v329 = vunpack.c.l.b16 %v192
      %v330 = vunpack.c.l.b16 %v193
      %v331 = vunpack.c.l.b16 %v194
      %v332 = vunpack.c.l.b16 %v195
      %v333 = vunpack.c.l.b16 %v196
      %v334 = vunpack.c.l.b16 %v197
      %v335 = vunpack.c.l.b16 %v198
      %v336 = vunpack.c.l.b16 %v199
      %v337 = vunpack.c.l.b16 %v200
      %v338 = vunpack.c.l.b16 %v201
      %v339 = vunpack.c.l.b16 %v202
      %v340 = vunpack.c.l.b16 %v203
      %v341 = vunpack.c.l.b16 %v204
      %v342 = vunpack.c.l.b16 %v205
      %v343 = vunpack.c.l.b16 %v206
      %v344 = vunpack.c.l.b16 %v207
      %v345 = vunpack.c.l.b16 %v208
      %v346 = vunpack.c.l.b16 %v209
      %v347 = vunpack.c.l.b16 %v210
      %v348 = vunpack.c.l.b16 %v211
      %v349 = vunpack.c.l.b16 %v212
      %v350 = vunpack.c.l.b16 %v213
      %v351 = vunpack.c.l.b16 %v214
      %v352 = vunpack.c.l.b16 %v215
      %v353 = vunpack.c.l.b16 %v216
      %v354 = vunpack.c.l.b16 %v217
      %v355 = vunpack.c.l.b16 %v218
      %v356 = vunpack.c.l.b16 %v219
      %v357 = vunpack.c.l.b16 %v220
      %v358 = vunpack.c.l.b16 %v221
      %v359 = vunpack.c.l.b16 %v222
      %v360 = vunpack.c.l.b16 %v223
      %v361 = vunpack.c.l.b16 %v224
      %v362 = vunpack.c.l.b16 %v225
      %v363 = vunpack.c.l.b16 %v226
      %v364 = vunpack.c.l.b16 %v227
      %v365 = vunpack.c.l.b16 %v228
      %v366 = vunpack.c.l.b16 %v229
      %v367 = vunpack.c.l.b16 %v230
      %v368 = vunpack.c.l.b16 %v231
      %v369 = vunpack.c.l.b16 %v232
      %v370 = vunpack.c.l.b16 %v233
      %v371 = vunpack.c.l.b16 %v234
      %v372 = vunpack.c.l.b16 %v235
      %v373 = vunpack.c.l.b16 %v236
      %v374 = vunpack.c.l.b16 %v237
      %v375 = vunpack.c.l.b16 %v238
      %v376 = vpack.c.b16 %v313, %v312
      %v377 = vpack.c.b16 %v315, %v314
      %v378 = vpack.c.b16 %v317, %v316
      %v379 = vpack.c.b16 %v319, %v318
      %v380 = vpack.c.b16 %v321, %v320
      %v381 = vpack.c.b16 %v323, %v322
      %v382 = vpack.c.b16 %v325, %v324
      %v383 = vpack.c.b16 %v327, %v326
      %v384 = vpack.c.b16 %v329, %v328
      %v385 = vpack.c.b16 %v331, %v330
      %v386 = vpack.c.b16 %v333, %v332
      %v387 = vpack.c.b16 %v335, %v334
      %v388 = vpack.c.b16 %v337, %v336
      %v389 = vpack.c.b16 %v339, %v338
      %v390 = vpack.c.b16 %v341, %v340
      %v391 = vpack.c.b16 %v343, %v342
      %v392 = vpack.c.b16 %v345, %v344
      %v393 = vpack.c.b16 %v347, %v346
      %v394 = vpack.c.b16 %v349, %v348
      %v395 = vpack.c.b16 %v351, %v350
      %v396 = vpack.c.b16 %v353, %v352
      %v397 = vpack.c.b16 %v355, %v354
      %v398 = vpack.c.b16 %v357, %v356
      %v399 = vpack.c.b16 %v359, %v358
      %v400 = vpack.c.b16 %v361, %v360
      %v401 = vpack.c.b16 %v363, %v362
      %v402 = vpack.c.b16 %v365, %v364
      %v403 = vpack.c.b16 %v367, %v366
      %v404 = vpack.c.b16 %v369, %v368
      %v405 = vpack.c.b16 %v371, %v370
      %v406 = vpack.c.b16 %v373, %v372
      %v407 = vpack.c.b16 %v375, %v374
      %v410 = vunpack.c.l.b16 %v239
      %v411 = vunpack.c.l.b16 %v240
      %v412 = vpack.c.b16 %v411, %v410
      %vm414 = vcmask 130048
      %v416 = vsel %vm414, %v376, 0
      %v419 = vsel %vm414, %v377, 0
      %v422 = vsel %vm414, %v378, 0
      %v425 = vsel %vm414, %v379, 0
      %v428 = vsel %vm414, %v380, 0
      %v431 = vsel %vm414, %v381, 0
      %v434 = vsel %vm414, %v382, 0
      %v437 = vsel %vm414, %v383, 0
      %v440 = vsel %vm414, %v384, 0
      %v443 = vsel %vm414, %v385, 0
      %v446 = vsel %vm414, %v386, 0
      %v449 = vsel %vm414, %v387, 0
      %v452 = vsel %vm414, %v388, 0
      %v455 = vsel %vm414, %v389, 0
      %v458 = vsel %vm414, %v390, 0
      %v461 = vsel %vm414, %v391, 0
      %v464 = vsel %vm414, %v392, 0
      %v467 = vsel %vm414, %v393, 0
      %v470 = vsel %vm414, %v394, 0
      %v473 = vsel %vm414, %v395, 0
      %v476 = vsel %vm414, %v396, 0
      %v479 = vsel %vm414, %v397, 0
      %v482 = vsel %vm414, %v398, 0
      %v485 = vsel %vm414, %v399, 0
      %v488 = vsel %vm414, %v400, 0
      %v491 = vsel %vm414, %v401, 0
      %v494 = vsel %vm414, %v402, 0
      %v497 = vsel %vm414, %v403, 0
      %v500 = vsel %vm414, %v404, 0
      %v503 = vsel %vm414, %v405, 0
      %v506 = vsel %vm414, %v406, 0
      %v509 = vsel %vm414, %v407, 0
      %511 = vmatprep.subr.bf16.mxu0 0
      %512 = vmatpush1.bf16.msra.mxu0 %v412
      %513 = vmatprep.subr.bf16.mxu0 0
      %514 = vmatpush1.bf16.msra.mxu0 0
      %515 = vmatprep.subr.bf16.mxu0 0
      %516 = vmatpush1.bf16.msra.mxu0 0
      %517 = vmatprep.subr.bf16.mxu0 0
      %518 = vmatpush1.bf16.msra.mxu0 0
      %519 = vmatprep.subr.bf16.mxu0 0
      %520 = vmatpush1.bf16.msra.mxu0 0
      %521 = vmatprep.subr.bf16.mxu0 0
      %522 = vmatpush1.bf16.msra.mxu0 0
      %523 = vmatprep.subr.bf16.mxu0 0
      %524 = vmatpush1.bf16.msra.mxu0 0
      %525 = vmatprep.subr.bf16.mxu0 0
      %526 = vmatpush1.bf16.msra.mxu0 0
      %527 = vmatprep.subr.bf16.mxu0 0
      %528 = vmatpush1.bf16.msra.mxu0 0
      %529 = vmatprep.subr.bf16.mxu0 0
      %530 = vmatpush1.bf16.msra.mxu0 0
      %531 = vmatprep.subr.bf16.mxu0 0
      %532 = vmatpush1.bf16.msra.mxu0 0
      %533 = vmatprep.subr.bf16.mxu0 0
      %534 = vmatpush1.bf16.msra.mxu0 0
      %535 = vmatprep.subr.bf16.mxu0 0
      %536 = vmatpush1.bf16.msra.mxu0 0
      %537 = vmatprep.subr.bf16.mxu0 0
      %538 = vmatpush1.bf16.msra.mxu0 0
      %539 = vmatprep.subr.bf16.mxu0 0
      %540 = vmatpush1.bf16.msra.mxu0 0
      %541 = vmatprep.subr.bf16.mxu0 0
      %542 = vmatpush1.bf16.msra.mxu0 0
      %543 = vmatprep.mubr.bf16.mxu0 0
      %544 = vmatmul.mubr.bf16.gmra.mrb[0].mxu0 %v416
      %v545 = vpop.f32.mrb[0].mxu0
      %v546 = vadd.f32 %v246, %v545
      %v547 = vpop.f32.mrb[0].mxu0
      %v548 = vpop.f32.mrb[0].mxu0
      %v549 = vadd.f32 %v246, %v548
      %v550 = vpop.f32.mrb[0].mxu0
      %551 = vmatprep.mubr.bf16.mxu0 0
      %552 = vmatmul.mubr.bf16.gmra.mrb[0].mxu0 %v419
      %v553 = vpop.f32.mrb[0].mxu0
      %v554 = vadd.f32 %v246, %v553
      %v555 = vpop.f32.mrb[0].mxu0
      %v556 = vpop.f32.mrb[0].mxu0
      %v557 = vadd.f32 %v246, %v556
      %v558 = vpop.f32.mrb[0].mxu0
      %559 = vmatprep.mubr.bf16.mxu0 0
      %560 = vmatmul.mubr.bf16.gmra.mrb[0].mxu0 %v422
      %v561 = vpop.f32.mrb[0].mxu0
      %v562 = vadd.f32 %v246, %v561
      %v563 = vpop.f32.mrb[0].mxu0
      %v564 = vpop.f32.mrb[0].mxu0
      %v565 = vadd.f32 %v246, %v564
      %v566 = vpop.f32.mrb[0].mxu0
      %567 = vmatprep.mubr.bf16.mxu0 0
      %568 = vmatmul.mubr.bf16.gmra.mrb[0].mxu0 %v425
      %v569 = vpop.f32.mrb[0].mxu0
      %v570 = vadd.f32 %v246, %v569
      %v571 = vpop.f32.mrb[0].mxu0
      %v572 = vpop.f32.mrb[0].mxu0
      %v573 = vadd.f32 %v246, %v572
      %v574 = vpop.f32.mrb[0].mxu0
      %575 = vmatprep.mubr.bf16.mxu0 0
      %576 = vmatmul.mubr.bf16.gmra.mrb[0].mxu0 %v428
      %v577 = vpop.f32.mrb[0].mxu0
      %v578 = vadd.f32 %v246, %v577
      %v579 = vpop.f32.mrb[0].mxu0
      %v580 = vpop.f32.mrb[0].mxu0
      %v581 = vadd.f32 %v246, %v580
      %v582 = vpop.f32.mrb[0].mxu0
      %583 = vmatprep.mubr.bf16.mxu0 0
      %584 = vmatmul.mubr.bf16.gmra.mrb[0].mxu0 %v431
      %v585 = vpop.f32.mrb[0].mxu0
      %v586 = vadd.f32 %v246, %v585
      %v587 = vpop.f32.mrb[0].mxu0
      %v588 = vpop.f32.mrb[0].mxu0
      %v589 = vadd.f32 %v246, %v588
      %v590 = vpop.f32.mrb[0].mxu0
      %591 = vmatprep.mubr.bf16.mxu0 0
      %592 = vmatmul.mubr.bf16.gmra.mrb[0].mxu0 %v434
      %v593 = vpop.f32.mrb[0].mxu0
      %v594 = vadd.f32 %v246, %v593
      %v595 = vpop.f32.mrb[0].mxu0
      %v596 = vpop.f32.mrb[0].mxu0
      %v597 = vadd.f32 %v246, %v596
      %v598 = vpop.f32.mrb[0].mxu0
      %599 = vmatprep.mubr.bf16.mxu0 0
      %600 = vmatmul.mubr.bf16.gmra.mrb[0].mxu0 %v437
      %v601 = vpop.f32.mrb[0].mxu0
      %v602 = vadd.f32 %v246, %v601
      %v603 = vpop.f32.mrb[0].mxu0
      %v604 = vpop.f32.mrb[0].mxu0
      %v605 = vadd.f32 %v246, %v604
      %v606 = vpop.f32.mrb[0].mxu0
      %607 = vmatprep.mubr.bf16.mxu0 0
      %608 = vmatmul.mubr.bf16.gmra.mrb[0].mxu0 %v440
      %v609 = vpop.f32.mrb[0].mxu0
      %v610 = vadd.f32 %v246, %v609
      %v611 = vpop.f32.mrb[0].mxu0
      %v612 = vpop.f32.mrb[0].mxu0
      %v613 = vadd.f32 %v246, %v612
      %v614 = vpop.f32.mrb[0].mxu0
      %615 = vmatprep.mubr.bf16.mxu0 0
      %616 = vmatmul.mubr.bf16.gmra.mrb[0].mxu0 %v443
      %v617 = vpop.f32.mrb[0].mxu0
      %v618 = vadd.f32 %v246, %v617
      %v619 = vpop.f32.mrb[0].mxu0
      %v620 = vpop.f32.mrb[0].mxu0
      %v621 = vadd.f32 %v246, %v620
      %v622 = vpop.f32.mrb[0].mxu0
      %623 = vmatprep.mubr.bf16.mxu0 0
      %624 = vmatmul.mubr.bf16.gmra.mrb[0].mxu0 %v446
      %v625 = vpop.f32.mrb[0].mxu0
      %v626 = vadd.f32 %v246, %v625
      %v627 = vpop.f32.mrb[0].mxu0
      %v628 = vpop.f32.mrb[0].mxu0
      %v629 = vadd.f32 %v246, %v628
      %v630 = vpop.f32.mrb[0].mxu0
      %631 = vmatprep.mubr.bf16.mxu0 0
      %632 = vmatmul.mubr.bf16.gmra.mrb[0].mxu0 %v449
      %v633 = vpop.f32.mrb[0].mxu0
      %v634 = vadd.f32 %v246, %v633
      %v635 = vpop.f32.mrb[0].mxu0
      %v636 = vpop.f32.mrb[0].mxu0
      %v637 = vadd.f32 %v246, %v636
      %v638 = vpop.f32.mrb[0].mxu0
      %639 = vmatprep.mubr.bf16.mxu0 0
      %640 = vmatmul.mubr.bf16.gmra.mrb[0].mxu0 %v452
      %v641 = vpop.f32.mrb[0].mxu0
      %v642 = vadd.f32 %v246, %v641
      %v643 = vpop.f32.mrb[0].mxu0
      %v644 = vpop.f32.mrb[0].mxu0
      %v645 = vadd.f32 %v246, %v644
      %v646 = vpop.f32.mrb[0].mxu0
      %647 = vmatprep.mubr.bf16.mxu0 0
      %648 = vmatmul.mubr.bf16.gmra.mrb[0].mxu0 %v455
      %v649 = vpop.f32.mrb[0].mxu0
      %v650 = vadd.f32 %v246, %v649
      %v651 = vpop.f32.mrb[0].mxu0
      %v652 = vpop.f32.mrb[0].mxu0
      %v653 = vadd.f32 %v246, %v652
      %v654 = vpop.f32.mrb[0].mxu0
      %655 = vmatprep.mubr.bf16.mxu0 0
      %656 = vmatmul.mubr.bf16.gmra.mrb[0].mxu0 %v458
      %v657 = vpop.f32.mrb[0].mxu0
      %v658 = vadd.f32 %v246, %v657
      %v659 = vpop.f32.mrb[0].mxu0
      %v660 = vpop.f32.mrb[0].mxu0
      %v661 = vadd.f32 %v246, %v660
      %v662 = vpop.f32.mrb[0].mxu0
      %663 = vmatprep.mubr.bf16.mxu0 0
      %664 = vmatmul.mubr.bf16.gmra.mrb[0].mxu0 %v461
      %v665 = vpop.f32.mrb[0].mxu0
      %v666 = vadd.f32 %v246, %v665
      %v667 = vpop.f32.mrb[0].mxu0
      %v668 = vpop.f32.mrb[0].mxu0
      %v669 = vadd.f32 %v246, %v668
      %v670 = vpop.f32.mrb[0].mxu0
      %671 = vmatprep.mubr.bf16.mxu0 0
      %672 = vmatmul.mubr.bf16.gmra.mrb[0].mxu0 %v464
      %v673 = vpop.f32.mrb[0].mxu0
      %v674 = vadd.f32 %v246, %v673
      %v675 = vpop.f32.mrb[0].mxu0
      %v676 = vpop.f32.mrb[0].mxu0
      %v677 = vadd.f32 %v246, %v676
      %v678 = vpop.f32.mrb[0].mxu0
      %679 = vmatprep.mubr.bf16.mxu0 0
      %680 = vmatmul.mubr.bf16.gmra.mrb[0].mxu0 %v467
      %v681 = vpop.f32.mrb[0].mxu0
      %v682 = vadd.f32 %v246, %v681
      %v683 = vpop.f32.mrb[0].mxu0
      %v684 = vpop.f32.mrb[0].mxu0
      %v685 = vadd.f32 %v246, %v684
      %v686 = vpop.f32.mrb[0].mxu0
      %687 = vmatprep.mubr.bf16.mxu0 0
      %688 = vmatmul.mubr.bf16.gmra.mrb[0].mxu0 %v470
      %v689 = vpop.f32.mrb[0].mxu0
      %v690 = vadd.f32 %v246, %v689
      %v691 = vpop.f32.mrb[0].mxu0
      %v692 = vpop.f32.mrb[0].mxu0
      %v693 = vadd.f32 %v246, %v692
      %v694 = vpop.f32.mrb[0].mxu0
      %695 = vmatprep.mubr.bf16.mxu0 0
      %696 = vmatmul.mubr.bf16.gmra.mrb[0].mxu0 %v473
      %v697 = vpop.f32.mrb[0].mxu0
      %v698 = vadd.f32 %v246, %v697
      %v699 = vpop.f32.mrb[0].mxu0
      %v700 = vpop.f32.mrb[0].mxu0
      %v701 = vadd.f32 %v246, %v700
      %v702 = vpop.f32.mrb[0].mxu0
      %703 = vmatprep.mubr.bf16.mxu0 0
      %704 = vmatmul.mubr.bf16.gmra.mrb[0].mxu0 %v476
      %v705 = vpop.f32.mrb[0].mxu0
      %v706 = vadd.f32 %v246, %v705
      %v707 = vpop.f32.mrb[0].mxu0
      %v708 = vpop.f32.mrb[0].mxu0
      %v709 = vadd.f32 %v246, %v708
      %v710 = vpop.f32.mrb[0].mxu0
      %711 = vmatprep.mubr.bf16.mxu0 0
      %712 = vmatmul.mubr.bf16.gmra.mrb[0].mxu0 %v479
      %v713 = vpop.f32.mrb[0].mxu0
      %v714 = vadd.f32 %v246, %v713
      %v715 = vpop.f32.mrb[0].mxu0
      %v716 = vpop.f32.mrb[0].mxu0
      %v717 = vadd.f32 %v246, %v716
      %v718 = vpop.f32.mrb[0].mxu0
      %719 = vmatprep.mubr.bf16.mxu0 0
      %720 = vmatmul.mubr.bf16.gmra.mrb[0].mxu0 %v482
      %v721 = vpop.f32.mrb[0].mxu0
      %v722 = vadd.f32 %v246, %v721
      %v723 = vpop.f32.mrb[0].mxu0
      %v724 = vpop.f32.mrb[0].mxu0
      %v725 = vadd.f32 %v246, %v724
      %v726 = vpop.f32.mrb[0].mxu0
      %727 = vmatprep.mubr.bf16.mxu0 0
      %728 = vmatmul.mubr.bf16.gmra.mrb[0].mxu0 %v485
      %v729 = vpop.f32.mrb[0].mxu0
      %v730 = vadd.f32 %v246, %v729
      %v731 = vpop.f32.mrb[0].mxu0
      %v732 = vpop.f32.mrb[0].mxu0
      %v733 = vadd.f32 %v246, %v732
      %v734 = vpop.f32.mrb[0].mxu0
      %735 = vmatprep.mubr.bf16.mxu0 0
      %736 = vmatmul.mubr.bf16.gmra.mrb[0].mxu0 %v488
      %v737 = vpop.f32.mrb[0].mxu0
      %v738 = vadd.f32 %v246, %v737
      %v739 = vpop.f32.mrb[0].mxu0
      %v740 = vpop.f32.mrb[0].mxu0
      %v741 = vadd.f32 %v246, %v740
      %v742 = vpop.f32.mrb[0].mxu0
      %743 = vmatprep.mubr.bf16.mxu0 0
      %744 = vmatmul.mubr.bf16.gmra.mrb[0].mxu0 %v491
      %v745 = vpop.f32.mrb[0].mxu0
      %v746 = vadd.f32 %v246, %v745
      %v747 = vpop.f32.mrb[0].mxu0
      %v748 = vpop.f32.mrb[0].mxu0
      %v749 = vadd.f32 %v246, %v748
      %v750 = vpop.f32.mrb[0].mxu0
      %751 = vmatprep.mubr.bf16.mxu0 0
      %752 = vmatmul.mubr.bf16.gmra.mrb[0].mxu0 %v494
      %v753 = vpop.f32.mrb[0].mxu0
      %v754 = vadd.f32 %v246, %v753
      %v755 = vpop.f32.mrb[0].mxu0
      %v756 = vpop.f32.mrb[0].mxu0
      %v757 = vadd.f32 %v246, %v756
      %v758 = vpop.f32.mrb[0].mxu0
      %759 = vmatprep.mubr.bf16.mxu0 0
      %760 = vmatmul.mubr.bf16.gmra.mrb[0].mxu0 %v497
      %v761 = vpop.f32.mrb[0].mxu0
      %v762 = vadd.f32 %v246, %v761
      %v763 = vpop.f32.mrb[0].mxu0
      %v764 = vpop.f32.mrb[0].mxu0
      %v765 = vadd.f32 %v246, %v764
      %v766 = vpop.f32.mrb[0].mxu0
      %767 = vmatprep.mubr.bf16.mxu0 0
      %768 = vmatmul.mubr.bf16.gmra.mrb[0].mxu0 %v500
      %v769 = vpop.f32.mrb[0].mxu0
      %v770 = vadd.f32 %v246, %v769
      %v771 = vpop.f32.mrb[0].mxu0
      %v772 = vpop.f32.mrb[0].mxu0
      %v773 = vadd.f32 %v246, %v772
      %v774 = vpop.f32.mrb[0].mxu0
      %775 = vmatprep.mubr.bf16.mxu0 0
      %776 = vmatmul.mubr.bf16.gmra.mrb[0].mxu0 %v503
      %v777 = vpop.f32.mrb[0].mxu0
      %v778 = vadd.f32 %v246, %v777
      %v779 = vpop.f32.mrb[0].mxu0
      %v780 = vpop.f32.mrb[0].mxu0
      %v781 = vadd.f32 %v246, %v780
      %v782 = vpop.f32.mrb[0].mxu0
      %783 = vmatprep.mubr.bf16.mxu0 0
      %784 = vmatmul.mubr.bf16.gmra.mrb[0].mxu0 %v506
      %v785 = vpop.f32.mrb[0].mxu0
      %v786 = vadd.f32 %v246, %v785
      %v787 = vpop.f32.mrb[0].mxu0
      %v788 = vpop.f32.mrb[0].mxu0
      %v789 = vadd.f32 %v246, %v788
      %v790 = vpop.f32.mrb[0].mxu0
      %791 = vmatprep.mubr.bf16.mxu0 0
      %792 = vmatmul.mubr.bf16.gmra.mrb[0].mxu0 %v509
      %v793 = vpop.f32.mrb[0].mxu0
      %v794 = vadd.f32 %v246, %v793
      %v795 = vpop.f32.mrb[0].mxu0
      %v796 = vpop.f32.mrb[0].mxu0
      %v797 = vadd.f32 %v246, %v796
      %v798 = vpop.f32.mrb[0].mxu0
      %799 = vdwg.mxu0
      %vm800 = vcmp.ge.f32.partialorder %v546, 0.0
      %vm801 = vcmp.ge.f32.partialorder %v549, 0.0
      %vm802 = vcmp.ge.f32.partialorder %v554, 0.0
      %vm803 = vcmp.ge.f32.partialorder %v557, 0.0
      %vm804 = vcmp.ge.f32.partialorder %v562, 0.0
      %vm805 = vcmp.ge.f32.partialorder %v565, 0.0
      %vm806 = vcmp.ge.f32.partialorder %v570, 0.0
      %vm807 = vcmp.ge.f32.partialorder %v573, 0.0
      %vm808 = vcmp.ge.f32.partialorder %v578, 0.0
      %vm809 = vcmp.ge.f32.partialorder %v581, 0.0
      %vm810 = vcmp.ge.f32.partialorder %v586, 0.0
      %vm811 = vcmp.ge.f32.partialorder %v589, 0.0
      %vm812 = vcmp.ge.f32.partialorder %v594, 0.0
      %vm813 = vcmp.ge.f32.partialorder %v597, 0.0
      %vm814 = vcmp.ge.f32.partialorder %v602, 0.0
      %vm815 = vcmp.ge.f32.partialorder %v605, 0.0
      %vm816 = vcmp.ge.f32.partialorder %v610, 0.0
      %vm817 = vcmp.ge.f32.partialorder %v613, 0.0
      %vm818 = vcmp.ge.f32.partialorder %v618, 0.0
      %vm819 = vcmp.ge.f32.partialorder %v621, 0.0
      %vm820 = vcmp.ge.f32.partialorder %v626, 0.0
      %vm821 = vcmp.ge.f32.partialorder %v629, 0.0
      %vm822 = vcmp.ge.f32.partialorder %v634, 0.0
      %vm823 = vcmp.ge.f32.partialorder %v637, 0.0
      %vm824 = vcmp.ge.f32.partialorder %v642, 0.0
      %vm825 = vcmp.ge.f32.partialorder %v645, 0.0
      %vm826 = vcmp.ge.f32.partialorder %v650, 0.0
      %vm827 = vcmp.ge.f32.partialorder %v653, 0.0
      %vm828 = vcmp.ge.f32.partialorder %v658, 0.0
      %vm829 = vcmp.ge.f32.partialorder %v661, 0.0
      %vm830 = vcmp.ge.f32.partialorder %v666, 0.0
      %vm831 = vcmp.ge.f32.partialorder %v669, 0.0
      %vm832 = vcmp.ge.f32.partialorder %v674, 0.0
      %vm833 = vcmp.ge.f32.partialorder %v677, 0.0
      %vm834 = vcmp.ge.f32.partialorder %v682, 0.0
      %vm835 = vcmp.ge.f32.partialorder %v685, 0.0
      %vm836 = vcmp.ge.f32.partialorder %v690, 0.0
      %vm837 = vcmp.ge.f32.partialorder %v693, 0.0
      %vm838 = vcmp.ge.f32.partialorder %v698, 0.0
      %vm839 = vcmp.ge.f32.partialorder %v701, 0.0
      %vm840 = vcmp.ge.f32.partialorder %v706, 0.0
      %vm841 = vcmp.ge.f32.partialorder %v709, 0.0
      %vm842 = vcmp.ge.f32.partialorder %v714, 0.0
      %vm843 = vcmp.ge.f32.partialorder %v717, 0.0
      %vm844 = vcmp.ge.f32.partialorder %v722, 0.0
      %vm845 = vcmp.ge.f32.partialorder %v725, 0.0
      %vm846 = vcmp.ge.f32.partialorder %v730, 0.0
      %vm847 = vcmp.ge.f32.partialorder %v733, 0.0
      %vm848 = vcmp.ge.f32.partialorder %v738, 0.0
      %vm849 = vcmp.ge.f32.partialorder %v741, 0.0
      %vm850 = vcmp.ge.f32.partialorder %v746, 0.0
      %vm851 = vcmp.ge.f32.partialorder %v749, 0.0
      %vm852 = vcmp.ge.f32.partialorder %v754, 0.0
      %vm853 = vcmp.ge.f32.partialorder %v757, 0.0
      %vm854 = vcmp.ge.f32.partialorder %v762, 0.0
      %vm855 = vcmp.ge.f32.partialorder %v765, 0.0
      %vm856 = vcmp.ge.f32.partialorder %v770, 0.0
      %vm857 = vcmp.ge.f32.partialorder %v773, 0.0
      %vm858 = vcmp.ge.f32.partialorder %v778, 0.0
      %vm859 = vcmp.ge.f32.partialorder %v781, 0.0
      %vm860 = vcmp.ge.f32.partialorder %v786, 0.0
      %vm861 = vcmp.ge.f32.partialorder %v789, 0.0
      %vm862 = vcmp.ge.f32.partialorder %v794, 0.0
      %vm863 = vcmp.ge.f32.partialorder %v797, 0.0
      %v864 = vmul.f32 %v546, 0.01
      %v865 = vmul.f32 %v549, 0.01
      %v866 = vmul.f32 %v554, 0.01
      %v867 = vmul.f32 %v557, 0.01
      %v868 = vmul.f32 %v562, 0.01
      %v869 = vmul.f32 %v565, 0.01
      %v870 = vmul.f32 %v570, 0.01
      %v871 = vmul.f32 %v573, 0.01
      %v872 = vmul.f32 %v578, 0.01
      %v873 = vmul.f32 %v581, 0.01
      %v874 = vmul.f32 %v586, 0.01
      %v875 = vmul.f32 %v589, 0.01
      %v876 = vmul.f32 %v594, 0.01
      %v877 = vmul.f32 %v597, 0.01
      %v878 = vmul.f32 %v602, 0.01
      %v879 = vmul.f32 %v605, 0.01
      %v880 = vmul.f32 %v610, 0.01
      %v881 = vmul.f32 %v613, 0.01
      %v882 = vmul.f32 %v618, 0.01
      %v883 = vmul.f32 %v621, 0.01
      %v884 = vmul.f32 %v626, 0.01
      %v885 = vmul.f32 %v629, 0.01
      %v886 = vmul.f32 %v634, 0.01
      %v887 = vmul.f32 %v637, 0.01
      %v888 = vmul.f32 %v642, 0.01
      %v889 = vmul.f32 %v645, 0.01
      %v890 = vmul.f32 %v650, 0.01
      %v891 = vmul.f32 %v653, 0.01
      %v892 = vmul.f32 %v658, 0.01
      %v893 = vmul.f32 %v661, 0.01
      %v894 = vmul.f32 %v666, 0.01
      %v895 = vmul.f32 %v669, 0.01
      %v896 = vmul.f32 %v674, 0.01
      %v897 = vmul.f32 %v677, 0.01
      %v898 = vmul.f32 %v682, 0.01
      %v899 = vmul.f32 %v685, 0.01
      %v900 = vmul.f32 %v690, 0.01
      %v901 = vmul.f32 %v693, 0.01
      %v902 = vmul.f32 %v698, 0.01
      %v903 = vmul.f32 %v701, 0.01
      %v904 = vmul.f32 %v706, 0.01
      %v905 = vmul.f32 %v709, 0.01
      %v906 = vmul.f32 %v714, 0.01
      %v907 = vmul.f32 %v717, 0.01
      %v908 = vmul.f32 %v722, 0.01
      %v909 = vmul.f32 %v725, 0.01
      %v910 = vmul.f32 %v730, 0.01
      %v911 = vmul.f32 %v733, 0.01
      %v912 = vmul.f32 %v738, 0.01
      %v913 = vmul.f32 %v741, 0.01
      %v914 = vmul.f32 %v746, 0.01
      %v915 = vmul.f32 %v749, 0.01
      %v916 = vmul.f32 %v754, 0.01
      %v917 = vmul.f32 %v757, 0.01
      %v918 = vmul.f32 %v762, 0.01
      %v919 = vmul.f32 %v765, 0.01
      %v920 = vmul.f32 %v770, 0.01
      %v921 = vmul.f32 %v773, 0.01
      %v922 = vmul.f32 %v778, 0.01
      %v923 = vmul.f32 %v781, 0.01
      %v924 = vmul.f32 %v786, 0.01
      %v925 = vmul.f32 %v789, 0.01
      %v926 = vmul.f32 %v794, 0.01
      %v927 = vmul.f32 %v797, 0.01
      %v928 = vsel %vm800, %v546, %v864
      %v929 = vsel %vm801, %v549, %v865
      %v930 = vsel %vm802, %v554, %v866
      %v931 = vsel %vm803, %v557, %v867
      %v932 = vsel %vm804, %v562, %v868
      %v933 = vsel %vm805, %v565, %v869
      %v934 = vsel %vm806, %v570, %v870
      %v935 = vsel %vm807, %v573, %v871
      %v936 = vsel %vm808, %v578, %v872
      %v937 = vsel %vm809, %v581, %v873
      %v938 = vsel %vm810, %v586, %v874
      %v939 = vsel %vm811, %v589, %v875
      %v940 = vsel %vm812, %v594, %v876
      %v941 = vsel %vm813, %v597, %v877
      %v942 = vsel %vm814, %v602, %v878
      %v943 = vsel %vm815, %v605, %v879
      %v944 = vsel %vm816, %v610, %v880
      %v945 = vsel %vm817, %v613, %v881
      %v946 = vsel %vm818, %v618, %v882
      %v947 = vsel %vm819, %v621, %v883
      %v948 = vsel %vm820, %v626, %v884
      %v949 = vsel %vm821, %v629, %v885
      %v950 = vsel %vm822, %v634, %v886
      %v951 = vsel %vm823, %v637, %v887
      %v952 = vsel %vm824, %v642, %v888
      %v953 = vsel %vm825, %v645, %v889
      %v954 = vsel %vm826, %v650, %v890
      %v955 = vsel %vm827, %v653, %v891
      %v956 = vsel %vm828, %v658, %v892
      %v957 = vsel %vm829, %v661, %v893
      %v958 = vsel %vm830, %v666, %v894
      %v959 = vsel %vm831, %v669, %v895
      %v960 = vsel %vm832, %v674, %v896
      %v961 = vsel %vm833, %v677, %v897
      %v962 = vsel %vm834, %v682, %v898
      %v963 = vsel %vm835, %v685, %v899
      %v964 = vsel %vm836, %v690, %v900
      %v965 = vsel %vm837, %v693, %v901
      %v966 = vsel %vm838, %v698, %v902
      %v967 = vsel %vm839, %v701, %v903
      %v968 = vsel %vm840, %v706, %v904
      %v969 = vsel %vm841, %v709, %v905
      %v970 = vsel %vm842, %v714, %v906
      %v971 = vsel %vm843, %v717, %v907
      %v972 = vsel %vm844, %v722, %v908
      %v973 = vsel %vm845, %v725, %v909
      %v974 = vsel %vm846, %v730, %v910
      %v975 = vsel %vm847, %v733, %v911
      %v976 = vsel %vm848, %v738, %v912
      %v977 = vsel %vm849, %v741, %v913
      %v978 = vsel %vm850, %v746, %v914
      %v979 = vsel %vm851, %v749, %v915
      %v980 = vsel %vm852, %v754, %v916
      %v981 = vsel %vm853, %v757, %v917
      %v982 = vsel %vm854, %v762, %v918
      %v983 = vsel %vm855, %v765, %v919
      %v984 = vsel %vm856, %v770, %v920
      %v985 = vsel %vm857, %v773, %v921
      %v986 = vsel %vm858, %v778, %v922
      %v987 = vsel %vm859, %v781, %v923
      %v988 = vsel %vm860, %v786, %v924
      %v989 = vsel %vm861, %v789, %v925
      %v990 = vsel %vm862, %v794, %v926
      %v991 = vsel %vm863, %v797, %v927
      %992 = vst.msk [vmem:[%s172] sm:$0xff] %vm414, %v928
      %993 = vst.msk [vmem:[%s172 + $0x8] sm:$0xff] %vm414, %v929
      %994 = vst.msk [vmem:[%s172 + $0x10] sm:$0xff] %vm414, %v930
      %995 = vst.msk [vmem:[%s172 + $0x18] sm:$0xff] %vm414, %v931
      %996 = vst.msk [vmem:[%s172 + $0x20] sm:$0xff] %vm414, %v932
      %997 = vst.msk [vmem:[%s172 + $0x28] sm:$0xff] %vm414, %v933
      %998 = vst.msk [vmem:[%s172 + $0x30] sm:$0xff] %vm414, %v934
      %999 = vst.msk [vmem:[%s172 + $0x38] sm:$0xff] %vm414, %v935
      %1000 = vst.msk [vmem:[%s172 + $0x40] sm:$0xff] %vm414, %v936
      %1001 = vst.msk [vmem:[%s172 + $0x48] sm:$0xff] %vm414, %v937
      %1002 = vst.msk [vmem:[%s172 + $0x50] sm:$0xff] %vm414, %v938
      %1003 = vst.msk [vmem:[%s172 + $0x58] sm:$0xff] %vm414, %v939
      %1004 = vst.msk [vmem:[%s172 + $0x60] sm:$0xff] %vm414, %v940
      %1005 = vst.msk [vmem:[%s172 + $0x68] sm:$0xff] %vm414, %v941
      %1006 = vst.msk [vmem:[%s172 + $0x70] sm:$0xff] %vm414, %v942
      %1007 = vst.msk [vmem:[%s172 + $0x78] sm:$0xff] %vm414, %v943
      %1008 = vst.msk [vmem:[%s172 + $0x80] sm:$0xff] %vm414, %v944
      %1009 = vst.msk [vmem:[%s172 + $0x88] sm:$0xff] %vm414, %v945
      %1010 = vst.msk [vmem:[%s172 + $0x90] sm:$0xff] %vm414, %v946
      %1011 = vst.msk [vmem:[%s172 + $0x98] sm:$0xff] %vm414, %v947
      %1012 = vst.msk [vmem:[%s172 + $0xa0] sm:$0xff] %vm414, %v948
      %1013 = vst.msk [vmem:[%s172 + $0xa8] sm:$0xff] %vm414, %v949
      %1014 = vst.msk [vmem:[%s172 + $0xb0] sm:$0xff] %vm414, %v950
      %1015 = vst.msk [vmem:[%s172 + $0xb8] sm:$0xff] %vm414, %v951
      %1016 = vst.msk [vmem:[%s172 + $0xc0] sm:$0xff] %vm414, %v952
      %1017 = vst.msk [vmem:[%s172 + $0xc8] sm:$0xff] %vm414, %v953
      %1018 = vst.msk [vmem:[%s172 + $0xd0] sm:$0xff] %vm414, %v954
      %1019 = vst.msk [vmem:[%s172 + $0xd8] sm:$0xff] %vm414, %v955
      %1020 = vst.msk [vmem:[%s172 + $0xe0] sm:$0xff] %vm414, %v956
      %1021 = vst.msk [vmem:[%s172 + $0xe8] sm:$0xff] %vm414, %v957
      %1022 = vst.msk [vmem:[%s172 + $0xf0] sm:$0xff] %vm414, %v958
      %1023 = vst.msk [vmem:[%s172 + $0xf8] sm:$0xff] %vm414, %v959
      %1024 = vst.msk [vmem:[%s172 + $0x100] sm:$0xff] %vm414, %v960
      %1025 = vst.msk [vmem:[%s172 + $0x108] sm:$0xff] %vm414, %v961
      %1026 = vst.msk [vmem:[%s172 + $0x110] sm:$0xff] %vm414, %v962
      %1027 = vst.msk [vmem:[%s172 + $0x118] sm:$0xff] %vm414, %v963
      %1028 = vst.msk [vmem:[%s172 + $0x120] sm:$0xff] %vm414, %v964
      %1029 = vst.msk [vmem:[%s172 + $0x128] sm:$0xff] %vm414, %v965
      %1030 = vst.msk [vmem:[%s172 + $0x130] sm:$0xff] %vm414, %v966
      %1031 = vst.msk [vmem:[%s172 + $0x138] sm:$0xff] %vm414, %v967
      %1032 = vst.msk [vmem:[%s172 + $0x140] sm:$0xff] %vm414, %v968
      %1033 = vst.msk [vmem:[%s172 + $0x148] sm:$0xff] %vm414, %v969
      %1034 = vst.msk [vmem:[%s172 + $0x150] sm:$0xff] %vm414, %v970
      %1035 = vst.msk [vmem:[%s172 + $0x158] sm:$0xff] %vm414, %v971
      %1036 = vst.msk [vmem:[%s172 + $0x160] sm:$0xff] %vm414, %v972
      %1037 = vst.msk [vmem:[%s172 + $0x168] sm:$0xff] %vm414, %v973
      %1038 = vst.msk [vmem:[%s172 + $0x170] sm:$0xff] %vm414, %v974
      %1039 = vst.msk [vmem:[%s172 + $0x178] sm:$0xff] %vm414, %v975
      %1040 = vst.msk [vmem:[%s172 + $0x180] sm:$0xff] %vm414, %v976
      %1041 = vst.msk [vmem:[%s172 + $0x188] sm:$0xff] %vm414, %v977
      %1042 = vst.msk [vmem:[%s172 + $0x190] sm:$0xff] %vm414, %v978
      %1043 = vst.msk [vmem:[%s172 + $0x198] sm:$0xff] %vm414, %v979
      %1044 = vst.msk [vmem:[%s172 + $0x1a0] sm:$0xff] %vm414, %v980
      %1045 = vst.msk [vmem:[%s172 + $0x1a8] sm:$0xff] %vm414, %v981
      %1046 = vst.msk [vmem:[%s172 + $0x1b0] sm:$0xff] %vm414, %v982
      %1047 = vst.msk [vmem:[%s172 + $0x1b8] sm:$0xff] %vm414, %v983
      %1048 = vst.msk [vmem:[%s172 + $0x1c0] sm:$0xff] %vm414, %v984
      %1049 = vst.msk [vmem:[%s172 + $0x1c8] sm:$0xff] %vm414, %v985
      %1050 = vst.msk [vmem:[%s172 + $0x1d0] sm:$0xff] %vm414, %v986
      %1051 = vst.msk [vmem:[%s172 + $0x1d8] sm:$0xff] %vm414, %v987
      %1052 = vst.msk [vmem:[%s172 + $0x1e0] sm:$0xff] %vm414, %v988
      %1053 = vst.msk [vmem:[%s172 + $0x1e8] sm:$0xff] %vm414, %v989
      %1054 = vst.msk [vmem:[%s172 + $0x1f0] sm:$0xff] %vm414, %v990
      %1055 = vst.msk [vmem:[%s172 + $0x1f8] sm:$0xff] %vm414, %v991
      %s1056 = smul.u32 64, %s14
      %p1057 = scmp.lt.s32.totalorder %s1056, 255
      %s1058 = scalar_select %p1057, %s1056, 255
      %s1059 = smul.addr %s1058, 8
      %s1060 = scalar_lea.vmem %s3, %s1059
      // Predicated region
      $region33: #{encoder_graph_forward.4} parent=31 // pred_check
        %p1061 = pneg %p100
      $region34: #{encoder_graph_forward.4} parent=31 // pred_check_branch
        %1063 = sbr.rel (%p1061) target = $region36
      $region35: #{encoder_graph_forward.4} parent=31 // pred_region
        %s1064 = smul.u32 64, %s14
      $region36: #{encoder_graph_forward.4} parent=31 // pred_fallthru
        _
    $region32: #{encoder_graph_forward.4} parent=5 // pred_fallthru
      _
    %p1065 = scmp.le.s32.totalorder 2, %s9
    // Predicated region
    $region37: #{encoder_graph_forward.4} parent=5 // pred_check
      %p1066 = pneg %p1065
    $region38: #{encoder_graph_forward.4} parent=5 // pred_check_branch
      %1068 = sbr.rel (%p1066) target = $region40
    $region39: #{encoder_graph_forward.4} parent=5 // pred_region
      %s1069 = ssub.s32 %s9, 2
      // Predicated region
      $region41: #{encoder_graph_forward.4} parent=39 // pred_check
        %p1070 = pneg %p106
      $region42: #{encoder_graph_forward.4} parent=39 // pred_check_branch
        %1072 = sbr.rel (%p1070) target = $region44
      $region43: #{encoder_graph_forward.4} parent=39 // pred_region
        %s1073 = smul.u32 64, %s15
        %p1074 = scmp.lt.s32.totalorder %s1073, 255
        %s1075 = scalar_select %p1074, %s1073, 255
        %s1076 = smul.addr %s1075, 8
        %s1077 = scalar_lea.vmem %s3, %s1076
      $region44: #{encoder_graph_forward.4} parent=39 // pred_fallthru
        _
    $region40: #{encoder_graph_forward.4} parent=5 // pred_fallthru
      _
  $region6: #{encoder_graph_forward.4} parent=0 // loop_footer
    %s13 = sadd.s32 1, %s9
  $region7: #{encoder_graph_forward.4} parent=0 // loop_footer_branch
    %8 = sbr.rel target = $region3
  $region8: #{encoder_graph_forward.4} parent=0 // loop_exit
    _

// kernel: encoder_graph_forward.5
$region0: #{encoder_graph_forward.5}
  #allocation0 [shape = 'u32[]', space=smem, size = 0x4, offset = 0x4, fixed_abs, tag = 'smem constant byte address 0x4 - core index']
  #allocation1 [shape = 'u32[144,128]{1,0:T(1,128)}', space=vmem, size = 0x12000, scoped, tag = 'internal scratch']
  %s0 = inlined_call_operand.vmem [shape: bf16[250,256], index: 0, kind: input, shape index: {}]
  %s1 = inlined_call_operand.vmem [shape: bf16[256,8], index: 1, kind: input, shape index: {}]
  %s2 = inlined_call_operand.vmem [shape: f32[1,8], index: 2, kind: input, shape index: {}]
  %s3 = inlined_call_operand.vmem [shape: f32[250,8], index: 3, kind: output, shape index: {}]
  %s4 = sld [smem:[#allocation0]]
  $region22: #{encoder_graph_forward.5} parent=0
    _
  %s6 = ssub.s32 1, %s4
  %s7 = scalar_select 0, %s6, %s4
  // Predicated region
  $region2: #{encoder_graph_forward.5} parent=0 // pred_check
    _
  $region3: #{encoder_graph_forward.5} parent=0 // pred_check_branch
    %9 = sbr.rel (0) target = $region5
  $region4: #{encoder_graph_forward.5} parent=0 // pred_region
    _
  $region5: #{encoder_graph_forward.5} parent=0 // pred_fallthru
    _
  // Predicated region
  $region6: #{encoder_graph_forward.5} parent=0 // pred_check
    _
  $region7: #{encoder_graph_forward.5} parent=0 // pred_check_branch
    %11 = sbr.rel (0) target = $region9
  $region8: #{encoder_graph_forward.5} parent=0 // pred_region
    _
  $region9: #{encoder_graph_forward.5} parent=0 // pred_fallthru
    _
  // Predicated region
  $region10: #{encoder_graph_forward.5} parent=0 // pred_check
    _
  $region11: #{encoder_graph_forward.5} parent=0 // pred_check_branch
    %13 = sbr.rel (0) target = $region13
  $region12: #{encoder_graph_forward.5} parent=0 // pred_region
    _
  $region13: #{encoder_graph_forward.5} parent=0 // pred_fallthru
    _
  %v15 = vld [vmem:[%s0] sm:$0xff]
  %v16 = vld [vmem:[%s0 + $0x8] sm:$0xff]
  %v17 = vld [vmem:[%s0 + $0x10] sm:$0xff]
  %v18 = vld [vmem:[%s0 + $0x18] sm:$0xff]
  %v19 = vld [vmem:[%s0 + $0x20] sm:$0xff]
  %v20 = vld [vmem:[%s0 + $0x28] sm:$0xff]
  %v21 = vld [vmem:[%s0 + $0x30] sm:$0xff]
  %v22 = vld [vmem:[%s0 + $0x38] sm:$0xff]
  %v23 = vld [vmem:[%s0 + $0x40] sm:$0xff]
  %v24 = vld [vmem:[%s0 + $0x48] sm:$0xff]
  %v25 = vld [vmem:[%s0 + $0x50] sm:$0xff]
  %v26 = vld [vmem:[%s0 + $0x58] sm:$0xff]
  %v27 = vld [vmem:[%s0 + $0x60] sm:$0xff]
  %v28 = vld [vmem:[%s0 + $0x68] sm:$0xff]
  %v29 = vld [vmem:[%s0 + $0x70] sm:$0xff]
  %v30 = vld [vmem:[%s0 + $0x78] sm:$0xff]
  %v31 = vld [vmem:[%s0 + $0x80] sm:$0xff]
  %v32 = vld [vmem:[%s0 + $0x88] sm:$0xff]
  %v33 = vld [vmem:[%s0 + $0x90] sm:$0xff]
  %v34 = vld [vmem:[%s0 + $0x98] sm:$0xff]
  %v35 = vld [vmem:[%s0 + $0xa0] sm:$0xff]
  %v36 = vld [vmem:[%s0 + $0xa8] sm:$0xff]
  %v37 = vld [vmem:[%s0 + $0xb0] sm:$0xff]
  %v38 = vld [vmem:[%s0 + $0xb8] sm:$0xff]
  %v39 = vld [vmem:[%s0 + $0xc0] sm:$0xff]
  %v40 = vld [vmem:[%s0 + $0xc8] sm:$0xff]
  %v41 = vld [vmem:[%s0 + $0xd0] sm:$0xff]
  %v42 = vld [vmem:[%s0 + $0xd8] sm:$0xff]
  %v43 = vld [vmem:[%s0 + $0xe0] sm:$0xff]
  %v44 = vld [vmem:[%s0 + $0xe8] sm:$0xff]
  %v45 = vld [vmem:[%s0 + $0xf0] sm:$0xff]
  %v46 = vld [vmem:[%s0 + $0xf8] sm:$0x11]
  %v47 = vld [vmem:[%s1] sm:$0xf]
  %v48 = vld [vmem:[%s1 + $0x4] sm:$0xf]
  %v49 = vld [vmem:[%s1 + $0x8] sm:$0xf]
  %v50 = vld [vmem:[%s1 + $0xc] sm:$0xf]
  %v51 = vld [vmem:[%s1 + $0x10] sm:$0xf]
  %v52 = vld [vmem:[%s1 + $0x14] sm:$0xf]
  %v53 = vld [vmem:[%s1 + $0x18] sm:$0xf]
  %v54 = vld [vmem:[%s1 + $0x1c] sm:$0xf]
  %v55 = vld [vmem:[%s1 + $0x20] sm:$0xf]
  %v56 = vld [vmem:[%s1 + $0x24] sm:$0xf]
  %v57 = vld [vmem:[%s1 + $0x28] sm:$0xf]
  %v58 = vld [vmem:[%s1 + $0x2c] sm:$0xf]
  %v59 = vld [vmem:[%s1 + $0x30] sm:$0xf]
  %v60 = vld [vmem:[%s1 + $0x34] sm:$0xf]
  %v61 = vld [vmem:[%s1 + $0x38] sm:$0xf]
  %v62 = vld [vmem:[%s1 + $0x3c] sm:$0xf]
  %v63 = vld [vmem:[%s1 + $0x40] sm:$0xf]
  %v64 = vld [vmem:[%s1 + $0x44] sm:$0xf]
  %v65 = vld [vmem:[%s1 + $0x48] sm:$0xf]
  %v66 = vld [vmem:[%s1 + $0x4c] sm:$0xf]
  %v67 = vld [vmem:[%s1 + $0x50] sm:$0xf]
  %v68 = vld [vmem:[%s1 + $0x54] sm:$0xf]
  %v69 = vld [vmem:[%s1 + $0x58] sm:$0xf]
  %v70 = vld [vmem:[%s1 + $0x5c] sm:$0xf]
  %v71 = vld [vmem:[%s1 + $0x60] sm:$0xf]
  %v72 = vld [vmem:[%s1 + $0x64] sm:$0xf]
  %v73 = vld [vmem:[%s1 + $0x68] sm:$0xf]
  %v74 = vld [vmem:[%s1 + $0x6c] sm:$0xf]
  %v75 = vld [vmem:[%s1 + $0x70] sm:$0xf]
  %v76 = vld [vmem:[%s1 + $0x74] sm:$0xf]
  %v77 = vld [vmem:[%s1 + $0x78] sm:$0xf]
  %v78 = vld [vmem:[%s1 + $0x7c] sm:$0xf]
  %v79 = vld [vmem:[%s2] sm:$0x1]
  %v81 = vlaneseq
  %v82 = vshrl.u32 %v81, 7
  %v83 = vsub.s32 0, %v82
  %v84 = vrot.slane %v79, %v83
  %v118 = vunpack.c.l.b16 %v15
  %v119 = vunpack.c.h.b16 %v15
  %v120 = vunpack.c.l.b16 %v16
  %v121 = vunpack.c.h.b16 %v16
  %v122 = vunpack.c.l.b16 %v17
  %v123 = vunpack.c.h.b16 %v17
  %v124 = vunpack.c.l.b16 %v18
  %v125 = vunpack.c.h.b16 %v18
  %v126 = vunpack.c.l.b16 %v19
  %v127 = vunpack.c.h.b16 %v19
  %v128 = vunpack.c.l.b16 %v20
  %v129 = vunpack.c.h.b16 %v20
  %v130 = vunpack.c.l.b16 %v21
  %v131 = vunpack.c.h.b16 %v21
  %v132 = vunpack.c.l.b16 %v22
  %v133 = vunpack.c.h.b16 %v22
  %v134 = vunpack.c.l.b16 %v23
  %v135 = vunpack.c.h.b16 %v23
  %v136 = vunpack.c.l.b16 %v24
  %v137 = vunpack.c.h.b16 %v24
  %v138 = vunpack.c.l.b16 %v25
  %v139 = vunpack.c.h.b16 %v25
  %v140 = vunpack.c.l.b16 %v26
  %v141 = vunpack.c.h.b16 %v26
  %v142 = vunpack.c.l.b16 %v27
  %v143 = vunpack.c.h.b16 %v27
  %v144 = vunpack.c.l.b16 %v28
  %v145 = vunpack.c.h.b16 %v28
  %v146 = vunpack.c.l.b16 %v29
  %v147 = vunpack.c.h.b16 %v29
  %v148 = vunpack.c.l.b16 %v30
  %v149 = vunpack.c.h.b16 %v30
  %v150 = vunpack.c.l.b16 %v31
  %v151 = vunpack.c.h.b16 %v31
  %v152 = vunpack.c.l.b16 %v32
  %v153 = vunpack.c.h.b16 %v32
  %v154 = vunpack.c.l.b16 %v33
  %v155 = vunpack.c.h.b16 %v33
  %v156 = vunpack.c.l.b16 %v34
  %v157 = vunpack.c.h.b16 %v34
  %v158 = vunpack.c.l.b16 %v35
  %v159 = vunpack.c.h.b16 %v35
  %v160 = vunpack.c.l.b16 %v36
  %v161 = vunpack.c.h.b16 %v36
  %v162 = vunpack.c.l.b16 %v37
  %v163 = vunpack.c.h.b16 %v37
  %v164 = vunpack.c.l.b16 %v38
  %v165 = vunpack.c.h.b16 %v38
  %v166 = vunpack.c.l.b16 %v39
  %v167 = vunpack.c.h.b16 %v39
  %v168 = vunpack.c.l.b16 %v40
  %v169 = vunpack.c.h.b16 %v40
  %v170 = vunpack.c.l.b16 %v41
  %v171 = vunpack.c.h.b16 %v41
  %v172 = vunpack.c.l.b16 %v42
  %v173 = vunpack.c.h.b16 %v42
  %v174 = vunpack.c.l.b16 %v43
  %v175 = vunpack.c.h.b16 %v43
  %v176 = vunpack.c.l.b16 %v44
  %v177 = vunpack.c.h.b16 %v44
  %v178 = vunpack.c.l.b16 %v45
  %v179 = vunpack.c.h.b16 %v45
  %v180 = vunpack.c.l.b16 %v46
  %v181 = vunpack.c.h.b16 %v46
  %v182 = vpack.c.b16 %v120, %v118
  %v183 = vpack.c.b16 %v121, %v119
  %v184 = vpack.c.b16 %v124, %v122
  %v185 = vpack.c.b16 %v125, %v123
  %v186 = vpack.c.b16 %v128, %v126
  %v187 = vpack.c.b16 %v129, %v127
  %v188 = vpack.c.b16 %v132, %v130
  %v189 = vpack.c.b16 %v133, %v131
  %v190 = vpack.c.b16 %v136, %v134
  %v191 = vpack.c.b16 %v137, %v135
  %v192 = vpack.c.b16 %v140, %v138
  %v193 = vpack.c.b16 %v141, %v139
  %v194 = vpack.c.b16 %v144, %v142
  %v195 = vpack.c.b16 %v145, %v143
  %v196 = vpack.c.b16 %v148, %v146
  %v197 = vpack.c.b16 %v149, %v147
  %v198 = vpack.c.b16 %v152, %v150
  %v199 = vpack.c.b16 %v153, %v151
  %v200 = vpack.c.b16 %v156, %v154
  %v201 = vpack.c.b16 %v157, %v155
  %v202 = vpack.c.b16 %v160, %v158
  %v203 = vpack.c.b16 %v161, %v159
  %v204 = vpack.c.b16 %v164, %v162
  %v205 = vpack.c.b16 %v165, %v163
  %v206 = vpack.c.b16 %v168, %v166
  %v207 = vpack.c.b16 %v169, %v167
  %v208 = vpack.c.b16 %v172, %v170
  %v209 = vpack.c.b16 %v173, %v171
  %v210 = vpack.c.b16 %v176, %v174
  %v211 = vpack.c.b16 %v177, %v175
  %v212 = vpack.c.b16 %v180, %v178
  %v213 = vpack.c.b16 %v181, %v179
  %v278 = vunpack.c.l.b16 %v47
  %v279 = vunpack.c.l.b16 %v48
  %v280 = vunpack.c.l.b16 %v49
  %v281 = vunpack.c.l.b16 %v50
  %v282 = vunpack.c.l.b16 %v51
  %v283 = vunpack.c.l.b16 %v52
  %v284 = vunpack.c.l.b16 %v53
  %v285 = vunpack.c.l.b16 %v54
  %v286 = vunpack.c.l.b16 %v55
  %v287 = vunpack.c.l.b16 %v56
  %v288 = vunpack.c.l.b16 %v57
  %v289 = vunpack.c.l.b16 %v58
  %v290 = vunpack.c.l.b16 %v59
  %v291 = vunpack.c.l.b16 %v60
  %v292 = vunpack.c.l.b16 %v61
  %v293 = vunpack.c.l.b16 %v62
  %v294 = vunpack.c.l.b16 %v63
  %v295 = vunpack.c.l.b16 %v64
  %v296 = vunpack.c.l.b16 %v65
  %v297 = vunpack.c.l.b16 %v66
  %v298 = vunpack.c.l.b16 %v67
  %v299 = vunpack.c.l.b16 %v68
  %v300 = vunpack.c.l.b16 %v69
  %v301 = vunpack.c.l.b16 %v70
  %v302 = vunpack.c.l.b16 %v71
  %v303 = vunpack.c.l.b16 %v72
  %v304 = vunpack.c.l.b16 %v73
  %v305 = vunpack.c.l.b16 %v74
  %v306 = vunpack.c.l.b16 %v75
  %v307 = vunpack.c.l.b16 %v76
  %v308 = vunpack.c.l.b16 %v77
  %v309 = vunpack.c.l.b16 %v78
  %v310 = vpack.c.b16 %v279, %v278
  %v311 = vpack.c.b16 %v281, %v280
  %v312 = vpack.c.b16 %v283, %v282
  %v313 = vpack.c.b16 %v285, %v284
  %v314 = vpack.c.b16 %v287, %v286
  %v315 = vpack.c.b16 %v289, %v288
  %v316 = vpack.c.b16 %v291, %v290
  %v317 = vpack.c.b16 %v293, %v292
  %v318 = vpack.c.b16 %v295, %v294
  %v319 = vpack.c.b16 %v297, %v296
  %v320 = vpack.c.b16 %v299, %v298
  %v321 = vpack.c.b16 %v301, %v300
  %v322 = vpack.c.b16 %v303, %v302
  %v323 = vpack.c.b16 %v305, %v304
  %v324 = vpack.c.b16 %v307, %v306
  %v325 = vpack.c.b16 %v309, %v308
  %342 = vmatprep.subr.bf16.mxu0 0
  %343 = vmatpush1.bf16.msra.mxu0 %v310
  %344 = vmatprep.subr.bf16.mxu0 0
  %345 = vmatpush1.bf16.msra.mxu0 %v311
  %346 = vmatprep.subr.bf16.mxu0 0
  %347 = vmatpush1.bf16.msra.mxu0 %v312
  %348 = vmatprep.subr.bf16.mxu0 0
  %349 = vmatpush1.bf16.msra.mxu0 %v313
  %350 = vmatprep.subr.bf16.mxu0 0
  %351 = vmatpush1.bf16.msra.mxu0 %v314
  %352 = vmatprep.subr.bf16.mxu0 0
  %353 = vmatpush1.bf16.msra.mxu0 %v315
  %354 = vmatprep.subr.bf16.mxu0 0
  %355 = vmatpush1.bf16.msra.mxu0 %v316
  %356 = vmatprep.subr.bf16.mxu0 0
  %357 = vmatpush1.bf16.msra.mxu0 %v317
  %358 = vmatprep.subr.bf16.mxu0 0
  %359 = vmatpush1.bf16.msra.mxu0 %v318
  %360 = vmatprep.subr.bf16.mxu0 0
  %361 = vmatpush1.bf16.msra.mxu0 %v319
  %362 = vmatprep.subr.bf16.mxu0 0
  %363 = vmatpush1.bf16.msra.mxu0 %v320
  %364 = vmatprep.subr.bf16.mxu0 0
  %365 = vmatpush1.bf16.msra.mxu0 %v321
  %366 = vmatprep.subr.bf16.mxu0 0
  %367 = vmatpush1.bf16.msra.mxu0 %v322
  %368 = vmatprep.subr.bf16.mxu0 0
  %369 = vmatpush1.bf16.msra.mxu0 %v323
  %370 = vmatprep.subr.bf16.mxu0 0
  %371 = vmatpush1.bf16.msra.mxu0 %v324
  %372 = vmatprep.subr.bf16.mxu0 0
  %373 = vmatpush1.bf16.msra.mxu0 %v325
  %374 = vmatprep.mubr.bf16.mxu0 %v183
  %375 = vmatmul.mubr.bf16.gmra.mrb[0].mxu0 %v182
  %v376 = vpop.f32.mrb[0].mxu0
  %v377 = vadd.f32 %v84, %v376
  %v378 = vpop.f32.mrb[0].mxu0
  %v379 = vpop.f32.mrb[0].mxu0
  %v380 = vadd.f32 %v84, %v379
  %v381 = vpop.f32.mrb[0].mxu0
  %382 = vmatprep.mubr.bf16.mxu0 %v185
  %383 = vmatmul.mubr.bf16.gmra.mrb[0].mxu0 %v184
  %v384 = vpop.f32.mrb[0].mxu0
  %v385 = vadd.f32 %v84, %v384
  %v386 = vpop.f32.mrb[0].mxu0
  %v387 = vpop.f32.mrb[0].mxu0
  %v388 = vadd.f32 %v84, %v387
  %v389 = vpop.f32.mrb[0].mxu0
  %390 = vmatprep.mubr.bf16.mxu0 %v187
  %391 = vmatmul.mubr.bf16.gmra.mrb[0].mxu0 %v186
  %v392 = vpop.f32.mrb[0].mxu0
  %v393 = vadd.f32 %v84, %v392
  %v394 = vpop.f32.mrb[0].mxu0
  %v395 = vpop.f32.mrb[0].mxu0
  %v396 = vadd.f32 %v84, %v395
  %v397 = vpop.f32.mrb[0].mxu0
  %398 = vmatprep.mubr.bf16.mxu0 %v189
  %399 = vmatmul.mubr.bf16.gmra.mrb[0].mxu0 %v188
  %v400 = vpop.f32.mrb[0].mxu0
  %v401 = vadd.f32 %v84, %v400
  %v402 = vpop.f32.mrb[0].mxu0
  %v403 = vpop.f32.mrb[0].mxu0
  %v404 = vadd.f32 %v84, %v403
  %v405 = vpop.f32.mrb[0].mxu0
  %406 = vmatprep.mubr.bf16.mxu0 %v191
  %407 = vmatmul.mubr.bf16.gmra.mrb[0].mxu0 %v190
  %v408 = vpop.f32.mrb[0].mxu0
  %v409 = vadd.f32 %v84, %v408
  %v410 = vpop.f32.mrb[0].mxu0
  %v411 = vpop.f32.mrb[0].mxu0
  %v412 = vadd.f32 %v84, %v411
  %v413 = vpop.f32.mrb[0].mxu0
  %414 = vmatprep.mubr.bf16.mxu0 %v193
  %415 = vmatmul.mubr.bf16.gmra.mrb[0].mxu0 %v192
  %v416 = vpop.f32.mrb[0].mxu0
  %v417 = vadd.f32 %v84, %v416
  %v418 = vpop.f32.mrb[0].mxu0
  %v419 = vpop.f32.mrb[0].mxu0
  %v420 = vadd.f32 %v84, %v419
  %v421 = vpop.f32.mrb[0].mxu0
  %422 = vmatprep.mubr.bf16.mxu0 %v195
  %423 = vmatmul.mubr.bf16.gmra.mrb[0].mxu0 %v194
  %v424 = vpop.f32.mrb[0].mxu0
  %v425 = vadd.f32 %v84, %v424
  %v426 = vpop.f32.mrb[0].mxu0
  %v427 = vpop.f32.mrb[0].mxu0
  %v428 = vadd.f32 %v84, %v427
  %v429 = vpop.f32.mrb[0].mxu0
  %430 = vmatprep.mubr.bf16.mxu0 %v197
  %431 = vmatmul.mubr.bf16.gmra.mrb[0].mxu0 %v196
  %v432 = vpop.f32.mrb[0].mxu0
  %v433 = vadd.f32 %v84, %v432
  %v434 = vpop.f32.mrb[0].mxu0
  %v435 = vpop.f32.mrb[0].mxu0
  %v436 = vadd.f32 %v84, %v435
  %v437 = vpop.f32.mrb[0].mxu0
  %438 = vmatprep.mubr.bf16.mxu0 %v199
  %439 = vmatmul.mubr.bf16.gmra.mrb[0].mxu0 %v198
  %v440 = vpop.f32.mrb[0].mxu0
  %v441 = vadd.f32 %v84, %v440
  %v442 = vpop.f32.mrb[0].mxu0
  %v443 = vpop.f32.mrb[0].mxu0
  %v444 = vadd.f32 %v84, %v443
  %v445 = vpop.f32.mrb[0].mxu0
  %446 = vmatprep.mubr.bf16.mxu0 %v201
  %447 = vmatmul.mubr.bf16.gmra.mrb[0].mxu0 %v200
  %v448 = vpop.f32.mrb[0].mxu0
  %v449 = vadd.f32 %v84, %v448
  %v450 = vpop.f32.mrb[0].mxu0
  %v451 = vpop.f32.mrb[0].mxu0
  %v452 = vadd.f32 %v84, %v451
  %v453 = vpop.f32.mrb[0].mxu0
  %454 = vmatprep.mubr.bf16.mxu0 %v203
  %455 = vmatmul.mubr.bf16.gmra.mrb[0].mxu0 %v202
  %v456 = vpop.f32.mrb[0].mxu0
  %v457 = vadd.f32 %v84, %v456
  %v458 = vpop.f32.mrb[0].mxu0
  %v459 = vpop.f32.mrb[0].mxu0
  %v460 = vadd.f32 %v84, %v459
  %v461 = vpop.f32.mrb[0].mxu0
  %462 = vmatprep.mubr.bf16.mxu0 %v205
  %463 = vmatmul.mubr.bf16.gmra.mrb[0].mxu0 %v204
  %v464 = vpop.f32.mrb[0].mxu0
  %v465 = vadd.f32 %v84, %v464
  %v466 = vpop.f32.mrb[0].mxu0
  %v467 = vpop.f32.mrb[0].mxu0
  %v468 = vadd.f32 %v84, %v467
  %v469 = vpop.f32.mrb[0].mxu0
  %470 = vmatprep.mubr.bf16.mxu0 %v207
  %471 = vmatmul.mubr.bf16.gmra.mrb[0].mxu0 %v206
  %v472 = vpop.f32.mrb[0].mxu0
  %v473 = vadd.f32 %v84, %v472
  %v474 = vpop.f32.mrb[0].mxu0
  %v475 = vpop.f32.mrb[0].mxu0
  %v476 = vadd.f32 %v84, %v475
  %v477 = vpop.f32.mrb[0].mxu0
  %478 = vmatprep.mubr.bf16.mxu0 %v209
  %479 = vmatmul.mubr.bf16.gmra.mrb[0].mxu0 %v208
  %v480 = vpop.f32.mrb[0].mxu0
  %v481 = vadd.f32 %v84, %v480
  %v482 = vpop.f32.mrb[0].mxu0
  %v483 = vpop.f32.mrb[0].mxu0
  %v484 = vadd.f32 %v84, %v483
  %v485 = vpop.f32.mrb[0].mxu0
  %486 = vmatprep.mubr.bf16.mxu0 %v211
  %487 = vmatmul.mubr.bf16.gmra.mrb[0].mxu0 %v210
  %v488 = vpop.f32.mrb[0].mxu0
  %v489 = vadd.f32 %v84, %v488
  %v490 = vpop.f32.mrb[0].mxu0
  %v491 = vpop.f32.mrb[0].mxu0
  %v492 = vadd.f32 %v84, %v491
  %v493 = vpop.f32.mrb[0].mxu0
  %494 = vmatprep.mubr.bf16.mxu0 %v213
  %495 = vmatmul.mubr.bf16.gmra.mrb[0].mxu0 %v212
  %v496 = vpop.f32.mrb[0].mxu0
  %v497 = vadd.f32 %v84, %v496
  %v498 = vpop.f32.mrb[0].mxu0
  %v499 = vpop.f32.mrb[0].mxu0
  %v500 = vadd.f32 %v84, %v499
  %v501 = vpop.f32.mrb[0].mxu0
  %502 = vdwg.mxu0
  %vm503 = vcmp.ge.f32.partialorder %v377, 0.0
  %vm504 = vcmp.ge.f32.partialorder %v380, 0.0
  %vm505 = vcmp.ge.f32.partialorder %v385, 0.0
  %vm506 = vcmp.ge.f32.partialorder %v388, 0.0
  %vm507 = vcmp.ge.f32.partialorder %v393, 0.0
  %vm508 = vcmp.ge.f32.partialorder %v396, 0.0
  %vm509 = vcmp.ge.f32.partialorder %v401, 0.0
  %vm510 = vcmp.ge.f32.partialorder %v404, 0.0
  %vm511 = vcmp.ge.f32.partialorder %v409, 0.0
  %vm512 = vcmp.ge.f32.partialorder %v412, 0.0
  %vm513 = vcmp.ge.f32.partialorder %v417, 0.0
  %vm514 = vcmp.ge.f32.partialorder %v420, 0.0
  %vm515 = vcmp.ge.f32.partialorder %v425, 0.0
  %vm516 = vcmp.ge.f32.partialorder %v428, 0.0
  %vm517 = vcmp.ge.f32.partialorder %v433, 0.0
  %vm518 = vcmp.ge.f32.partialorder %v436, 0.0
  %vm519 = vcmp.ge.f32.partialorder %v441, 0.0
  %vm520 = vcmp.ge.f32.partialorder %v444, 0.0
  %vm521 = vcmp.ge.f32.partialorder %v449, 0.0
  %vm522 = vcmp.ge.f32.partialorder %v452, 0.0
  %vm523 = vcmp.ge.f32.partialorder %v457, 0.0
  %vm524 = vcmp.ge.f32.partialorder %v460, 0.0
  %vm525 = vcmp.ge.f32.partialorder %v465, 0.0
  %vm526 = vcmp.ge.f32.partialorder %v468, 0.0
  %vm527 = vcmp.ge.f32.partialorder %v473, 0.0
  %vm528 = vcmp.ge.f32.partialorder %v476, 0.0
  %vm529 = vcmp.ge.f32.partialorder %v481, 0.0
  %vm530 = vcmp.ge.f32.partialorder %v484, 0.0
  %vm531 = vcmp.ge.f32.partialorder %v489, 0.0
  %vm532 = vcmp.ge.f32.partialorder %v492, 0.0
  %vm533 = vcmp.ge.f32.partialorder %v497, 0.0
  %vm534 = vcmp.ge.f32.partialorder %v500, 0.0
  %v535 = vmul.f32 %v377, 0.01
  %v536 = vmul.f32 %v380, 0.01
  %v537 = vmul.f32 %v385, 0.01
  %v538 = vmul.f32 %v388, 0.01
  %v539 = vmul.f32 %v393, 0.01
  %v540 = vmul.f32 %v396, 0.01
  %v541 = vmul.f32 %v401, 0.01
  %v542 = vmul.f32 %v404, 0.01
  %v543 = vmul.f32 %v409, 0.01
  %v544 = vmul.f32 %v412, 0.01
  %v545 = vmul.f32 %v417, 0.01
  %v546 = vmul.f32 %v420, 0.01
  %v547 = vmul.f32 %v425, 0.01
  %v548 = vmul.f32 %v428, 0.01
  %v549 = vmul.f32 %v433, 0.01
  %v550 = vmul.f32 %v436, 0.01
  %v551 = vmul.f32 %v441, 0.01
  %v552 = vmul.f32 %v444, 0.01
  %v553 = vmul.f32 %v449, 0.01
  %v554 = vmul.f32 %v452, 0.01
  %v555 = vmul.f32 %v457, 0.01
  %v556 = vmul.f32 %v460, 0.01
  %v557 = vmul.f32 %v465, 0.01
  %v558 = vmul.f32 %v468, 0.01
  %v559 = vmul.f32 %v473, 0.01
  %v560 = vmul.f32 %v476, 0.01
  %v561 = vmul.f32 %v481, 0.01
  %v562 = vmul.f32 %v484, 0.01
  %v563 = vmul.f32 %v489, 0.01
  %v564 = vmul.f32 %v492, 0.01
  %v565 = vmul.f32 %v497, 0.01
  %v566 = vmul.f32 %v500, 0.01
  %v567 = vsel %vm503, %v377, %v535
  %v568 = vsel %vm504, %v380, %v536
  %v569 = vsel %vm505, %v385, %v537
  %v570 = vsel %vm506, %v388, %v538
  %v571 = vsel %vm507, %v393, %v539
  %v572 = vsel %vm508, %v396, %v540
  %v573 = vsel %vm509, %v401, %v541
  %v574 = vsel %vm510, %v404, %v542
  %v575 = vsel %vm511, %v409, %v543
  %v576 = vsel %vm512, %v412, %v544
  %v577 = vsel %vm513, %v417, %v545
  %v578 = vsel %vm514, %v420, %v546
  %v579 = vsel %vm515, %v425, %v547
  %v580 = vsel %vm516, %v428, %v548
  %v581 = vsel %vm517, %v433, %v549
  %v582 = vsel %vm518, %v436, %v550
  %v583 = vsel %vm519, %v441, %v551
  %v584 = vsel %vm520, %v444, %v552
  %v585 = vsel %vm521, %v449, %v553
  %v586 = vsel %vm522, %v452, %v554
  %v587 = vsel %vm523, %v457, %v555
  %v588 = vsel %vm524, %v460, %v556
  %v589 = vsel %vm525, %v465, %v557
  %v590 = vsel %vm526, %v468, %v558
  %v591 = vsel %vm527, %v473, %v559
  %v592 = vsel %vm528, %v476, %v560
  %v593 = vsel %vm529, %v481, %v561
  %v594 = vsel %vm530, %v484, %v562
  %v595 = vsel %vm531, %v489, %v563
  %v596 = vsel %vm532, %v492, %v564
  %v597 = vsel %vm533, %v497, %v565
  %v598 = vsel %vm534, %v500, %v566
  %vm599 = vcmask 64512
  %600 = vst.msk [vmem:[%s3] sm:$0xff] %vm599, %v567
  %601 = vst.msk [vmem:[%s3 + $0x8] sm:$0xff] %vm599, %v568
  %602 = vst.msk [vmem:[%s3 + $0x10] sm:$0xff] %vm599, %v569
  %603 = vst.msk [vmem:[%s3 + $0x18] sm:$0xff] %vm599, %v570
  %604 = vst.msk [vmem:[%s3 + $0x20] sm:$0xff] %vm599, %v571
  %605 = vst.msk [vmem:[%s3 + $0x28] sm:$0xff] %vm599, %v572
  %606 = vst.msk [vmem:[%s3 + $0x30] sm:$0xff] %vm599, %v573
  %607 = vst.msk [vmem:[%s3 + $0x38] sm:$0xff] %vm599, %v574
  %608 = vst.msk [vmem:[%s3 + $0x40] sm:$0xff] %vm599, %v575
  %609 = vst.msk [vmem:[%s3 + $0x48] sm:$0xff] %vm599, %v576
  %610 = vst.msk [vmem:[%s3 + $0x50] sm:$0xff] %vm599, %v577
  %611 = vst.msk [vmem:[%s3 + $0x58] sm:$0xff] %vm599, %v578
  %612 = vst.msk [vmem:[%s3 + $0x60] sm:$0xff] %vm599, %v579
  %613 = vst.msk [vmem:[%s3 + $0x68] sm:$0xff] %vm599, %v580
  %614 = vst.msk [vmem:[%s3 + $0x70] sm:$0xff] %vm599, %v581
  %615 = vst.msk [vmem:[%s3 + $0x78] sm:$0xff] %vm599, %v582
  %616 = vst.msk [vmem:[%s3 + $0x80] sm:$0xff] %vm599, %v583
  %617 = vst.msk [vmem:[%s3 + $0x88] sm:$0xff] %vm599, %v584
  %618 = vst.msk [vmem:[%s3 + $0x90] sm:$0xff] %vm599, %v585
  %619 = vst.msk [vmem:[%s3 + $0x98] sm:$0xff] %vm599, %v586
  %620 = vst.msk [vmem:[%s3 + $0xa0] sm:$0xff] %vm599, %v587
  %621 = vst.msk [vmem:[%s3 + $0xa8] sm:$0xff] %vm599, %v588
  %622 = vst.msk [vmem:[%s3 + $0xb0] sm:$0xff] %vm599, %v589
  %623 = vst.msk [vmem:[%s3 + $0xb8] sm:$0xff] %vm599, %v590
  %624 = vst.msk [vmem:[%s3 + $0xc0] sm:$0xff] %vm599, %v591
  %625 = vst.msk [vmem:[%s3 + $0xc8] sm:$0xff] %vm599, %v592
  %626 = vst.msk [vmem:[%s3 + $0xd0] sm:$0xff] %vm599, %v593
  %627 = vst.msk [vmem:[%s3 + $0xd8] sm:$0xff] %vm599, %v594
  %628 = vst.msk [vmem:[%s3 + $0xe0] sm:$0xff] %vm599, %v595
  %629 = vst.msk [vmem:[%s3 + $0xe8] sm:$0xff] %vm599, %v596
  %630 = vst.msk [vmem:[%s3 + $0xf0] sm:$0xff] %vm599, %v597
  %vm631 = vcmask 58368
  %632 = vst.msk [vmem:[%s3 + $0xf8] sm:$0x3] %vm631, %v598
  // Predicated region
  $region14: #{encoder_graph_forward.5} parent=0 // pred_check
    _
  $region15: #{encoder_graph_forward.5} parent=0 // pred_check_branch
    %634 = sbr.rel (0) target = $region17
  $region16: #{encoder_graph_forward.5} parent=0 // pred_region
    _
  $region17: #{encoder_graph_forward.5} parent=0 // pred_fallthru
    _
  // Predicated region
  $region18: #{encoder_graph_forward.5} parent=0 // pred_check
    _
  $region19: #{encoder_graph_forward.5} parent=0 // pred_check_branch
    %636 = sbr.rel (0) target = $region21
  $region20: #{encoder_graph_forward.5} parent=0 // pred_region
    _
  $region21: #{encoder_graph_forward.5} parent=0 // pred_fallthru
    _

// kernel: encoder_graph_forward.6
$region0: #{encoder_graph_forward.6}
  #allocation0 [shape = 'u32[]', space=smem, size = 0x4, offset = 0x4, fixed_abs, tag = 'smem constant byte address 0x4 - core index']
  #allocation1 [shape = 'u32[144,128]{1,0:T(1,128)}', space=vmem, size = 0x12000, scoped, tag = 'internal scratch']
  %s0 = inlined_call_operand.vmem [shape: bf16[90,72], index: 0, kind: input, shape index: {}]
  %s1 = inlined_call_operand.vmem [shape: bf16[72,4], index: 1, kind: input, shape index: {}]
  %s2 = inlined_call_operand.vmem [shape: f32[1,4], index: 2, kind: input, shape index: {}]
  %s3 = inlined_call_operand.vmem [shape: f32[90,4], index: 3, kind: output, shape index: {}]
  %s4 = sld [smem:[#allocation0]]
  $region22: #{encoder_graph_forward.6} parent=0
    _
  %s6 = ssub.s32 1, %s4
  %s7 = scalar_select 0, %s6, %s4
  // Predicated region
  $region2: #{encoder_graph_forward.6} parent=0 // pred_check
    _
  $region3: #{encoder_graph_forward.6} parent=0 // pred_check_branch
    %9 = sbr.rel (0) target = $region5
  $region4: #{encoder_graph_forward.6} parent=0 // pred_region
    _
  $region5: #{encoder_graph_forward.6} parent=0 // pred_fallthru
    _
  // Predicated region
  $region6: #{encoder_graph_forward.6} parent=0 // pred_check
    _
  $region7: #{encoder_graph_forward.6} parent=0 // pred_check_branch
    %11 = sbr.rel (0) target = $region9
  $region8: #{encoder_graph_forward.6} parent=0 // pred_region
    _
  $region9: #{encoder_graph_forward.6} parent=0 // pred_fallthru
    _
  // Predicated region
  $region10: #{encoder_graph_forward.6} parent=0 // pred_check
    _
  $region11: #{encoder_graph_forward.6} parent=0 // pred_check_branch
    %13 = sbr.rel (0) target = $region13
  $region12: #{encoder_graph_forward.6} parent=0 // pred_region
    _
  $region13: #{encoder_graph_forward.6} parent=0 // pred_fallthru
    _
  %v15 = vld [vmem:[%s0] sm:$0xf]
  %v16 = vld [vmem:[%s0 + $0x4] sm:$0xf]
  %v17 = vld [vmem:[%s0 + $0x8] sm:$0xf]
  %v18 = vld [vmem:[%s0 + $0xc] sm:$0xf]
  %v19 = vld [vmem:[%s0 + $0x10] sm:$0xf]
  %v20 = vld [vmem:[%s0 + $0x14] sm:$0xf]
  %v21 = vld [vmem:[%s0 + $0x18] sm:$0xf]
  %v22 = vld [vmem:[%s0 + $0x1c] sm:$0xf]
  %v23 = vld [vmem:[%s0 + $0x20] sm:$0xf]
  %v24 = vld [vmem:[%s0 + $0x24] sm:$0xf]
  %v25 = vld [vmem:[%s0 + $0x28] sm:$0xf]
  %v26 = vld [vmem:[%s0 + $0x2c] sm:$0x1]
  %v27 = vld [vmem:[%s1] sm:$0xf]
  %v28 = vld [vmem:[%s1 + $0x4] sm:$0xf]
  %v29 = vld [vmem:[%s1 + $0x8] sm:$0xf]
  %v30 = vld [vmem:[%s1 + $0xc] sm:$0xf]
  %v31 = vld [vmem:[%s1 + $0x10] sm:$0xf]
  %v32 = vld [vmem:[%s1 + $0x14] sm:$0xf]
  %v33 = vld [vmem:[%s1 + $0x18] sm:$0xf]
  %v34 = vld [vmem:[%s1 + $0x1c] sm:$0xf]
  %v35 = vld [vmem:[%s1 + $0x20] sm:$0xf]
  %v36 = vld [vmem:[%s2] sm:$0x1]
  %v38 = vlaneseq
  %v39 = vshrl.u32 %v38, 7
  %v40 = vsub.s32 0, %v39
  %v41 = vrot.slane %v36, %v40
  %v55 = vunpack.c.l.b16 %v15
  %v56 = vunpack.c.l.b16 %v16
  %v57 = vunpack.c.l.b16 %v17
  %v58 = vunpack.c.l.b16 %v18
  %v59 = vunpack.c.l.b16 %v19
  %v60 = vunpack.c.l.b16 %v20
  %v61 = vunpack.c.l.b16 %v21
  %v62 = vunpack.c.l.b16 %v22
  %v63 = vunpack.c.l.b16 %v23
  %v64 = vunpack.c.l.b16 %v24
  %v65 = vunpack.c.l.b16 %v25
  %v66 = vunpack.c.l.b16 %v26
  %v67 = vpack.c.b16 %v56, %v55
  %v68 = vpack.c.b16 %v58, %v57
  %v69 = vpack.c.b16 %v60, %v59
  %v70 = vpack.c.b16 %v62, %v61
  %v71 = vpack.c.b16 %v64, %v63
  %v72 = vpack.c.b16 %v66, %v65
  %v82 = vunpack.c.l.b16 %v27
  %v83 = vunpack.c.l.b16 %v28
  %v84 = vunpack.c.l.b16 %v29
  %v85 = vunpack.c.l.b16 %v30
  %v86 = vunpack.c.l.b16 %v31
  %v87 = vunpack.c.l.b16 %v32
  %v88 = vunpack.c.l.b16 %v33
  %v89 = vunpack.c.l.b16 %v34
  %v90 = vunpack.c.l.b16 %v35
  %v91 = vpack.c.b16 %v83, %v82
  %v92 = vpack.c.b16 %v85, %v84
  %v93 = vpack.c.b16 %v87, %v86
  %v94 = vpack.c.b16 %v89, %v88
  %v95 = vpack.c.b16 %v90, %v90
  %vm100 = vcmask 588800
  %v102 = vsel %vm100, %v67, 0
  %v105 = vsel %vm100, %v68, 0
  %v108 = vsel %vm100, %v69, 0
  %v111 = vsel %vm100, %v70, 0
  %v114 = vsel %vm100, %v71, 0
  %v117 = vsel %vm100, %v72, 0
  %vm119 = vcmask 1043456
  %v121 = vsel %vm119, %v95, 0
  %123 = vmatprep.subr.bf16.mxu0 0
  %124 = vmatpush1.bf16.msra.mxu0 %v91
  %125 = vmatprep.subr.bf16.mxu0 0
  %126 = vmatpush1.bf16.msra.mxu0 %v92
  %127 = vmatprep.subr.bf16.mxu0 0
  %128 = vmatpush1.bf16.msra.mxu0 %v93
  %129 = vmatprep.subr.bf16.mxu0 0
  %130 = vmatpush1.bf16.msra.mxu0 %v94
  %131 = vmatprep.subr.bf16.mxu0 0
  %132 = vmatpush1.bf16.msra.mxu0 %v121
  %133 = vmatprep.subr.bf16.mxu0 0
  %134 = vmatpush1.bf16.msra.mxu0 0
  %135 = vmatprep.subr.bf16.mxu0 0
  %136 = vmatpush1.bf16.msra.mxu0 0
  %137 = vmatprep.subr.bf16.mxu0 0
  %138 = vmatpush1.bf16.msra.mxu0 0
  %139 = vmatprep.subr.bf16.mxu0 0
  %140 = vmatpush1.bf16.msra.mxu0 0
  %141 = vmatprep.subr.bf16.mxu0 0
  %142 = vmatpush1.bf16.msra.mxu0 0
  %143 = vmatprep.subr.bf16.mxu0 0
  %144 = vmatpush1.bf16.msra.mxu0 0
  %145 = vmatprep.subr.bf16.mxu0 0
  %146 = vmatpush1.bf16.msra.mxu0 0
  %147 = vmatprep.subr.bf16.mxu0 0
  %148 = vmatpush1.bf16.msra.mxu0 0
  %149 = vmatprep.subr.bf16.mxu0 0
  %150 = vmatpush1.bf16.msra.mxu0 0
  %151 = vmatprep.subr.bf16.mxu0 0
  %152 = vmatpush1.bf16.msra.mxu0 0
  %153 = vmatprep.subr.bf16.mxu0 0
  %154 = vmatpush1.bf16.msra.mxu0 0
  %155 = vmatprep.mubr.bf16.mxu0 0
  %156 = vmatmul.mubr.bf16.gmra.mrb[0].mxu0 %v102
  %v157 = vpop.f32.mrb[0].mxu0
  %v158 = vadd.f32 %v41, %v157
  %v159 = vpop.f32.mrb[0].mxu0
  %v160 = vpop.f32.mrb[0].mxu0
  %v161 = vadd.f32 %v41, %v160
  %v162 = vpop.f32.mrb[0].mxu0
  %163 = vmatprep.mubr.bf16.mxu0 0
  %164 = vmatmul.mubr.bf16.gmra.mrb[0].mxu0 %v105
  %v165 = vpop.f32.mrb[0].mxu0
  %v166 = vadd.f32 %v41, %v165
  %v167 = vpop.f32.mrb[0].mxu0
  %v168 = vpop.f32.mrb[0].mxu0
  %v169 = vadd.f32 %v41, %v168
  %v170 = vpop.f32.mrb[0].mxu0
  %171 = vmatprep.mubr.bf16.mxu0 0
  %172 = vmatmul.mubr.bf16.gmra.mrb[0].mxu0 %v108
  %v173 = vpop.f32.mrb[0].mxu0
  %v174 = vadd.f32 %v41, %v173
  %v175 = vpop.f32.mrb[0].mxu0
  %v176 = vpop.f32.mrb[0].mxu0
  %v177 = vadd.f32 %v41, %v176
  %v178 = vpop.f32.mrb[0].mxu0
  %179 = vmatprep.mubr.bf16.mxu0 0
  %180 = vmatmul.mubr.bf16.gmra.mrb[0].mxu0 %v111
  %v181 = vpop.f32.mrb[0].mxu0
  %v182 = vadd.f32 %v41, %v181
  %v183 = vpop.f32.mrb[0].mxu0
  %v184 = vpop.f32.mrb[0].mxu0
  %v185 = vadd.f32 %v41, %v184
  %v186 = vpop.f32.mrb[0].mxu0
  %187 = vmatprep.mubr.bf16.mxu0 0
  %188 = vmatmul.mubr.bf16.gmra.mrb[0].mxu0 %v114
  %v189 = vpop.f32.mrb[0].mxu0
  %v190 = vadd.f32 %v41, %v189
  %v191 = vpop.f32.mrb[0].mxu0
  %v192 = vpop.f32.mrb[0].mxu0
  %v193 = vadd.f32 %v41, %v192
  %v194 = vpop.f32.mrb[0].mxu0
  %195 = vmatprep.mubr.bf16.mxu0 0
  %196 = vmatmul.mubr.bf16.gmra.mrb[0].mxu0 %v117
  %v197 = vpop.f32.mrb[0].mxu0
  %v198 = vadd.f32 %v41, %v197
  %v199 = vpop.f32.mrb[0].mxu0
  %v200 = vpop.f32.mrb[0].mxu0
  %v201 = vadd.f32 %v41, %v200
  %v202 = vpop.f32.mrb[0].mxu0
  %203 = vdwg.mxu0
  %vm204 = vcmp.ge.f32.partialorder %v158, 0.0
  %vm205 = vcmp.ge.f32.partialorder %v161, 0.0
  %vm206 = vcmp.ge.f32.partialorder %v166, 0.0
  %vm207 = vcmp.ge.f32.partialorder %v169, 0.0
  %vm208 = vcmp.ge.f32.partialorder %v174, 0.0
  %vm209 = vcmp.ge.f32.partialorder %v177, 0.0
  %vm210 = vcmp.ge.f32.partialorder %v182, 0.0
  %vm211 = vcmp.ge.f32.partialorder %v185, 0.0
  %vm212 = vcmp.ge.f32.partialorder %v190, 0.0
  %vm213 = vcmp.ge.f32.partialorder %v193, 0.0
  %vm214 = vcmp.ge.f32.partialorder %v198, 0.0
  %vm215 = vcmp.ge.f32.partialorder %v201, 0.0
  %v216 = vmul.f32 %v158, 0.01
  %v217 = vmul.f32 %v161, 0.01
  %v218 = vmul.f32 %v166, 0.01
  %v219 = vmul.f32 %v169, 0.01
  %v220 = vmul.f32 %v174, 0.01
  %v221 = vmul.f32 %v177, 0.01
  %v222 = vmul.f32 %v182, 0.01
  %v223 = vmul.f32 %v185, 0.01
  %v224 = vmul.f32 %v190, 0.01
  %v225 = vmul.f32 %v193, 0.01
  %v226 = vmul.f32 %v198, 0.01
  %v227 = vmul.f32 %v201, 0.01
  %v228 = vsel %vm204, %v158, %v216
  %v229 = vsel %vm205, %v161, %v217
  %v230 = vsel %vm206, %v166, %v218
  %v231 = vsel %vm207, %v169, %v219
  %v232 = vsel %vm208, %v174, %v220
  %v233 = vsel %vm209, %v177, %v221
  %v234 = vsel %vm210, %v182, %v222
  %v235 = vsel %vm211, %v185, %v223
  %v236 = vsel %vm212, %v190, %v224
  %v237 = vsel %vm213, %v193, %v225
  %v238 = vsel %vm214, %v198, %v226
  %v239 = vsel %vm215, %v201, %v227
  %vm240 = vcmask 31744
  %241 = vst.msk [vmem:[%s3] sm:$0xff] %vm240, %v228
  %242 = vst.msk [vmem:[%s3 + $0x8] sm:$0xff] %vm240, %v229
  %243 = vst.msk [vmem:[%s3 + $0x10] sm:$0xff] %vm240, %v230
  %244 = vst.msk [vmem:[%s3 + $0x18] sm:$0xff] %vm240, %v231
  %245 = vst.msk [vmem:[%s3 + $0x20] sm:$0xff] %vm240, %v232
  %246 = vst.msk [vmem:[%s3 + $0x28] sm:$0xff] %vm240, %v233
  %247 = vst.msk [vmem:[%s3 + $0x30] sm:$0xff] %vm240, %v234
  %248 = vst.msk [vmem:[%s3 + $0x38] sm:$0xff] %vm240, %v235
  %249 = vst.msk [vmem:[%s3 + $0x40] sm:$0xff] %vm240, %v236
  %250 = vst.msk [vmem:[%s3 + $0x48] sm:$0xff] %vm240, %v237
  %251 = vst.msk [vmem:[%s3 + $0x50] sm:$0xff] %vm240, %v238
  %vm252 = vcmask 25600
  %253 = vst.msk [vmem:[%s3 + $0x58] sm:$0x3] %vm252, %v239
  // Predicated region
  $region14: #{encoder_graph_forward.6} parent=0 // pred_check
    _
  $region15: #{encoder_graph_forward.6} parent=0 // pred_check_branch
    %255 = sbr.rel (0) target = $region17
  $region16: #{encoder_graph_forward.6} parent=0 // pred_region
    _
  $region17: #{encoder_graph_forward.6} parent=0 // pred_fallthru
    _
  // Predicated region
  $region18: #{encoder_graph_forward.6} parent=0 // pred_check
    _
  $region19: #{encoder_graph_forward.6} parent=0 // pred_check_branch
    %257 = sbr.rel (0) target = $region21
  $region20: #{encoder_graph_forward.6} parent=0 // pred_region
    _
  $region21: #{encoder_graph_forward.6} parent=0 // pred_fallthru
    _

// kernel: encoder_graph_forward.7
$region0: #{encoder_graph_forward.7}
  #allocation0 [shape = 'u32[]', space=smem, size = 0x4, offset = 0x4, fixed_abs, tag = 'smem constant byte address 0x4 - core index']
  #allocation1 [shape = 'u32[144,128]{1,0:T(1,128)}', space=vmem, size = 0x12000, scoped, tag = 'internal scratch']
  #allocation2 [shape = 'f32[20,4]{1,0:T(8,128)}', space=vmem, size = 0x3000, scoped, tag = 'scratch operand']
  %s0 = inlined_call_operand.vmem [shape: f32[2,5,36], index: 0, kind: input, shape index: {}]
  %s1 = inlined_call_operand.vmem [shape: f32[20,5], index: 1, kind: input, shape index: {}]
  %s2 = inlined_call_operand.vmem [shape: f32[20,5], index: 2, kind: input, shape index: {}]
  %s3 = inlined_call_operand.vmem [shape: f32[5,20], index: 3, kind: input, shape index: {}]
  %s4 = inlined_call_operand.vmem [shape: f32[5,20], index: 4, kind: input, shape index: {}]
  %s5 = inlined_call_operand.vmem [shape: f32[20,5], index: 5, kind: input, shape index: {}]
  %s6 = inlined_call_operand.vmem [shape: f32[5,20], index: 6, kind: input, shape index: {}]
  %s7 = inlined_call_operand.vmem [shape: f32[20,4], index: 7, kind: input, shape index: {}]
  %s8 = inlined_call_operand.vmem [shape: f32[36,36], index: 8, kind: input, shape index: {}]
  %s9 = inlined_call_operand.vmem [shape: f32[36,36], index: 9, kind: input, shape index: {}]
  %s10 = inlined_call_operand.vmem [shape: f32[1,36], index: 10, kind: input, shape index: {}]
  %s11 = inlined_call_operand.vmem [shape: f32[36,36], index: 11, kind: input, shape index: {}]
  %s12 = inlined_call_operand.vmem [shape: f32[1,36], index: 12, kind: input, shape index: {}]
  %s13 = inlined_call_operand.vmem [shape: f32[36,36], index: 13, kind: input, shape index: {}]
  %s14 = inlined_call_operand.vmem [shape: f32[36,36], index: 14, kind: input, shape index: {}]
  %s15 = inlined_call_operand.vmem [shape: f32[36,36], index: 15, kind: input, shape index: {}]
  %s16 = inlined_call_operand.vmem [shape: f32[1,36], index: 16, kind: input, shape index: {}]
  %s17 = inlined_call_operand.vmem [shape: f32[4,20,36], index: 17, kind: input, shape index: {}]
  %s18 = inlined_call_operand.vmem [shape: f32[5,4], index: 18, kind: input, shape index: {}]
  %s19 = inlined_call_operand.vmem [shape: f32[32,32], index: 19, kind: input, shape index: {}]
  %s20 = inlined_call_operand.vmem [shape: f32[1,32], index: 20, kind: input, shape index: {}]
  %s21 = inlined_call_operand.vmem [shape: f32[32,32], index: 21, kind: input, shape index: {}]
  %s22 = inlined_call_operand.vmem [shape: f32[32,32], index: 22, kind: input, shape index: {}]
  %s23 = inlined_call_operand.vmem [shape: f32[1,32], index: 23, kind: input, shape index: {}]
  %s24 = inlined_call_operand.vmem [shape: f32[32,32], index: 24, kind: input, shape index: {}]
  %s25 = inlined_call_operand.vmem [shape: f32[1,32], index: 25, kind: input, shape index: {}]
  %s26 = inlined_call_operand.vmem [shape: f32[2,5,32], index: 26, kind: output, shape index: {}]
  %s27 = sld [smem:[#allocation0]]
  $region137: #{encoder_graph_forward.7} parent=0
    _
  %s29 = ssub.s32 1, %s27
  %s30 = scalar_select 0, %s29, %s27
  loop: start=0, step=1, limit=4
  $region2: #{encoder_graph_forward.7} parent=0 // loop_pre_header
    _
  $region3: #{encoder_graph_forward.7} parent=0 // loop_header
    %s32 = sphi 0, %s36
    %p33 = scmp.ge.s32.totalorder %s32, 4
    %s42 = sphi 0, %s44
    %s45 = sphi 0, %s42
    %s46 = sphi 0, %s45
    %s62 = sphi 0, %s46
    %s66 = sphi 0, %s66
    %s68 = sphi 0, %s66
    %s69 = sphi 0, %s68
    %s83 = sphi 0, %s69
    %s87 = sphi 0, %s87
    %s89 = sphi 0, %s87
    %s90 = sphi 0, %s89
    %s104 = sphi 0, %s90
    %s108 = sphi 0, %s108
    %s110 = sphi 0, %s108
    %s111 = sphi 0, %s110
    %s125 = sphi 0, %s111
    %s129 = sphi 0, %s129
    %s131 = sphi 0, %s129
    %s132 = sphi 0, %s131
    %s146 = sphi 0, %s132
    %s150 = sphi 0, %s150
    %s152 = sphi 0, %s150
    %s153 = sphi 0, %s152
    %s167 = sphi 0, %s153
    %s171 = sphi 0, %s171
    %s173 = sphi 0, %s171
    %s174 = sphi 0, %s173
    %s188 = sphi 0, %s174
    %s192 = sphi 0, %s192
    %s194 = sphi 0, %s192
    %s195 = sphi 0, %s194
    %s209 = sphi 0, %s195
    %s213 = sphi 0, %s213
    %s215 = sphi 0, %s213
    %s216 = sphi 0, %s215
    %s230 = sphi 0, %s216
    %s234 = sphi 0, %s234
    %s236 = sphi 0, %s234
    %s237 = sphi 0, %s236
    %s251 = sphi 0, %s237
    %s255 = sphi 0, %s255
    %s257 = sphi 0, %s255
    %s258 = sphi 0, %s257
    %s272 = sphi 0, %s258
    %s276 = sphi 0, %s276
    %s278 = sphi 0, %s276
    %s279 = sphi 0, %s278
    %s293 = sphi 0, %s279
    %s297 = sphi 0, %s297
    %s299 = sphi 0, %s297
    %s300 = sphi 0, %s299
    %s314 = sphi 0, %s300
    %s318 = sphi 0, %s318
    %s320 = sphi 0, %s318
    %s321 = sphi 0, %s320
    %s335 = sphi 0, %s321
    %s339 = sphi 0, %s339
    %s341 = sphi 0, %s339
    %s342 = sphi 0, %s341
    %s356 = sphi 0, %s342
    %s360 = sphi 0, %s360
    %s362 = sphi 0, %s360
    %s363 = sphi 0, %s362
    %s377 = sphi 0, %s363
    %s381 = sphi 0, %s381
    %s383 = sphi 0, %s381
    %s384 = sphi 0, %s383
    %s398 = sphi 0, %s384
    %s402 = sphi 0, %s402
    %s404 = sphi 0, %s402
    %s405 = sphi 0, %s404
    %s419 = sphi 0, %s405
    %s423 = sphi 0, %s423
    %s425 = sphi 0, %s423
    %s426 = sphi 0, %s425
    %s440 = sphi 0, %s426
    %s444 = sphi 0, %s444
    %s446 = sphi 0, %s444
    %s447 = sphi 0, %s446
    %s461 = sphi 0, %s447
    %s465 = sphi 0, %s465
    %s467 = sphi 0, %s465
    %s468 = sphi 0, %s467
    %s482 = sphi 0, %s468
    %s486 = sphi 0, %s486
    %s488 = sphi 0, %s486
    %s489 = sphi 0, %s488
    %s503 = sphi 0, %s489
    %s507 = sphi 0, %s507
    %s509 = sphi 0, %s507
    %s510 = sphi 0, %s509
    %s524 = sphi 0, %s510
    %s528 = sphi 0, %s528
    %s530 = sphi 0, %s528
    %s531 = sphi 0, %s530
    %s545 = sphi 0, %s531
    %s549 = sphi 0, %s549
    %s551 = sphi 0, %s549
    %s552 = sphi 0, %s551
    %s566 = sphi 0, %s552
    %s570 = sphi 0, %s570
    %s572 = sphi 0, %s570
    %s573 = sphi 0, %s572
    %s587 = sphi 0, %s573
    %s593 = sphi 0, %s595
    %s596 = sphi 0, %s593
    %s597 = sphi 0, %s596
    %s613 = sphi 0, %s597
  $region4: #{encoder_graph_forward.7} parent=0 // loop_header_branch
    %35 = sbr.rel (%p33) target = $region8
  $region5: #{encoder_graph_forward.7} parent=0 // loop_body
    %s37 = ssub.s32 %s32, 1
    %s38 = ssub.s32 %s32, 2
    %s39 = sadd.s32 %s32, 1
    %s40 = ssub.s32 %s32, %s39
    %p41 = scmp.eq.s32.totalorder %s40, 0
    %s43 = sadd.s32 %s42, 1
    %s44 = scalar_select %p41, %s42, %s43
    %p47 = pneg %p41
    %p48 = scmp.eq.s32.totalorder %s32, 1
    %p49 = por %p47, %p48
    %p50 = scmp.ne.s32.totalorder %s42, %s45
    %p51 = scmp.eq.s32.totalorder %s32, 0
    %p52 = por %p50, %p51
    %p53 = scmp.ne.s32.totalorder %s42, %s45
    %p54 = scmp.eq.s32.totalorder %s37, 1
    %p55 = por %p53, %p54
    %p56 = scmp.ne.s32.totalorder %s45, %s46
    %p57 = scmp.eq.s32.totalorder %s37, 0
    %p58 = por %p56, %p57
    %p59 = scmp.ne.s32.totalorder %s45, %s46
    %p60 = scmp.eq.s32.totalorder %s38, 1
    %p61 = por %p59, %p60
    %p63 = scmp.ne.s32.totalorder %s46, %s62
    %p64 = scmp.eq.s32.totalorder %s38, 0
    %p65 = por %p63, %p64
    %s67 = sadd.s32 %s66, 1
    %p70 = scmp.eq.s32.totalorder %s32, 1
    %p71 = scmp.ne.s32.totalorder %s66, %s68
    %p72 = scmp.eq.s32.totalorder %s32, 0
    %p73 = por %p71, %p72
    %p74 = scmp.ne.s32.totalorder %s66, %s68
    %p75 = scmp.eq.s32.totalorder %s37, 1
    %p76 = por %p74, %p75
    %p77 = scmp.ne.s32.totalorder %s68, %s69
    %p78 = scmp.eq.s32.totalorder %s37, 0
    %p79 = por %p77, %p78
    %p80 = scmp.ne.s32.totalorder %s68, %s69
    %p81 = scmp.eq.s32.totalorder %s38, 1
    %p82 = por %p80, %p81
    %p84 = scmp.ne.s32.totalorder %s69, %s83
    %p85 = scmp.eq.s32.totalorder %s38, 0
    %p86 = por %p84, %p85
    %s88 = sadd.s32 %s87, 1
    %p91 = scmp.eq.s32.totalorder %s32, 1
    %p92 = scmp.ne.s32.totalorder %s87, %s89
    %p93 = scmp.eq.s32.totalorder %s32, 0
    %p94 = por %p92, %p93
    %p95 = scmp.ne.s32.totalorder %s87, %s89
    %p96 = scmp.eq.s32.totalorder %s37, 1
    %p97 = por %p95, %p96
    %p98 = scmp.ne.s32.totalorder %s89, %s90
    %p99 = scmp.eq.s32.totalorder %s37, 0
    %p100 = por %p98, %p99
    %p101 = scmp.ne.s32.totalorder %s89, %s90
    %p102 = scmp.eq.s32.totalorder %s38, 1
    %p103 = por %p101, %p102
    %p105 = scmp.ne.s32.totalorder %s90, %s104
    %p106 = scmp.eq.s32.totalorder %s38, 0
    %p107 = por %p105, %p106
    %s109 = sadd.s32 %s108, 1
    %p112 = scmp.eq.s32.totalorder %s32, 1
    %p113 = scmp.ne.s32.totalorder %s108, %s110
    %p114 = scmp.eq.s32.totalorder %s32, 0
    %p115 = por %p113, %p114
    %p116 = scmp.ne.s32.totalorder %s108, %s110
    %p117 = scmp.eq.s32.totalorder %s37, 1
    %p118 = por %p116, %p117
    %p119 = scmp.ne.s32.totalorder %s110, %s111
    %p120 = scmp.eq.s32.totalorder %s37, 0
    %p121 = por %p119, %p120
    %p122 = scmp.ne.s32.totalorder %s110, %s111
    %p123 = scmp.eq.s32.totalorder %s38, 1
    %p124 = por %p122, %p123
    %p126 = scmp.ne.s32.totalorder %s111, %s125
    %p127 = scmp.eq.s32.totalorder %s38, 0
    %p128 = por %p126, %p127
    %s130 = sadd.s32 %s129, 1
    %p133 = scmp.eq.s32.totalorder %s32, 1
    %p134 = scmp.ne.s32.totalorder %s129, %s131
    %p135 = scmp.eq.s32.totalorder %s32, 0
    %p136 = por %p134, %p135
    %p137 = scmp.ne.s32.totalorder %s129, %s131
    %p138 = scmp.eq.s32.totalorder %s37, 1
    %p139 = por %p137, %p138
    %p140 = scmp.ne.s32.totalorder %s131, %s132
    %p141 = scmp.eq.s32.totalorder %s37, 0
    %p142 = por %p140, %p141
    %p143 = scmp.ne.s32.totalorder %s131, %s132
    %p144 = scmp.eq.s32.totalorder %s38, 1
    %p145 = por %p143, %p144
    %p147 = scmp.ne.s32.totalorder %s132, %s146
    %p148 = scmp.eq.s32.totalorder %s38, 0
    %p149 = por %p147, %p148
    %s151 = sadd.s32 %s150, 1
    %p154 = scmp.eq.s32.totalorder %s32, 1
    %p155 = scmp.ne.s32.totalorder %s150, %s152
    %p156 = scmp.eq.s32.totalorder %s32, 0
    %p157 = por %p155, %p156
    %p158 = scmp.ne.s32.totalorder %s150, %s152
    %p159 = scmp.eq.s32.totalorder %s37, 1
    %p160 = por %p158, %p159
    %p161 = scmp.ne.s32.totalorder %s152, %s153
    %p162 = scmp.eq.s32.totalorder %s37, 0
    %p163 = por %p161, %p162
    %p164 = scmp.ne.s32.totalorder %s152, %s153
    %p165 = scmp.eq.s32.totalorder %s38, 1
    %p166 = por %p164, %p165
    %p168 = scmp.ne.s32.totalorder %s153, %s167
    %p169 = scmp.eq.s32.totalorder %s38, 0
    %p170 = por %p168, %p169
    %s172 = sadd.s32 %s171, 1
    %p175 = scmp.eq.s32.totalorder %s32, 1
    %p176 = scmp.ne.s32.totalorder %s171, %s173
    %p177 = scmp.eq.s32.totalorder %s32, 0
    %p178 = por %p176, %p177
    %p179 = scmp.ne.s32.totalorder %s171, %s173
    %p180 = scmp.eq.s32.totalorder %s37, 1
    %p181 = por %p179, %p180
    %p182 = scmp.ne.s32.totalorder %s173, %s174
    %p183 = scmp.eq.s32.totalorder %s37, 0
    %p184 = por %p182, %p183
    %p185 = scmp.ne.s32.totalorder %s173, %s174
    %p186 = scmp.eq.s32.totalorder %s38, 1
    %p187 = por %p185, %p186
    %p189 = scmp.ne.s32.totalorder %s174, %s188
    %p190 = scmp.eq.s32.totalorder %s38, 0
    %p191 = por %p189, %p190
    %s193 = sadd.s32 %s192, 1
    %p196 = scmp.eq.s32.totalorder %s32, 1
    %p197 = scmp.ne.s32.totalorder %s192, %s194
    %p198 = scmp.eq.s32.totalorder %s32, 0
    %p199 = por %p197, %p198
    %p200 = scmp.ne.s32.totalorder %s192, %s194
    %p201 = scmp.eq.s32.totalorder %s37, 1
    %p202 = por %p200, %p201
    %p203 = scmp.ne.s32.totalorder %s194, %s195
    %p204 = scmp.eq.s32.totalorder %s37, 0
    %p205 = por %p203, %p204
    %p206 = scmp.ne.s32.totalorder %s194, %s195
    %p207 = scmp.eq.s32.totalorder %s38, 1
    %p208 = por %p206, %p207
    %p210 = scmp.ne.s32.totalorder %s195, %s209
    %p211 = scmp.eq.s32.totalorder %s38, 0
    %p212 = por %p210, %p211
    %s214 = sadd.s32 %s213, 1
    %p217 = scmp.eq.s32.totalorder %s32, 1
    %p218 = scmp.ne.s32.totalorder %s213, %s215
    %p219 = scmp.eq.s32.totalorder %s32, 0
    %p220 = por %p218, %p219
    %p221 = scmp.ne.s32.totalorder %s213, %s215
    %p222 = scmp.eq.s32.totalorder %s37, 1
    %p223 = por %p221, %p222
    %p224 = scmp.ne.s32.totalorder %s215, %s216
    %p225 = scmp.eq.s32.totalorder %s37, 0
    %p226 = por %p224, %p225
    %p227 = scmp.ne.s32.totalorder %s215, %s216
    %p228 = scmp.eq.s32.totalorder %s38, 1
    %p229 = por %p227, %p228
    %p231 = scmp.ne.s32.totalorder %s216, %s230
    %p232 = scmp.eq.s32.totalorder %s38, 0
    %p233 = por %p231, %p232
    %s235 = sadd.s32 %s234, 1
    %p238 = scmp.eq.s32.totalorder %s32, 1
    %p239 = scmp.ne.s32.totalorder %s234, %s236
    %p240 = scmp.eq.s32.totalorder %s32, 0
    %p241 = por %p239, %p240
    %p242 = scmp.ne.s32.totalorder %s234, %s236
    %p243 = scmp.eq.s32.totalorder %s37, 1
    %p244 = por %p242, %p243
    %p245 = scmp.ne.s32.totalorder %s236, %s237
    %p246 = scmp.eq.s32.totalorder %s37, 0
    %p247 = por %p245, %p246
    %p248 = scmp.ne.s32.totalorder %s236, %s237
    %p249 = scmp.eq.s32.totalorder %s38, 1
    %p250 = por %p248, %p249
    %p252 = scmp.ne.s32.totalorder %s237, %s251
    %p253 = scmp.eq.s32.totalorder %s38, 0
    %p254 = por %p252, %p253
    %s256 = sadd.s32 %s255, 1
    %p259 = scmp.eq.s32.totalorder %s32, 1
    %p260 = scmp.ne.s32.totalorder %s255, %s257
    %p261 = scmp.eq.s32.totalorder %s32, 0
    %p262 = por %p260, %p261
    %p263 = scmp.ne.s32.totalorder %s255, %s257
    %p264 = scmp.eq.s32.totalorder %s37, 1
    %p265 = por %p263, %p264
    %p266 = scmp.ne.s32.totalorder %s257, %s258
    %p267 = scmp.eq.s32.totalorder %s37, 0
    %p268 = por %p266, %p267
    %p269 = scmp.ne.s32.totalorder %s257, %s258
    %p270 = scmp.eq.s32.totalorder %s38, 1
    %p271 = por %p269, %p270
    %p273 = scmp.ne.s32.totalorder %s258, %s272
    %p274 = scmp.eq.s32.totalorder %s38, 0
    %p275 = por %p273, %p274
    %s277 = sadd.s32 %s276, 1
    %p280 = scmp.eq.s32.totalorder %s32, 1
    %p281 = scmp.ne.s32.totalorder %s276, %s278
    %p282 = scmp.eq.s32.totalorder %s32, 0
    %p283 = por %p281, %p282
    %p284 = scmp.ne.s32.totalorder %s276, %s278
    %p285 = scmp.eq.s32.totalorder %s37, 1
    %p286 = por %p284, %p285
    %p287 = scmp.ne.s32.totalorder %s278, %s279
    %p288 = scmp.eq.s32.totalorder %s37, 0
    %p289 = por %p287, %p288
    %p290 = scmp.ne.s32.totalorder %s278, %s279
    %p291 = scmp.eq.s32.totalorder %s38, 1
    %p292 = por %p290, %p291
    %p294 = scmp.ne.s32.totalorder %s279, %s293
    %p295 = scmp.eq.s32.totalorder %s38, 0
    %p296 = por %p294, %p295
    %s298 = sadd.s32 %s297, 1
    %p301 = scmp.eq.s32.totalorder %s32, 1
    %p302 = scmp.ne.s32.totalorder %s297, %s299
    %p303 = scmp.eq.s32.totalorder %s32, 0
    %p304 = por %p302, %p303
    %p305 = scmp.ne.s32.totalorder %s297, %s299
    %p306 = scmp.eq.s32.totalorder %s37, 1
    %p307 = por %p305, %p306
    %p308 = scmp.ne.s32.totalorder %s299, %s300
    %p309 = scmp.eq.s32.totalorder %s37, 0
    %p310 = por %p308, %p309
    %p311 = scmp.ne.s32.totalorder %s299, %s300
    %p312 = scmp.eq.s32.totalorder %s38, 1
    %p313 = por %p311, %p312
    %p315 = scmp.ne.s32.totalorder %s300, %s314
    %p316 = scmp.eq.s32.totalorder %s38, 0
    %p317 = por %p315, %p316
    %s319 = sadd.s32 %s318, 1
    %p322 = scmp.eq.s32.totalorder %s32, 1
    %p323 = scmp.ne.s32.totalorder %s318, %s320
    %p324 = scmp.eq.s32.totalorder %s32, 0
    %p325 = por %p323, %p324
    %p326 = scmp.ne.s32.totalorder %s318, %s320
    %p327 = scmp.eq.s32.totalorder %s37, 1
    %p328 = por %p326, %p327
    %p329 = scmp.ne.s32.totalorder %s320, %s321
    %p330 = scmp.eq.s32.totalorder %s37, 0
    %p331 = por %p329, %p330
    %p332 = scmp.ne.s32.totalorder %s320, %s321
    %p333 = scmp.eq.s32.totalorder %s38, 1
    %p334 = por %p332, %p333
    %p336 = scmp.ne.s32.totalorder %s321, %s335
    %p337 = scmp.eq.s32.totalorder %s38, 0
    %p338 = por %p336, %p337
    %s340 = sadd.s32 %s339, 1
    %p343 = scmp.eq.s32.totalorder %s32, 1
    %p344 = scmp.ne.s32.totalorder %s339, %s341
    %p345 = scmp.eq.s32.totalorder %s32, 0
    %p346 = por %p344, %p345
    %p347 = scmp.ne.s32.totalorder %s339, %s341
    %p348 = scmp.eq.s32.totalorder %s37, 1
    %p349 = por %p347, %p348
    %p350 = scmp.ne.s32.totalorder %s341, %s342
    %p351 = scmp.eq.s32.totalorder %s37, 0
    %p352 = por %p350, %p351
    %p353 = scmp.ne.s32.totalorder %s341, %s342
    %p354 = scmp.eq.s32.totalorder %s38, 1
    %p355 = por %p353, %p354
    %p357 = scmp.ne.s32.totalorder %s342, %s356
    %p358 = scmp.eq.s32.totalorder %s38, 0
    %p359 = por %p357, %p358
    %s361 = sadd.s32 %s360, 1
    %p364 = scmp.eq.s32.totalorder %s32, 1
    %p365 = scmp.ne.s32.totalorder %s360, %s362
    %p366 = scmp.eq.s32.totalorder %s32, 0
    %p367 = por %p365, %p366
    %p368 = scmp.ne.s32.totalorder %s360, %s362
    %p369 = scmp.eq.s32.totalorder %s37, 1
    %p370 = por %p368, %p369
    %p371 = scmp.ne.s32.totalorder %s362, %s363
    %p372 = scmp.eq.s32.totalorder %s37, 0
    %p373 = por %p371, %p372
    %p374 = scmp.ne.s32.totalorder %s362, %s363
    %p375 = scmp.eq.s32.totalorder %s38, 1
    %p376 = por %p374, %p375
    %p378 = scmp.ne.s32.totalorder %s363, %s377
    %p379 = scmp.eq.s32.totalorder %s38, 0
    %p380 = por %p378, %p379
    %s382 = sadd.s32 %s381, 1
    %p385 = scmp.eq.s32.totalorder %s32, 1
    %p386 = scmp.ne.s32.totalorder %s381, %s383
    %p387 = scmp.eq.s32.totalorder %s32, 0
    %p388 = por %p386, %p387
    %p389 = scmp.ne.s32.totalorder %s381, %s383
    %p390 = scmp.eq.s32.totalorder %s37, 1
    %p391 = por %p389, %p390
    %p392 = scmp.ne.s32.totalorder %s383, %s384
    %p393 = scmp.eq.s32.totalorder %s37, 0
    %p394 = por %p392, %p393
    %p395 = scmp.ne.s32.totalorder %s383, %s384
    %p396 = scmp.eq.s32.totalorder %s38, 1
    %p397 = por %p395, %p396
    %p399 = scmp.ne.s32.totalorder %s384, %s398
    %p400 = scmp.eq.s32.totalorder %s38, 0
    %p401 = por %p399, %p400
    %s403 = sadd.s32 %s402, 1
    %p406 = scmp.eq.s32.totalorder %s32, 1
    %p407 = scmp.ne.s32.totalorder %s402, %s404
    %p408 = scmp.eq.s32.totalorder %s32, 0
    %p409 = por %p407, %p408
    %p410 = scmp.ne.s32.totalorder %s402, %s404
    %p411 = scmp.eq.s32.totalorder %s37, 1
    %p412 = por %p410, %p411
    %p413 = scmp.ne.s32.totalorder %s404, %s405
    %p414 = scmp.eq.s32.totalorder %s37, 0
    %p415 = por %p413, %p414
    %p416 = scmp.ne.s32.totalorder %s404, %s405
    %p417 = scmp.eq.s32.totalorder %s38, 1
    %p418 = por %p416, %p417
    %p420 = scmp.ne.s32.totalorder %s405, %s419
    %p421 = scmp.eq.s32.totalorder %s38, 0
    %p422 = por %p420, %p421
    %s424 = sadd.s32 %s423, 1
    %p427 = scmp.eq.s32.totalorder %s32, 1
    %p428 = scmp.ne.s32.totalorder %s423, %s425
    %p429 = scmp.eq.s32.totalorder %s32, 0
    %p430 = por %p428, %p429
    %p431 = scmp.ne.s32.totalorder %s423, %s425
    %p432 = scmp.eq.s32.totalorder %s37, 1
    %p433 = por %p431, %p432
    %p434 = scmp.ne.s32.totalorder %s425, %s426
    %p435 = scmp.eq.s32.totalorder %s37, 0
    %p436 = por %p434, %p435
    %p437 = scmp.ne.s32.totalorder %s425, %s426
    %p438 = scmp.eq.s32.totalorder %s38, 1
    %p439 = por %p437, %p438
    %p441 = scmp.ne.s32.totalorder %s426, %s440
    %p442 = scmp.eq.s32.totalorder %s38, 0
    %p443 = por %p441, %p442
    %s445 = sadd.s32 %s444, 1
    %p448 = scmp.eq.s32.totalorder %s32, 1
    %p449 = scmp.ne.s32.totalorder %s444, %s446
    %p450 = scmp.eq.s32.totalorder %s32, 0
    %p451 = por %p449, %p450
    %p452 = scmp.ne.s32.totalorder %s444, %s446
    %p453 = scmp.eq.s32.totalorder %s37, 1
    %p454 = por %p452, %p453
    %p455 = scmp.ne.s32.totalorder %s446, %s447
    %p456 = scmp.eq.s32.totalorder %s37, 0
    %p457 = por %p455, %p456
    %p458 = scmp.ne.s32.totalorder %s446, %s447
    %p459 = scmp.eq.s32.totalorder %s38, 1
    %p460 = por %p458, %p459
    %p462 = scmp.ne.s32.totalorder %s447, %s461
    %p463 = scmp.eq.s32.totalorder %s38, 0
    %p464 = por %p462, %p463
    %s466 = sadd.s32 %s465, 1
    %p469 = scmp.eq.s32.totalorder %s32, 1
    %p470 = scmp.ne.s32.totalorder %s465, %s467
    %p471 = scmp.eq.s32.totalorder %s32, 0
    %p472 = por %p470, %p471
    %p473 = scmp.ne.s32.totalorder %s465, %s467
    %p474 = scmp.eq.s32.totalorder %s37, 1
    %p475 = por %p473, %p474
    %p476 = scmp.ne.s32.totalorder %s467, %s468
    %p477 = scmp.eq.s32.totalorder %s37, 0
    %p478 = por %p476, %p477
    %p479 = scmp.ne.s32.totalorder %s467, %s468
    %p480 = scmp.eq.s32.totalorder %s38, 1
    %p481 = por %p479, %p480
    %p483 = scmp.ne.s32.totalorder %s468, %s482
    %p484 = scmp.eq.s32.totalorder %s38, 0
    %p485 = por %p483, %p484
    %s487 = sadd.s32 %s486, 1
    %p490 = scmp.eq.s32.totalorder %s32, 1
    %p491 = scmp.ne.s32.totalorder %s486, %s488
    %p492 = scmp.eq.s32.totalorder %s32, 0
    %p493 = por %p491, %p492
    %p494 = scmp.ne.s32.totalorder %s486, %s488
    %p495 = scmp.eq.s32.totalorder %s37, 1
    %p496 = por %p494, %p495
    %p497 = scmp.ne.s32.totalorder %s488, %s489
    %p498 = scmp.eq.s32.totalorder %s37, 0
    %p499 = por %p497, %p498
    %p500 = scmp.ne.s32.totalorder %s488, %s489
    %p501 = scmp.eq.s32.totalorder %s38, 1
    %p502 = por %p500, %p501
    %p504 = scmp.ne.s32.totalorder %s489, %s503
    %p505 = scmp.eq.s32.totalorder %s38, 0
    %p506 = por %p504, %p505
    %s508 = sadd.s32 %s507, 1
    %p511 = scmp.eq.s32.totalorder %s32, 1
    %p512 = scmp.ne.s32.totalorder %s507, %s509
    %p513 = scmp.eq.s32.totalorder %s32, 0
    %p514 = por %p512, %p513
    %p515 = scmp.ne.s32.totalorder %s507, %s509
    %p516 = scmp.eq.s32.totalorder %s37, 1
    %p517 = por %p515, %p516
    %p518 = scmp.ne.s32.totalorder %s509, %s510
    %p519 = scmp.eq.s32.totalorder %s37, 0
    %p520 = por %p518, %p519
    %p521 = scmp.ne.s32.totalorder %s509, %s510
    %p522 = scmp.eq.s32.totalorder %s38, 1
    %p523 = por %p521, %p522
    %p525 = scmp.ne.s32.totalorder %s510, %s524
    %p526 = scmp.eq.s32.totalorder %s38, 0
    %p527 = por %p525, %p526
    %s529 = sadd.s32 %s528, 1
    %p532 = scmp.eq.s32.totalorder %s32, 1
    %p533 = scmp.ne.s32.totalorder %s528, %s530
    %p534 = scmp.eq.s32.totalorder %s32, 0
    %p535 = por %p533, %p534
    %p536 = scmp.ne.s32.totalorder %s528, %s530
    %p537 = scmp.eq.s32.totalorder %s37, 1
    %p538 = por %p536, %p537
    %p539 = scmp.ne.s32.totalorder %s530, %s531
    %p540 = scmp.eq.s32.totalorder %s37, 0
    %p541 = por %p539, %p540
    %p542 = scmp.ne.s32.totalorder %s530, %s531
    %p543 = scmp.eq.s32.totalorder %s38, 1
    %p544 = por %p542, %p543
    %p546 = scmp.ne.s32.totalorder %s531, %s545
    %p547 = scmp.eq.s32.totalorder %s38, 0
    %p548 = por %p546, %p547
    %s550 = sadd.s32 %s549, 1
    %p553 = scmp.eq.s32.totalorder %s32, 1
    %p554 = scmp.ne.s32.totalorder %s549, %s551
    %p555 = scmp.eq.s32.totalorder %s32, 0
    %p556 = por %p554, %p555
    %p557 = scmp.ne.s32.totalorder %s549, %s551
    %p558 = scmp.eq.s32.totalorder %s37, 1
    %p559 = por %p557, %p558
    %p560 = scmp.ne.s32.totalorder %s551, %s552
    %p561 = scmp.eq.s32.totalorder %s37, 0
    %p562 = por %p560, %p561
    %p563 = scmp.ne.s32.totalorder %s551, %s552
    %p564 = scmp.eq.s32.totalorder %s38, 1
    %p565 = por %p563, %p564
    %p567 = scmp.ne.s32.totalorder %s552, %s566
    %p568 = scmp.eq.s32.totalorder %s38, 0
    %p569 = por %p567, %p568
    %s571 = sadd.s32 %s570, 1
    %p574 = scmp.eq.s32.totalorder %s32, 1
    %p575 = scmp.ne.s32.totalorder %s570, %s572
    %p576 = scmp.eq.s32.totalorder %s32, 0
    %p577 = por %p575, %p576
    %p578 = scmp.ne.s32.totalorder %s570, %s572
    %p579 = scmp.eq.s32.totalorder %s37, 1
    %p580 = por %p578, %p579
    %p581 = scmp.ne.s32.totalorder %s572, %s573
    %p582 = scmp.eq.s32.totalorder %s37, 0
    %p583 = por %p581, %p582
    %p584 = scmp.ne.s32.totalorder %s572, %s573
    %p585 = scmp.eq.s32.totalorder %s38, 1
    %p586 = por %p584, %p585
    %p588 = scmp.ne.s32.totalorder %s573, %s587
    %p589 = scmp.eq.s32.totalorder %s38, 0
    %p590 = por %p588, %p589
    %s591 = ssub.s32 %s32, %s39
    %p592 = scmp.eq.s32.totalorder %s591, 0
    %s594 = sadd.s32 %s593, 1
    %s595 = scalar_select %p592, %s593, %s594
    %p598 = pneg %p592
    %p599 = scmp.eq.s32.totalorder %s32, 1
    %p600 = por %p598, %p599
    %p601 = scmp.ne.s32.totalorder %s593, %s596
    %p602 = scmp.eq.s32.totalorder %s32, 0
    %p603 = por %p601, %p602
    %p604 = scmp.ne.s32.totalorder %s593, %s596
    %p605 = scmp.eq.s32.totalorder %s37, 1
    %p606 = por %p604, %p605
    %p607 = scmp.ne.s32.totalorder %s596, %s597
    %p608 = scmp.eq.s32.totalorder %s37, 0
    %p609 = por %p607, %p608
    %p610 = scmp.ne.s32.totalorder %s596, %s597
    %p611 = scmp.eq.s32.totalorder %s38, 1
    %p612 = por %p610, %p611
    %p614 = scmp.ne.s32.totalorder %s597, %s613
    %p615 = scmp.eq.s32.totalorder %s38, 0
    %p616 = por %p614, %p615
    %p617 = scmp.le.s32.totalorder 1, %s32
    %p618 = scmp.lt.s32.totalorder %s32, 3
    %p619 = pnand %p617, %p618
    %p620 = pneg %p619
    // Predicated region
    $region9: #{encoder_graph_forward.7} parent=5 // pred_check
      _
    $region10: #{encoder_graph_forward.7} parent=5 // pred_check_branch
      %622 = sbr.rel (%p619) target = $region12
    $region11: #{encoder_graph_forward.7} parent=5 // pred_region
      %s623 = ssub.s32 %s32, 1
      // Predicated region
      $region13: #{encoder_graph_forward.7} parent=11 // pred_check
        %p624 = pneg %p79
      $region14: #{encoder_graph_forward.7} parent=11 // pred_check_branch
        %626 = sbr.rel (%p624) target = $region16
      $region15: #{encoder_graph_forward.7} parent=11 // pred_region
        _
      $region16: #{encoder_graph_forward.7} parent=11 // pred_fallthru
        _
      // Predicated region
      $region17: #{encoder_graph_forward.7} parent=11 // pred_check
        %p627 = pneg %p100
      $region18: #{encoder_graph_forward.7} parent=11 // pred_check_branch
        %629 = sbr.rel (%p627) target = $region20
      $region19: #{encoder_graph_forward.7} parent=11 // pred_region
        _
      $region20: #{encoder_graph_forward.7} parent=11 // pred_fallthru
        _
      // Predicated region
      $region21: #{encoder_graph_forward.7} parent=11 // pred_check
        %p630 = pneg %p121
      $region22: #{encoder_graph_forward.7} parent=11 // pred_check_branch
        %632 = sbr.rel (%p630) target = $region24
      $region23: #{encoder_graph_forward.7} parent=11 // pred_region
        _
      $region24: #{encoder_graph_forward.7} parent=11 // pred_fallthru
        _
      // Predicated region
      $region25: #{encoder_graph_forward.7} parent=11 // pred_check
        %p633 = pneg %p142
      $region26: #{encoder_graph_forward.7} parent=11 // pred_check_branch
        %635 = sbr.rel (%p633) target = $region28
      $region27: #{encoder_graph_forward.7} parent=11 // pred_region
        _
      $region28: #{encoder_graph_forward.7} parent=11 // pred_fallthru
        _
      // Predicated region
      $region29: #{encoder_graph_forward.7} parent=11 // pred_check
        %p636 = pneg %p163
      $region30: #{encoder_graph_forward.7} parent=11 // pred_check_branch
        %638 = sbr.rel (%p636) target = $region32
      $region31: #{encoder_graph_forward.7} parent=11 // pred_region
        _
      $region32: #{encoder_graph_forward.7} parent=11 // pred_fallthru
        _
      // Predicated region
      $region33: #{encoder_graph_forward.7} parent=11 // pred_check
        %p639 = pneg %p184
      $region34: #{encoder_graph_forward.7} parent=11 // pred_check_branch
        %641 = sbr.rel (%p639) target = $region36
      $region35: #{encoder_graph_forward.7} parent=11 // pred_region
        _
      $region36: #{encoder_graph_forward.7} parent=11 // pred_fallthru
        _
      // Predicated region
      $region37: #{encoder_graph_forward.7} parent=11 // pred_check
        %p642 = pneg %p205
      $region38: #{encoder_graph_forward.7} parent=11 // pred_check_branch
        %644 = sbr.rel (%p642) target = $region40
      $region39: #{encoder_graph_forward.7} parent=11 // pred_region
        _
      $region40: #{encoder_graph_forward.7} parent=11 // pred_fallthru
        _
      // Predicated region
      $region41: #{encoder_graph_forward.7} parent=11 // pred_check
        %p645 = pneg %p226
      $region42: #{encoder_graph_forward.7} parent=11 // pred_check_branch
        %647 = sbr.rel (%p645) target = $region44
      $region43: #{encoder_graph_forward.7} parent=11 // pred_region
        _
      $region44: #{encoder_graph_forward.7} parent=11 // pred_fallthru
        _
      // Predicated region
      $region45: #{encoder_graph_forward.7} parent=11 // pred_check
        %p648 = pneg %p247
      $region46: #{encoder_graph_forward.7} parent=11 // pred_check_branch
        %650 = sbr.rel (%p648) target = $region48
      $region47: #{encoder_graph_forward.7} parent=11 // pred_region
        _
      $region48: #{encoder_graph_forward.7} parent=11 // pred_fallthru
        _
      // Predicated region
      $region49: #{encoder_graph_forward.7} parent=11 // pred_check
        %p651 = pneg %p268
      $region50: #{encoder_graph_forward.7} parent=11 // pred_check_branch
        %653 = sbr.rel (%p651) target = $region52
      $region51: #{encoder_graph_forward.7} parent=11 // pred_region
        _
      $region52: #{encoder_graph_forward.7} parent=11 // pred_fallthru
        _
      // Predicated region
      $region53: #{encoder_graph_forward.7} parent=11 // pred_check
        %p654 = pneg %p289
      $region54: #{encoder_graph_forward.7} parent=11 // pred_check_branch
        %656 = sbr.rel (%p654) target = $region56
      $region55: #{encoder_graph_forward.7} parent=11 // pred_region
        _
      $region56: #{encoder_graph_forward.7} parent=11 // pred_fallthru
        _
      // Predicated region
      $region57: #{encoder_graph_forward.7} parent=11 // pred_check
        %p657 = pneg %p310
      $region58: #{encoder_graph_forward.7} parent=11 // pred_check_branch
        %659 = sbr.rel (%p657) target = $region60
      $region59: #{encoder_graph_forward.7} parent=11 // pred_region
        _
      $region60: #{encoder_graph_forward.7} parent=11 // pred_fallthru
        _
      // Predicated region
      $region61: #{encoder_graph_forward.7} parent=11 // pred_check
        %p660 = pneg %p331
      $region62: #{encoder_graph_forward.7} parent=11 // pred_check_branch
        %662 = sbr.rel (%p660) target = $region64
      $region63: #{encoder_graph_forward.7} parent=11 // pred_region
        _
      $region64: #{encoder_graph_forward.7} parent=11 // pred_fallthru
        _
      // Predicated region
      $region65: #{encoder_graph_forward.7} parent=11 // pred_check
        %p663 = pneg %p352
      $region66: #{encoder_graph_forward.7} parent=11 // pred_check_branch
        %665 = sbr.rel (%p663) target = $region68
      $region67: #{encoder_graph_forward.7} parent=11 // pred_region
        _
      $region68: #{encoder_graph_forward.7} parent=11 // pred_fallthru
        _
      // Predicated region
      $region69: #{encoder_graph_forward.7} parent=11 // pred_check
        %p666 = pneg %p373
      $region70: #{encoder_graph_forward.7} parent=11 // pred_check_branch
        %668 = sbr.rel (%p666) target = $region72
      $region71: #{encoder_graph_forward.7} parent=11 // pred_region
        _
      $region72: #{encoder_graph_forward.7} parent=11 // pred_fallthru
        _
      // Predicated region
      $region73: #{encoder_graph_forward.7} parent=11 // pred_check
        %p669 = pneg %p394
      $region74: #{encoder_graph_forward.7} parent=11 // pred_check_branch
        %671 = sbr.rel (%p669) target = $region76
      $region75: #{encoder_graph_forward.7} parent=11 // pred_region
        _
      $region76: #{encoder_graph_forward.7} parent=11 // pred_fallthru
        _
      // Predicated region
      $region77: #{encoder_graph_forward.7} parent=11 // pred_check
        %p672 = pneg %p415
      $region78: #{encoder_graph_forward.7} parent=11 // pred_check_branch
        %674 = sbr.rel (%p672) target = $region80
      $region79: #{encoder_graph_forward.7} parent=11 // pred_region
        _
      $region80: #{encoder_graph_forward.7} parent=11 // pred_fallthru
        _
      // Predicated region
      $region81: #{encoder_graph_forward.7} parent=11 // pred_check
        %p675 = pneg %p436
      $region82: #{encoder_graph_forward.7} parent=11 // pred_check_branch
        %677 = sbr.rel (%p675) target = $region84
      $region83: #{encoder_graph_forward.7} parent=11 // pred_region
        _
      $region84: #{encoder_graph_forward.7} parent=11 // pred_fallthru
        _
      // Predicated region
      $region85: #{encoder_graph_forward.7} parent=11 // pred_check
        %p678 = pneg %p457
      $region86: #{encoder_graph_forward.7} parent=11 // pred_check_branch
        %680 = sbr.rel (%p678) target = $region88
      $region87: #{encoder_graph_forward.7} parent=11 // pred_region
        _
      $region88: #{encoder_graph_forward.7} parent=11 // pred_fallthru
        _
      // Predicated region
      $region89: #{encoder_graph_forward.7} parent=11 // pred_check
        %p681 = pneg %p478
      $region90: #{encoder_graph_forward.7} parent=11 // pred_check_branch
        %683 = sbr.rel (%p681) target = $region92
      $region91: #{encoder_graph_forward.7} parent=11 // pred_region
        _
      $region92: #{encoder_graph_forward.7} parent=11 // pred_fallthru
        _
      // Predicated region
      $region93: #{encoder_graph_forward.7} parent=11 // pred_check
        %p684 = pneg %p499
      $region94: #{encoder_graph_forward.7} parent=11 // pred_check_branch
        %686 = sbr.rel (%p684) target = $region96
      $region95: #{encoder_graph_forward.7} parent=11 // pred_region
        _
      $region96: #{encoder_graph_forward.7} parent=11 // pred_fallthru
        _
      // Predicated region
      $region97: #{encoder_graph_forward.7} parent=11 // pred_check
        %p687 = pneg %p520
      $region98: #{encoder_graph_forward.7} parent=11 // pred_check_branch
        %689 = sbr.rel (%p687) target = $region100
      $region99: #{encoder_graph_forward.7} parent=11 // pred_region
        _
      $region100: #{encoder_graph_forward.7} parent=11 // pred_fallthru
        _
      // Predicated region
      $region101: #{encoder_graph_forward.7} parent=11 // pred_check
        %p690 = pneg %p541
      $region102: #{encoder_graph_forward.7} parent=11 // pred_check_branch
        %692 = sbr.rel (%p690) target = $region104
      $region103: #{encoder_graph_forward.7} parent=11 // pred_region
        _
      $region104: #{encoder_graph_forward.7} parent=11 // pred_fallthru
        _
      // Predicated region
      $region105: #{encoder_graph_forward.7} parent=11 // pred_check
        %p693 = pneg %p562
      $region106: #{encoder_graph_forward.7} parent=11 // pred_check_branch
        %695 = sbr.rel (%p693) target = $region108
      $region107: #{encoder_graph_forward.7} parent=11 // pred_region
        _
      $region108: #{encoder_graph_forward.7} parent=11 // pred_fallthru
        _
      // Predicated region
      $region109: #{encoder_graph_forward.7} parent=11 // pred_check
        %p696 = pneg %p583
      $region110: #{encoder_graph_forward.7} parent=11 // pred_check_branch
        %698 = sbr.rel (%p696) target = $region112
      $region111: #{encoder_graph_forward.7} parent=11 // pred_region
        _
      $region112: #{encoder_graph_forward.7} parent=11 // pred_fallthru
        _
    $region12: #{encoder_graph_forward.7} parent=5 // pred_fallthru
      _
    %p699 = scmp.lt.s32.totalorder %s32, 2
    // Predicated region
    $region113: #{encoder_graph_forward.7} parent=5 // pred_check
      %p700 = pneg %p699
    $region114: #{encoder_graph_forward.7} parent=5 // pred_check_branch
      %702 = sbr.rel (%p700) target = $region116
    $region115: #{encoder_graph_forward.7} parent=5 // pred_region
      // Predicated region
      $region117: #{encoder_graph_forward.7} parent=115 // pred_check
        %p703 = pneg %p52
      $region118: #{encoder_graph_forward.7} parent=115 // pred_check_branch
        %705 = sbr.rel (%p703) target = $region120
      $region119: #{encoder_graph_forward.7} parent=115 // pred_region
        %p706 = scmp.lt.s32.totalorder %s32, 1
        %s707 = scalar_select %p706, %s32, 1
        %s708 = smul.addr %s707, 8
        %s709 = scalar_lea.vmem %s0, %s708
      $region120: #{encoder_graph_forward.7} parent=115 // pred_fallthru
        _
    $region116: #{encoder_graph_forward.7} parent=5 // pred_fallthru
      _
    %p710 = scmp.le.s32.totalorder 1, %s32
    %p711 = scmp.lt.s32.totalorder %s32, 3
    %p712 = pnand %p710, %p711
    %p713 = pneg %p712
    // Predicated region
    $region121: #{encoder_graph_forward.7} parent=5 // pred_check
      _
    $region122: #{encoder_graph_forward.7} parent=5 // pred_check_branch
      %715 = sbr.rel (%p712) target = $region124
    $region123: #{encoder_graph_forward.7} parent=5 // pred_region
      %s716 = ssub.s32 %s32, 1
      %p717 = scmp.lt.s32.totalorder %s37, 1
      %s718 = scalar_select %p717, %s37, 1
      %s719 = smul.addr %s718, 8
      %s720 = scalar_lea.vmem %s0, %s719
      %p721 = pneg %p58
      %p722 = pneg %p55
      %p723 = pneg %p79
      %p724 = pneg %p76
      %p725 = pneg %p100
      %p726 = pneg %p97
      %p727 = pneg %p121
      %p728 = pneg %p118
      %p729 = pneg %p142
      %p730 = pneg %p139
      %p731 = pneg %p163
      %p732 = pneg %p160
      %p733 = pneg %p184
      %p734 = pneg %p181
      %p735 = pneg %p205
      %p736 = pneg %p202
      %p737 = pneg %p226
      %p738 = pneg %p223
      %p739 = pneg %p247
      %p740 = pneg %p244
      %p741 = pneg %p268
      %p742 = pneg %p265
      %p743 = pneg %p289
      %p744 = pneg %p286
      %p745 = pneg %p310
      %p746 = pneg %p307
      %p747 = pneg %p331
      %p748 = pneg %p328
      %p749 = pneg %p352
      %p750 = pneg %p349
      %p751 = pneg %p373
      %p752 = pneg %p370
      %p753 = pneg %p394
      %p754 = pneg %p391
      %p755 = pneg %p415
      %p756 = pneg %p412
      %p757 = pneg %p436
      %p758 = pneg %p433
      %p759 = pneg %p457
      %p760 = pneg %p454
      %p761 = pneg %p478
      %p762 = pneg %p475
      %p763 = pneg %p499
      %p764 = pneg %p496
      %p765 = pneg %p520
      %p766 = pneg %p517
      %p767 = pneg %p541
      %p768 = pneg %p538
      %p769 = pneg %p562
      %p770 = pneg %p559
      %p771 = pneg %p583
      %p772 = pneg %p580
      %p773 = pneg %p609
      %p774 = pneg %p606
      %p775 = scmp.lt.s32.totalorder %s37, 1
      %s776 = scalar_select %p775, %s37, 1
      %s777 = smul.addr %s776, 8
      %s778 = scalar_lea.vmem %s26, %s777
      %p779 = scmp.lt.s32.totalorder %s37, 1
      %s780 = scalar_select %p779, %s37, 1
      %s781 = smul.addr %s780, 8
      %s782 = scalar_lea.vmem %s0, %s781
      %p783 = scmp.lt.s32.totalorder %s37, 1
      %s784 = scalar_select %p783, %s37, 1
      %s785 = smul.addr %s784, 8
      %s786 = scalar_lea.vmem %s26, %s785
      %v787 = vld [vmem:[%s782] sm:$0x1f]
      %v788 = vld [vmem:[%s1] sm:$0xff]
      %v789 = vld [vmem:[%s1 + $0x8] sm:$0xff]
      %v790 = vld [vmem:[%s1 + $0x10] sm:$0xf]
      %v791 = vld [vmem:[%s2] sm:$0xff]
      %v792 = vld [vmem:[%s2 + $0x8] sm:$0xff]
      %v793 = vld [vmem:[%s2 + $0x10] sm:$0xf]
      %v794 = vld [vmem:[%s3] sm:$0x1f]
      %v795 = vld [vmem:[%s4] sm:$0x1f]
      %vm796 = vcmask 39936
      %v798 = vsel %vm796, %v788, 0
      %v801 = vsel %vm796, %v789, 0
      %v804 = vsel %vm796, %v790, 0
      %vm806 = vcmask 1044480
      %v808 = vsel %vm806, %v787, 0
      %810 = vmatprep.subr.mxu0 0.0
      %811 = vmatpush1.msra.mxu0 %v808
      %812 = vmatprep.subr.mxu0 0.0
      %813 = vmatpush1.msra.mxu0 0.0
      %814 = vmatprep.subr.mxu0 0.0
      %815 = vmatpush1.msra.mxu0 0.0
      %816 = vmatprep.subr.mxu0 0.0
      %817 = vmatpush1.msra.mxu0 0.0
      %818 = vmatprep.subr.mxu0 0.0
      %819 = vmatpush1.msra.mxu0 0.0
      %820 = vmatprep.subr.mxu0 0.0
      %821 = vmatpush1.msra.mxu0 0.0
      %822 = vmatprep.subr.mxu0 0.0
      %823 = vmatpush1.msra.mxu0 0.0
      %824 = vmatprep.subr.mxu0 0.0
      %825 = vmatpush1.msra.mxu0 0.0
      %826 = vmatprep.subr.mxu0 0.0
      %827 = vmatpush1.msra.mxu0 0.0
      %828 = vmatprep.subr.mxu0 0.0
      %829 = vmatpush1.msra.mxu0 0.0
      %830 = vmatprep.subr.mxu0 0.0
      %831 = vmatpush1.msra.mxu0 0.0
      %832 = vmatprep.subr.mxu0 0.0
      %833 = vmatpush1.msra.mxu0 0.0
      %834 = vmatprep.subr.mxu0 0.0
      %835 = vmatpush1.msra.mxu0 0.0
      %836 = vmatprep.subr.mxu0 0.0
      %837 = vmatpush1.msra.mxu0 0.0
      %838 = vmatprep.subr.mxu0 0.0
      %839 = vmatpush1.msra.mxu0 0.0
      %840 = vmatprep.subr.mxu0 0.0
      %841 = vmatpush1.msra.mxu0 0.0
      %842 = vmatprep.subr.mxu0 0.0
      %843 = vmatpush1.msra.mxu0 0.0
      %844 = vmatprep.subr.mxu0 0.0
      %845 = vmatpush1.msra.mxu0 0.0
      %846 = vmatprep.subr.mxu0 0.0
      %847 = vmatpush1.msra.mxu0 0.0
      %848 = vmatprep.subr.mxu0 0.0
      %849 = vmatpush1.msra.mxu0 0.0
      %850 = vmatprep.subr.mxu0 0.0
      %851 = vmatpush1.msra.mxu0 0.0
      %852 = vmatprep.subr.mxu0 0.0
      %853 = vmatpush1.msra.mxu0 0.0
      %854 = vmatprep.subr.mxu0 0.0
      %855 = vmatpush1.msra.mxu0 0.0
      %856 = vmatprep.subr.mxu0 0.0
      %857 = vmatpush1.msra.mxu0 0.0
      %858 = vmatprep.subr.mxu0 0.0
      %859 = vmatpush1.msra.mxu0 0.0
      %860 = vmatprep.subr.mxu0 0.0
      %861 = vmatpush1.msra.mxu0 0.0
      %862 = vmatprep.subr.mxu0 0.0
      %863 = vmatpush1.msra.mxu0 0.0
      %864 = vmatprep.subr.mxu0 0.0
      %865 = vmatpush1.msra.mxu0 0.0
      %866 = vmatprep.subr.mxu0 0.0
      %867 = vmatpush1.msra.mxu0 0.0
      %868 = vmatprep.subr.mxu0 0.0
      %869 = vmatpush1.msra.mxu0 0.0
      %870 = vmatprep.subr.mxu0 0.0
      %871 = vmatpush1.msra.mxu0 0.0
      %872 = vmatprep.subr.mxu0 0.0
      %873 = vmatpush1.msra.mxu0 0.0
      %874 = vmatprep.mubr.f32.mxu0 0.0
      %875 = vmatmul.mubr.f32.gmra.mrb[0].mxu0 %v798
      %v876 = vpop.f32.mrb[0].mxu0
      %v877 = vadd.f32 0.0, %v876
      %v878 = vpop.f32.mrb[0].mxu0
      %879 = vmatprep.mubr.f32.mxu0 0.0
      %880 = vmatmul.mubr.f32.gmra.mrb[0].mxu0 %v801
      %v881 = vpop.f32.mrb[0].mxu0
      %v882 = vadd.f32 0.0, %v881
      %v883 = vpop.f32.mrb[0].mxu0
      %884 = vmatprep.mubr.f32.mxu0 0.0
      %885 = vmatmul.mubr.f32.gmra.mrb[0].mxu0 %v804
      %v886 = vpop.f32.mrb[0].mxu0
      %v887 = vadd.f32 0.0, %v886
      %v888 = vpop.f32.mrb[0].mxu0
      %889 = vdwg.mxu0
      %v890 = vld [vmem:[%s8] sm:$0xff]
      %v891 = vld [vmem:[%s8 + $0x8] sm:$0xff]
      %v892 = vld [vmem:[%s8 + $0x10] sm:$0xff]
      %v893 = vld [vmem:[%s8 + $0x18] sm:$0xff]
      %v894 = vld [vmem:[%s8 + $0x20] sm:$0xf]
      %v896 = vsel %vm796, %v791, 0
      %v899 = vsel %vm796, %v792, 0
      %v902 = vsel %vm796, %v793, 0
      %904 = vmatprep.subr.mxu0 0.0
      %905 = vmatpush1.msra.mxu0 %v808
      %906 = vmatprep.subr.mxu0 0.0
      %907 = vmatpush1.msra.mxu0 0.0
      %908 = vmatprep.subr.mxu0 0.0
      %909 = vmatpush1.msra.mxu0 0.0
      %910 = vmatprep.subr.mxu0 0.0
      %911 = vmatpush1.msra.mxu0 0.0
      %912 = vmatprep.subr.mxu0 0.0
      %913 = vmatpush1.msra.mxu0 0.0
      %914 = vmatprep.subr.mxu0 0.0
      %915 = vmatpush1.msra.mxu0 0.0
      %916 = vmatprep.subr.mxu0 0.0
      %917 = vmatpush1.msra.mxu0 0.0
      %918 = vmatprep.subr.mxu0 0.0
      %919 = vmatpush1.msra.mxu0 0.0
      %920 = vmatprep.subr.mxu0 0.0
      %921 = vmatpush1.msra.mxu0 0.0
      %922 = vmatprep.subr.mxu0 0.0
      %923 = vmatpush1.msra.mxu0 0.0
      %924 = vmatprep.subr.mxu0 0.0
      %925 = vmatpush1.msra.mxu0 0.0
      %926 = vmatprep.subr.mxu0 0.0
      %927 = vmatpush1.msra.mxu0 0.0
      %928 = vmatprep.subr.mxu0 0.0
      %929 = vmatpush1.msra.mxu0 0.0
      %930 = vmatprep.subr.mxu0 0.0
      %931 = vmatpush1.msra.mxu0 0.0
      %932 = vmatprep.subr.mxu0 0.0
      %933 = vmatpush1.msra.mxu0 0.0
      %934 = vmatprep.subr.mxu0 0.0
      %935 = vmatpush1.msra.mxu0 0.0
      %936 = vmatprep.subr.mxu0 0.0
      %937 = vmatpush1.msra.mxu0 0.0
      %938 = vmatprep.subr.mxu0 0.0
      %939 = vmatpush1.msra.mxu0 0.0
      %940 = vmatprep.subr.mxu0 0.0
      %941 = vmatpush1.msra.mxu0 0.0
      %942 = vmatprep.subr.mxu0 0.0
      %943 = vmatpush1.msra.mxu0 0.0
      %944 = vmatprep.subr.mxu0 0.0
      %945 = vmatpush1.msra.mxu0 0.0
      %946 = vmatprep.subr.mxu0 0.0
      %947 = vmatpush1.msra.mxu0 0.0
      %948 = vmatprep.subr.mxu0 0.0
      %949 = vmatpush1.msra.mxu0 0.0
      %950 = vmatprep.subr.mxu0 0.0
      %951 = vmatpush1.msra.mxu0 0.0
      %952 = vmatprep.subr.mxu0 0.0
      %953 = vmatpush1.msra.mxu0 0.0
      %954 = vmatprep.subr.mxu0 0.0
      %955 = vmatpush1.msra.mxu0 0.0
      %956 = vmatprep.subr.mxu0 0.0
      %957 = vmatpush1.msra.mxu0 0.0
      %958 = vmatprep.subr.mxu0 0.0
      %959 = vmatpush1.msra.mxu0 0.0
      %960 = vmatprep.subr.mxu0 0.0
      %961 = vmatpush1.msra.mxu0 0.0
      %962 = vmatprep.subr.mxu0 0.0
      %963 = vmatpush1.msra.mxu0 0.0
      %964 = vmatprep.subr.mxu0 0.0
      %965 = vmatpush1.msra.mxu0 0.0
      %966 = vmatprep.subr.mxu0 0.0
      %967 = vmatpush1.msra.mxu0 0.0
      %968 = vmatprep.mubr.f32.mxu0 0.0
      %969 = vmatmul.mubr.f32.gmra.mrb[0].mxu0 %v896
      %v970 = vpop.f32.mrb[0].mxu0
      %v971 = vadd.f32 0.0, %v970
      %v972 = vpop.f32.mrb[0].mxu0
      %973 = vmatprep.mubr.f32.mxu0 0.0
      %974 = vmatmul.mubr.f32.gmra.mrb[0].mxu0 %v899
      %v975 = vpop.f32.mrb[0].mxu0
      %v976 = vadd.f32 0.0, %v975
      %v977 = vpop.f32.mrb[0].mxu0
      %978 = vmatprep.mubr.f32.mxu0 0.0
      %979 = vmatmul.mubr.f32.gmra.mrb[0].mxu0 %v902
      %v980 = vpop.f32.mrb[0].mxu0
      %v981 = vadd.f32 0.0, %v980
      %v982 = vpop.f32.mrb[0].mxu0
      %983 = vdwg.mxu0
      %v984 = vld [vmem:[%s9] sm:$0xff]
      %v985 = vld [vmem:[%s9 + $0x8] sm:$0xff]
      %v986 = vld [vmem:[%s9 + $0x10] sm:$0xff]
      %v987 = vld [vmem:[%s9 + $0x18] sm:$0xff]
      %v988 = vld [vmem:[%s9 + $0x20] sm:$0xf]
      %vm989 = vcmask 293888
      %v991 = vsel %vm989, %v971, 0
      %v994 = vsel %vm989, %v976, 0
      %v997 = vsel %vm989, %v981, 0
      %vm999 = vcmask 1043456
      %v1001 = vsel %vm999, %v988, 0
      %1003 = vmatprep.subr.mxu0 0.0
      %1004 = vmatpush1.msra.mxu0 %v984
      %1005 = vmatprep.subr.mxu0 0.0
      %1006 = vmatpush1.msra.mxu0 %v985
      %1007 = vmatprep.subr.mxu0 0.0
      %1008 = vmatpush1.msra.mxu0 %v986
      %1009 = vmatprep.subr.mxu0 0.0
      %1010 = vmatpush1.msra.mxu0 %v987
      %1011 = vmatprep.subr.mxu0 0.0
      %1012 = vmatpush1.msra.mxu0 %v1001
      %1013 = vmatprep.subr.mxu0 0.0
      %1014 = vmatpush1.msra.mxu0 0.0
      %1015 = vmatprep.subr.mxu0 0.0
      %1016 = vmatpush1.msra.mxu0 0.0
      %1017 = vmatprep.subr.mxu0 0.0
      %1018 = vmatpush1.msra.mxu0 0.0
      %1019 = vmatprep.subr.mxu0 0.0
      %1020 = vmatpush1.msra.mxu0 0.0
      %1021 = vmatprep.subr.mxu0 0.0
      %1022 = vmatpush1.msra.mxu0 0.0
      %1023 = vmatprep.subr.mxu0 0.0
      %1024 = vmatpush1.msra.mxu0 0.0
      %1025 = vmatprep.subr.mxu0 0.0
      %1026 = vmatpush1.msra.mxu0 0.0
      %1027 = vmatprep.subr.mxu0 0.0
      %1028 = vmatpush1.msra.mxu0 0.0
      %1029 = vmatprep.subr.mxu0 0.0
      %1030 = vmatpush1.msra.mxu0 0.0
      %1031 = vmatprep.subr.mxu0 0.0
      %1032 = vmatpush1.msra.mxu0 0.0
      %1033 = vmatprep.subr.mxu0 0.0
      %1034 = vmatpush1.msra.mxu0 0.0
      %1035 = vmatprep.subr.mxu0 0.0
      %1036 = vmatpush1.msra.mxu0 0.0
      %1037 = vmatprep.subr.mxu0 0.0
      %1038 = vmatpush1.msra.mxu0 0.0
      %1039 = vmatprep.subr.mxu0 0.0
      %1040 = vmatpush1.msra.mxu0 0.0
      %1041 = vmatprep.subr.mxu0 0.0
      %1042 = vmatpush1.msra.mxu0 0.0
      %1043 = vmatprep.subr.mxu0 0.0
      %1044 = vmatpush1.msra.mxu0 0.0
      %1045 = vmatprep.subr.mxu0 0.0
      %1046 = vmatpush1.msra.mxu0 0.0
      %1047 = vmatprep.subr.mxu0 0.0
      %1048 = vmatpush1.msra.mxu0 0.0
      %1049 = vmatprep.subr.mxu0 0.0
      %1050 = vmatpush1.msra.mxu0 0.0
      %1051 = vmatprep.subr.mxu0 0.0
      %1052 = vmatpush1.msra.mxu0 0.0
      %1053 = vmatprep.subr.mxu0 0.0
      %1054 = vmatpush1.msra.mxu0 0.0
      %1055 = vmatprep.subr.mxu0 0.0
      %1056 = vmatpush1.msra.mxu0 0.0
      %1057 = vmatprep.subr.mxu0 0.0
      %1058 = vmatpush1.msra.mxu0 0.0
      %1059 = vmatprep.subr.mxu0 0.0
      %1060 = vmatpush1.msra.mxu0 0.0
      %1061 = vmatprep.subr.mxu0 0.0
      %1062 = vmatpush1.msra.mxu0 0.0
      %1063 = vmatprep.subr.mxu0 0.0
      %1064 = vmatpush1.msra.mxu0 0.0
      %1065 = vmatprep.subr.mxu0 0.0
      %1066 = vmatpush1.msra.mxu0 0.0
      %1067 = vmatprep.mubr.f32.mxu0 0.0
      %1068 = vmatmul.mubr.f32.gmra.mrb[0].mxu0 %v991
      %v1069 = vpop.f32.mrb[0].mxu0
      %v1070 = vadd.f32 0.0, %v1069
      %v1071 = vpop.f32.mrb[0].mxu0
      %1072 = vmatprep.mubr.f32.mxu0 0.0
      %1073 = vmatmul.mubr.f32.gmra.mrb[0].mxu0 %v994
      %v1074 = vpop.f32.mrb[0].mxu0
      %v1075 = vadd.f32 0.0, %v1074
      %v1076 = vpop.f32.mrb[0].mxu0
      %1077 = vmatprep.mubr.f32.mxu0 0.0
      %1078 = vmatmul.mubr.f32.gmra.mrb[0].mxu0 %v997
      %v1079 = vpop.f32.mrb[0].mxu0
      %v1080 = vadd.f32 0.0, %v1079
      %v1081 = vpop.f32.mrb[0].mxu0
      %1082 = vdwg.mxu0
      %v1084 = vsel %vm989, %v877, 0
      %v1087 = vsel %vm989, %v882, 0
      %v1090 = vsel %vm989, %v887, 0
      %v1093 = vsel %vm999, %v894, 0
      %1095 = vmatprep.subr.mxu0 0.0
      %1096 = vmatpush1.msra.mxu0 %v890
      %1097 = vmatprep.subr.mxu0 0.0
      %1098 = vmatpush1.msra.mxu0 %v891
      %1099 = vmatprep.subr.mxu0 0.0
      %1100 = vmatpush1.msra.mxu0 %v892
      %1101 = vmatprep.subr.mxu0 0.0
      %1102 = vmatpush1.msra.mxu0 %v893
      %1103 = vmatprep.subr.mxu0 0.0
      %1104 = vmatpush1.msra.mxu0 %v1093
      %1105 = vmatprep.subr.mxu0 0.0
      %1106 = vmatpush1.msra.mxu0 0.0
      %1107 = vmatprep.subr.mxu0 0.0
      %1108 = vmatpush1.msra.mxu0 0.0
      %1109 = vmatprep.subr.mxu0 0.0
      %1110 = vmatpush1.msra.mxu0 0.0
      %1111 = vmatprep.subr.mxu0 0.0
      %1112 = vmatpush1.msra.mxu0 0.0
      %1113 = vmatprep.subr.mxu0 0.0
      %1114 = vmatpush1.msra.mxu0 0.0
      %1115 = vmatprep.subr.mxu0 0.0
      %1116 = vmatpush1.msra.mxu0 0.0
      %1117 = vmatprep.subr.mxu0 0.0
      %1118 = vmatpush1.msra.mxu0 0.0
      %1119 = vmatprep.subr.mxu0 0.0
      %1120 = vmatpush1.msra.mxu0 0.0
      %1121 = vmatprep.subr.mxu0 0.0
      %1122 = vmatpush1.msra.mxu0 0.0
      %1123 = vmatprep.subr.mxu0 0.0
      %1124 = vmatpush1.msra.mxu0 0.0
      %1125 = vmatprep.subr.mxu0 0.0
      %1126 = vmatpush1.msra.mxu0 0.0
      %1127 = vmatprep.subr.mxu0 0.0
      %1128 = vmatpush1.msra.mxu0 0.0
      %1129 = vmatprep.subr.mxu0 0.0
      %1130 = vmatpush1.msra.mxu0 0.0
      %1131 = vmatprep.subr.mxu0 0.0
      %1132 = vmatpush1.msra.mxu0 0.0
      %1133 = vmatprep.subr.mxu0 0.0
      %1134 = vmatpush1.msra.mxu0 0.0
      %1135 = vmatprep.subr.mxu0 0.0
      %1136 = vmatpush1.msra.mxu0 0.0
      %1137 = vmatprep.subr.mxu0 0.0
      %1138 = vmatpush1.msra.mxu0 0.0
      %1139 = vmatprep.subr.mxu0 0.0
      %1140 = vmatpush1.msra.mxu0 0.0
      %1141 = vmatprep.subr.mxu0 0.0
      %1142 = vmatpush1.msra.mxu0 0.0
      %1143 = vmatprep.subr.mxu0 0.0
      %1144 = vmatpush1.msra.mxu0 0.0
      %1145 = vmatprep.subr.mxu0 0.0
      %1146 = vmatpush1.msra.mxu0 0.0
      %1147 = vmatprep.subr.mxu0 0.0
      %1148 = vmatpush1.msra.mxu0 0.0
      %1149 = vmatprep.subr.mxu0 0.0
      %1150 = vmatpush1.msra.mxu0 0.0
      %1151 = vmatprep.subr.mxu0 0.0
      %1152 = vmatpush1.msra.mxu0 0.0
      %1153 = vmatprep.subr.mxu0 0.0
      %1154 = vmatpush1.msra.mxu0 0.0
      %1155 = vmatprep.subr.mxu0 0.0
      %1156 = vmatpush1.msra.mxu0 0.0
      %1157 = vmatprep.subr.mxu0 0.0
      %1158 = vmatpush1.msra.mxu0 0.0
      %1159 = vmatprep.mubr.f32.mxu0 0.0
      %1160 = vmatmul.mubr.f32.gmra.mrb[0].mxu0 %v1084
      %v1161 = vpop.f32.mrb[0].mxu0
      %v1162 = vadd.f32 %v1070, %v1161
      %v1163 = vpop.f32.mrb[0].mxu0
      %1164 = vmatprep.mubr.f32.mxu0 0.0
      %1165 = vmatmul.mubr.f32.gmra.mrb[0].mxu0 %v1087
      %v1166 = vpop.f32.mrb[0].mxu0
      %v1167 = vadd.f32 %v1075, %v1166
      %v1168 = vpop.f32.mrb[0].mxu0
      %1169 = vmatprep.mubr.f32.mxu0 0.0
      %1170 = vmatmul.mubr.f32.gmra.mrb[0].mxu0 %v1090
      %v1171 = vpop.f32.mrb[0].mxu0
      %v1172 = vadd.f32 %v1080, %v1171
      %v1173 = vpop.f32.mrb[0].mxu0
      %1174 = vdwg.mxu0
      %v1175 = vld [vmem:[%s10] sm:$0x1]
      %v1177 = vlaneseq
      %v1178 = vshrl.u32 %v1177, 7
      %v1179 = vsub.s32 0, %v1178
      %v1180 = vrot.slane %v1175, %v1179
      %v1182 = vadd.f32 %v1162, %v1180
      %v1183 = vadd.f32 %v1167, %v1180
      %v1184 = vadd.f32 %v1172, %v1180
      %v1185 = vmax.f32 %v1182, 0.0
      %v1186 = vmax.f32 %v1183, 0.0
      %v1187 = vmax.f32 %v1184, 0.0
      %vm1188 = vcmask 162816
      %v1190 = vsel %vm1188, %v794, 0
      %v1193 = vsel %vm999, %v1187, 0
      %1195 = vmatprep.subr.mxu0 0.0
      %1196 = vmatpush1.msra.mxu0 %v1185
      %1197 = vmatprep.subr.mxu0 0.0
      %1198 = vmatpush1.msra.mxu0 %v1186
      %1199 = vmatprep.subr.mxu0 0.0
      %1200 = vmatpush1.msra.mxu0 %v1193
      %1201 = vmatprep.subr.mxu0 0.0
      %1202 = vmatpush1.msra.mxu0 0.0
      %1203 = vmatprep.subr.mxu0 0.0
      %1204 = vmatpush1.msra.mxu0 0.0
      %1205 = vmatprep.subr.mxu0 0.0
      %1206 = vmatpush1.msra.mxu0 0.0
      %1207 = vmatprep.subr.mxu0 0.0
      %1208 = vmatpush1.msra.mxu0 0.0
      %1209 = vmatprep.subr.mxu0 0.0
      %1210 = vmatpush1.msra.mxu0 0.0
      %1211 = vmatprep.subr.mxu0 0.0
      %1212 = vmatpush1.msra.mxu0 0.0
      %1213 = vmatprep.subr.mxu0 0.0
      %1214 = vmatpush1.msra.mxu0 0.0
      %1215 = vmatprep.subr.mxu0 0.0
      %1216 = vmatpush1.msra.mxu0 0.0
      %1217 = vmatprep.subr.mxu0 0.0
      %1218 = vmatpush1.msra.mxu0 0.0
      %1219 = vmatprep.subr.mxu0 0.0
      %1220 = vmatpush1.msra.mxu0 0.0
      %1221 = vmatprep.subr.mxu0 0.0
      %1222 = vmatpush1.msra.mxu0 0.0
      %1223 = vmatprep.subr.mxu0 0.0
      %1224 = vmatpush1.msra.mxu0 0.0
      %1225 = vmatprep.subr.mxu0 0.0
      %1226 = vmatpush1.msra.mxu0 0.0
      %1227 = vmatprep.subr.mxu0 0.0
      %1228 = vmatpush1.msra.mxu0 0.0
      %1229 = vmatprep.subr.mxu0 0.0
      %1230 = vmatpush1.msra.mxu0 0.0
      %1231 = vmatprep.subr.mxu0 0.0
      %1232 = vmatpush1.msra.mxu0 0.0
      %1233 = vmatprep.subr.mxu0 0.0
      %1234 = vmatpush1.msra.mxu0 0.0
      %1235 = vmatprep.subr.mxu0 0.0
      %1236 = vmatpush1.msra.mxu0 0.0
      %1237 = vmatprep.subr.mxu0 0.0
      %1238 = vmatpush1.msra.mxu0 0.0
      %1239 = vmatprep.subr.mxu0 0.0
      %1240 = vmatpush1.msra.mxu0 0.0
      %1241 = vmatprep.subr.mxu0 0.0
      %1242 = vmatpush1.msra.mxu0 0.0
      %1243 = vmatprep.subr.mxu0 0.0
      %1244 = vmatpush1.msra.mxu0 0.0
      %1245 = vmatprep.subr.mxu0 0.0
      %1246 = vmatpush1.msra.mxu0 0.0
      %1247 = vmatprep.subr.mxu0 0.0
      %1248 = vmatpush1.msra.mxu0 0.0
      %1249 = vmatprep.subr.mxu0 0.0
      %1250 = vmatpush1.msra.mxu0 0.0
      %1251 = vmatprep.subr.mxu0 0.0
      %1252 = vmatpush1.msra.mxu0 0.0
      %1253 = vmatprep.subr.mxu0 0.0
      %1254 = vmatpush1.msra.mxu0 0.0
      %1255 = vmatprep.subr.mxu0 0.0
      %1256 = vmatpush1.msra.mxu0 0.0
      %1257 = vmatprep.subr.mxu0 0.0
      %1258 = vmatpush1.msra.mxu0 0.0
      %1259 = vmatprep.mubr.f32.mxu0 0.0
      %1260 = vmatmul.mubr.f32.gmra.mrb[0].mxu0 %v1190
      %v1261 = vpop.f32.mrb[0].mxu0
      %v1262 = vadd.f32 0.0, %v1261
      %v1263 = vpop.f32.mrb[0].mxu0
      %1264 = vdwg.mxu0
      %v1265 = vld [vmem:[%s11] sm:$0xff]
      %v1266 = vld [vmem:[%s11 + $0x8] sm:$0xff]
      %v1267 = vld [vmem:[%s11 + $0x10] sm:$0xff]
      %v1268 = vld [vmem:[%s11 + $0x18] sm:$0xff]
      %v1269 = vld [vmem:[%s11 + $0x20] sm:$0xf]
      %v1270 = vld [vmem:[%s12] sm:$0x1]
      %v1272 = vlaneseq
      %v1273 = vshrl.u32 %v1272, 7
      %v1274 = vsub.s32 0, %v1273
      %v1275 = vrot.slane %v1270, %v1274
      %v1278 = vsel %vm989, %v1262, 0
      %v1281 = vsel %vm999, %v1269, 0
      %1283 = vmatprep.subr.mxu0 0.0
      %1284 = vmatpush1.msra.mxu0 %v1265
      %1285 = vmatprep.subr.mxu0 0.0
      %1286 = vmatpush1.msra.mxu0 %v1266
      %1287 = vmatprep.subr.mxu0 0.0
      %1288 = vmatpush1.msra.mxu0 %v1267
      %1289 = vmatprep.subr.mxu0 0.0
      %1290 = vmatpush1.msra.mxu0 %v1268
      %1291 = vmatprep.subr.mxu0 0.0
      %1292 = vmatpush1.msra.mxu0 %v1281
      %1293 = vmatprep.subr.mxu0 0.0
      %1294 = vmatpush1.msra.mxu0 0.0
      %1295 = vmatprep.subr.mxu0 0.0
      %1296 = vmatpush1.msra.mxu0 0.0
      %1297 = vmatprep.subr.mxu0 0.0
      %1298 = vmatpush1.msra.mxu0 0.0
      %1299 = vmatprep.subr.mxu0 0.0
      %1300 = vmatpush1.msra.mxu0 0.0
      %1301 = vmatprep.subr.mxu0 0.0
      %1302 = vmatpush1.msra.mxu0 0.0
      %1303 = vmatprep.subr.mxu0 0.0
      %1304 = vmatpush1.msra.mxu0 0.0
      %1305 = vmatprep.subr.mxu0 0.0
      %1306 = vmatpush1.msra.mxu0 0.0
      %1307 = vmatprep.subr.mxu0 0.0
      %1308 = vmatpush1.msra.mxu0 0.0
      %1309 = vmatprep.subr.mxu0 0.0
      %1310 = vmatpush1.msra.mxu0 0.0
      %1311 = vmatprep.subr.mxu0 0.0
      %1312 = vmatpush1.msra.mxu0 0.0
      %1313 = vmatprep.subr.mxu0 0.0
      %1314 = vmatpush1.msra.mxu0 0.0
      %1315 = vmatprep.subr.mxu0 0.0
      %1316 = vmatpush1.msra.mxu0 0.0
      %1317 = vmatprep.subr.mxu0 0.0
      %1318 = vmatpush1.msra.mxu0 0.0
      %1319 = vmatprep.subr.mxu0 0.0
      %1320 = vmatpush1.msra.mxu0 0.0
      %1321 = vmatprep.subr.mxu0 0.0
      %1322 = vmatpush1.msra.mxu0 0.0
      %1323 = vmatprep.subr.mxu0 0.0
      %1324 = vmatpush1.msra.mxu0 0.0
      %1325 = vmatprep.subr.mxu0 0.0
      %1326 = vmatpush1.msra.mxu0 0.0
      %1327 = vmatprep.subr.mxu0 0.0
      %1328 = vmatpush1.msra.mxu0 0.0
      %1329 = vmatprep.subr.mxu0 0.0
      %1330 = vmatpush1.msra.mxu0 0.0
      %1331 = vmatprep.subr.mxu0 0.0
      %1332 = vmatpush1.msra.mxu0 0.0
      %1333 = vmatprep.subr.mxu0 0.0
      %1334 = vmatpush1.msra.mxu0 0.0
      %1335 = vmatprep.subr.mxu0 0.0
      %1336 = vmatpush1.msra.mxu0 0.0
      %1337 = vmatprep.subr.mxu0 0.0
      %1338 = vmatpush1.msra.mxu0 0.0
      %1339 = vmatprep.subr.mxu0 0.0
      %1340 = vmatpush1.msra.mxu0 0.0
      %1341 = vmatprep.subr.mxu0 0.0
      %1342 = vmatpush1.msra.mxu0 0.0
      %1343 = vmatprep.subr.mxu0 0.0
      %1344 = vmatpush1.msra.mxu0 0.0
      %1345 = vmatprep.subr.mxu0 0.0
      %1346 = vmatpush1.msra.mxu0 0.0
      %1347 = vmatprep.mubr.f32.mxu0 0.0
      %1348 = vmatmul.mubr.f32.gmra.mrb[0].mxu0 %v1278
      %v1349 = vpop.f32.mrb[0].mxu0
      %v1350 = vadd.f32 %v1275, %v1349
      %v1351 = vpop.f32.mrb[0].mxu0
      %1352 = vdwg.mxu0
      %v1353 = vmax.f32 %v1350, 0.0
      %v1355 = vsel %vm806, %v1353, 0
      %1357 = vmatprep.subr.mxu0 0.0
      %1358 = vmatpush1.msra.mxu0 %v1355
      %1359 = vmatprep.subr.mxu0 0.0
      %1360 = vmatpush1.msra.mxu0 0.0
      %1361 = vmatprep.subr.mxu0 0.0
      %1362 = vmatpush1.msra.mxu0 0.0
      %1363 = vmatprep.subr.mxu0 0.0
      %1364 = vmatpush1.msra.mxu0 0.0
      %1365 = vmatprep.subr.mxu0 0.0
      %1366 = vmatpush1.msra.mxu0 0.0
      %1367 = vmatprep.subr.mxu0 0.0
      %1368 = vmatpush1.msra.mxu0 0.0
      %1369 = vmatprep.subr.mxu0 0.0
      %1370 = vmatpush1.msra.mxu0 0.0
      %1371 = vmatprep.subr.mxu0 0.0
      %1372 = vmatpush1.msra.mxu0 0.0
      %1373 = vmatprep.subr.mxu0 0.0
      %1374 = vmatpush1.msra.mxu0 0.0
      %1375 = vmatprep.subr.mxu0 0.0
      %1376 = vmatpush1.msra.mxu0 0.0
      %1377 = vmatprep.subr.mxu0 0.0
      %1378 = vmatpush1.msra.mxu0 0.0
      %1379 = vmatprep.subr.mxu0 0.0
      %1380 = vmatpush1.msra.mxu0 0.0
      %1381 = vmatprep.subr.mxu0 0.0
      %1382 = vmatpush1.msra.mxu0 0.0
      %1383 = vmatprep.subr.mxu0 0.0
      %1384 = vmatpush1.msra.mxu0 0.0
      %1385 = vmatprep.subr.mxu0 0.0
      %1386 = vmatpush1.msra.mxu0 0.0
      %1387 = vmatprep.subr.mxu0 0.0
      %1388 = vmatpush1.msra.mxu0 0.0
      %1389 = vmatprep.subr.mxu0 0.0
      %1390 = vmatpush1.msra.mxu0 0.0
      %1391 = vmatprep.subr.mxu0 0.0
      %1392 = vmatpush1.msra.mxu0 0.0
      %1393 = vmatprep.subr.mxu0 0.0
      %1394 = vmatpush1.msra.mxu0 0.0
      %1395 = vmatprep.subr.mxu0 0.0
      %1396 = vmatpush1.msra.mxu0 0.0
      %1397 = vmatprep.subr.mxu0 0.0
      %1398 = vmatpush1.msra.mxu0 0.0
      %1399 = vmatprep.subr.mxu0 0.0
      %1400 = vmatpush1.msra.mxu0 0.0
      %1401 = vmatprep.subr.mxu0 0.0
      %1402 = vmatpush1.msra.mxu0 0.0
      %1403 = vmatprep.subr.mxu0 0.0
      %1404 = vmatpush1.msra.mxu0 0.0
      %1405 = vmatprep.subr.mxu0 0.0
      %1406 = vmatpush1.msra.mxu0 0.0
      %1407 = vmatprep.subr.mxu0 0.0
      %1408 = vmatpush1.msra.mxu0 0.0
      %1409 = vmatprep.subr.mxu0 0.0
      %1410 = vmatpush1.msra.mxu0 0.0
      %1411 = vmatprep.subr.mxu0 0.0
      %1412 = vmatpush1.msra.mxu0 0.0
      %1413 = vmatprep.subr.mxu0 0.0
      %1414 = vmatpush1.msra.mxu0 0.0
      %1415 = vmatprep.subr.mxu0 0.0
      %1416 = vmatpush1.msra.mxu0 0.0
      %1417 = vmatprep.subr.mxu0 0.0
      %1418 = vmatpush1.msra.mxu0 0.0
      %1419 = vmatprep.subr.mxu0 0.0
      %1420 = vmatpush1.msra.mxu0 0.0
      %1421 = vmatprep.mubr.f32.mxu0 0.0
      %1422 = vmatmul.mubr.f32.gmra.mrb[0].mxu0 %v798
      %v1423 = vpop.f32.mrb[0].mxu0
      %v1424 = vadd.f32 0.0, %v1423
      %v1425 = vpop.f32.mrb[0].mxu0
      %1426 = vmatprep.mubr.f32.mxu0 0.0
      %1427 = vmatmul.mubr.f32.gmra.mrb[0].mxu0 %v801
      %v1428 = vpop.f32.mrb[0].mxu0
      %v1429 = vadd.f32 0.0, %v1428
      %v1430 = vpop.f32.mrb[0].mxu0
      %1431 = vmatprep.mubr.f32.mxu0 0.0
      %1432 = vmatmul.mubr.f32.gmra.mrb[0].mxu0 %v804
      %v1433 = vpop.f32.mrb[0].mxu0
      %v1434 = vadd.f32 0.0, %v1433
      %v1435 = vpop.f32.mrb[0].mxu0
      %1436 = vdwg.mxu0
      %v1437 = vld [vmem:[%s13] sm:$0xff]
      %v1438 = vld [vmem:[%s13 + $0x8] sm:$0xff]
      %v1439 = vld [vmem:[%s13 + $0x10] sm:$0xff]
      %v1440 = vld [vmem:[%s13 + $0x18] sm:$0xff]
      %v1441 = vld [vmem:[%s13 + $0x20] sm:$0xf]
      %1442 = vmatprep.subr.mxu0 0.0
      %1443 = vmatpush1.msra.mxu0 %v1355
      %1444 = vmatprep.subr.mxu0 0.0
      %1445 = vmatpush1.msra.mxu0 0.0
      %1446 = vmatprep.subr.mxu0 0.0
      %1447 = vmatpush1.msra.mxu0 0.0
      %1448 = vmatprep.subr.mxu0 0.0
      %1449 = vmatpush1.msra.mxu0 0.0
      %1450 = vmatprep.subr.mxu0 0.0
      %1451 = vmatpush1.msra.mxu0 0.0
      %1452 = vmatprep.subr.mxu0 0.0
      %1453 = vmatpush1.msra.mxu0 0.0
      %1454 = vmatprep.subr.mxu0 0.0
      %1455 = vmatpush1.msra.mxu0 0.0
      %1456 = vmatprep.subr.mxu0 0.0
      %1457 = vmatpush1.msra.mxu0 0.0
      %1458 = vmatprep.subr.mxu0 0.0
      %1459 = vmatpush1.msra.mxu0 0.0
      %1460 = vmatprep.subr.mxu0 0.0
      %1461 = vmatpush1.msra.mxu0 0.0
      %1462 = vmatprep.subr.mxu0 0.0
      %1463 = vmatpush1.msra.mxu0 0.0
      %1464 = vmatprep.subr.mxu0 0.0
      %1465 = vmatpush1.msra.mxu0 0.0
      %1466 = vmatprep.subr.mxu0 0.0
      %1467 = vmatpush1.msra.mxu0 0.0
      %1468 = vmatprep.subr.mxu0 0.0
      %1469 = vmatpush1.msra.mxu0 0.0
      %1470 = vmatprep.subr.mxu0 0.0
      %1471 = vmatpush1.msra.mxu0 0.0
      %1472 = vmatprep.subr.mxu0 0.0
      %1473 = vmatpush1.msra.mxu0 0.0
      %1474 = vmatprep.subr.mxu0 0.0
      %1475 = vmatpush1.msra.mxu0 0.0
      %1476 = vmatprep.subr.mxu0 0.0
      %1477 = vmatpush1.msra.mxu0 0.0
      %1478 = vmatprep.subr.mxu0 0.0
      %1479 = vmatpush1.msra.mxu0 0.0
      %1480 = vmatprep.subr.mxu0 0.0
      %1481 = vmatpush1.msra.mxu0 0.0
      %1482 = vmatprep.subr.mxu0 0.0
      %1483 = vmatpush1.msra.mxu0 0.0
      %1484 = vmatprep.subr.mxu0 0.0
      %1485 = vmatpush1.msra.mxu0 0.0
      %1486 = vmatprep.subr.mxu0 0.0
      %1487 = vmatpush1.msra.mxu0 0.0
      %1488 = vmatprep.subr.mxu0 0.0
      %1489 = vmatpush1.msra.mxu0 0.0
      %1490 = vmatprep.subr.mxu0 0.0
      %1491 = vmatpush1.msra.mxu0 0.0
      %1492 = vmatprep.subr.mxu0 0.0
      %1493 = vmatpush1.msra.mxu0 0.0
      %1494 = vmatprep.subr.mxu0 0.0
      %1495 = vmatpush1.msra.mxu0 0.0
      %1496 = vmatprep.subr.mxu0 0.0
      %1497 = vmatpush1.msra.mxu0 0.0
      %1498 = vmatprep.subr.mxu0 0.0
      %1499 = vmatpush1.msra.mxu0 0.0
      %1500 = vmatprep.subr.mxu0 0.0
      %1501 = vmatpush1.msra.mxu0 0.0
      %1502 = vmatprep.subr.mxu0 0.0
      %1503 = vmatpush1.msra.mxu0 0.0
      %1504 = vmatprep.subr.mxu0 0.0
      %1505 = vmatpush1.msra.mxu0 0.0
      %1506 = vmatprep.mubr.f32.mxu0 0.0
      %1507 = vmatmul.mubr.f32.gmra.mrb[0].mxu0 %v896
      %v1508 = vpop.f32.mrb[0].mxu0
      %v1509 = vadd.f32 0.0, %v1508
      %v1510 = vpop.f32.mrb[0].mxu0
      %1511 = vmatprep.mubr.f32.mxu0 0.0
      %1512 = vmatmul.mubr.f32.gmra.mrb[0].mxu0 %v899
      %v1513 = vpop.f32.mrb[0].mxu0
      %v1514 = vadd.f32 0.0, %v1513
      %v1515 = vpop.f32.mrb[0].mxu0
      %1516 = vmatprep.mubr.f32.mxu0 0.0
      %1517 = vmatmul.mubr.f32.gmra.mrb[0].mxu0 %v902
      %v1518 = vpop.f32.mrb[0].mxu0
      %v1519 = vadd.f32 0.0, %v1518
      %v1520 = vpop.f32.mrb[0].mxu0
      %1521 = vdwg.mxu0
      %v1522 = vld [vmem:[%s14] sm:$0xff]
      %v1523 = vld [vmem:[%s14 + $0x8] sm:$0xff]
      %v1524 = vld [vmem:[%s14 + $0x10] sm:$0xff]
      %v1525 = vld [vmem:[%s14 + $0x18] sm:$0xff]
      %v1526 = vld [vmem:[%s14 + $0x20] sm:$0xf]
      %v1528 = vsel %vm989, %v1509, 0
      %v1531 = vsel %vm989, %v1514, 0
      %v1534 = vsel %vm989, %v1519, 0
      %v1537 = vsel %vm999, %v1526, 0
      %1539 = vmatprep.subr.mxu0 0.0
      %1540 = vmatpush1.msra.mxu0 %v1522
      %1541 = vmatprep.subr.mxu0 0.0
      %1542 = vmatpush1.msra.mxu0 %v1523
      %1543 = vmatprep.subr.mxu0 0.0
      %1544 = vmatpush1.msra.mxu0 %v1524
      %1545 = vmatprep.subr.mxu0 0.0
      %1546 = vmatpush1.msra.mxu0 %v1525
      %1547 = vmatprep.subr.mxu0 0.0
      %1548 = vmatpush1.msra.mxu0 %v1537
      %1549 = vmatprep.subr.mxu0 0.0
      %1550 = vmatpush1.msra.mxu0 0.0
      %1551 = vmatprep.subr.mxu0 0.0
      %1552 = vmatpush1.msra.mxu0 0.0
      %1553 = vmatprep.subr.mxu0 0.0
      %1554 = vmatpush1.msra.mxu0 0.0
      %1555 = vmatprep.subr.mxu0 0.0
      %1556 = vmatpush1.msra.mxu0 0.0
      %1557 = vmatprep.subr.mxu0 0.0
      %1558 = vmatpush1.msra.mxu0 0.0
      %1559 = vmatprep.subr.mxu0 0.0
      %1560 = vmatpush1.msra.mxu0 0.0
      %1561 = vmatprep.subr.mxu0 0.0
      %1562 = vmatpush1.msra.mxu0 0.0
      %1563 = vmatprep.subr.mxu0 0.0
      %1564 = vmatpush1.msra.mxu0 0.0
      %1565 = vmatprep.subr.mxu0 0.0
      %1566 = vmatpush1.msra.mxu0 0.0
      %1567 = vmatprep.subr.mxu0 0.0
      %1568 = vmatpush1.msra.mxu0 0.0
      %1569 = vmatprep.subr.mxu0 0.0
      %1570 = vmatpush1.msra.mxu0 0.0
      %1571 = vmatprep.subr.mxu0 0.0
      %1572 = vmatpush1.msra.mxu0 0.0
      %1573 = vmatprep.subr.mxu0 0.0
      %1574 = vmatpush1.msra.mxu0 0.0
      %1575 = vmatprep.subr.mxu0 0.0
      %1576 = vmatpush1.msra.mxu0 0.0
      %1577 = vmatprep.subr.mxu0 0.0
      %1578 = vmatpush1.msra.mxu0 0.0
      %1579 = vmatprep.subr.mxu0 0.0
      %1580 = vmatpush1.msra.mxu0 0.0
      %1581 = vmatprep.subr.mxu0 0.0
      %1582 = vmatpush1.msra.mxu0 0.0
      %1583 = vmatprep.subr.mxu0 0.0
      %1584 = vmatpush1.msra.mxu0 0.0
      %1585 = vmatprep.subr.mxu0 0.0
      %1586 = vmatpush1.msra.mxu0 0.0
      %1587 = vmatprep.subr.mxu0 0.0
      %1588 = vmatpush1.msra.mxu0 0.0
      %1589 = vmatprep.subr.mxu0 0.0
      %1590 = vmatpush1.msra.mxu0 0.0
      %1591 = vmatprep.subr.mxu0 0.0
      %1592 = vmatpush1.msra.mxu0 0.0
      %1593 = vmatprep.subr.mxu0 0.0
      %1594 = vmatpush1.msra.mxu0 0.0
      %1595 = vmatprep.subr.mxu0 0.0
      %1596 = vmatpush1.msra.mxu0 0.0
      %1597 = vmatprep.subr.mxu0 0.0
      %1598 = vmatpush1.msra.mxu0 0.0
      %1599 = vmatprep.subr.mxu0 0.0
      %1600 = vmatpush1.msra.mxu0 0.0
      %1601 = vmatprep.subr.mxu0 0.0
      %1602 = vmatpush1.msra.mxu0 0.0
      %1603 = vmatprep.mubr.f32.mxu0 0.0
      %1604 = vmatmul.mubr.f32.gmra.mrb[0].mxu0 %v1528
      %v1605 = vpop.f32.mrb[0].mxu0
      %v1606 = vadd.f32 0.0, %v1605
      %v1607 = vpop.f32.mrb[0].mxu0
      %1608 = vmatprep.mubr.f32.mxu0 0.0
      %1609 = vmatmul.mubr.f32.gmra.mrb[0].mxu0 %v1531
      %v1610 = vpop.f32.mrb[0].mxu0
      %v1611 = vadd.f32 0.0, %v1610
      %v1612 = vpop.f32.mrb[0].mxu0
      %1613 = vmatprep.mubr.f32.mxu0 0.0
      %1614 = vmatmul.mubr.f32.gmra.mrb[0].mxu0 %v1534
      %v1615 = vpop.f32.mrb[0].mxu0
      %v1616 = vadd.f32 0.0, %v1615
      %v1617 = vpop.f32.mrb[0].mxu0
      %1618 = vdwg.mxu0
      %v1620 = vsel %vm989, %v1424, 0
      %v1623 = vsel %vm989, %v1429, 0
      %v1626 = vsel %vm989, %v1434, 0
      %v1629 = vsel %vm999, %v1441, 0
      %1631 = vmatprep.subr.mxu0 0.0
      %1632 = vmatpush1.msra.mxu0 %v1437
      %1633 = vmatprep.subr.mxu0 0.0
      %1634 = vmatpush1.msra.mxu0 %v1438
      %1635 = vmatprep.subr.mxu0 0.0
      %1636 = vmatpush1.msra.mxu0 %v1439
      %1637 = vmatprep.subr.mxu0 0.0
      %1638 = vmatpush1.msra.mxu0 %v1440
      %1639 = vmatprep.subr.mxu0 0.0
      %1640 = vmatpush1.msra.mxu0 %v1629
      %1641 = vmatprep.subr.mxu0 0.0
      %1642 = vmatpush1.msra.mxu0 0.0
      %1643 = vmatprep.subr.mxu0 0.0
      %1644 = vmatpush1.msra.mxu0 0.0
      %1645 = vmatprep.subr.mxu0 0.0
      %1646 = vmatpush1.msra.mxu0 0.0
      %1647 = vmatprep.subr.mxu0 0.0
      %1648 = vmatpush1.msra.mxu0 0.0
      %1649 = vmatprep.subr.mxu0 0.0
      %1650 = vmatpush1.msra.mxu0 0.0
      %1651 = vmatprep.subr.mxu0 0.0
      %1652 = vmatpush1.msra.mxu0 0.0
      %1653 = vmatprep.subr.mxu0 0.0
      %1654 = vmatpush1.msra.mxu0 0.0
      %1655 = vmatprep.subr.mxu0 0.0
      %1656 = vmatpush1.msra.mxu0 0.0
      %1657 = vmatprep.subr.mxu0 0.0
      %1658 = vmatpush1.msra.mxu0 0.0
      %1659 = vmatprep.subr.mxu0 0.0
      %1660 = vmatpush1.msra.mxu0 0.0
      %1661 = vmatprep.subr.mxu0 0.0
      %1662 = vmatpush1.msra.mxu0 0.0
      %1663 = vmatprep.subr.mxu0 0.0
      %1664 = vmatpush1.msra.mxu0 0.0
      %1665 = vmatprep.subr.mxu0 0.0
      %1666 = vmatpush1.msra.mxu0 0.0
      %1667 = vmatprep.subr.mxu0 0.0
      %1668 = vmatpush1.msra.mxu0 0.0
      %1669 = vmatprep.subr.mxu0 0.0
      %1670 = vmatpush1.msra.mxu0 0.0
      %1671 = vmatprep.subr.mxu0 0.0
      %1672 = vmatpush1.msra.mxu0 0.0
      %1673 = vmatprep.subr.mxu0 0.0
      %1674 = vmatpush1.msra.mxu0 0.0
      %1675 = vmatprep.subr.mxu0 0.0
      %1676 = vmatpush1.msra.mxu0 0.0
      %1677 = vmatprep.subr.mxu0 0.0
      %1678 = vmatpush1.msra.mxu0 0.0
      %1679 = vmatprep.subr.mxu0 0.0
      %1680 = vmatpush1.msra.mxu0 0.0
      %1681 = vmatprep.subr.mxu0 0.0
      %1682 = vmatpush1.msra.mxu0 0.0
      %1683 = vmatprep.subr.mxu0 0.0
      %1684 = vmatpush1.msra.mxu0 0.0
      %1685 = vmatprep.subr.mxu0 0.0
      %1686 = vmatpush1.msra.mxu0 0.0
      %1687 = vmatprep.subr.mxu0 0.0
      %1688 = vmatpush1.msra.mxu0 0.0
      %1689 = vmatprep.subr.mxu0 0.0
      %1690 = vmatpush1.msra.mxu0 0.0
      %1691 = vmatprep.subr.mxu0 0.0
      %1692 = vmatpush1.msra.mxu0 0.0
      %1693 = vmatprep.subr.mxu0 0.0
      %1694 = vmatpush1.msra.mxu0 0.0
      %1695 = vmatprep.mubr.f32.mxu0 0.0
      %1696 = vmatmul.mubr.f32.gmra.mrb[0].mxu0 %v1620
      %v1697 = vpop.f32.mrb[0].mxu0
      %v1698 = vadd.f32 %v1606, %v1697
      %v1699 = vpop.f32.mrb[0].mxu0
      %1700 = vmatprep.mubr.f32.mxu0 0.0
      %1701 = vmatmul.mubr.f32.gmra.mrb[0].mxu0 %v1623
      %v1702 = vpop.f32.mrb[0].mxu0
      %v1703 = vadd.f32 %v1611, %v1702
      %v1704 = vpop.f32.mrb[0].mxu0
      %1705 = vmatprep.mubr.f32.mxu0 0.0
      %1706 = vmatmul.mubr.f32.gmra.mrb[0].mxu0 %v1626
      %v1707 = vpop.f32.mrb[0].mxu0
      %v1708 = vadd.f32 %v1616, %v1707
      %v1709 = vpop.f32.mrb[0].mxu0
      %1710 = vdwg.mxu0
      %v1711 = vld [vmem:[%s15] sm:$0xff]
      %v1712 = vld [vmem:[%s15 + $0x8] sm:$0xff]
      %v1713 = vld [vmem:[%s15 + $0x10] sm:$0xff]
      %v1714 = vld [vmem:[%s15 + $0x18] sm:$0xff]
      %v1715 = vld [vmem:[%s15 + $0x20] sm:$0xf]
      %v1717 = vsel %vm989, %v1185, 0
      %v1720 = vsel %vm989, %v1186, 0
      %v1722 = vsel %vm989, %v1187, 0
      %v1725 = vsel %vm999, %v1715, 0
      %1727 = vmatprep.subr.mxu0 0.0
      %1728 = vmatpush1.msra.mxu0 %v1711
      %1729 = vmatprep.subr.mxu0 0.0
      %1730 = vmatpush1.msra.mxu0 %v1712
      %1731 = vmatprep.subr.mxu0 0.0
      %1732 = vmatpush1.msra.mxu0 %v1713
      %1733 = vmatprep.subr.mxu0 0.0
      %1734 = vmatpush1.msra.mxu0 %v1714
      %1735 = vmatprep.subr.mxu0 0.0
      %1736 = vmatpush1.msra.mxu0 %v1725
      %1737 = vmatprep.subr.mxu0 0.0
      %1738 = vmatpush1.msra.mxu0 0.0
      %1739 = vmatprep.subr.mxu0 0.0
      %1740 = vmatpush1.msra.mxu0 0.0
      %1741 = vmatprep.subr.mxu0 0.0
      %1742 = vmatpush1.msra.mxu0 0.0
      %1743 = vmatprep.subr.mxu0 0.0
      %1744 = vmatpush1.msra.mxu0 0.0
      %1745 = vmatprep.subr.mxu0 0.0
      %1746 = vmatpush1.msra.mxu0 0.0
      %1747 = vmatprep.subr.mxu0 0.0
      %1748 = vmatpush1.msra.mxu0 0.0
      %1749 = vmatprep.subr.mxu0 0.0
      %1750 = vmatpush1.msra.mxu0 0.0
      %1751 = vmatprep.subr.mxu0 0.0
      %1752 = vmatpush1.msra.mxu0 0.0
      %1753 = vmatprep.subr.mxu0 0.0
      %1754 = vmatpush1.msra.mxu0 0.0
      %1755 = vmatprep.subr.mxu0 0.0
      %1756 = vmatpush1.msra.mxu0 0.0
      %1757 = vmatprep.subr.mxu0 0.0
      %1758 = vmatpush1.msra.mxu0 0.0
      %1759 = vmatprep.subr.mxu0 0.0
      %1760 = vmatpush1.msra.mxu0 0.0
      %1761 = vmatprep.subr.mxu0 0.0
      %1762 = vmatpush1.msra.mxu0 0.0
      %1763 = vmatprep.subr.mxu0 0.0
      %1764 = vmatpush1.msra.mxu0 0.0
      %1765 = vmatprep.subr.mxu0 0.0
      %1766 = vmatpush1.msra.mxu0 0.0
      %1767 = vmatprep.subr.mxu0 0.0
      %1768 = vmatpush1.msra.mxu0 0.0
      %1769 = vmatprep.subr.mxu0 0.0
      %1770 = vmatpush1.msra.mxu0 0.0
      %1771 = vmatprep.subr.mxu0 0.0
      %1772 = vmatpush1.msra.mxu0 0.0
      %1773 = vmatprep.subr.mxu0 0.0
      %1774 = vmatpush1.msra.mxu0 0.0
      %1775 = vmatprep.subr.mxu0 0.0
      %1776 = vmatpush1.msra.mxu0 0.0
      %1777 = vmatprep.subr.mxu0 0.0
      %1778 = vmatpush1.msra.mxu0 0.0
      %1779 = vmatprep.subr.mxu0 0.0
      %1780 = vmatpush1.msra.mxu0 0.0
      %1781 = vmatprep.subr.mxu0 0.0
      %1782 = vmatpush1.msra.mxu0 0.0
      %1783 = vmatprep.subr.mxu0 0.0
      %1784 = vmatpush1.msra.mxu0 0.0
      %1785 = vmatprep.subr.mxu0 0.0
      %1786 = vmatpush1.msra.mxu0 0.0
      %1787 = vmatprep.subr.mxu0 0.0
      %1788 = vmatpush1.msra.mxu0 0.0
      %1789 = vmatprep.subr.mxu0 0.0
      %1790 = vmatpush1.msra.mxu0 0.0
      %1791 = vmatprep.mubr.f32.mxu0 0.0
      %1792 = vmatmul.mubr.f32.gmra.mrb[0].mxu0 %v1717
      %v1793 = vpop.f32.mrb[0].mxu0
      %v1794 = vadd.f32 0.0, %v1793
      %v1795 = vpop.f32.mrb[0].mxu0
      %1796 = vmatprep.mubr.f32.mxu0 0.0
      %1797 = vmatmul.mubr.f32.gmra.mrb[0].mxu0 %v1720
      %v1798 = vpop.f32.mrb[0].mxu0
      %v1799 = vadd.f32 0.0, %v1798
      %v1800 = vpop.f32.mrb[0].mxu0
      %1801 = vmatprep.mubr.f32.mxu0 0.0
      %1802 = vmatmul.mubr.f32.gmra.mrb[0].mxu0 %v1722
      %v1803 = vpop.f32.mrb[0].mxu0
      %v1804 = vadd.f32 0.0, %v1803
      %v1805 = vpop.f32.mrb[0].mxu0
      %1806 = vdwg.mxu0
      %v1807 = vadd.f32 %v1698, %v1794
      %v1808 = vadd.f32 %v1703, %v1799
      %v1809 = vadd.f32 %v1708, %v1804
      %v1810 = vld [vmem:[%s16] sm:$0x1]
      %v1812 = vlaneseq
      %v1813 = vshrl.u32 %v1812, 7
      %v1814 = vsub.s32 0, %v1813
      %v1815 = vrot.slane %v1810, %v1814
      %v1817 = vadd.f32 %v1807, %v1815
      %v1818 = vadd.f32 %v1808, %v1815
      %v1819 = vadd.f32 %v1809, %v1815
      %v1820 = vmax.f32 %v1817, 0.0
      %v1821 = vmax.f32 %v1818, 0.0
      %v1822 = vmax.f32 %v1819, 0.0
      %v1823 = vld [vmem:[%s17] sm:$0xff]
      %v1824 = vld [vmem:[%s17 + $0x8] sm:$0xff]
      %v1825 = vld [vmem:[%s17 + $0x10] sm:$0xf]
      %v1826 = vmul.f32 %v1820, %v1823
      %v1827 = vmul.f32 %v1821, %v1824
      %v1828 = vmul.f32 %v1822, %v1825
      %v1829 = vsel %vm989, %v1826, 0.0
      %1830 = vadd.xlane.f32.xlu0 %v1829
      %v1831 = vpop.xlane.xlu0 %1830
      %v1832 = vsel %vm989, %v1827, 0.0
      %1833 = vadd.xlane.f32.xlu0 %v1832
      %v1834 = vpop.xlane.xlu0 %1833
      %vm1835 = vcmask 289792
      %v1836 = vsel %vm1835, %v1828, 0.0
      %1837 = vadd.xlane.f32.xlu0 %v1836
      %v1838 = vpop.xlane.xlu0 %1837
      %vm1839 = vcmask 7168
      %1840 = vst.msk [vmem:[#allocation2] sm:$0xff] %vm1839, %v1831
      %1841 = vst.msk [vmem:[#allocation2 + $0x8] sm:$0xff] %vm1839, %v1834
      %vm1842 = vcmask 3072
      %1843 = vst.msk [vmem:[#allocation2 + $0x10] sm:$0xf] %vm1842, %v1838
      %s1844 = scalar_lea.vmem %s17, 24
      %v1845 = vld [vmem:[%s1844] sm:$0xff]
      %v1846 = vld [vmem:[%s1844 + $0x8] sm:$0xff]
      %v1847 = vld [vmem:[%s1844 + $0x10] sm:$0xf]
      %v1848 = vmul.f32 %v1820, %v1845
      %v1849 = vmul.f32 %v1821, %v1846
      %v1850 = vmul.f32 %v1822, %v1847
      %v1851 = vsel %vm989, %v1848, 0.0
      %1852 = vadd.xlane.f32.xlu0 %v1851
      %v1853 = vpop.xlane.xlu0 %1852
      %v1854 = vsel %vm989, %v1849, 0.0
      %1855 = vadd.xlane.f32.xlu0 %v1854
      %v1856 = vpop.xlane.xlu0 %1855
      %v1857 = vsel %vm1835, %v1850, 0.0
      %1858 = vadd.xlane.f32.xlu0 %v1857
      %v1859 = vpop.xlane.xlu0 %1858
      %vm1860 = vcmask 15368
      %1861 = vst.msk [vmem:[#allocation2] sm:$0xff] %vm1860, %v1853
      %1862 = vst.msk [vmem:[#allocation2 + $0x8] sm:$0xff] %vm1860, %v1856
      %vm1863 = vcmask 11272
      %1864 = vst.msk [vmem:[#allocation2 + $0x10] sm:$0xf] %vm1863, %v1859
      %s1865 = scalar_lea.vmem %s17, 48
      %v1866 = vld [vmem:[%s1865] sm:$0xff]
      %v1867 = vld [vmem:[%s1865 + $0x8] sm:$0xff]
      %v1868 = vld [vmem:[%s1865 + $0x10] sm:$0xf]
      %v1869 = vmul.f32 %v1820, %v1866
      %v1870 = vmul.f32 %v1821, %v1867
      %v1871 = vmul.f32 %v1822, %v1868
      %v1872 = vsel %vm989, %v1869, 0.0
      %1873 = vadd.xlane.f32.xlu0 %v1872
      %v1874 = vpop.xlane.xlu0 %1873
      %v1875 = vsel %vm989, %v1870, 0.0
      %1876 = vadd.xlane.f32.xlu0 %v1875
      %v1877 = vpop.xlane.xlu0 %1876
      %v1878 = vsel %vm1835, %v1871, 0.0
      %1879 = vadd.xlane.f32.xlu0 %v1878
      %v1880 = vpop.xlane.xlu0 %1879
      %vm1881 = vcmask 23568
      %1882 = vst.msk [vmem:[#allocation2] sm:$0xff] %vm1881, %v1874
      %1883 = vst.msk [vmem:[#allocation2 + $0x8] sm:$0xff] %vm1881, %v1877
      %vm1884 = vcmask 19472
      %1885 = vst.msk [vmem:[#allocation2 + $0x10] sm:$0xf] %vm1884, %v1880
      %s1886 = scalar_lea.vmem %s17, 72
      %v1887 = vld [vmem:[%s1886] sm:$0xff]
      %v1888 = vld [vmem:[%s1886 + $0x8] sm:$0xff]
      %v1889 = vld [vmem:[%s1886 + $0x10] sm:$0xf]
      %v1890 = vmul.f32 %v1820, %v1887
      %v1891 = vmul.f32 %v1821, %v1888
      %v1892 = vmul.f32 %v1822, %v1889
      %v1893 = vsel %vm989, %v1890, 0.0
      %1894 = vadd.xlane.f32.xlu0 %v1893
      %v1895 = vpop.xlane.xlu0 %1894
      %v1896 = vsel %vm989, %v1891, 0.0
      %1897 = vadd.xlane.f32.xlu0 %v1896
      %v1898 = vpop.xlane.xlu0 %1897
      %v1899 = vsel %vm1835, %v1892, 0.0
      %1900 = vadd.xlane.f32.xlu0 %v1899
      %v1901 = vpop.xlane.xlu0 %1900
      %vm1902 = vcmask 31768
      %1903 = vst.msk [vmem:[#allocation2] sm:$0xff] %vm1902, %v1895
      %1904 = vst.msk [vmem:[#allocation2 + $0x8] sm:$0xff] %vm1902, %v1898
      %vm1905 = vcmask 27672
      %1906 = vst.msk [vmem:[#allocation2 + $0x10] sm:$0xf] %vm1905, %v1901
      %v1907 = vld [vmem:[%s6] sm:$0x1f]
      %v1908 = vld [vmem:[#allocation2] sm:$0xff]
      %v1909 = vld [vmem:[#allocation2 + $0x8] sm:$0xff]
      %v1910 = vld [vmem:[#allocation2 + $0x10] sm:$0xf]
      %v1911 = vld [vmem:[%s18] sm:$0x1f]
      %v1913 = vsel %vm1188, %v1907, 0
      %v1916 = vsel %vm999, %v1910, 0
      %1918 = vmatprep.subr.mxu0 0.0
      %1919 = vmatpush1.msra.mxu0 %v1908
      %1920 = vmatprep.subr.mxu0 0.0
      %1921 = vmatpush1.msra.mxu0 %v1909
      %1922 = vmatprep.subr.mxu0 0.0
      %1923 = vmatpush1.msra.mxu0 %v1916
      %1924 = vmatprep.subr.mxu0 0.0
      %1925 = vmatpush1.msra.mxu0 0.0
      %1926 = vmatprep.subr.mxu0 0.0
      %1927 = vmatpush1.msra.mxu0 0.0
      %1928 = vmatprep.subr.mxu0 0.0
      %1929 = vmatpush1.msra.mxu0 0.0
      %1930 = vmatprep.subr.mxu0 0.0
      %1931 = vmatpush1.msra.mxu0 0.0
      %1932 = vmatprep.subr.mxu0 0.0
      %1933 = vmatpush1.msra.mxu0 0.0
      %1934 = vmatprep.subr.mxu0 0.0
      %1935 = vmatpush1.msra.mxu0 0.0
      %1936 = vmatprep.subr.mxu0 0.0
      %1937 = vmatpush1.msra.mxu0 0.0
      %1938 = vmatprep.subr.mxu0 0.0
      %1939 = vmatpush1.msra.mxu0 0.0
      %1940 = vmatprep.subr.mxu0 0.0
      %1941 = vmatpush1.msra.mxu0 0.0
      %1942 = vmatprep.subr.mxu0 0.0
      %1943 = vmatpush1.msra.mxu0 0.0
      %1944 = vmatprep.subr.mxu0 0.0
      %1945 = vmatpush1.msra.mxu0 0.0
      %1946 = vmatprep.subr.mxu0 0.0
      %1947 = vmatpush1.msra.mxu0 0.0
      %1948 = vmatprep.subr.mxu0 0.0
      %1949 = vmatpush1.msra.mxu0 0.0
      %1950 = vmatprep.subr.mxu0 0.0
      %1951 = vmatpush1.msra.mxu0 0.0
      %1952 = vmatprep.subr.mxu0 0.0
      %1953 = vmatpush1.msra.mxu0 0.0
      %1954 = vmatprep.subr.mxu0 0.0
      %1955 = vmatpush1.msra.mxu0 0.0
      %1956 = vmatprep.subr.mxu0 0.0
      %1957 = vmatpush1.msra.mxu0 0.0
      %1958 = vmatprep.subr.mxu0 0.0
      %1959 = vmatpush1.msra.mxu0 0.0
      %1960 = vmatprep.subr.mxu0 0.0
      %1961 = vmatpush1.msra.mxu0 0.0
      %1962 = vmatprep.subr.mxu0 0.0
      %1963 = vmatpush1.msra.mxu0 0.0
      %1964 = vmatprep.subr.mxu0 0.0
      %1965 = vmatpush1.msra.mxu0 0.0
      %1966 = vmatprep.subr.mxu0 0.0
      %1967 = vmatpush1.msra.mxu0 0.0
      %1968 = vmatprep.subr.mxu0 0.0
      %1969 = vmatpush1.msra.mxu0 0.0
      %1970 = vmatprep.subr.mxu0 0.0
      %1971 = vmatpush1.msra.mxu0 0.0
      %1972 = vmatprep.subr.mxu0 0.0
      %1973 = vmatpush1.msra.mxu0 0.0
      %1974 = vmatprep.subr.mxu0 0.0
      %1975 = vmatpush1.msra.mxu0 0.0
      %1976 = vmatprep.subr.mxu0 0.0
      %1977 = vmatpush1.msra.mxu0 0.0
      %1978 = vmatprep.subr.mxu0 0.0
      %1979 = vmatpush1.msra.mxu0 0.0
      %1980 = vmatprep.subr.mxu0 0.0
      %1981 = vmatpush1.msra.mxu0 0.0
      %1982 = vmatprep.mubr.f32.mxu0 0.0
      %1983 = vmatmul.mubr.f32.gmra.mrb[0].mxu0 %v1913
      %v1984 = vpop.f32.mrb[0].mxu0
      %v1985 = vadd.f32 %v1911, %v1984
      %v1986 = vpop.f32.mrb[0].mxu0
      %1987 = vdwg.mxu0
      %vm1988 = vcmask 28672
      %v1989 = vsel %vm1988, %v1985, -inf
      %1990 = vmax.xlane.f32.xlu0 %v1989
      %v1991 = vpop.xlane.xlu0 %1990
      %v1992 = vsub.f32 %v1985, %v1991
      %v1993 = vmul.f32 %v1992, 1.442695
      %v1994 = vpow.pop %v1993
      %v1995 = vsel %vm1988, %v1994, 0.0
      %1996 = vadd.xlane.f32.xlu0 %v1995
      %v1997 = vpop.xlane.xlu0 %1996
      %v1998 = vrcp.pop %v1997
      %v1999 = vmul.f32 %v1994, %v1998
      %v2000 = vld [vmem:[%s5] sm:$0xff]
      %v2001 = vld [vmem:[%s5 + $0x8] sm:$0xff]
      %v2002 = vld [vmem:[%s5 + $0x10] sm:$0xf]
      %v2004 = vsel %vm796, %v2000, 0
      %v2007 = vsel %vm796, %v2001, 0
      %v2010 = vsel %vm796, %v2002, 0
      %v2013 = vsel %vm806, %v1999, 0
      %2015 = vmatprep.subr.mxu0 0.0
      %2016 = vmatpush1.msra.mxu0 %v2013
      %2017 = vmatprep.subr.mxu0 0.0
      %2018 = vmatpush1.msra.mxu0 0.0
      %2019 = vmatprep.subr.mxu0 0.0
      %2020 = vmatpush1.msra.mxu0 0.0
      %2021 = vmatprep.subr.mxu0 0.0
      %2022 = vmatpush1.msra.mxu0 0.0
      %2023 = vmatprep.subr.mxu0 0.0
      %2024 = vmatpush1.msra.mxu0 0.0
      %2025 = vmatprep.subr.mxu0 0.0
      %2026 = vmatpush1.msra.mxu0 0.0
      %2027 = vmatprep.subr.mxu0 0.0
      %2028 = vmatpush1.msra.mxu0 0.0
      %2029 = vmatprep.subr.mxu0 0.0
      %2030 = vmatpush1.msra.mxu0 0.0
      %2031 = vmatprep.subr.mxu0 0.0
      %2032 = vmatpush1.msra.mxu0 0.0
      %2033 = vmatprep.subr.mxu0 0.0
      %2034 = vmatpush1.msra.mxu0 0.0
      %2035 = vmatprep.subr.mxu0 0.0
      %2036 = vmatpush1.msra.mxu0 0.0
      %2037 = vmatprep.subr.mxu0 0.0
      %2038 = vmatpush1.msra.mxu0 0.0
      %2039 = vmatprep.subr.mxu0 0.0
      %2040 = vmatpush1.msra.mxu0 0.0
      %2041 = vmatprep.subr.mxu0 0.0
      %2042 = vmatpush1.msra.mxu0 0.0
      %2043 = vmatprep.subr.mxu0 0.0
      %2044 = vmatpush1.msra.mxu0 0.0
      %2045 = vmatprep.subr.mxu0 0.0
      %2046 = vmatpush1.msra.mxu0 0.0
      %2047 = vmatprep.subr.mxu0 0.0
      %2048 = vmatpush1.msra.mxu0 0.0
      %2049 = vmatprep.subr.mxu0 0.0
      %2050 = vmatpush1.msra.mxu0 0.0
      %2051 = vmatprep.subr.mxu0 0.0
      %2052 = vmatpush1.msra.mxu0 0.0
      %2053 = vmatprep.subr.mxu0 0.0
      %2054 = vmatpush1.msra.mxu0 0.0
      %2055 = vmatprep.subr.mxu0 0.0
      %2056 = vmatpush1.msra.mxu0 0.0
      %2057 = vmatprep.subr.mxu0 0.0
      %2058 = vmatpush1.msra.mxu0 0.0
      %2059 = vmatprep.subr.mxu0 0.0
      %2060 = vmatpush1.msra.mxu0 0.0
      %2061 = vmatprep.subr.mxu0 0.0
      %2062 = vmatpush1.msra.mxu0 0.0
      %2063 = vmatprep.subr.mxu0 0.0
      %2064 = vmatpush1.msra.mxu0 0.0
      %2065 = vmatprep.subr.mxu0 0.0
      %2066 = vmatpush1.msra.mxu0 0.0
      %2067 = vmatprep.subr.mxu0 0.0
      %2068 = vmatpush1.msra.mxu0 0.0
      %2069 = vmatprep.subr.mxu0 0.0
      %2070 = vmatpush1.msra.mxu0 0.0
      %2071 = vmatprep.subr.mxu0 0.0
      %2072 = vmatpush1.msra.mxu0 0.0
      %2073 = vmatprep.subr.mxu0 0.0
      %2074 = vmatpush1.msra.mxu0 0.0
      %2075 = vmatprep.subr.mxu0 0.0
      %2076 = vmatpush1.msra.mxu0 0.0
      %2077 = vmatprep.subr.mxu0 0.0
      %2078 = vmatpush1.msra.mxu0 0.0
      %2079 = vmatprep.mubr.f32.mxu0 0.0
      %2080 = vmatmul.mubr.f32.gmra.mrb[0].mxu0 %v2004
      %v2081 = vpop.f32.mrb[0].mxu0
      %v2082 = vadd.f32 0.0, %v2081
      %v2083 = vpop.f32.mrb[0].mxu0
      %2084 = vmatprep.mubr.f32.mxu0 0.0
      %2085 = vmatmul.mubr.f32.gmra.mrb[0].mxu0 %v2007
      %v2086 = vpop.f32.mrb[0].mxu0
      %v2087 = vadd.f32 0.0, %v2086
      %v2088 = vpop.f32.mrb[0].mxu0
      %2089 = vmatprep.mubr.f32.mxu0 0.0
      %2090 = vmatmul.mubr.f32.gmra.mrb[0].mxu0 %v2010
      %v2091 = vpop.f32.mrb[0].mxu0
      %v2092 = vadd.f32 0.0, %v2091
      %v2093 = vpop.f32.mrb[0].mxu0
      %2094 = vdwg.mxu0
      %v2095 = vld [vmem:[%s7] sm:$0xff]
      %v2096 = vld [vmem:[%s7 + $0x8] sm:$0xff]
      %v2097 = vld [vmem:[%s7 + $0x10] sm:$0xf]
      %v2098 = vmul.f32 %v2082, %v2095
      %v2099 = vmul.f32 %v2087, %v2096
      %v2100 = vmul.f32 %v2092, %v2097
      %vm2101 = vcmask 31744
      %v2102 = vsel %vm2101, %v2098, 0.0
      %2103 = vadd.xlane.f32.xlu0 %v2102
      %v2104 = vpop.xlane.xlu0 %2103
      %v2105 = vsel %vm2101, %v2099, 0.0
      %2106 = vadd.xlane.f32.xlu0 %v2105
      %v2107 = vpop.xlane.xlu0 %2106
      %vm2108 = vcmask 27648
      %v2109 = vsel %vm2108, %v2100, 0.0
      %2110 = vadd.xlane.f32.xlu0 %v2109
      %v2111 = vpop.xlane.xlu0 %2110
      %v2112 = vmul.f32 %v2104, %v788
      %v2113 = vmul.f32 %v2107, %v789
      %v2114 = vmul.f32 %v2111, %v790
      %v2115 = vmul.f32 %v2104, %v791
      %v2116 = vmul.f32 %v2107, %v792
      %v2117 = vmul.f32 %v2111, %v793
      %v2118 = vlaneseq
      %v2119 = vshrl.u32 %v2118, 7
      %vm2120 = vcmp.eq.s32.totalorder %v2119, 0
      %v2121 = vsel %vm2120, 1.0, 0.0
      %v2122 = vld [vmem:[%s19] sm:$0xff]
      %v2123 = vld [vmem:[%s19 + $0x8] sm:$0xff]
      %v2124 = vld [vmem:[%s19 + $0x10] sm:$0xff]
      %v2125 = vld [vmem:[%s19 + $0x18] sm:$0xff]
      %v2126 = vld [vmem:[%s20] sm:$0x1]
      %v2128 = vlaneseq
      %v2129 = vshrl.u32 %v2128, 7
      %v2130 = vsub.s32 0, %v2129
      %v2131 = vrot.slane %v2126, %v2130
      %vm2133 = vcmask 261120
      %v2135 = vsel %vm2133, %v2121, 0
      %2137 = vmatprep.subr.mxu0 0.0
      %2138 = vmatpush1.msra.mxu0 %v2122
      %2139 = vmatprep.subr.mxu0 0.0
      %2140 = vmatpush1.msra.mxu0 %v2123
      %2141 = vmatprep.subr.mxu0 0.0
      %2142 = vmatpush1.msra.mxu0 %v2124
      %2143 = vmatprep.subr.mxu0 0.0
      %2144 = vmatpush1.msra.mxu0 %v2125
      %2145 = vmatprep.subr.mxu0 0.0
      %2146 = vmatpush1.msra.mxu0 0.0
      %2147 = vmatprep.subr.mxu0 0.0
      %2148 = vmatpush1.msra.mxu0 0.0
      %2149 = vmatprep.subr.mxu0 0.0
      %2150 = vmatpush1.msra.mxu0 0.0
      %2151 = vmatprep.subr.mxu0 0.0
      %2152 = vmatpush1.msra.mxu0 0.0
      %2153 = vmatprep.subr.mxu0 0.0
      %2154 = vmatpush1.msra.mxu0 0.0
      %2155 = vmatprep.subr.mxu0 0.0
      %2156 = vmatpush1.msra.mxu0 0.0
      %2157 = vmatprep.subr.mxu0 0.0
      %2158 = vmatpush1.msra.mxu0 0.0
      %2159 = vmatprep.subr.mxu0 0.0
      %2160 = vmatpush1.msra.mxu0 0.0
      %2161 = vmatprep.subr.mxu0 0.0
      %2162 = vmatpush1.msra.mxu0 0.0
      %2163 = vmatprep.subr.mxu0 0.0
      %2164 = vmatpush1.msra.mxu0 0.0
      %2165 = vmatprep.subr.mxu0 0.0
      %2166 = vmatpush1.msra.mxu0 0.0
      %2167 = vmatprep.subr.mxu0 0.0
      %2168 = vmatpush1.msra.mxu0 0.0
      %2169 = vmatprep.subr.mxu0 0.0
      %2170 = vmatpush1.msra.mxu0 0.0
      %2171 = vmatprep.subr.mxu0 0.0
      %2172 = vmatpush1.msra.mxu0 0.0
      %2173 = vmatprep.subr.mxu0 0.0
      %2174 = vmatpush1.msra.mxu0 0.0
      %2175 = vmatprep.subr.mxu0 0.0
      %2176 = vmatpush1.msra.mxu0 0.0
      %2177 = vmatprep.subr.mxu0 0.0
      %2178 = vmatpush1.msra.mxu0 0.0
      %2179 = vmatprep.subr.mxu0 0.0
      %2180 = vmatpush1.msra.mxu0 0.0
      %2181 = vmatprep.subr.mxu0 0.0
      %2182 = vmatpush1.msra.mxu0 0.0
      %2183 = vmatprep.subr.mxu0 0.0
      %2184 = vmatpush1.msra.mxu0 0.0
      %2185 = vmatprep.subr.mxu0 0.0
      %2186 = vmatpush1.msra.mxu0 0.0
      %2187 = vmatprep.subr.mxu0 0.0
      %2188 = vmatpush1.msra.mxu0 0.0
      %2189 = vmatprep.subr.mxu0 0.0
      %2190 = vmatpush1.msra.mxu0 0.0
      %2191 = vmatprep.subr.mxu0 0.0
      %2192 = vmatpush1.msra.mxu0 0.0
      %2193 = vmatprep.subr.mxu0 0.0
      %2194 = vmatpush1.msra.mxu0 0.0
      %2195 = vmatprep.subr.mxu0 0.0
      %2196 = vmatpush1.msra.mxu0 0.0
      %2197 = vmatprep.subr.mxu0 0.0
      %2198 = vmatpush1.msra.mxu0 0.0
      %2199 = vmatprep.subr.mxu0 0.0
      %2200 = vmatpush1.msra.mxu0 0.0
      %2201 = vmatprep.mubr.f32.mxu0 0.0
      %2202 = vmatmul.mubr.f32.gmra.mrb[0].mxu0 %v2135
      %v2203 = vpop.f32.mrb[0].mxu0
      %v2204 = vadd.f32 %v2131, %v2203
      %v2205 = vpop.f32.mrb[0].mxu0
      %2206 = vdwg.mxu0
      %v2207 = vmax.f32 %v2204, 0.0
      %v2209 = vsel %vm796, %v2112, 0
      %v2212 = vsel %vm796, %v2113, 0
      %v2215 = vsel %vm796, %v2114, 0
      %v2218 = vsel %vm806, %v2207, 0
      %2220 = vmatprep.subr.mxu0 0.0
      %2221 = vmatpush1.msra.mxu0 %v2218
      %2222 = vmatprep.subr.mxu0 0.0
      %2223 = vmatpush1.msra.mxu0 0.0
      %2224 = vmatprep.subr.mxu0 0.0
      %2225 = vmatpush1.msra.mxu0 0.0
      %2226 = vmatprep.subr.mxu0 0.0
      %2227 = vmatpush1.msra.mxu0 0.0
      %2228 = vmatprep.subr.mxu0 0.0
      %2229 = vmatpush1.msra.mxu0 0.0
      %2230 = vmatprep.subr.mxu0 0.0
      %2231 = vmatpush1.msra.mxu0 0.0
      %2232 = vmatprep.subr.mxu0 0.0
      %2233 = vmatpush1.msra.mxu0 0.0
      %2234 = vmatprep.subr.mxu0 0.0
      %2235 = vmatpush1.msra.mxu0 0.0
      %2236 = vmatprep.subr.mxu0 0.0
      %2237 = vmatpush1.msra.mxu0 0.0
      %2238 = vmatprep.subr.mxu0 0.0
      %2239 = vmatpush1.msra.mxu0 0.0
      %2240 = vmatprep.subr.mxu0 0.0
      %2241 = vmatpush1.msra.mxu0 0.0
      %2242 = vmatprep.subr.mxu0 0.0
      %2243 = vmatpush1.msra.mxu0 0.0
      %2244 = vmatprep.subr.mxu0 0.0
      %2245 = vmatpush1.msra.mxu0 0.0
      %2246 = vmatprep.subr.mxu0 0.0
      %2247 = vmatpush1.msra.mxu0 0.0
      %2248 = vmatprep.subr.mxu0 0.0
      %2249 = vmatpush1.msra.mxu0 0.0
      %2250 = vmatprep.subr.mxu0 0.0
      %2251 = vmatpush1.msra.mxu0 0.0
      %2252 = vmatprep.subr.mxu0 0.0
      %2253 = vmatpush1.msra.mxu0 0.0
      %2254 = vmatprep.subr.mxu0 0.0
      %2255 = vmatpush1.msra.mxu0 0.0
      %2256 = vmatprep.subr.mxu0 0.0
      %2257 = vmatpush1.msra.mxu0 0.0
      %2258 = vmatprep.subr.mxu0 0.0
      %2259 = vmatpush1.msra.mxu0 0.0
      %2260 = vmatprep.subr.mxu0 0.0
      %2261 = vmatpush1.msra.mxu0 0.0
      %2262 = vmatprep.subr.mxu0 0.0
      %2263 = vmatpush1.msra.mxu0 0.0
      %2264 = vmatprep.subr.mxu0 0.0
      %2265 = vmatpush1.msra.mxu0 0.0
      %2266 = vmatprep.subr.mxu0 0.0
      %2267 = vmatpush1.msra.mxu0 0.0
      %2268 = vmatprep.subr.mxu0 0.0
      %2269 = vmatpush1.msra.mxu0 0.0
      %2270 = vmatprep.subr.mxu0 0.0
      %2271 = vmatpush1.msra.mxu0 0.0
      %2272 = vmatprep.subr.mxu0 0.0
      %2273 = vmatpush1.msra.mxu0 0.0
      %2274 = vmatprep.subr.mxu0 0.0
      %2275 = vmatpush1.msra.mxu0 0.0
      %2276 = vmatprep.subr.mxu0 0.0
      %2277 = vmatpush1.msra.mxu0 0.0
      %2278 = vmatprep.subr.mxu0 0.0
      %2279 = vmatpush1.msra.mxu0 0.0
      %2280 = vmatprep.subr.mxu0 0.0
      %2281 = vmatpush1.msra.mxu0 0.0
      %2282 = vmatprep.subr.mxu0 0.0
      %2283 = vmatpush1.msra.mxu0 0.0
      %2284 = vmatprep.mubr.f32.mxu0 0.0
      %2285 = vmatmul.mubr.f32.gmra.mrb[0].mxu0 %v2209
      %v2286 = vpop.f32.mrb[0].mxu0
      %v2287 = vadd.f32 0.0, %v2286
      %v2288 = vpop.f32.mrb[0].mxu0
      %2289 = vmatprep.mubr.f32.mxu0 0.0
      %2290 = vmatmul.mubr.f32.gmra.mrb[0].mxu0 %v2212
      %v2291 = vpop.f32.mrb[0].mxu0
      %v2292 = vadd.f32 0.0, %v2291
      %v2293 = vpop.f32.mrb[0].mxu0
      %2294 = vmatprep.mubr.f32.mxu0 0.0
      %2295 = vmatmul.mubr.f32.gmra.mrb[0].mxu0 %v2215
      %v2296 = vpop.f32.mrb[0].mxu0
      %v2297 = vadd.f32 0.0, %v2296
      %v2298 = vpop.f32.mrb[0].mxu0
      %2299 = vdwg.mxu0
      %v2301 = vsel %vm796, %v2115, 0
      %v2304 = vsel %vm796, %v2116, 0
      %v2307 = vsel %vm796, %v2117, 0
      %2309 = vmatprep.subr.mxu0 0.0
      %2310 = vmatpush1.msra.mxu0 %v2218
      %2311 = vmatprep.subr.mxu0 0.0
      %2312 = vmatpush1.msra.mxu0 0.0
      %2313 = vmatprep.subr.mxu0 0.0
      %2314 = vmatpush1.msra.mxu0 0.0
      %2315 = vmatprep.subr.mxu0 0.0
      %2316 = vmatpush1.msra.mxu0 0.0
      %2317 = vmatprep.subr.mxu0 0.0
      %2318 = vmatpush1.msra.mxu0 0.0
      %2319 = vmatprep.subr.mxu0 0.0
      %2320 = vmatpush1.msra.mxu0 0.0
      %2321 = vmatprep.subr.mxu0 0.0
      %2322 = vmatpush1.msra.mxu0 0.0
      %2323 = vmatprep.subr.mxu0 0.0
      %2324 = vmatpush1.msra.mxu0 0.0
      %2325 = vmatprep.subr.mxu0 0.0
      %2326 = vmatpush1.msra.mxu0 0.0
      %2327 = vmatprep.subr.mxu0 0.0
      %2328 = vmatpush1.msra.mxu0 0.0
      %2329 = vmatprep.subr.mxu0 0.0
      %2330 = vmatpush1.msra.mxu0 0.0
      %2331 = vmatprep.subr.mxu0 0.0
      %2332 = vmatpush1.msra.mxu0 0.0
      %2333 = vmatprep.subr.mxu0 0.0
      %2334 = vmatpush1.msra.mxu0 0.0
      %2335 = vmatprep.subr.mxu0 0.0
      %2336 = vmatpush1.msra.mxu0 0.0
      %2337 = vmatprep.subr.mxu0 0.0
      %2338 = vmatpush1.msra.mxu0 0.0
      %2339 = vmatprep.subr.mxu0 0.0
      %2340 = vmatpush1.msra.mxu0 0.0
      %2341 = vmatprep.subr.mxu0 0.0
      %2342 = vmatpush1.msra.mxu0 0.0
      %2343 = vmatprep.subr.mxu0 0.0
      %2344 = vmatpush1.msra.mxu0 0.0
      %2345 = vmatprep.subr.mxu0 0.0
      %2346 = vmatpush1.msra.mxu0 0.0
      %2347 = vmatprep.subr.mxu0 0.0
      %2348 = vmatpush1.msra.mxu0 0.0
      %2349 = vmatprep.subr.mxu0 0.0
      %2350 = vmatpush1.msra.mxu0 0.0
      %2351 = vmatprep.subr.mxu0 0.0
      %2352 = vmatpush1.msra.mxu0 0.0
      %2353 = vmatprep.subr.mxu0 0.0
      %2354 = vmatpush1.msra.mxu0 0.0
      %2355 = vmatprep.subr.mxu0 0.0
      %2356 = vmatpush1.msra.mxu0 0.0
      %2357 = vmatprep.subr.mxu0 0.0
      %2358 = vmatpush1.msra.mxu0 0.0
      %2359 = vmatprep.subr.mxu0 0.0
      %2360 = vmatpush1.msra.mxu0 0.0
      %2361 = vmatprep.subr.mxu0 0.0
      %2362 = vmatpush1.msra.mxu0 0.0
      %2363 = vmatprep.subr.mxu0 0.0
      %2364 = vmatpush1.msra.mxu0 0.0
      %2365 = vmatprep.subr.mxu0 0.0
      %2366 = vmatpush1.msra.mxu0 0.0
      %2367 = vmatprep.subr.mxu0 0.0
      %2368 = vmatpush1.msra.mxu0 0.0
      %2369 = vmatprep.subr.mxu0 0.0
      %2370 = vmatpush1.msra.mxu0 0.0
      %2371 = vmatprep.subr.mxu0 0.0
      %2372 = vmatpush1.msra.mxu0 0.0
      %2373 = vmatprep.mubr.f32.mxu0 0.0
      %2374 = vmatmul.mubr.f32.gmra.mrb[0].mxu0 %v2301
      %v2375 = vpop.f32.mrb[0].mxu0
      %v2376 = vadd.f32 0.0, %v2375
      %v2377 = vpop.f32.mrb[0].mxu0
      %2378 = vmatprep.mubr.f32.mxu0 0.0
      %2379 = vmatmul.mubr.f32.gmra.mrb[0].mxu0 %v2304
      %v2380 = vpop.f32.mrb[0].mxu0
      %v2381 = vadd.f32 0.0, %v2380
      %v2382 = vpop.f32.mrb[0].mxu0
      %2383 = vmatprep.mubr.f32.mxu0 0.0
      %2384 = vmatmul.mubr.f32.gmra.mrb[0].mxu0 %v2307
      %v2385 = vpop.f32.mrb[0].mxu0
      %v2386 = vadd.f32 0.0, %v2385
      %v2387 = vpop.f32.mrb[0].mxu0
      %2388 = vdwg.mxu0
      %v2389 = vld [vmem:[%s21] sm:$0xff]
      %v2390 = vld [vmem:[%s21 + $0x8] sm:$0xff]
      %v2391 = vld [vmem:[%s21 + $0x10] sm:$0xff]
      %v2392 = vld [vmem:[%s21 + $0x18] sm:$0xff]
      %v2393 = vld [vmem:[%s22] sm:$0xff]
      %v2394 = vld [vmem:[%s22 + $0x8] sm:$0xff]
      %v2395 = vld [vmem:[%s22 + $0x10] sm:$0xff]
      %v2396 = vld [vmem:[%s22 + $0x18] sm:$0xff]
      %v2398 = vsel %vm2133, %v2376, 0
      %v2401 = vsel %vm2133, %v2381, 0
      %v2404 = vsel %vm2133, %v2386, 0
      %2406 = vmatprep.subr.mxu0 0.0
      %2407 = vmatpush1.msra.mxu0 %v2393
      %2408 = vmatprep.subr.mxu0 0.0
      %2409 = vmatpush1.msra.mxu0 %v2394
      %2410 = vmatprep.subr.mxu0 0.0
      %2411 = vmatpush1.msra.mxu0 %v2395
      %2412 = vmatprep.subr.mxu0 0.0
      %2413 = vmatpush1.msra.mxu0 %v2396
      %2414 = vmatprep.subr.mxu0 0.0
      %2415 = vmatpush1.msra.mxu0 0.0
      %2416 = vmatprep.subr.mxu0 0.0
      %2417 = vmatpush1.msra.mxu0 0.0
      %2418 = vmatprep.subr.mxu0 0.0
      %2419 = vmatpush1.msra.mxu0 0.0
      %2420 = vmatprep.subr.mxu0 0.0
      %2421 = vmatpush1.msra.mxu0 0.0
      %2422 = vmatprep.subr.mxu0 0.0
      %2423 = vmatpush1.msra.mxu0 0.0
      %2424 = vmatprep.subr.mxu0 0.0
      %2425 = vmatpush1.msra.mxu0 0.0
      %2426 = vmatprep.subr.mxu0 0.0
      %2427 = vmatpush1.msra.mxu0 0.0
      %2428 = vmatprep.subr.mxu0 0.0
      %2429 = vmatpush1.msra.mxu0 0.0
      %2430 = vmatprep.subr.mxu0 0.0
      %2431 = vmatpush1.msra.mxu0 0.0
      %2432 = vmatprep.subr.mxu0 0.0
      %2433 = vmatpush1.msra.mxu0 0.0
      %2434 = vmatprep.subr.mxu0 0.0
      %2435 = vmatpush1.msra.mxu0 0.0
      %2436 = vmatprep.subr.mxu0 0.0
      %2437 = vmatpush1.msra.mxu0 0.0
      %2438 = vmatprep.subr.mxu0 0.0
      %2439 = vmatpush1.msra.mxu0 0.0
      %2440 = vmatprep.subr.mxu0 0.0
      %2441 = vmatpush1.msra.mxu0 0.0
      %2442 = vmatprep.subr.mxu0 0.0
      %2443 = vmatpush1.msra.mxu0 0.0
      %2444 = vmatprep.subr.mxu0 0.0
      %2445 = vmatpush1.msra.mxu0 0.0
      %2446 = vmatprep.subr.mxu0 0.0
      %2447 = vmatpush1.msra.mxu0 0.0
      %2448 = vmatprep.subr.mxu0 0.0
      %2449 = vmatpush1.msra.mxu0 0.0
      %2450 = vmatprep.subr.mxu0 0.0
      %2451 = vmatpush1.msra.mxu0 0.0
      %2452 = vmatprep.subr.mxu0 0.0
      %2453 = vmatpush1.msra.mxu0 0.0
      %2454 = vmatprep.subr.mxu0 0.0
      %2455 = vmatpush1.msra.mxu0 0.0
      %2456 = vmatprep.subr.mxu0 0.0
      %2457 = vmatpush1.msra.mxu0 0.0
      %2458 = vmatprep.subr.mxu0 0.0
      %2459 = vmatpush1.msra.mxu0 0.0
      %2460 = vmatprep.subr.mxu0 0.0
      %2461 = vmatpush1.msra.mxu0 0.0
      %2462 = vmatprep.subr.mxu0 0.0
      %2463 = vmatpush1.msra.mxu0 0.0
      %2464 = vmatprep.subr.mxu0 0.0
      %2465 = vmatpush1.msra.mxu0 0.0
      %2466 = vmatprep.subr.mxu0 0.0
      %2467 = vmatpush1.msra.mxu0 0.0
      %2468 = vmatprep.subr.mxu0 0.0
      %2469 = vmatpush1.msra.mxu0 0.0
      %2470 = vmatprep.mubr.f32.mxu0 0.0
      %2471 = vmatmul.mubr.f32.gmra.mrb[0].mxu0 %v2398
      %v2472 = vpop.f32.mrb[0].mxu0
      %v2473 = vadd.f32 0.0, %v2472
      %v2474 = vpop.f32.mrb[0].mxu0
      %2475 = vmatprep.mubr.f32.mxu0 0.0
      %2476 = vmatmul.mubr.f32.gmra.mrb[0].mxu0 %v2401
      %v2477 = vpop.f32.mrb[0].mxu0
      %v2478 = vadd.f32 0.0, %v2477
      %v2479 = vpop.f32.mrb[0].mxu0
      %2480 = vmatprep.mubr.f32.mxu0 0.0
      %2481 = vmatmul.mubr.f32.gmra.mrb[0].mxu0 %v2404
      %v2482 = vpop.f32.mrb[0].mxu0
      %v2483 = vadd.f32 0.0, %v2482
      %v2484 = vpop.f32.mrb[0].mxu0
      %2485 = vdwg.mxu0
      %v2487 = vsel %vm2133, %v2287, 0
      %v2490 = vsel %vm2133, %v2292, 0
      %v2493 = vsel %vm2133, %v2297, 0
      %2495 = vmatprep.subr.mxu0 0.0
      %2496 = vmatpush1.msra.mxu0 %v2389
      %2497 = vmatprep.subr.mxu0 0.0
      %2498 = vmatpush1.msra.mxu0 %v2390
      %2499 = vmatprep.subr.mxu0 0.0
      %2500 = vmatpush1.msra.mxu0 %v2391
      %2501 = vmatprep.subr.mxu0 0.0
      %2502 = vmatpush1.msra.mxu0 %v2392
      %2503 = vmatprep.subr.mxu0 0.0
      %2504 = vmatpush1.msra.mxu0 0.0
      %2505 = vmatprep.subr.mxu0 0.0
      %2506 = vmatpush1.msra.mxu0 0.0
      %2507 = vmatprep.subr.mxu0 0.0
      %2508 = vmatpush1.msra.mxu0 0.0
      %2509 = vmatprep.subr.mxu0 0.0
      %2510 = vmatpush1.msra.mxu0 0.0
      %2511 = vmatprep.subr.mxu0 0.0
      %2512 = vmatpush1.msra.mxu0 0.0
      %2513 = vmatprep.subr.mxu0 0.0
      %2514 = vmatpush1.msra.mxu0 0.0
      %2515 = vmatprep.subr.mxu0 0.0
      %2516 = vmatpush1.msra.mxu0 0.0
      %2517 = vmatprep.subr.mxu0 0.0
      %2518 = vmatpush1.msra.mxu0 0.0
      %2519 = vmatprep.subr.mxu0 0.0
      %2520 = vmatpush1.msra.mxu0 0.0
      %2521 = vmatprep.subr.mxu0 0.0
      %2522 = vmatpush1.msra.mxu0 0.0
      %2523 = vmatprep.subr.mxu0 0.0
      %2524 = vmatpush1.msra.mxu0 0.0
      %2525 = vmatprep.subr.mxu0 0.0
      %2526 = vmatpush1.msra.mxu0 0.0
      %2527 = vmatprep.subr.mxu0 0.0
      %2528 = vmatpush1.msra.mxu0 0.0
      %2529 = vmatprep.subr.mxu0 0.0
      %2530 = vmatpush1.msra.mxu0 0.0
      %2531 = vmatprep.subr.mxu0 0.0
      %2532 = vmatpush1.msra.mxu0 0.0
      %2533 = vmatprep.subr.mxu0 0.0
      %2534 = vmatpush1.msra.mxu0 0.0
      %2535 = vmatprep.subr.mxu0 0.0
      %2536 = vmatpush1.msra.mxu0 0.0
      %2537 = vmatprep.subr.mxu0 0.0
      %2538 = vmatpush1.msra.mxu0 0.0
      %2539 = vmatprep.subr.mxu0 0.0
      %2540 = vmatpush1.msra.mxu0 0.0
      %2541 = vmatprep.subr.mxu0 0.0
      %2542 = vmatpush1.msra.mxu0 0.0
      %2543 = vmatprep.subr.mxu0 0.0
      %2544 = vmatpush1.msra.mxu0 0.0
      %2545 = vmatprep.subr.mxu0 0.0
      %2546 = vmatpush1.msra.mxu0 0.0
      %2547 = vmatprep.subr.mxu0 0.0
      %2548 = vmatpush1.msra.mxu0 0.0
      %2549 = vmatprep.subr.mxu0 0.0
      %2550 = vmatpush1.msra.mxu0 0.0
      %2551 = vmatprep.subr.mxu0 0.0
      %2552 = vmatpush1.msra.mxu0 0.0
      %2553 = vmatprep.subr.mxu0 0.0
      %2554 = vmatpush1.msra.mxu0 0.0
      %2555 = vmatprep.subr.mxu0 0.0
      %2556 = vmatpush1.msra.mxu0 0.0
      %2557 = vmatprep.subr.mxu0 0.0
      %2558 = vmatpush1.msra.mxu0 0.0
      %2559 = vmatprep.mubr.f32.mxu0 0.0
      %2560 = vmatmul.mubr.f32.gmra.mrb[0].mxu0 %v2487
      %v2561 = vpop.f32.mrb[0].mxu0
      %v2562 = vadd.f32 %v2473, %v2561
      %v2563 = vpop.f32.mrb[0].mxu0
      %2564 = vmatprep.mubr.f32.mxu0 0.0
      %2565 = vmatmul.mubr.f32.gmra.mrb[0].mxu0 %v2490
      %v2566 = vpop.f32.mrb[0].mxu0
      %v2567 = vadd.f32 %v2478, %v2566
      %v2568 = vpop.f32.mrb[0].mxu0
      %2569 = vmatprep.mubr.f32.mxu0 0.0
      %2570 = vmatmul.mubr.f32.gmra.mrb[0].mxu0 %v2493
      %v2571 = vpop.f32.mrb[0].mxu0
      %v2572 = vadd.f32 %v2483, %v2571
      %v2573 = vpop.f32.mrb[0].mxu0
      %2574 = vdwg.mxu0
      %v2575 = vld [vmem:[%s23] sm:$0x1]
      %v2577 = vlaneseq
      %v2578 = vshrl.u32 %v2577, 7
      %v2579 = vsub.s32 0, %v2578
      %v2580 = vrot.slane %v2575, %v2579
      %v2582 = vadd.f32 %v2562, %v2580
      %v2583 = vadd.f32 %v2567, %v2580
      %v2584 = vadd.f32 %v2572, %v2580
      %v2585 = vmax.f32 %v2582, 0.0
      %v2586 = vmax.f32 %v2583, 0.0
      %v2587 = vmax.f32 %v2584, 0.0
      %v2588 = vld [vmem:[%s24] sm:$0xff]
      %v2589 = vld [vmem:[%s24 + $0x8] sm:$0xff]
      %v2590 = vld [vmem:[%s24 + $0x10] sm:$0xff]
      %v2591 = vld [vmem:[%s24 + $0x18] sm:$0xff]
      %v2592 = vld [vmem:[%s25] sm:$0x1]
      %v2594 = vlaneseq
      %v2595 = vshrl.u32 %v2594, 7
      %v2596 = vsub.s32 0, %v2595
      %v2597 = vrot.slane %v2592, %v2596
      %v2600 = vsel %vm2133, %v2585, 0
      %v2603 = vsel %vm2133, %v2586, 0
      %v2606 = vsel %vm2133, %v2587, 0
      %2608 = vmatprep.subr.mxu0 0.0
      %2609 = vmatpush1.msra.mxu0 %v2588
      %2610 = vmatprep.subr.mxu0 0.0
      %2611 = vmatpush1.msra.mxu0 %v2589
      %2612 = vmatprep.subr.mxu0 0.0
      %2613 = vmatpush1.msra.mxu0 %v2590
      %2614 = vmatprep.subr.mxu0 0.0
      %2615 = vmatpush1.msra.mxu0 %v2591
      %2616 = vmatprep.subr.mxu0 0.0
      %2617 = vmatpush1.msra.mxu0 0.0
      %2618 = vmatprep.subr.mxu0 0.0
      %2619 = vmatpush1.msra.mxu0 0.0
      %2620 = vmatprep.subr.mxu0 0.0
      %2621 = vmatpush1.msra.mxu0 0.0
      %2622 = vmatprep.subr.mxu0 0.0
      %2623 = vmatpush1.msra.mxu0 0.0
      %2624 = vmatprep.subr.mxu0 0.0
      %2625 = vmatpush1.msra.mxu0 0.0
      %2626 = vmatprep.subr.mxu0 0.0
      %2627 = vmatpush1.msra.mxu0 0.0
      %2628 = vmatprep.subr.mxu0 0.0
      %2629 = vmatpush1.msra.mxu0 0.0
      %2630 = vmatprep.subr.mxu0 0.0
      %2631 = vmatpush1.msra.mxu0 0.0
      %2632 = vmatprep.subr.mxu0 0.0
      %2633 = vmatpush1.msra.mxu0 0.0
      %2634 = vmatprep.subr.mxu0 0.0
      %2635 = vmatpush1.msra.mxu0 0.0
      %2636 = vmatprep.subr.mxu0 0.0
      %2637 = vmatpush1.msra.mxu0 0.0
      %2638 = vmatprep.subr.mxu0 0.0
      %2639 = vmatpush1.msra.mxu0 0.0
      %2640 = vmatprep.subr.mxu0 0.0
      %2641 = vmatpush1.msra.mxu0 0.0
      %2642 = vmatprep.subr.mxu0 0.0
      %2643 = vmatpush1.msra.mxu0 0.0
      %2644 = vmatprep.subr.mxu0 0.0
      %2645 = vmatpush1.msra.mxu0 0.0
      %2646 = vmatprep.subr.mxu0 0.0
      %2647 = vmatpush1.msra.mxu0 0.0
      %2648 = vmatprep.subr.mxu0 0.0
      %2649 = vmatpush1.msra.mxu0 0.0
      %2650 = vmatprep.subr.mxu0 0.0
      %2651 = vmatpush1.msra.mxu0 0.0
      %2652 = vmatprep.subr.mxu0 0.0
      %2653 = vmatpush1.msra.mxu0 0.0
      %2654 = vmatprep.subr.mxu0 0.0
      %2655 = vmatpush1.msra.mxu0 0.0
      %2656 = vmatprep.subr.mxu0 0.0
      %2657 = vmatpush1.msra.mxu0 0.0
      %2658 = vmatprep.subr.mxu0 0.0
      %2659 = vmatpush1.msra.mxu0 0.0
      %2660 = vmatprep.subr.mxu0 0.0
      %2661 = vmatpush1.msra.mxu0 0.0
      %2662 = vmatprep.subr.mxu0 0.0
      %2663 = vmatpush1.msra.mxu0 0.0
      %2664 = vmatprep.subr.mxu0 0.0
      %2665 = vmatpush1.msra.mxu0 0.0
      %2666 = vmatprep.subr.mxu0 0.0
      %2667 = vmatpush1.msra.mxu0 0.0
      %2668 = vmatprep.subr.mxu0 0.0
      %2669 = vmatpush1.msra.mxu0 0.0
      %2670 = vmatprep.subr.mxu0 0.0
      %2671 = vmatpush1.msra.mxu0 0.0
      %2672 = vmatprep.mubr.f32.mxu0 0.0
      %2673 = vmatmul.mubr.f32.gmra.mrb[0].mxu0 %v2600
      %v2674 = vpop.f32.mrb[0].mxu0
      %v2675 = vadd.f32 %v2597, %v2674
      %v2676 = vpop.f32.mrb[0].mxu0
      %2677 = vmatprep.mubr.f32.mxu0 0.0
      %2678 = vmatmul.mubr.f32.gmra.mrb[0].mxu0 %v2603
      %v2679 = vpop.f32.mrb[0].mxu0
      %v2680 = vadd.f32 %v2597, %v2679
      %v2681 = vpop.f32.mrb[0].mxu0
      %2682 = vmatprep.mubr.f32.mxu0 0.0
      %2683 = vmatmul.mubr.f32.gmra.mrb[0].mxu0 %v2606
      %v2684 = vpop.f32.mrb[0].mxu0
      %v2685 = vadd.f32 %v2597, %v2684
      %v2686 = vpop.f32.mrb[0].mxu0
      %2687 = vdwg.mxu0
      %v2688 = vmax.f32 %v2675, 0.0
      %v2689 = vmax.f32 %v2680, 0.0
      %v2690 = vmax.f32 %v2685, 0.0
      %v2691 = vmul.f32 %v2104, %v2688
      %v2692 = vmul.f32 %v2107, %v2689
      %v2693 = vmul.f32 %v2111, %v2690
      %v2695 = vsel %vm1188, %v795, 0
      %v2698 = vsel %vm999, %v2693, 0
      %2700 = vmatprep.subr.mxu0 0.0
      %2701 = vmatpush1.msra.mxu0 %v2691
      %2702 = vmatprep.subr.mxu0 0.0
      %2703 = vmatpush1.msra.mxu0 %v2692
      %2704 = vmatprep.subr.mxu0 0.0
      %2705 = vmatpush1.msra.mxu0 %v2698
      %2706 = vmatprep.subr.mxu0 0.0
      %2707 = vmatpush1.msra.mxu0 0.0
      %2708 = vmatprep.subr.mxu0 0.0
      %2709 = vmatpush1.msra.mxu0 0.0
      %2710 = vmatprep.subr.mxu0 0.0
      %2711 = vmatpush1.msra.mxu0 0.0
      %2712 = vmatprep.subr.mxu0 0.0
      %2713 = vmatpush1.msra.mxu0 0.0
      %2714 = vmatprep.subr.mxu0 0.0
      %2715 = vmatpush1.msra.mxu0 0.0
      %2716 = vmatprep.subr.mxu0 0.0
      %2717 = vmatpush1.msra.mxu0 0.0
      %2718 = vmatprep.subr.mxu0 0.0
      %2719 = vmatpush1.msra.mxu0 0.0
      %2720 = vmatprep.subr.mxu0 0.0
      %2721 = vmatpush1.msra.mxu0 0.0
      %2722 = vmatprep.subr.mxu0 0.0
      %2723 = vmatpush1.msra.mxu0 0.0
      %2724 = vmatprep.subr.mxu0 0.0
      %2725 = vmatpush1.msra.mxu0 0.0
      %2726 = vmatprep.subr.mxu0 0.0
      %2727 = vmatpush1.msra.mxu0 0.0
      %2728 = vmatprep.subr.mxu0 0.0
      %2729 = vmatpush1.msra.mxu0 0.0
      %2730 = vmatprep.subr.mxu0 0.0
      %2731 = vmatpush1.msra.mxu0 0.0
      %2732 = vmatprep.subr.mxu0 0.0
      %2733 = vmatpush1.msra.mxu0 0.0
      %2734 = vmatprep.subr.mxu0 0.0
      %2735 = vmatpush1.msra.mxu0 0.0
      %2736 = vmatprep.subr.mxu0 0.0
      %2737 = vmatpush1.msra.mxu0 0.0
      %2738 = vmatprep.subr.mxu0 0.0
      %2739 = vmatpush1.msra.mxu0 0.0
      %2740 = vmatprep.subr.mxu0 0.0
      %2741 = vmatpush1.msra.mxu0 0.0
      %2742 = vmatprep.subr.mxu0 0.0
      %2743 = vmatpush1.msra.mxu0 0.0
      %2744 = vmatprep.subr.mxu0 0.0
      %2745 = vmatpush1.msra.mxu0 0.0
      %2746 = vmatprep.subr.mxu0 0.0
      %2747 = vmatpush1.msra.mxu0 0.0
      %2748 = vmatprep.subr.mxu0 0.0
      %2749 = vmatpush1.msra.mxu0 0.0
      %2750 = vmatprep.subr.mxu0 0.0
      %2751 = vmatpush1.msra.mxu0 0.0
      %2752 = vmatprep.subr.mxu0 0.0
      %2753 = vmatpush1.msra.mxu0 0.0
      %2754 = vmatprep.subr.mxu0 0.0
      %2755 = vmatpush1.msra.mxu0 0.0
      %2756 = vmatprep.subr.mxu0 0.0
      %2757 = vmatpush1.msra.mxu0 0.0
      %2758 = vmatprep.subr.mxu0 0.0
      %2759 = vmatpush1.msra.mxu0 0.0
      %2760 = vmatprep.subr.mxu0 0.0
      %2761 = vmatpush1.msra.mxu0 0.0
      %2762 = vmatprep.subr.mxu0 0.0
      %2763 = vmatpush1.msra.mxu0 0.0
      %2764 = vmatprep.mubr.f32.mxu0 0.0
      %2765 = vmatmul.mubr.f32.gmra.mrb[0].mxu0 %v2695
      %v2766 = vpop.f32.mrb[0].mxu0
      %v2767 = vadd.f32 0.0, %v2766
      %v2768 = vpop.f32.mrb[0].mxu0
      %2769 = vdwg.mxu0
      %v2770 = vadd.f32 %v2767, 0.0
      %v2772 = vsel %vm2133, %v2767, 0
      %2774 = vmatprep.subr.mxu0 0.0
      %2775 = vmatpush1.msra.mxu0 %v2122
      %2776 = vmatprep.subr.mxu0 0.0
      %2777 = vmatpush1.msra.mxu0 %v2123
      %2778 = vmatprep.subr.mxu0 0.0
      %2779 = vmatpush1.msra.mxu0 %v2124
      %2780 = vmatprep.subr.mxu0 0.0
      %2781 = vmatpush1.msra.mxu0 %v2125
      %2782 = vmatprep.subr.mxu0 0.0
      %2783 = vmatpush1.msra.mxu0 0.0
      %2784 = vmatprep.subr.mxu0 0.0
      %2785 = vmatpush1.msra.mxu0 0.0
      %2786 = vmatprep.subr.mxu0 0.0
      %2787 = vmatpush1.msra.mxu0 0.0
      %2788 = vmatprep.subr.mxu0 0.0
      %2789 = vmatpush1.msra.mxu0 0.0
      %2790 = vmatprep.subr.mxu0 0.0
      %2791 = vmatpush1.msra.mxu0 0.0
      %2792 = vmatprep.subr.mxu0 0.0
      %2793 = vmatpush1.msra.mxu0 0.0
      %2794 = vmatprep.subr.mxu0 0.0
      %2795 = vmatpush1.msra.mxu0 0.0
      %2796 = vmatprep.subr.mxu0 0.0
      %2797 = vmatpush1.msra.mxu0 0.0
      %2798 = vmatprep.subr.mxu0 0.0
      %2799 = vmatpush1.msra.mxu0 0.0
      %2800 = vmatprep.subr.mxu0 0.0
      %2801 = vmatpush1.msra.mxu0 0.0
      %2802 = vmatprep.subr.mxu0 0.0
      %2803 = vmatpush1.msra.mxu0 0.0
      %2804 = vmatprep.subr.mxu0 0.0
      %2805 = vmatpush1.msra.mxu0 0.0
      %2806 = vmatprep.subr.mxu0 0.0
      %2807 = vmatpush1.msra.mxu0 0.0
      %2808 = vmatprep.subr.mxu0 0.0
      %2809 = vmatpush1.msra.mxu0 0.0
      %2810 = vmatprep.subr.mxu0 0.0
      %2811 = vmatpush1.msra.mxu0 0.0
      %2812 = vmatprep.subr.mxu0 0.0
      %2813 = vmatpush1.msra.mxu0 0.0
      %2814 = vmatprep.subr.mxu0 0.0
      %2815 = vmatpush1.msra.mxu0 0.0
      %2816 = vmatprep.subr.mxu0 0.0
      %2817 = vmatpush1.msra.mxu0 0.0
      %2818 = vmatprep.subr.mxu0 0.0
      %2819 = vmatpush1.msra.mxu0 0.0
      %2820 = vmatprep.subr.mxu0 0.0
      %2821 = vmatpush1.msra.mxu0 0.0
      %2822 = vmatprep.subr.mxu0 0.0
      %2823 = vmatpush1.msra.mxu0 0.0
      %2824 = vmatprep.subr.mxu0 0.0
      %2825 = vmatpush1.msra.mxu0 0.0
      %2826 = vmatprep.subr.mxu0 0.0
      %2827 = vmatpush1.msra.mxu0 0.0
      %2828 = vmatprep.subr.mxu0 0.0
      %2829 = vmatpush1.msra.mxu0 0.0
      %2830 = vmatprep.subr.mxu0 0.0
      %2831 = vmatpush1.msra.mxu0 0.0
      %2832 = vmatprep.subr.mxu0 0.0
      %2833 = vmatpush1.msra.mxu0 0.0
      %2834 = vmatprep.subr.mxu0 0.0
      %2835 = vmatpush1.msra.mxu0 0.0
      %2836 = vmatprep.subr.mxu0 0.0
      %2837 = vmatpush1.msra.mxu0 0.0
      %2838 = vmatprep.mubr.f32.mxu0 0.0
      %2839 = vmatmul.mubr.f32.gmra.mrb[0].mxu0 %v2772
      %v2840 = vpop.f32.mrb[0].mxu0
      %v2841 = vadd.f32 %v2131, %v2840
      %v2842 = vpop.f32.mrb[0].mxu0
      %2843 = vdwg.mxu0
      %v2844 = vmax.f32 %v2841, 0.0
      %v2846 = vsel %vm806, %v2844, 0
      %2848 = vmatprep.subr.mxu0 0.0
      %2849 = vmatpush1.msra.mxu0 %v2846
      %2850 = vmatprep.subr.mxu0 0.0
      %2851 = vmatpush1.msra.mxu0 0.0
      %2852 = vmatprep.subr.mxu0 0.0
      %2853 = vmatpush1.msra.mxu0 0.0
      %2854 = vmatprep.subr.mxu0 0.0
      %2855 = vmatpush1.msra.mxu0 0.0
      %2856 = vmatprep.subr.mxu0 0.0
      %2857 = vmatpush1.msra.mxu0 0.0
      %2858 = vmatprep.subr.mxu0 0.0
      %2859 = vmatpush1.msra.mxu0 0.0
      %2860 = vmatprep.subr.mxu0 0.0
      %2861 = vmatpush1.msra.mxu0 0.0
      %2862 = vmatprep.subr.mxu0 0.0
      %2863 = vmatpush1.msra.mxu0 0.0
      %2864 = vmatprep.subr.mxu0 0.0
      %2865 = vmatpush1.msra.mxu0 0.0
      %2866 = vmatprep.subr.mxu0 0.0
      %2867 = vmatpush1.msra.mxu0 0.0
      %2868 = vmatprep.subr.mxu0 0.0
      %2869 = vmatpush1.msra.mxu0 0.0
      %2870 = vmatprep.subr.mxu0 0.0
      %2871 = vmatpush1.msra.mxu0 0.0
      %2872 = vmatprep.subr.mxu0 0.0
      %2873 = vmatpush1.msra.mxu0 0.0
      %2874 = vmatprep.subr.mxu0 0.0
      %2875 = vmatpush1.msra.mxu0 0.0
      %2876 = vmatprep.subr.mxu0 0.0
      %2877 = vmatpush1.msra.mxu0 0.0
      %2878 = vmatprep.subr.mxu0 0.0
      %2879 = vmatpush1.msra.mxu0 0.0
      %2880 = vmatprep.subr.mxu0 0.0
      %2881 = vmatpush1.msra.mxu0 0.0
      %2882 = vmatprep.subr.mxu0 0.0
      %2883 = vmatpush1.msra.mxu0 0.0
      %2884 = vmatprep.subr.mxu0 0.0
      %2885 = vmatpush1.msra.mxu0 0.0
      %2886 = vmatprep.subr.mxu0 0.0
      %2887 = vmatpush1.msra.mxu0 0.0
      %2888 = vmatprep.subr.mxu0 0.0
      %2889 = vmatpush1.msra.mxu0 0.0
      %2890 = vmatprep.subr.mxu0 0.0
      %2891 = vmatpush1.msra.mxu0 0.0
      %2892 = vmatprep.subr.mxu0 0.0
      %2893 = vmatpush1.msra.mxu0 0.0
      %2894 = vmatprep.subr.mxu0 0.0
      %2895 = vmatpush1.msra.mxu0 0.0
      %2896 = vmatprep.subr.mxu0 0.0
      %2897 = vmatpush1.msra.mxu0 0.0
      %2898 = vmatprep.subr.mxu0 0.0
      %2899 = vmatpush1.msra.mxu0 0.0
      %2900 = vmatprep.subr.mxu0 0.0
      %2901 = vmatpush1.msra.mxu0 0.0
      %2902 = vmatprep.subr.mxu0 0.0
      %2903 = vmatpush1.msra.mxu0 0.0
      %2904 = vmatprep.subr.mxu0 0.0
      %2905 = vmatpush1.msra.mxu0 0.0
      %2906 = vmatprep.subr.mxu0 0.0
      %2907 = vmatpush1.msra.mxu0 0.0
      %2908 = vmatprep.subr.mxu0 0.0
      %2909 = vmatpush1.msra.mxu0 0.0
      %2910 = vmatprep.subr.mxu0 0.0
      %2911 = vmatpush1.msra.mxu0 0.0
      %2912 = vmatprep.mubr.f32.mxu0 0.0
      %2913 = vmatmul.mubr.f32.gmra.mrb[0].mxu0 %v2209
      %v2914 = vpop.f32.mrb[0].mxu0
      %v2915 = vadd.f32 0.0, %v2914
      %v2916 = vpop.f32.mrb[0].mxu0
      %2917 = vmatprep.mubr.f32.mxu0 0.0
      %2918 = vmatmul.mubr.f32.gmra.mrb[0].mxu0 %v2212
      %v2919 = vpop.f32.mrb[0].mxu0
      %v2920 = vadd.f32 0.0, %v2919
      %v2921 = vpop.f32.mrb[0].mxu0
      %2922 = vmatprep.mubr.f32.mxu0 0.0
      %2923 = vmatmul.mubr.f32.gmra.mrb[0].mxu0 %v2215
      %v2924 = vpop.f32.mrb[0].mxu0
      %v2925 = vadd.f32 0.0, %v2924
      %v2926 = vpop.f32.mrb[0].mxu0
      %2927 = vdwg.mxu0
      %2928 = vmatprep.subr.mxu0 0.0
      %2929 = vmatpush1.msra.mxu0 %v2846
      %2930 = vmatprep.subr.mxu0 0.0
      %2931 = vmatpush1.msra.mxu0 0.0
      %2932 = vmatprep.subr.mxu0 0.0
      %2933 = vmatpush1.msra.mxu0 0.0
      %2934 = vmatprep.subr.mxu0 0.0
      %2935 = vmatpush1.msra.mxu0 0.0
      %2936 = vmatprep.subr.mxu0 0.0
      %2937 = vmatpush1.msra.mxu0 0.0
      %2938 = vmatprep.subr.mxu0 0.0
      %2939 = vmatpush1.msra.mxu0 0.0
      %2940 = vmatprep.subr.mxu0 0.0
      %2941 = vmatpush1.msra.mxu0 0.0
      %2942 = vmatprep.subr.mxu0 0.0
      %2943 = vmatpush1.msra.mxu0 0.0
      %2944 = vmatprep.subr.mxu0 0.0
      %2945 = vmatpush1.msra.mxu0 0.0
      %2946 = vmatprep.subr.mxu0 0.0
      %2947 = vmatpush1.msra.mxu0 0.0
      %2948 = vmatprep.subr.mxu0 0.0
      %2949 = vmatpush1.msra.mxu0 0.0
      %2950 = vmatprep.subr.mxu0 0.0
      %2951 = vmatpush1.msra.mxu0 0.0
      %2952 = vmatprep.subr.mxu0 0.0
      %2953 = vmatpush1.msra.mxu0 0.0
      %2954 = vmatprep.subr.mxu0 0.0
      %2955 = vmatpush1.msra.mxu0 0.0
      %2956 = vmatprep.subr.mxu0 0.0
      %2957 = vmatpush1.msra.mxu0 0.0
      %2958 = vmatprep.subr.mxu0 0.0
      %2959 = vmatpush1.msra.mxu0 0.0
      %2960 = vmatprep.subr.mxu0 0.0
      %2961 = vmatpush1.msra.mxu0 0.0
      %2962 = vmatprep.subr.mxu0 0.0
      %2963 = vmatpush1.msra.mxu0 0.0
      %2964 = vmatprep.subr.mxu0 0.0
      %2965 = vmatpush1.msra.mxu0 0.0
      %2966 = vmatprep.subr.mxu0 0.0
      %2967 = vmatpush1.msra.mxu0 0.0
      %2968 = vmatprep.subr.mxu0 0.0
      %2969 = vmatpush1.msra.mxu0 0.0
      %2970 = vmatprep.subr.mxu0 0.0
      %2971 = vmatpush1.msra.mxu0 0.0
      %2972 = vmatprep.subr.mxu0 0.0
      %2973 = vmatpush1.msra.mxu0 0.0
      %2974 = vmatprep.subr.mxu0 0.0
      %2975 = vmatpush1.msra.mxu0 0.0
      %2976 = vmatprep.subr.mxu0 0.0
      %2977 = vmatpush1.msra.mxu0 0.0
      %2978 = vmatprep.subr.mxu0 0.0
      %2979 = vmatpush1.msra.mxu0 0.0
      %2980 = vmatprep.subr.mxu0 0.0
      %2981 = vmatpush1.msra.mxu0 0.0
      %2982 = vmatprep.subr.mxu0 0.0
      %2983 = vmatpush1.msra.mxu0 0.0
      %2984 = vmatprep.subr.mxu0 0.0
      %2985 = vmatpush1.msra.mxu0 0.0
      %2986 = vmatprep.subr.mxu0 0.0
      %2987 = vmatpush1.msra.mxu0 0.0
      %2988 = vmatprep.subr.mxu0 0.0
      %2989 = vmatpush1.msra.mxu0 0.0
      %2990 = vmatprep.subr.mxu0 0.0
      %2991 = vmatpush1.msra.mxu0 0.0
      %2992 = vmatprep.mubr.f32.mxu0 0.0
      %2993 = vmatmul.mubr.f32.gmra.mrb[0].mxu0 %v2301
      %v2994 = vpop.f32.mrb[0].mxu0
      %v2995 = vadd.f32 0.0, %v2994
      %v2996 = vpop.f32.mrb[0].mxu0
      %2997 = vmatprep.mubr.f32.mxu0 0.0
      %2998 = vmatmul.mubr.f32.gmra.mrb[0].mxu0 %v2304
      %v2999 = vpop.f32.mrb[0].mxu0
      %v3000 = vadd.f32 0.0, %v2999
      %v3001 = vpop.f32.mrb[0].mxu0
      %3002 = vmatprep.mubr.f32.mxu0 0.0
      %3003 = vmatmul.mubr.f32.gmra.mrb[0].mxu0 %v2307
      %v3004 = vpop.f32.mrb[0].mxu0
      %v3005 = vadd.f32 0.0, %v3004
      %v3006 = vpop.f32.mrb[0].mxu0
      %3007 = vdwg.mxu0
      %v3009 = vsel %vm2133, %v2995, 0
      %v3012 = vsel %vm2133, %v3000, 0
      %v3015 = vsel %vm2133, %v3005, 0
      %3017 = vmatprep.subr.mxu0 0.0
      %3018 = vmatpush1.msra.mxu0 %v2393
      %3019 = vmatprep.subr.mxu0 0.0
      %3020 = vmatpush1.msra.mxu0 %v2394
      %3021 = vmatprep.subr.mxu0 0.0
      %3022 = vmatpush1.msra.mxu0 %v2395
      %3023 = vmatprep.subr.mxu0 0.0
      %3024 = vmatpush1.msra.mxu0 %v2396
      %3025 = vmatprep.subr.mxu0 0.0
      %3026 = vmatpush1.msra.mxu0 0.0
      %3027 = vmatprep.subr.mxu0 0.0
      %3028 = vmatpush1.msra.mxu0 0.0
      %3029 = vmatprep.subr.mxu0 0.0
      %3030 = vmatpush1.msra.mxu0 0.0
      %3031 = vmatprep.subr.mxu0 0.0
      %3032 = vmatpush1.msra.mxu0 0.0
      %3033 = vmatprep.subr.mxu0 0.0
      %3034 = vmatpush1.msra.mxu0 0.0
      %3035 = vmatprep.subr.mxu0 0.0
      %3036 = vmatpush1.msra.mxu0 0.0
      %3037 = vmatprep.subr.mxu0 0.0
      %3038 = vmatpush1.msra.mxu0 0.0
      %3039 = vmatprep.subr.mxu0 0.0
      %3040 = vmatpush1.msra.mxu0 0.0
      %3041 = vmatprep.subr.mxu0 0.0
      %3042 = vmatpush1.msra.mxu0 0.0
      %3043 = vmatprep.subr.mxu0 0.0
      %3044 = vmatpush1.msra.mxu0 0.0
      %3045 = vmatprep.subr.mxu0 0.0
      %3046 = vmatpush1.msra.mxu0 0.0
      %3047 = vmatprep.subr.mxu0 0.0
      %3048 = vmatpush1.msra.mxu0 0.0
      %3049 = vmatprep.subr.mxu0 0.0
      %3050 = vmatpush1.msra.mxu0 0.0
      %3051 = vmatprep.subr.mxu0 0.0
      %3052 = vmatpush1.msra.mxu0 0.0
      %3053 = vmatprep.subr.mxu0 0.0
      %3054 = vmatpush1.msra.mxu0 0.0
      %3055 = vmatprep.subr.mxu0 0.0
      %3056 = vmatpush1.msra.mxu0 0.0
      %3057 = vmatprep.subr.mxu0 0.0
      %3058 = vmatpush1.msra.mxu0 0.0
      %3059 = vmatprep.subr.mxu0 0.0
      %3060 = vmatpush1.msra.mxu0 0.0
      %3061 = vmatprep.subr.mxu0 0.0
      %3062 = vmatpush1.msra.mxu0 0.0
      %3063 = vmatprep.subr.mxu0 0.0
      %3064 = vmatpush1.msra.mxu0 0.0
      %3065 = vmatprep.subr.mxu0 0.0
      %3066 = vmatpush1.msra.mxu0 0.0
      %3067 = vmatprep.subr.mxu0 0.0
      %3068 = vmatpush1.msra.mxu0 0.0
      %3069 = vmatprep.subr.mxu0 0.0
      %3070 = vmatpush1.msra.mxu0 0.0
      %3071 = vmatprep.subr.mxu0 0.0
      %3072 = vmatpush1.msra.mxu0 0.0
      %3073 = vmatprep.subr.mxu0 0.0
      %3074 = vmatpush1.msra.mxu0 0.0
      %3075 = vmatprep.subr.mxu0 0.0
      %3076 = vmatpush1.msra.mxu0 0.0
      %3077 = vmatprep.subr.mxu0 0.0
      %3078 = vmatpush1.msra.mxu0 0.0
      %3079 = vmatprep.subr.mxu0 0.0
      %3080 = vmatpush1.msra.mxu0 0.0
      %3081 = vmatprep.mubr.f32.mxu0 0.0
      %3082 = vmatmul.mubr.f32.gmra.mrb[0].mxu0 %v3009
      %v3083 = vpop.f32.mrb[0].mxu0
      %v3084 = vadd.f32 0.0, %v3083
      %v3085 = vpop.f32.mrb[0].mxu0
      %3086 = vmatprep.mubr.f32.mxu0 0.0
      %3087 = vmatmul.mubr.f32.gmra.mrb[0].mxu0 %v3012
      %v3088 = vpop.f32.mrb[0].mxu0
      %v3089 = vadd.f32 0.0, %v3088
      %v3090 = vpop.f32.mrb[0].mxu0
      %3091 = vmatprep.mubr.f32.mxu0 0.0
      %3092 = vmatmul.mubr.f32.gmra.mrb[0].mxu0 %v3015
      %v3093 = vpop.f32.mrb[0].mxu0
      %v3094 = vadd.f32 0.0, %v3093
      %v3095 = vpop.f32.mrb[0].mxu0
      %3096 = vdwg.mxu0
      %v3098 = vsel %vm2133, %v2915, 0
      %v3101 = vsel %vm2133, %v2920, 0
      %v3104 = vsel %vm2133, %v2925, 0
      %3106 = vmatprep.subr.mxu0 0.0
      %3107 = vmatpush1.msra.mxu0 %v2389
      %3108 = vmatprep.subr.mxu0 0.0
      %3109 = vmatpush1.msra.mxu0 %v2390
      %3110 = vmatprep.subr.mxu0 0.0
      %3111 = vmatpush1.msra.mxu0 %v2391
      %3112 = vmatprep.subr.mxu0 0.0
      %3113 = vmatpush1.msra.mxu0 %v2392
      %3114 = vmatprep.subr.mxu0 0.0
      %3115 = vmatpush1.msra.mxu0 0.0
      %3116 = vmatprep.subr.mxu0 0.0
      %3117 = vmatpush1.msra.mxu0 0.0
      %3118 = vmatprep.subr.mxu0 0.0
      %3119 = vmatpush1.msra.mxu0 0.0
      %3120 = vmatprep.subr.mxu0 0.0
      %3121 = vmatpush1.msra.mxu0 0.0
      %3122 = vmatprep.subr.mxu0 0.0
      %3123 = vmatpush1.msra.mxu0 0.0
      %3124 = vmatprep.subr.mxu0 0.0
      %3125 = vmatpush1.msra.mxu0 0.0
      %3126 = vmatprep.subr.mxu0 0.0
      %3127 = vmatpush1.msra.mxu0 0.0
      %3128 = vmatprep.subr.mxu0 0.0
      %3129 = vmatpush1.msra.mxu0 0.0
      %3130 = vmatprep.subr.mxu0 0.0
      %3131 = vmatpush1.msra.mxu0 0.0
      %3132 = vmatprep.subr.mxu0 0.0
      %3133 = vmatpush1.msra.mxu0 0.0
      %3134 = vmatprep.subr.mxu0 0.0
      %3135 = vmatpush1.msra.mxu0 0.0
      %3136 = vmatprep.subr.mxu0 0.0
      %3137 = vmatpush1.msra.mxu0 0.0
      %3138 = vmatprep.subr.mxu0 0.0
      %3139 = vmatpush1.msra.mxu0 0.0
      %3140 = vmatprep.subr.mxu0 0.0
      %3141 = vmatpush1.msra.mxu0 0.0
      %3142 = vmatprep.subr.mxu0 0.0
      %3143 = vmatpush1.msra.mxu0 0.0
      %3144 = vmatprep.subr.mxu0 0.0
      %3145 = vmatpush1.msra.mxu0 0.0
      %3146 = vmatprep.subr.mxu0 0.0
      %3147 = vmatpush1.msra.mxu0 0.0
      %3148 = vmatprep.subr.mxu0 0.0
      %3149 = vmatpush1.msra.mxu0 0.0
      %3150 = vmatprep.subr.mxu0 0.0
      %3151 = vmatpush1.msra.mxu0 0.0
      %3152 = vmatprep.subr.mxu0 0.0
      %3153 = vmatpush1.msra.mxu0 0.0
      %3154 = vmatprep.subr.mxu0 0.0
      %3155 = vmatpush1.msra.mxu0 0.0
      %3156 = vmatprep.subr.mxu0 0.0
      %3157 = vmatpush1.msra.mxu0 0.0
      %3158 = vmatprep.subr.mxu0 0.0
      %3159 = vmatpush1.msra.mxu0 0.0
      %3160 = vmatprep.subr.mxu0 0.0
      %3161 = vmatpush1.msra.mxu0 0.0
      %3162 = vmatprep.subr.mxu0 0.0
      %3163 = vmatpush1.msra.mxu0 0.0
      %3164 = vmatprep.subr.mxu0 0.0
      %3165 = vmatpush1.msra.mxu0 0.0
      %3166 = vmatprep.subr.mxu0 0.0
      %3167 = vmatpush1.msra.mxu0 0.0
      %3168 = vmatprep.subr.mxu0 0.0
      %3169 = vmatpush1.msra.mxu0 0.0
      %3170 = vmatprep.mubr.f32.mxu0 0.0
      %3171 = vmatmul.mubr.f32.gmra.mrb[0].mxu0 %v3098
      %v3172 = vpop.f32.mrb[0].mxu0
      %v3173 = vadd.f32 %v3084, %v3172
      %v3174 = vpop.f32.mrb[0].mxu0
      %3175 = vmatprep.mubr.f32.mxu0 0.0
      %3176 = vmatmul.mubr.f32.gmra.mrb[0].mxu0 %v3101
      %v3177 = vpop.f32.mrb[0].mxu0
      %v3178 = vadd.f32 %v3089, %v3177
      %v3179 = vpop.f32.mrb[0].mxu0
      %3180 = vmatprep.mubr.f32.mxu0 0.0
      %3181 = vmatmul.mubr.f32.gmra.mrb[0].mxu0 %v3104
      %v3182 = vpop.f32.mrb[0].mxu0
      %v3183 = vadd.f32 %v3094, %v3182
      %v3184 = vpop.f32.mrb[0].mxu0
      %3185 = vdwg.mxu0
      %v3186 = vadd.f32 %v3173, %v2580
      %v3187 = vadd.f32 %v3178, %v2580
      %v3188 = vadd.f32 %v3183, %v2580
      %v3189 = vmax.f32 %v3186, 0.0
      %v3190 = vmax.f32 %v3187, 0.0
      %v3191 = vmax.f32 %v3188, 0.0
      %v3193 = vsel %vm2133, %v3189, 0
      %v3196 = vsel %vm2133, %v3190, 0
      %v3199 = vsel %vm2133, %v3191, 0
      %3201 = vmatprep.subr.mxu0 0.0
      %3202 = vmatpush1.msra.mxu0 %v2588
      %3203 = vmatprep.subr.mxu0 0.0
      %3204 = vmatpush1.msra.mxu0 %v2589
      %3205 = vmatprep.subr.mxu0 0.0
      %3206 = vmatpush1.msra.mxu0 %v2590
      %3207 = vmatprep.subr.mxu0 0.0
      %3208 = vmatpush1.msra.mxu0 %v2591
      %3209 = vmatprep.subr.mxu0 0.0
      %3210 = vmatpush1.msra.mxu0 0.0
      %3211 = vmatprep.subr.mxu0 0.0
      %3212 = vmatpush1.msra.mxu0 0.0
      %3213 = vmatprep.subr.mxu0 0.0
      %3214 = vmatpush1.msra.mxu0 0.0
      %3215 = vmatprep.subr.mxu0 0.0
      %3216 = vmatpush1.msra.mxu0 0.0
      %3217 = vmatprep.subr.mxu0 0.0
      %3218 = vmatpush1.msra.mxu0 0.0
      %3219 = vmatprep.subr.mxu0 0.0
      %3220 = vmatpush1.msra.mxu0 0.0
      %3221 = vmatprep.subr.mxu0 0.0
      %3222 = vmatpush1.msra.mxu0 0.0
      %3223 = vmatprep.subr.mxu0 0.0
      %3224 = vmatpush1.msra.mxu0 0.0
      %3225 = vmatprep.subr.mxu0 0.0
      %3226 = vmatpush1.msra.mxu0 0.0
      %3227 = vmatprep.subr.mxu0 0.0
      %3228 = vmatpush1.msra.mxu0 0.0
      %3229 = vmatprep.subr.mxu0 0.0
      %3230 = vmatpush1.msra.mxu0 0.0
      %3231 = vmatprep.subr.mxu0 0.0
      %3232 = vmatpush1.msra.mxu0 0.0
      %3233 = vmatprep.subr.mxu0 0.0
      %3234 = vmatpush1.msra.mxu0 0.0
      %3235 = vmatprep.subr.mxu0 0.0
      %3236 = vmatpush1.msra.mxu0 0.0
      %3237 = vmatprep.subr.mxu0 0.0
      %3238 = vmatpush1.msra.mxu0 0.0
      %3239 = vmatprep.subr.mxu0 0.0
      %3240 = vmatpush1.msra.mxu0 0.0
      %3241 = vmatprep.subr.mxu0 0.0
      %3242 = vmatpush1.msra.mxu0 0.0
      %3243 = vmatprep.subr.mxu0 0.0
      %3244 = vmatpush1.msra.mxu0 0.0
      %3245 = vmatprep.subr.mxu0 0.0
      %3246 = vmatpush1.msra.mxu0 0.0
      %3247 = vmatprep.subr.mxu0 0.0
      %3248 = vmatpush1.msra.mxu0 0.0
      %3249 = vmatprep.subr.mxu0 0.0
      %3250 = vmatpush1.msra.mxu0 0.0
      %3251 = vmatprep.subr.mxu0 0.0
      %3252 = vmatpush1.msra.mxu0 0.0
      %3253 = vmatprep.subr.mxu0 0.0
      %3254 = vmatpush1.msra.mxu0 0.0
      %3255 = vmatprep.subr.mxu0 0.0
      %3256 = vmatpush1.msra.mxu0 0.0
      %3257 = vmatprep.subr.mxu0 0.0
      %3258 = vmatpush1.msra.mxu0 0.0
      %3259 = vmatprep.subr.mxu0 0.0
      %3260 = vmatpush1.msra.mxu0 0.0
      %3261 = vmatprep.subr.mxu0 0.0
      %3262 = vmatpush1.msra.mxu0 0.0
      %3263 = vmatprep.subr.mxu0 0.0
      %3264 = vmatpush1.msra.mxu0 0.0
      %3265 = vmatprep.mubr.f32.mxu0 0.0
      %3266 = vmatmul.mubr.f32.gmra.mrb[0].mxu0 %v3193
      %v3267 = vpop.f32.mrb[0].mxu0
      %v3268 = vadd.f32 %v2597, %v3267
      %v3269 = vpop.f32.mrb[0].mxu0
      %3270 = vmatprep.mubr.f32.mxu0 0.0
      %3271 = vmatmul.mubr.f32.gmra.mrb[0].mxu0 %v3196
      %v3272 = vpop.f32.mrb[0].mxu0
      %v3273 = vadd.f32 %v2597, %v3272
      %v3274 = vpop.f32.mrb[0].mxu0
      %3275 = vmatprep.mubr.f32.mxu0 0.0
      %3276 = vmatmul.mubr.f32.gmra.mrb[0].mxu0 %v3199
      %v3277 = vpop.f32.mrb[0].mxu0
      %v3278 = vadd.f32 %v2597, %v3277
      %v3279 = vpop.f32.mrb[0].mxu0
      %3280 = vdwg.mxu0
      %v3281 = vmax.f32 %v3268, 0.0
      %v3282 = vmax.f32 %v3273, 0.0
      %v3283 = vmax.f32 %v3278, 0.0
      %v3284 = vmul.f32 %v2104, %v3281
      %v3285 = vmul.f32 %v2107, %v3282
      %v3286 = vmul.f32 %v2111, %v3283
      %v3288 = vsel %vm999, %v3286, 0
      %3290 = vmatprep.subr.mxu0 0.0
      %3291 = vmatpush1.msra.mxu0 %v3284
      %3292 = vmatprep.subr.mxu0 0.0
      %3293 = vmatpush1.msra.mxu0 %v3285
      %3294 = vmatprep.subr.mxu0 0.0
      %3295 = vmatpush1.msra.mxu0 %v3288
      %3296 = vmatprep.subr.mxu0 0.0
      %3297 = vmatpush1.msra.mxu0 0.0
      %3298 = vmatprep.subr.mxu0 0.0
      %3299 = vmatpush1.msra.mxu0 0.0
      %3300 = vmatprep.subr.mxu0 0.0
      %3301 = vmatpush1.msra.mxu0 0.0
      %3302 = vmatprep.subr.mxu0 0.0
      %3303 = vmatpush1.msra.mxu0 0.0
      %3304 = vmatprep.subr.mxu0 0.0
      %3305 = vmatpush1.msra.mxu0 0.0
      %3306 = vmatprep.subr.mxu0 0.0
      %3307 = vmatpush1.msra.mxu0 0.0
      %3308 = vmatprep.subr.mxu0 0.0
      %3309 = vmatpush1.msra.mxu0 0.0
      %3310 = vmatprep.subr.mxu0 0.0
      %3311 = vmatpush1.msra.mxu0 0.0
      %3312 = vmatprep.subr.mxu0 0.0
      %3313 = vmatpush1.msra.mxu0 0.0
      %3314 = vmatprep.subr.mxu0 0.0
      %3315 = vmatpush1.msra.mxu0 0.0
      %3316 = vmatprep.subr.mxu0 0.0
      %3317 = vmatpush1.msra.mxu0 0.0
      %3318 = vmatprep.subr.mxu0 0.0
      %3319 = vmatpush1.msra.mxu0 0.0
      %3320 = vmatprep.subr.mxu0 0.0
      %3321 = vmatpush1.msra.mxu0 0.0
      %3322 = vmatprep.subr.mxu0 0.0
      %3323 = vmatpush1.msra.mxu0 0.0
      %3324 = vmatprep.subr.mxu0 0.0
      %3325 = vmatpush1.msra.mxu0 0.0
      %3326 = vmatprep.subr.mxu0 0.0
      %3327 = vmatpush1.msra.mxu0 0.0
      %3328 = vmatprep.subr.mxu0 0.0
      %3329 = vmatpush1.msra.mxu0 0.0
      %3330 = vmatprep.subr.mxu0 0.0
      %3331 = vmatpush1.msra.mxu0 0.0
      %3332 = vmatprep.subr.mxu0 0.0
      %3333 = vmatpush1.msra.mxu0 0.0
      %3334 = vmatprep.subr.mxu0 0.0
      %3335 = vmatpush1.msra.mxu0 0.0
      %3336 = vmatprep.subr.mxu0 0.0
      %3337 = vmatpush1.msra.mxu0 0.0
      %3338 = vmatprep.subr.mxu0 0.0
      %3339 = vmatpush1.msra.mxu0 0.0
      %3340 = vmatprep.subr.mxu0 0.0
      %3341 = vmatpush1.msra.mxu0 0.0
      %3342 = vmatprep.subr.mxu0 0.0
      %3343 = vmatpush1.msra.mxu0 0.0
      %3344 = vmatprep.subr.mxu0 0.0
      %3345 = vmatpush1.msra.mxu0 0.0
      %3346 = vmatprep.subr.mxu0 0.0
      %3347 = vmatpush1.msra.mxu0 0.0
      %3348 = vmatprep.subr.mxu0 0.0
      %3349 = vmatpush1.msra.mxu0 0.0
      %3350 = vmatprep.subr.mxu0 0.0
      %3351 = vmatpush1.msra.mxu0 0.0
      %3352 = vmatprep.subr.mxu0 0.0
      %3353 = vmatpush1.msra.mxu0 0.0
      %3354 = vmatprep.mubr.f32.mxu0 0.0
      %3355 = vmatmul.mubr.f32.gmra.mrb[0].mxu0 %v2695
      %v3356 = vpop.f32.mrb[0].mxu0
      %v3357 = vadd.f32 0.0, %v3356
      %v3358 = vpop.f32.mrb[0].mxu0
      %3359 = vdwg.mxu0
      %v3360 = vadd.f32 %v2770, %v3357
      %v3362 = vsel %vm2133, %v3357, 0
      %3364 = vmatprep.subr.mxu0 0.0
      %3365 = vmatpush1.msra.mxu0 %v2122
      %3366 = vmatprep.subr.mxu0 0.0
      %3367 = vmatpush1.msra.mxu0 %v2123
      %3368 = vmatprep.subr.mxu0 0.0
      %3369 = vmatpush1.msra.mxu0 %v2124
      %3370 = vmatprep.subr.mxu0 0.0
      %3371 = vmatpush1.msra.mxu0 %v2125
      %3372 = vmatprep.subr.mxu0 0.0
      %3373 = vmatpush1.msra.mxu0 0.0
      %3374 = vmatprep.subr.mxu0 0.0
      %3375 = vmatpush1.msra.mxu0 0.0
      %3376 = vmatprep.subr.mxu0 0.0
      %3377 = vmatpush1.msra.mxu0 0.0
      %3378 = vmatprep.subr.mxu0 0.0
      %3379 = vmatpush1.msra.mxu0 0.0
      %3380 = vmatprep.subr.mxu0 0.0
      %3381 = vmatpush1.msra.mxu0 0.0
      %3382 = vmatprep.subr.mxu0 0.0
      %3383 = vmatpush1.msra.mxu0 0.0
      %3384 = vmatprep.subr.mxu0 0.0
      %3385 = vmatpush1.msra.mxu0 0.0
      %3386 = vmatprep.subr.mxu0 0.0
      %3387 = vmatpush1.msra.mxu0 0.0
      %3388 = vmatprep.subr.mxu0 0.0
      %3389 = vmatpush1.msra.mxu0 0.0
      %3390 = vmatprep.subr.mxu0 0.0
      %3391 = vmatpush1.msra.mxu0 0.0
      %3392 = vmatprep.subr.mxu0 0.0
      %3393 = vmatpush1.msra.mxu0 0.0
      %3394 = vmatprep.subr.mxu0 0.0
      %3395 = vmatpush1.msra.mxu0 0.0
      %3396 = vmatprep.subr.mxu0 0.0
      %3397 = vmatpush1.msra.mxu0 0.0
      %3398 = vmatprep.subr.mxu0 0.0
      %3399 = vmatpush1.msra.mxu0 0.0
      %3400 = vmatprep.subr.mxu0 0.0
      %3401 = vmatpush1.msra.mxu0 0.0
      %3402 = vmatprep.subr.mxu0 0.0
      %3403 = vmatpush1.msra.mxu0 0.0
      %3404 = vmatprep.subr.mxu0 0.0
      %3405 = vmatpush1.msra.mxu0 0.0
      %3406 = vmatprep.subr.mxu0 0.0
      %3407 = vmatpush1.msra.mxu0 0.0
      %3408 = vmatprep.subr.mxu0 0.0
      %3409 = vmatpush1.msra.mxu0 0.0
      %3410 = vmatprep.subr.mxu0 0.0
      %3411 = vmatpush1.msra.mxu0 0.0
      %3412 = vmatprep.subr.mxu0 0.0
      %3413 = vmatpush1.msra.mxu0 0.0
      %3414 = vmatprep.subr.mxu0 0.0
      %3415 = vmatpush1.msra.mxu0 0.0
      %3416 = vmatprep.subr.mxu0 0.0
      %3417 = vmatpush1.msra.mxu0 0.0
      %3418 = vmatprep.subr.mxu0 0.0
      %3419 = vmatpush1.msra.mxu0 0.0
      %3420 = vmatprep.subr.mxu0 0.0
      %3421 = vmatpush1.msra.mxu0 0.0
      %3422 = vmatprep.subr.mxu0 0.0
      %3423 = vmatpush1.msra.mxu0 0.0
      %3424 = vmatprep.subr.mxu0 0.0
      %3425 = vmatpush1.msra.mxu0 0.0
      %3426 = vmatprep.subr.mxu0 0.0
      %3427 = vmatpush1.msra.mxu0 0.0
      %3428 = vmatprep.mubr.f32.mxu0 0.0
      %3429 = vmatmul.mubr.f32.gmra.mrb[0].mxu0 %v3362
      %v3430 = vpop.f32.mrb[0].mxu0
      %v3431 = vadd.f32 %v2131, %v3430
      %v3432 = vpop.f32.mrb[0].mxu0
      %3433 = vdwg.mxu0
      %v3434 = vmax.f32 %v3431, 0.0
      %v3436 = vsel %vm806, %v3434, 0
      %3438 = vmatprep.subr.mxu0 0.0
      %3439 = vmatpush1.msra.mxu0 %v3436
      %3440 = vmatprep.subr.mxu0 0.0
      %3441 = vmatpush1.msra.mxu0 0.0
      %3442 = vmatprep.subr.mxu0 0.0
      %3443 = vmatpush1.msra.mxu0 0.0
      %3444 = vmatprep.subr.mxu0 0.0
      %3445 = vmatpush1.msra.mxu0 0.0
      %3446 = vmatprep.subr.mxu0 0.0
      %3447 = vmatpush1.msra.mxu0 0.0
      %3448 = vmatprep.subr.mxu0 0.0
      %3449 = vmatpush1.msra.mxu0 0.0
      %3450 = vmatprep.subr.mxu0 0.0
      %3451 = vmatpush1.msra.mxu0 0.0
      %3452 = vmatprep.subr.mxu0 0.0
      %3453 = vmatpush1.msra.mxu0 0.0
      %3454 = vmatprep.subr.mxu0 0.0
      %3455 = vmatpush1.msra.mxu0 0.0
      %3456 = vmatprep.subr.mxu0 0.0
      %3457 = vmatpush1.msra.mxu0 0.0
      %3458 = vmatprep.subr.mxu0 0.0
      %3459 = vmatpush1.msra.mxu0 0.0
      %3460 = vmatprep.subr.mxu0 0.0
      %3461 = vmatpush1.msra.mxu0 0.0
      %3462 = vmatprep.subr.mxu0 0.0
      %3463 = vmatpush1.msra.mxu0 0.0
      %3464 = vmatprep.subr.mxu0 0.0
      %3465 = vmatpush1.msra.mxu0 0.0
      %3466 = vmatprep.subr.mxu0 0.0
      %3467 = vmatpush1.msra.mxu0 0.0
      %3468 = vmatprep.subr.mxu0 0.0
      %3469 = vmatpush1.msra.mxu0 0.0
      %3470 = vmatprep.subr.mxu0 0.0
      %3471 = vmatpush1.msra.mxu0 0.0
      %3472 = vmatprep.subr.mxu0 0.0
      %3473 = vmatpush1.msra.mxu0 0.0
      %3474 = vmatprep.subr.mxu0 0.0
      %3475 = vmatpush1.msra.mxu0 0.0
      %3476 = vmatprep.subr.mxu0 0.0
      %3477 = vmatpush1.msra.mxu0 0.0
      %3478 = vmatprep.subr.mxu0 0.0
      %3479 = vmatpush1.msra.mxu0 0.0
      %3480 = vmatprep.subr.mxu0 0.0
      %3481 = vmatpush1.msra.mxu0 0.0
      %3482 = vmatprep.subr.mxu0 0.0
      %3483 = vmatpush1.msra.mxu0 0.0
      %3484 = vmatprep.subr.mxu0 0.0
      %3485 = vmatpush1.msra.mxu0 0.0
      %3486 = vmatprep.subr.mxu0 0.0
      %3487 = vmatpush1.msra.mxu0 0.0
      %3488 = vmatprep.subr.mxu0 0.0
      %3489 = vmatpush1.msra.mxu0 0.0
      %3490 = vmatprep.subr.mxu0 0.0
      %3491 = vmatpush1.msra.mxu0 0.0
      %3492 = vmatprep.subr.mxu0 0.0
      %3493 = vmatpush1.msra.mxu0 0.0
      %3494 = vmatprep.subr.mxu0 0.0
      %3495 = vmatpush1.msra.mxu0 0.0
      %3496 = vmatprep.subr.mxu0 0.0
      %3497 = vmatpush1.msra.mxu0 0.0
      %3498 = vmatprep.subr.mxu0 0.0
      %3499 = vmatpush1.msra.mxu0 0.0
      %3500 = vmatprep.subr.mxu0 0.0
      %3501 = vmatpush1.msra.mxu0 0.0
      %3502 = vmatprep.mubr.f32.mxu0 0.0
      %3503 = vmatmul.mubr.f32.gmra.mrb[0].mxu0 %v2209
      %v3504 = vpop.f32.mrb[0].mxu0
      %v3505 = vadd.f32 0.0, %v3504
      %v3506 = vpop.f32.mrb[0].mxu0
      %3507 = vmatprep.mubr.f32.mxu0 0.0
      %3508 = vmatmul.mubr.f32.gmra.mrb[0].mxu0 %v2212
      %v3509 = vpop.f32.mrb[0].mxu0
      %v3510 = vadd.f32 0.0, %v3509
      %v3511 = vpop.f32.mrb[0].mxu0
      %3512 = vmatprep.mubr.f32.mxu0 0.0
      %3513 = vmatmul.mubr.f32.gmra.mrb[0].mxu0 %v2215
      %v3514 = vpop.f32.mrb[0].mxu0
      %v3515 = vadd.f32 0.0, %v3514
      %v3516 = vpop.f32.mrb[0].mxu0
      %3517 = vdwg.mxu0
      %3518 = vmatprep.subr.mxu0 0.0
      %3519 = vmatpush1.msra.mxu0 %v3436
      %3520 = vmatprep.subr.mxu0 0.0
      %3521 = vmatpush1.msra.mxu0 0.0
      %3522 = vmatprep.subr.mxu0 0.0
      %3523 = vmatpush1.msra.mxu0 0.0
      %3524 = vmatprep.subr.mxu0 0.0
      %3525 = vmatpush1.msra.mxu0 0.0
      %3526 = vmatprep.subr.mxu0 0.0
      %3527 = vmatpush1.msra.mxu0 0.0
      %3528 = vmatprep.subr.mxu0 0.0
      %3529 = vmatpush1.msra.mxu0 0.0
      %3530 = vmatprep.subr.mxu0 0.0
      %3531 = vmatpush1.msra.mxu0 0.0
      %3532 = vmatprep.subr.mxu0 0.0
      %3533 = vmatpush1.msra.mxu0 0.0
      %3534 = vmatprep.subr.mxu0 0.0
      %3535 = vmatpush1.msra.mxu0 0.0
      %3536 = vmatprep.subr.mxu0 0.0
      %3537 = vmatpush1.msra.mxu0 0.0
      %3538 = vmatprep.subr.mxu0 0.0
      %3539 = vmatpush1.msra.mxu0 0.0
      %3540 = vmatprep.subr.mxu0 0.0
      %3541 = vmatpush1.msra.mxu0 0.0
      %3542 = vmatprep.subr.mxu0 0.0
      %3543 = vmatpush1.msra.mxu0 0.0
      %3544 = vmatprep.subr.mxu0 0.0
      %3545 = vmatpush1.msra.mxu0 0.0
      %3546 = vmatprep.subr.mxu0 0.0
      %3547 = vmatpush1.msra.mxu0 0.0
      %3548 = vmatprep.subr.mxu0 0.0
      %3549 = vmatpush1.msra.mxu0 0.0
      %3550 = vmatprep.subr.mxu0 0.0
      %3551 = vmatpush1.msra.mxu0 0.0
      %3552 = vmatprep.subr.mxu0 0.0
      %3553 = vmatpush1.msra.mxu0 0.0
      %3554 = vmatprep.subr.mxu0 0.0
      %3555 = vmatpush1.msra.mxu0 0.0
      %3556 = vmatprep.subr.mxu0 0.0
      %3557 = vmatpush1.msra.mxu0 0.0
      %3558 = vmatprep.subr.mxu0 0.0
      %3559 = vmatpush1.msra.mxu0 0.0
      %3560 = vmatprep.subr.mxu0 0.0
      %3561 = vmatpush1.msra.mxu0 0.0
      %3562 = vmatprep.subr.mxu0 0.0
      %3563 = vmatpush1.msra.mxu0 0.0
      %3564 = vmatprep.subr.mxu0 0.0
      %3565 = vmatpush1.msra.mxu0 0.0
      %3566 = vmatprep.subr.mxu0 0.0
      %3567 = vmatpush1.msra.mxu0 0.0
      %3568 = vmatprep.subr.mxu0 0.0
      %3569 = vmatpush1.msra.mxu0 0.0
      %3570 = vmatprep.subr.mxu0 0.0
      %3571 = vmatpush1.msra.mxu0 0.0
      %3572 = vmatprep.subr.mxu0 0.0
      %3573 = vmatpush1.msra.mxu0 0.0
      %3574 = vmatprep.subr.mxu0 0.0
      %3575 = vmatpush1.msra.mxu0 0.0
      %3576 = vmatprep.subr.mxu0 0.0
      %3577 = vmatpush1.msra.mxu0 0.0
      %3578 = vmatprep.subr.mxu0 0.0
      %3579 = vmatpush1.msra.mxu0 0.0
      %3580 = vmatprep.subr.mxu0 0.0
      %3581 = vmatpush1.msra.mxu0 0.0
      %3582 = vmatprep.mubr.f32.mxu0 0.0
      %3583 = vmatmul.mubr.f32.gmra.mrb[0].mxu0 %v2301
      %v3584 = vpop.f32.mrb[0].mxu0
      %v3585 = vadd.f32 0.0, %v3584
      %v3586 = vpop.f32.mrb[0].mxu0
      %3587 = vmatprep.mubr.f32.mxu0 0.0
      %3588 = vmatmul.mubr.f32.gmra.mrb[0].mxu0 %v2304
      %v3589 = vpop.f32.mrb[0].mxu0
      %v3590 = vadd.f32 0.0, %v3589
      %v3591 = vpop.f32.mrb[0].mxu0
      %3592 = vmatprep.mubr.f32.mxu0 0.0
      %3593 = vmatmul.mubr.f32.gmra.mrb[0].mxu0 %v2307
      %v3594 = vpop.f32.mrb[0].mxu0
      %v3595 = vadd.f32 0.0, %v3594
      %v3596 = vpop.f32.mrb[0].mxu0
      %3597 = vdwg.mxu0
      %v3599 = vsel %vm2133, %v3585, 0
      %v3602 = vsel %vm2133, %v3590, 0
      %v3605 = vsel %vm2133, %v3595, 0
      %3607 = vmatprep.subr.mxu0 0.0
      %3608 = vmatpush1.msra.mxu0 %v2393
      %3609 = vmatprep.subr.mxu0 0.0
      %3610 = vmatpush1.msra.mxu0 %v2394
      %3611 = vmatprep.subr.mxu0 0.0
      %3612 = vmatpush1.msra.mxu0 %v2395
      %3613 = vmatprep.subr.mxu0 0.0
      %3614 = vmatpush1.msra.mxu0 %v2396
      %3615 = vmatprep.subr.mxu0 0.0
      %3616 = vmatpush1.msra.mxu0 0.0
      %3617 = vmatprep.subr.mxu0 0.0
      %3618 = vmatpush1.msra.mxu0 0.0
      %3619 = vmatprep.subr.mxu0 0.0
      %3620 = vmatpush1.msra.mxu0 0.0
      %3621 = vmatprep.subr.mxu0 0.0
      %3622 = vmatpush1.msra.mxu0 0.0
      %3623 = vmatprep.subr.mxu0 0.0
      %3624 = vmatpush1.msra.mxu0 0.0
      %3625 = vmatprep.subr.mxu0 0.0
      %3626 = vmatpush1.msra.mxu0 0.0
      %3627 = vmatprep.subr.mxu0 0.0
      %3628 = vmatpush1.msra.mxu0 0.0
      %3629 = vmatprep.subr.mxu0 0.0
      %3630 = vmatpush1.msra.mxu0 0.0
      %3631 = vmatprep.subr.mxu0 0.0
      %3632 = vmatpush1.msra.mxu0 0.0
      %3633 = vmatprep.subr.mxu0 0.0
      %3634 = vmatpush1.msra.mxu0 0.0
      %3635 = vmatprep.subr.mxu0 0.0
      %3636 = vmatpush1.msra.mxu0 0.0
      %3637 = vmatprep.subr.mxu0 0.0
      %3638 = vmatpush1.msra.mxu0 0.0
      %3639 = vmatprep.subr.mxu0 0.0
      %3640 = vmatpush1.msra.mxu0 0.0
      %3641 = vmatprep.subr.mxu0 0.0
      %3642 = vmatpush1.msra.mxu0 0.0
      %3643 = vmatprep.subr.mxu0 0.0
      %3644 = vmatpush1.msra.mxu0 0.0
      %3645 = vmatprep.subr.mxu0 0.0
      %3646 = vmatpush1.msra.mxu0 0.0
      %3647 = vmatprep.subr.mxu0 0.0
      %3648 = vmatpush1.msra.mxu0 0.0
      %3649 = vmatprep.subr.mxu0 0.0
      %3650 = vmatpush1.msra.mxu0 0.0
      %3651 = vmatprep.subr.mxu0 0.0
      %3652 = vmatpush1.msra.mxu0 0.0
      %3653 = vmatprep.subr.mxu0 0.0
      %3654 = vmatpush1.msra.mxu0 0.0
      %3655 = vmatprep.subr.mxu0 0.0
      %3656 = vmatpush1.msra.mxu0 0.0
      %3657 = vmatprep.subr.mxu0 0.0
      %3658 = vmatpush1.msra.mxu0 0.0
      %3659 = vmatprep.subr.mxu0 0.0
      %3660 = vmatpush1.msra.mxu0 0.0
      %3661 = vmatprep.subr.mxu0 0.0
      %3662 = vmatpush1.msra.mxu0 0.0
      %3663 = vmatprep.subr.mxu0 0.0
      %3664 = vmatpush1.msra.mxu0 0.0
      %3665 = vmatprep.subr.mxu0 0.0
      %3666 = vmatpush1.msra.mxu0 0.0
      %3667 = vmatprep.subr.mxu0 0.0
      %3668 = vmatpush1.msra.mxu0 0.0
      %3669 = vmatprep.subr.mxu0 0.0
      %3670 = vmatpush1.msra.mxu0 0.0
      %3671 = vmatprep.mubr.f32.mxu0 0.0
      %3672 = vmatmul.mubr.f32.gmra.mrb[0].mxu0 %v3599
      %v3673 = vpop.f32.mrb[0].mxu0
      %v3674 = vadd.f32 0.0, %v3673
      %v3675 = vpop.f32.mrb[0].mxu0
      %3676 = vmatprep.mubr.f32.mxu0 0.0
      %3677 = vmatmul.mubr.f32.gmra.mrb[0].mxu0 %v3602
      %v3678 = vpop.f32.mrb[0].mxu0
      %v3679 = vadd.f32 0.0, %v3678
      %v3680 = vpop.f32.mrb[0].mxu0
      %3681 = vmatprep.mubr.f32.mxu0 0.0
      %3682 = vmatmul.mubr.f32.gmra.mrb[0].mxu0 %v3605
      %v3683 = vpop.f32.mrb[0].mxu0
      %v3684 = vadd.f32 0.0, %v3683
      %v3685 = vpop.f32.mrb[0].mxu0
      %3686 = vdwg.mxu0
      %v3688 = vsel %vm2133, %v3505, 0
      %v3691 = vsel %vm2133, %v3510, 0
      %v3694 = vsel %vm2133, %v3515, 0
      %3696 = vmatprep.subr.mxu0 0.0
      %3697 = vmatpush1.msra.mxu0 %v2389
      %3698 = vmatprep.subr.mxu0 0.0
      %3699 = vmatpush1.msra.mxu0 %v2390
      %3700 = vmatprep.subr.mxu0 0.0
      %3701 = vmatpush1.msra.mxu0 %v2391
      %3702 = vmatprep.subr.mxu0 0.0
      %3703 = vmatpush1.msra.mxu0 %v2392
      %3704 = vmatprep.subr.mxu0 0.0
      %3705 = vmatpush1.msra.mxu0 0.0
      %3706 = vmatprep.subr.mxu0 0.0
      %3707 = vmatpush1.msra.mxu0 0.0
      %3708 = vmatprep.subr.mxu0 0.0
      %3709 = vmatpush1.msra.mxu0 0.0
      %3710 = vmatprep.subr.mxu0 0.0
      %3711 = vmatpush1.msra.mxu0 0.0
      %3712 = vmatprep.subr.mxu0 0.0
      %3713 = vmatpush1.msra.mxu0 0.0
      %3714 = vmatprep.subr.mxu0 0.0
      %3715 = vmatpush1.msra.mxu0 0.0
      %3716 = vmatprep.subr.mxu0 0.0
      %3717 = vmatpush1.msra.mxu0 0.0
      %3718 = vmatprep.subr.mxu0 0.0
      %3719 = vmatpush1.msra.mxu0 0.0
      %3720 = vmatprep.subr.mxu0 0.0
      %3721 = vmatpush1.msra.mxu0 0.0
      %3722 = vmatprep.subr.mxu0 0.0
      %3723 = vmatpush1.msra.mxu0 0.0
      %3724 = vmatprep.subr.mxu0 0.0
      %3725 = vmatpush1.msra.mxu0 0.0
      %3726 = vmatprep.subr.mxu0 0.0
      %3727 = vmatpush1.msra.mxu0 0.0
      %3728 = vmatprep.subr.mxu0 0.0
      %3729 = vmatpush1.msra.mxu0 0.0
      %3730 = vmatprep.subr.mxu0 0.0
      %3731 = vmatpush1.msra.mxu0 0.0
      %3732 = vmatprep.subr.mxu0 0.0
      %3733 = vmatpush1.msra.mxu0 0.0
      %3734 = vmatprep.subr.mxu0 0.0
      %3735 = vmatpush1.msra.mxu0 0.0
      %3736 = vmatprep.subr.mxu0 0.0
      %3737 = vmatpush1.msra.mxu0 0.0
      %3738 = vmatprep.subr.mxu0 0.0
      %3739 = vmatpush1.msra.mxu0 0.0
      %3740 = vmatprep.subr.mxu0 0.0
      %3741 = vmatpush1.msra.mxu0 0.0
      %3742 = vmatprep.subr.mxu0 0.0
      %3743 = vmatpush1.msra.mxu0 0.0
      %3744 = vmatprep.subr.mxu0 0.0
      %3745 = vmatpush1.msra.mxu0 0.0
      %3746 = vmatprep.subr.mxu0 0.0
      %3747 = vmatpush1.msra.mxu0 0.0
      %3748 = vmatprep.subr.mxu0 0.0
      %3749 = vmatpush1.msra.mxu0 0.0
      %3750 = vmatprep.subr.mxu0 0.0
      %3751 = vmatpush1.msra.mxu0 0.0
      %3752 = vmatprep.subr.mxu0 0.0
      %3753 = vmatpush1.msra.mxu0 0.0
      %3754 = vmatprep.subr.mxu0 0.0
      %3755 = vmatpush1.msra.mxu0 0.0
      %3756 = vmatprep.subr.mxu0 0.0
      %3757 = vmatpush1.msra.mxu0 0.0
      %3758 = vmatprep.subr.mxu0 0.0
      %3759 = vmatpush1.msra.mxu0 0.0
      %3760 = vmatprep.mubr.f32.mxu0 0.0
      %3761 = vmatmul.mubr.f32.gmra.mrb[0].mxu0 %v3688
      %v3762 = vpop.f32.mrb[0].mxu0
      %v3763 = vadd.f32 %v3674, %v3762
      %v3764 = vpop.f32.mrb[0].mxu0
      %3765 = vmatprep.mubr.f32.mxu0 0.0
      %3766 = vmatmul.mubr.f32.gmra.mrb[0].mxu0 %v3691
      %v3767 = vpop.f32.mrb[0].mxu0
      %v3768 = vadd.f32 %v3679, %v3767
      %v3769 = vpop.f32.mrb[0].mxu0
      %3770 = vmatprep.mubr.f32.mxu0 0.0
      %3771 = vmatmul.mubr.f32.gmra.mrb[0].mxu0 %v3694
      %v3772 = vpop.f32.mrb[0].mxu0
      %v3773 = vadd.f32 %v3684, %v3772
      %v3774 = vpop.f32.mrb[0].mxu0
      %3775 = vdwg.mxu0
      %v3776 = vadd.f32 %v3763, %v2580
      %v3777 = vadd.f32 %v3768, %v2580
      %v3778 = vadd.f32 %v3773, %v2580
      %v3779 = vmax.f32 %v3776, 0.0
      %v3780 = vmax.f32 %v3777, 0.0
      %v3781 = vmax.f32 %v3778, 0.0
      %v3783 = vsel %vm2133, %v3779, 0
      %v3786 = vsel %vm2133, %v3780, 0
      %v3789 = vsel %vm2133, %v3781, 0
      %3791 = vmatprep.subr.mxu0 0.0
      %3792 = vmatpush1.msra.mxu0 %v2588
      %3793 = vmatprep.subr.mxu0 0.0
      %3794 = vmatpush1.msra.mxu0 %v2589
      %3795 = vmatprep.subr.mxu0 0.0
      %3796 = vmatpush1.msra.mxu0 %v2590
      %3797 = vmatprep.subr.mxu0 0.0
      %3798 = vmatpush1.msra.mxu0 %v2591
      %3799 = vmatprep.subr.mxu0 0.0
      %3800 = vmatpush1.msra.mxu0 0.0
      %3801 = vmatprep.subr.mxu0 0.0
      %3802 = vmatpush1.msra.mxu0 0.0
      %3803 = vmatprep.subr.mxu0 0.0
      %3804 = vmatpush1.msra.mxu0 0.0
      %3805 = vmatprep.subr.mxu0 0.0
      %3806 = vmatpush1.msra.mxu0 0.0
      %3807 = vmatprep.subr.mxu0 0.0
      %3808 = vmatpush1.msra.mxu0 0.0
      %3809 = vmatprep.subr.mxu0 0.0
      %3810 = vmatpush1.msra.mxu0 0.0
      %3811 = vmatprep.subr.mxu0 0.0
      %3812 = vmatpush1.msra.mxu0 0.0
      %3813 = vmatprep.subr.mxu0 0.0
      %3814 = vmatpush1.msra.mxu0 0.0
      %3815 = vmatprep.subr.mxu0 0.0
      %3816 = vmatpush1.msra.mxu0 0.0
      %3817 = vmatprep.subr.mxu0 0.0
      %3818 = vmatpush1.msra.mxu0 0.0
      %3819 = vmatprep.subr.mxu0 0.0
      %3820 = vmatpush1.msra.mxu0 0.0
      %3821 = vmatprep.subr.mxu0 0.0
      %3822 = vmatpush1.msra.mxu0 0.0
      %3823 = vmatprep.subr.mxu0 0.0
      %3824 = vmatpush1.msra.mxu0 0.0
      %3825 = vmatprep.subr.mxu0 0.0
      %3826 = vmatpush1.msra.mxu0 0.0
      %3827 = vmatprep.subr.mxu0 0.0
      %3828 = vmatpush1.msra.mxu0 0.0
      %3829 = vmatprep.subr.mxu0 0.0
      %3830 = vmatpush1.msra.mxu0 0.0
      %3831 = vmatprep.subr.mxu0 0.0
      %3832 = vmatpush1.msra.mxu0 0.0
      %3833 = vmatprep.subr.mxu0 0.0
      %3834 = vmatpush1.msra.mxu0 0.0
      %3835 = vmatprep.subr.mxu0 0.0
      %3836 = vmatpush1.msra.mxu0 0.0
      %3837 = vmatprep.subr.mxu0 0.0
      %3838 = vmatpush1.msra.mxu0 0.0
      %3839 = vmatprep.subr.mxu0 0.0
      %3840 = vmatpush1.msra.mxu0 0.0
      %3841 = vmatprep.subr.mxu0 0.0
      %3842 = vmatpush1.msra.mxu0 0.0
      %3843 = vmatprep.subr.mxu0 0.0
      %3844 = vmatpush1.msra.mxu0 0.0
      %3845 = vmatprep.subr.mxu0 0.0
      %3846 = vmatpush1.msra.mxu0 0.0
      %3847 = vmatprep.subr.mxu0 0.0
      %3848 = vmatpush1.msra.mxu0 0.0
      %3849 = vmatprep.subr.mxu0 0.0
      %3850 = vmatpush1.msra.mxu0 0.0
      %3851 = vmatprep.subr.mxu0 0.0
      %3852 = vmatpush1.msra.mxu0 0.0
      %3853 = vmatprep.subr.mxu0 0.0
      %3854 = vmatpush1.msra.mxu0 0.0
      %3855 = vmatprep.mubr.f32.mxu0 0.0
      %3856 = vmatmul.mubr.f32.gmra.mrb[0].mxu0 %v3783
      %v3857 = vpop.f32.mrb[0].mxu0
      %v3858 = vadd.f32 %v2597, %v3857
      %v3859 = vpop.f32.mrb[0].mxu0
      %3860 = vmatprep.mubr.f32.mxu0 0.0
      %3861 = vmatmul.mubr.f32.gmra.mrb[0].mxu0 %v3786
      %v3862 = vpop.f32.mrb[0].mxu0
      %v3863 = vadd.f32 %v2597, %v3862
      %v3864 = vpop.f32.mrb[0].mxu0
      %3865 = vmatprep.mubr.f32.mxu0 0.0
      %3866 = vmatmul.mubr.f32.gmra.mrb[0].mxu0 %v3789
      %v3867 = vpop.f32.mrb[0].mxu0
      %v3868 = vadd.f32 %v2597, %v3867
      %v3869 = vpop.f32.mrb[0].mxu0
      %3870 = vdwg.mxu0
      %v3871 = vmax.f32 %v3858, 0.0
      %v3872 = vmax.f32 %v3863, 0.0
      %v3873 = vmax.f32 %v3868, 0.0
      %v3874 = vmul.f32 %v2104, %v3871
      %v3875 = vmul.f32 %v2107, %v3872
      %v3876 = vmul.f32 %v2111, %v3873
      %v3878 = vsel %vm999, %v3876, 0
      %3880 = vmatprep.subr.mxu0 0.0
      %3881 = vmatpush1.msra.mxu0 %v3874
      %3882 = vmatprep.subr.mxu0 0.0
      %3883 = vmatpush1.msra.mxu0 %v3875
      %3884 = vmatprep.subr.mxu0 0.0
      %3885 = vmatpush1.msra.mxu0 %v3878
      %3886 = vmatprep.subr.mxu0 0.0
      %3887 = vmatpush1.msra.mxu0 0.0
      %3888 = vmatprep.subr.mxu0 0.0
      %3889 = vmatpush1.msra.mxu0 0.0
      %3890 = vmatprep.subr.mxu0 0.0
      %3891 = vmatpush1.msra.mxu0 0.0
      %3892 = vmatprep.subr.mxu0 0.0
      %3893 = vmatpush1.msra.mxu0 0.0
      %3894 = vmatprep.subr.mxu0 0.0
      %3895 = vmatpush1.msra.mxu0 0.0
      %3896 = vmatprep.subr.mxu0 0.0
      %3897 = vmatpush1.msra.mxu0 0.0
      %3898 = vmatprep.subr.mxu0 0.0
      %3899 = vmatpush1.msra.mxu0 0.0
      %3900 = vmatprep.subr.mxu0 0.0
      %3901 = vmatpush1.msra.mxu0 0.0
      %3902 = vmatprep.subr.mxu0 0.0
      %3903 = vmatpush1.msra.mxu0 0.0
      %3904 = vmatprep.subr.mxu0 0.0
      %3905 = vmatpush1.msra.mxu0 0.0
      %3906 = vmatprep.subr.mxu0 0.0
      %3907 = vmatpush1.msra.mxu0 0.0
      %3908 = vmatprep.subr.mxu0 0.0
      %3909 = vmatpush1.msra.mxu0 0.0
      %3910 = vmatprep.subr.mxu0 0.0
      %3911 = vmatpush1.msra.mxu0 0.0
      %3912 = vmatprep.subr.mxu0 0.0
      %3913 = vmatpush1.msra.mxu0 0.0
      %3914 = vmatprep.subr.mxu0 0.0
      %3915 = vmatpush1.msra.mxu0 0.0
      %3916 = vmatprep.subr.mxu0 0.0
      %3917 = vmatpush1.msra.mxu0 0.0
      %3918 = vmatprep.subr.mxu0 0.0
      %3919 = vmatpush1.msra.mxu0 0.0
      %3920 = vmatprep.subr.mxu0 0.0
      %3921 = vmatpush1.msra.mxu0 0.0
      %3922 = vmatprep.subr.mxu0 0.0
      %3923 = vmatpush1.msra.mxu0 0.0
      %3924 = vmatprep.subr.mxu0 0.0
      %3925 = vmatpush1.msra.mxu0 0.0
      %3926 = vmatprep.subr.mxu0 0.0
      %3927 = vmatpush1.msra.mxu0 0.0
      %3928 = vmatprep.subr.mxu0 0.0
      %3929 = vmatpush1.msra.mxu0 0.0
      %3930 = vmatprep.subr.mxu0 0.0
      %3931 = vmatpush1.msra.mxu0 0.0
      %3932 = vmatprep.subr.mxu0 0.0
      %3933 = vmatpush1.msra.mxu0 0.0
      %3934 = vmatprep.subr.mxu0 0.0
      %3935 = vmatpush1.msra.mxu0 0.0
      %3936 = vmatprep.subr.mxu0 0.0
      %3937 = vmatpush1.msra.mxu0 0.0
      %3938 = vmatprep.subr.mxu0 0.0
      %3939 = vmatpush1.msra.mxu0 0.0
      %3940 = vmatprep.subr.mxu0 0.0
      %3941 = vmatpush1.msra.mxu0 0.0
      %3942 = vmatprep.subr.mxu0 0.0
      %3943 = vmatpush1.msra.mxu0 0.0
      %3944 = vmatprep.mubr.f32.mxu0 0.0
      %3945 = vmatmul.mubr.f32.gmra.mrb[0].mxu0 %v2695
      %v3946 = vpop.f32.mrb[0].mxu0
      %v3947 = vadd.f32 0.0, %v3946
      %v3948 = vpop.f32.mrb[0].mxu0
      %3949 = vdwg.mxu0
      %v3950 = vadd.f32 %v3360, %v3947
      %v3952 = vsel %vm2133, %v3947, 0
      %3954 = vmatprep.subr.mxu0 0.0
      %3955 = vmatpush1.msra.mxu0 %v2122
      %3956 = vmatprep.subr.mxu0 0.0
      %3957 = vmatpush1.msra.mxu0 %v2123
      %3958 = vmatprep.subr.mxu0 0.0
      %3959 = vmatpush1.msra.mxu0 %v2124
      %3960 = vmatprep.subr.mxu0 0.0
      %3961 = vmatpush1.msra.mxu0 %v2125
      %3962 = vmatprep.subr.mxu0 0.0
      %3963 = vmatpush1.msra.mxu0 0.0
      %3964 = vmatprep.subr.mxu0 0.0
      %3965 = vmatpush1.msra.mxu0 0.0
      %3966 = vmatprep.subr.mxu0 0.0
      %3967 = vmatpush1.msra.mxu0 0.0
      %3968 = vmatprep.subr.mxu0 0.0
      %3969 = vmatpush1.msra.mxu0 0.0
      %3970 = vmatprep.subr.mxu0 0.0
      %3971 = vmatpush1.msra.mxu0 0.0
      %3972 = vmatprep.subr.mxu0 0.0
      %3973 = vmatpush1.msra.mxu0 0.0
      %3974 = vmatprep.subr.mxu0 0.0
      %3975 = vmatpush1.msra.mxu0 0.0
      %3976 = vmatprep.subr.mxu0 0.0
      %3977 = vmatpush1.msra.mxu0 0.0
      %3978 = vmatprep.subr.mxu0 0.0
      %3979 = vmatpush1.msra.mxu0 0.0
      %3980 = vmatprep.subr.mxu0 0.0
      %3981 = vmatpush1.msra.mxu0 0.0
      %3982 = vmatprep.subr.mxu0 0.0
      %3983 = vmatpush1.msra.mxu0 0.0
      %3984 = vmatprep.subr.mxu0 0.0
      %3985 = vmatpush1.msra.mxu0 0.0
      %3986 = vmatprep.subr.mxu0 0.0
      %3987 = vmatpush1.msra.mxu0 0.0
      %3988 = vmatprep.subr.mxu0 0.0
      %3989 = vmatpush1.msra.mxu0 0.0
      %3990 = vmatprep.subr.mxu0 0.0
      %3991 = vmatpush1.msra.mxu0 0.0
      %3992 = vmatprep.subr.mxu0 0.0
      %3993 = vmatpush1.msra.mxu0 0.0
      %3994 = vmatprep.subr.mxu0 0.0
      %3995 = vmatpush1.msra.mxu0 0.0
      %3996 = vmatprep.subr.mxu0 0.0
      %3997 = vmatpush1.msra.mxu0 0.0
      %3998 = vmatprep.subr.mxu0 0.0
      %3999 = vmatpush1.msra.mxu0 0.0
      %4000 = vmatprep.subr.mxu0 0.0
      %4001 = vmatpush1.msra.mxu0 0.0
      %4002 = vmatprep.subr.mxu0 0.0
      %4003 = vmatpush1.msra.mxu0 0.0
      %4004 = vmatprep.subr.mxu0 0.0
      %4005 = vmatpush1.msra.mxu0 0.0
      %4006 = vmatprep.subr.mxu0 0.0
      %4007 = vmatpush1.msra.mxu0 0.0
      %4008 = vmatprep.subr.mxu0 0.0
      %4009 = vmatpush1.msra.mxu0 0.0
      %4010 = vmatprep.subr.mxu0 0.0
      %4011 = vmatpush1.msra.mxu0 0.0
      %4012 = vmatprep.subr.mxu0 0.0
      %4013 = vmatpush1.msra.mxu0 0.0
      %4014 = vmatprep.subr.mxu0 0.0
      %4015 = vmatpush1.msra.mxu0 0.0
      %4016 = vmatprep.subr.mxu0 0.0
      %4017 = vmatpush1.msra.mxu0 0.0
      %4018 = vmatprep.mubr.f32.mxu0 0.0
      %4019 = vmatmul.mubr.f32.gmra.mrb[0].mxu0 %v3952
      %v4020 = vpop.f32.mrb[0].mxu0
      %v4021 = vadd.f32 %v2131, %v4020
      %v4022 = vpop.f32.mrb[0].mxu0
      %4023 = vdwg.mxu0
      %v4024 = vmax.f32 %v4021, 0.0
      %v4026 = vsel %vm806, %v4024, 0
      %4028 = vmatprep.subr.mxu0 0.0
      %4029 = vmatpush1.msra.mxu0 %v4026
      %4030 = vmatprep.subr.mxu0 0.0
      %4031 = vmatpush1.msra.mxu0 0.0
      %4032 = vmatprep.subr.mxu0 0.0
      %4033 = vmatpush1.msra.mxu0 0.0
      %4034 = vmatprep.subr.mxu0 0.0
      %4035 = vmatpush1.msra.mxu0 0.0
      %4036 = vmatprep.subr.mxu0 0.0
      %4037 = vmatpush1.msra.mxu0 0.0
      %4038 = vmatprep.subr.mxu0 0.0
      %4039 = vmatpush1.msra.mxu0 0.0
      %4040 = vmatprep.subr.mxu0 0.0
      %4041 = vmatpush1.msra.mxu0 0.0
      %4042 = vmatprep.subr.mxu0 0.0
      %4043 = vmatpush1.msra.mxu0 0.0
      %4044 = vmatprep.subr.mxu0 0.0
      %4045 = vmatpush1.msra.mxu0 0.0
      %4046 = vmatprep.subr.mxu0 0.0
      %4047 = vmatpush1.msra.mxu0 0.0
      %4048 = vmatprep.subr.mxu0 0.0
      %4049 = vmatpush1.msra.mxu0 0.0
      %4050 = vmatprep.subr.mxu0 0.0
      %4051 = vmatpush1.msra.mxu0 0.0
      %4052 = vmatprep.subr.mxu0 0.0
      %4053 = vmatpush1.msra.mxu0 0.0
      %4054 = vmatprep.subr.mxu0 0.0
      %4055 = vmatpush1.msra.mxu0 0.0
      %4056 = vmatprep.subr.mxu0 0.0
      %4057 = vmatpush1.msra.mxu0 0.0
      %4058 = vmatprep.subr.mxu0 0.0
      %4059 = vmatpush1.msra.mxu0 0.0
      %4060 = vmatprep.subr.mxu0 0.0
      %4061 = vmatpush1.msra.mxu0 0.0
      %4062 = vmatprep.subr.mxu0 0.0
      %4063 = vmatpush1.msra.mxu0 0.0
      %4064 = vmatprep.subr.mxu0 0.0
      %4065 = vmatpush1.msra.mxu0 0.0
      %4066 = vmatprep.subr.mxu0 0.0
      %4067 = vmatpush1.msra.mxu0 0.0
      %4068 = vmatprep.subr.mxu0 0.0
      %4069 = vmatpush1.msra.mxu0 0.0
      %4070 = vmatprep.subr.mxu0 0.0
      %4071 = vmatpush1.msra.mxu0 0.0
      %4072 = vmatprep.subr.mxu0 0.0
      %4073 = vmatpush1.msra.mxu0 0.0
      %4074 = vmatprep.subr.mxu0 0.0
      %4075 = vmatpush1.msra.mxu0 0.0
      %4076 = vmatprep.subr.mxu0 0.0
      %4077 = vmatpush1.msra.mxu0 0.0
      %4078 = vmatprep.subr.mxu0 0.0
      %4079 = vmatpush1.msra.mxu0 0.0
      %4080 = vmatprep.subr.mxu0 0.0
      %4081 = vmatpush1.msra.mxu0 0.0
      %4082 = vmatprep.subr.mxu0 0.0
      %4083 = vmatpush1.msra.mxu0 0.0
      %4084 = vmatprep.subr.mxu0 0.0
      %4085 = vmatpush1.msra.mxu0 0.0
      %4086 = vmatprep.subr.mxu0 0.0
      %4087 = vmatpush1.msra.mxu0 0.0
      %4088 = vmatprep.subr.mxu0 0.0
      %4089 = vmatpush1.msra.mxu0 0.0
      %4090 = vmatprep.subr.mxu0 0.0
      %4091 = vmatpush1.msra.mxu0 0.0
      %4092 = vmatprep.mubr.f32.mxu0 0.0
      %4093 = vmatmul.mubr.f32.gmra.mrb[0].mxu0 %v2209
      %v4094 = vpop.f32.mrb[0].mxu0
      %v4095 = vadd.f32 0.0, %v4094
      %v4096 = vpop.f32.mrb[0].mxu0
      %4097 = vmatprep.mubr.f32.mxu0 0.0
      %4098 = vmatmul.mubr.f32.gmra.mrb[0].mxu0 %v2212
      %v4099 = vpop.f32.mrb[0].mxu0
      %v4100 = vadd.f32 0.0, %v4099
      %v4101 = vpop.f32.mrb[0].mxu0
      %4102 = vmatprep.mubr.f32.mxu0 0.0
      %4103 = vmatmul.mubr.f32.gmra.mrb[0].mxu0 %v2215
      %v4104 = vpop.f32.mrb[0].mxu0
      %v4105 = vadd.f32 0.0, %v4104
      %v4106 = vpop.f32.mrb[0].mxu0
      %4107 = vdwg.mxu0
      %4108 = vmatprep.subr.mxu0 0.0
      %4109 = vmatpush1.msra.mxu0 %v4026
      %4110 = vmatprep.subr.mxu0 0.0
      %4111 = vmatpush1.msra.mxu0 0.0
      %4112 = vmatprep.subr.mxu0 0.0
      %4113 = vmatpush1.msra.mxu0 0.0
      %4114 = vmatprep.subr.mxu0 0.0
      %4115 = vmatpush1.msra.mxu0 0.0
      %4116 = vmatprep.subr.mxu0 0.0
      %4117 = vmatpush1.msra.mxu0 0.0
      %4118 = vmatprep.subr.mxu0 0.0
      %4119 = vmatpush1.msra.mxu0 0.0
      %4120 = vmatprep.subr.mxu0 0.0
      %4121 = vmatpush1.msra.mxu0 0.0
      %4122 = vmatprep.subr.mxu0 0.0
      %4123 = vmatpush1.msra.mxu0 0.0
      %4124 = vmatprep.subr.mxu0 0.0
      %4125 = vmatpush1.msra.mxu0 0.0
      %4126 = vmatprep.subr.mxu0 0.0
      %4127 = vmatpush1.msra.mxu0 0.0
      %4128 = vmatprep.subr.mxu0 0.0
      %4129 = vmatpush1.msra.mxu0 0.0
      %4130 = vmatprep.subr.mxu0 0.0
      %4131 = vmatpush1.msra.mxu0 0.0
      %4132 = vmatprep.subr.mxu0 0.0
      %4133 = vmatpush1.msra.mxu0 0.0
      %4134 = vmatprep.subr.mxu0 0.0
      %4135 = vmatpush1.msra.mxu0 0.0
      %4136 = vmatprep.subr.mxu0 0.0
      %4137 = vmatpush1.msra.mxu0 0.0
      %4138 = vmatprep.subr.mxu0 0.0
      %4139 = vmatpush1.msra.mxu0 0.0
      %4140 = vmatprep.subr.mxu0 0.0
      %4141 = vmatpush1.msra.mxu0 0.0
      %4142 = vmatprep.subr.mxu0 0.0
      %4143 = vmatpush1.msra.mxu0 0.0
      %4144 = vmatprep.subr.mxu0 0.0
      %4145 = vmatpush1.msra.mxu0 0.0
      %4146 = vmatprep.subr.mxu0 0.0
      %4147 = vmatpush1.msra.mxu0 0.0
      %4148 = vmatprep.subr.mxu0 0.0
      %4149 = vmatpush1.msra.mxu0 0.0
      %4150 = vmatprep.subr.mxu0 0.0
      %4151 = vmatpush1.msra.mxu0 0.0
      %4152 = vmatprep.subr.mxu0 0.0
      %4153 = vmatpush1.msra.mxu0 0.0
      %4154 = vmatprep.subr.mxu0 0.0
      %4155 = vmatpush1.msra.mxu0 0.0
      %4156 = vmatprep.subr.mxu0 0.0
      %4157 = vmatpush1.msra.mxu0 0.0
      %4158 = vmatprep.subr.mxu0 0.0
      %4159 = vmatpush1.msra.mxu0 0.0
      %4160 = vmatprep.subr.mxu0 0.0
      %4161 = vmatpush1.msra.mxu0 0.0
      %4162 = vmatprep.subr.mxu0 0.0
      %4163 = vmatpush1.msra.mxu0 0.0
      %4164 = vmatprep.subr.mxu0 0.0
      %4165 = vmatpush1.msra.mxu0 0.0
      %4166 = vmatprep.subr.mxu0 0.0
      %4167 = vmatpush1.msra.mxu0 0.0
      %4168 = vmatprep.subr.mxu0 0.0
      %4169 = vmatpush1.msra.mxu0 0.0
      %4170 = vmatprep.subr.mxu0 0.0
      %4171 = vmatpush1.msra.mxu0 0.0
      %4172 = vmatprep.mubr.f32.mxu0 0.0
      %4173 = vmatmul.mubr.f32.gmra.mrb[0].mxu0 %v2301
      %v4174 = vpop.f32.mrb[0].mxu0
      %v4175 = vadd.f32 0.0, %v4174
      %v4176 = vpop.f32.mrb[0].mxu0
      %4177 = vmatprep.mubr.f32.mxu0 0.0
      %4178 = vmatmul.mubr.f32.gmra.mrb[0].mxu0 %v2304
      %v4179 = vpop.f32.mrb[0].mxu0
      %v4180 = vadd.f32 0.0, %v4179
      %v4181 = vpop.f32.mrb[0].mxu0
      %4182 = vmatprep.mubr.f32.mxu0 0.0
      %4183 = vmatmul.mubr.f32.gmra.mrb[0].mxu0 %v2307
      %v4184 = vpop.f32.mrb[0].mxu0
      %v4185 = vadd.f32 0.0, %v4184
      %v4186 = vpop.f32.mrb[0].mxu0
      %4187 = vdwg.mxu0
      %v4189 = vsel %vm2133, %v4175, 0
      %v4192 = vsel %vm2133, %v4180, 0
      %v4195 = vsel %vm2133, %v4185, 0
      %4197 = vmatprep.subr.mxu0 0.0
      %4198 = vmatpush1.msra.mxu0 %v2393
      %4199 = vmatprep.subr.mxu0 0.0
      %4200 = vmatpush1.msra.mxu0 %v2394
      %4201 = vmatprep.subr.mxu0 0.0
      %4202 = vmatpush1.msra.mxu0 %v2395
      %4203 = vmatprep.subr.mxu0 0.0
      %4204 = vmatpush1.msra.mxu0 %v2396
      %4205 = vmatprep.subr.mxu0 0.0
      %4206 = vmatpush1.msra.mxu0 0.0
      %4207 = vmatprep.subr.mxu0 0.0
      %4208 = vmatpush1.msra.mxu0 0.0
      %4209 = vmatprep.subr.mxu0 0.0
      %4210 = vmatpush1.msra.mxu0 0.0
      %4211 = vmatprep.subr.mxu0 0.0
      %4212 = vmatpush1.msra.mxu0 0.0
      %4213 = vmatprep.subr.mxu0 0.0
      %4214 = vmatpush1.msra.mxu0 0.0
      %4215 = vmatprep.subr.mxu0 0.0
      %4216 = vmatpush1.msra.mxu0 0.0
      %4217 = vmatprep.subr.mxu0 0.0
      %4218 = vmatpush1.msra.mxu0 0.0
      %4219 = vmatprep.subr.mxu0 0.0
      %4220 = vmatpush1.msra.mxu0 0.0
      %4221 = vmatprep.subr.mxu0 0.0
      %4222 = vmatpush1.msra.mxu0 0.0
      %4223 = vmatprep.subr.mxu0 0.0
      %4224 = vmatpush1.msra.mxu0 0.0
      %4225 = vmatprep.subr.mxu0 0.0
      %4226 = vmatpush1.msra.mxu0 0.0
      %4227 = vmatprep.subr.mxu0 0.0
      %4228 = vmatpush1.msra.mxu0 0.0
      %4229 = vmatprep.subr.mxu0 0.0
      %4230 = vmatpush1.msra.mxu0 0.0
      %4231 = vmatprep.subr.mxu0 0.0
      %4232 = vmatpush1.msra.mxu0 0.0
      %4233 = vmatprep.subr.mxu0 0.0
      %4234 = vmatpush1.msra.mxu0 0.0
      %4235 = vmatprep.subr.mxu0 0.0
      %4236 = vmatpush1.msra.mxu0 0.0
      %4237 = vmatprep.subr.mxu0 0.0
      %4238 = vmatpush1.msra.mxu0 0.0
      %4239 = vmatprep.subr.mxu0 0.0
      %4240 = vmatpush1.msra.mxu0 0.0
      %4241 = vmatprep.subr.mxu0 0.0
      %4242 = vmatpush1.msra.mxu0 0.0
      %4243 = vmatprep.subr.mxu0 0.0
      %4244 = vmatpush1.msra.mxu0 0.0
      %4245 = vmatprep.subr.mxu0 0.0
      %4246 = vmatpush1.msra.mxu0 0.0
      %4247 = vmatprep.subr.mxu0 0.0
      %4248 = vmatpush1.msra.mxu0 0.0
      %4249 = vmatprep.subr.mxu0 0.0
      %4250 = vmatpush1.msra.mxu0 0.0
      %4251 = vmatprep.subr.mxu0 0.0
      %4252 = vmatpush1.msra.mxu0 0.0
      %4253 = vmatprep.subr.mxu0 0.0
      %4254 = vmatpush1.msra.mxu0 0.0
      %4255 = vmatprep.subr.mxu0 0.0
      %4256 = vmatpush1.msra.mxu0 0.0
      %4257 = vmatprep.subr.mxu0 0.0
      %4258 = vmatpush1.msra.mxu0 0.0
      %4259 = vmatprep.subr.mxu0 0.0
      %4260 = vmatpush1.msra.mxu0 0.0
      %4261 = vmatprep.mubr.f32.mxu0 0.0
      %4262 = vmatmul.mubr.f32.gmra.mrb[0].mxu0 %v4189
      %v4263 = vpop.f32.mrb[0].mxu0
      %v4264 = vadd.f32 0.0, %v4263
      %v4265 = vpop.f32.mrb[0].mxu0
      %4266 = vmatprep.mubr.f32.mxu0 0.0
      %4267 = vmatmul.mubr.f32.gmra.mrb[0].mxu0 %v4192
      %v4268 = vpop.f32.mrb[0].mxu0
      %v4269 = vadd.f32 0.0, %v4268
      %v4270 = vpop.f32.mrb[0].mxu0
      %4271 = vmatprep.mubr.f32.mxu0 0.0
      %4272 = vmatmul.mubr.f32.gmra.mrb[0].mxu0 %v4195
      %v4273 = vpop.f32.mrb[0].mxu0
      %v4274 = vadd.f32 0.0, %v4273
      %v4275 = vpop.f32.mrb[0].mxu0
      %4276 = vdwg.mxu0
      %v4278 = vsel %vm2133, %v4095, 0
      %v4281 = vsel %vm2133, %v4100, 0
      %v4284 = vsel %vm2133, %v4105, 0
      %4286 = vmatprep.subr.mxu0 0.0
      %4287 = vmatpush1.msra.mxu0 %v2389
      %4288 = vmatprep.subr.mxu0 0.0
      %4289 = vmatpush1.msra.mxu0 %v2390
      %4290 = vmatprep.subr.mxu0 0.0
      %4291 = vmatpush1.msra.mxu0 %v2391
      %4292 = vmatprep.subr.mxu0 0.0
      %4293 = vmatpush1.msra.mxu0 %v2392
      %4294 = vmatprep.subr.mxu0 0.0
      %4295 = vmatpush1.msra.mxu0 0.0
      %4296 = vmatprep.subr.mxu0 0.0
      %4297 = vmatpush1.msra.mxu0 0.0
      %4298 = vmatprep.subr.mxu0 0.0
      %4299 = vmatpush1.msra.mxu0 0.0
      %4300 = vmatprep.subr.mxu0 0.0
      %4301 = vmatpush1.msra.mxu0 0.0
      %4302 = vmatprep.subr.mxu0 0.0
      %4303 = vmatpush1.msra.mxu0 0.0
      %4304 = vmatprep.subr.mxu0 0.0
      %4305 = vmatpush1.msra.mxu0 0.0
      %4306 = vmatprep.subr.mxu0 0.0
      %4307 = vmatpush1.msra.mxu0 0.0
      %4308 = vmatprep.subr.mxu0 0.0
      %4309 = vmatpush1.msra.mxu0 0.0
      %4310 = vmatprep.subr.mxu0 0.0
      %4311 = vmatpush1.msra.mxu0 0.0
      %4312 = vmatprep.subr.mxu0 0.0
      %4313 = vmatpush1.msra.mxu0 0.0
      %4314 = vmatprep.subr.mxu0 0.0
      %4315 = vmatpush1.msra.mxu0 0.0
      %4316 = vmatprep.subr.mxu0 0.0
      %4317 = vmatpush1.msra.mxu0 0.0
      %4318 = vmatprep.subr.mxu0 0.0
      %4319 = vmatpush1.msra.mxu0 0.0
      %4320 = vmatprep.subr.mxu0 0.0
      %4321 = vmatpush1.msra.mxu0 0.0
      %4322 = vmatprep.subr.mxu0 0.0
      %4323 = vmatpush1.msra.mxu0 0.0
      %4324 = vmatprep.subr.mxu0 0.0
      %4325 = vmatpush1.msra.mxu0 0.0
      %4326 = vmatprep.subr.mxu0 0.0
      %4327 = vmatpush1.msra.mxu0 0.0
      %4328 = vmatprep.subr.mxu0 0.0
      %4329 = vmatpush1.msra.mxu0 0.0
      %4330 = vmatprep.subr.mxu0 0.0
      %4331 = vmatpush1.msra.mxu0 0.0
      %4332 = vmatprep.subr.mxu0 0.0
      %4333 = vmatpush1.msra.mxu0 0.0
      %4334 = vmatprep.subr.mxu0 0.0
      %4335 = vmatpush1.msra.mxu0 0.0
      %4336 = vmatprep.subr.mxu0 0.0
      %4337 = vmatpush1.msra.mxu0 0.0
      %4338 = vmatprep.subr.mxu0 0.0
      %4339 = vmatpush1.msra.mxu0 0.0
      %4340 = vmatprep.subr.mxu0 0.0
      %4341 = vmatpush1.msra.mxu0 0.0
      %4342 = vmatprep.subr.mxu0 0.0
      %4343 = vmatpush1.msra.mxu0 0.0
      %4344 = vmatprep.subr.mxu0 0.0
      %4345 = vmatpush1.msra.mxu0 0.0
      %4346 = vmatprep.subr.mxu0 0.0
      %4347 = vmatpush1.msra.mxu0 0.0
      %4348 = vmatprep.subr.mxu0 0.0
      %4349 = vmatpush1.msra.mxu0 0.0
      %4350 = vmatprep.mubr.f32.mxu0 0.0
      %4351 = vmatmul.mubr.f32.gmra.mrb[0].mxu0 %v4278
      %v4352 = vpop.f32.mrb[0].mxu0
      %v4353 = vadd.f32 %v4264, %v4352
      %v4354 = vpop.f32.mrb[0].mxu0
      %4355 = vmatprep.mubr.f32.mxu0 0.0
      %4356 = vmatmul.mubr.f32.gmra.mrb[0].mxu0 %v4281
      %v4357 = vpop.f32.mrb[0].mxu0
      %v4358 = vadd.f32 %v4269, %v4357
      %v4359 = vpop.f32.mrb[0].mxu0
      %4360 = vmatprep.mubr.f32.mxu0 0.0
      %4361 = vmatmul.mubr.f32.gmra.mrb[0].mxu0 %v4284
      %v4362 = vpop.f32.mrb[0].mxu0
      %v4363 = vadd.f32 %v4274, %v4362
      %v4364 = vpop.f32.mrb[0].mxu0
      %4365 = vdwg.mxu0
      %v4366 = vadd.f32 %v4353, %v2580
      %v4367 = vadd.f32 %v4358, %v2580
      %v4368 = vadd.f32 %v4363, %v2580
      %v4369 = vmax.f32 %v4366, 0.0
      %v4370 = vmax.f32 %v4367, 0.0
      %v4371 = vmax.f32 %v4368, 0.0
      %v4373 = vsel %vm2133, %v4369, 0
      %v4376 = vsel %vm2133, %v4370, 0
      %v4379 = vsel %vm2133, %v4371, 0
      %4381 = vmatprep.subr.mxu0 0.0
      %4382 = vmatpush1.msra.mxu0 %v2588
      %4383 = vmatprep.subr.mxu0 0.0
      %4384 = vmatpush1.msra.mxu0 %v2589
      %4385 = vmatprep.subr.mxu0 0.0
      %4386 = vmatpush1.msra.mxu0 %v2590
      %4387 = vmatprep.subr.mxu0 0.0
      %4388 = vmatpush1.msra.mxu0 %v2591
      %4389 = vmatprep.subr.mxu0 0.0
      %4390 = vmatpush1.msra.mxu0 0.0
      %4391 = vmatprep.subr.mxu0 0.0
      %4392 = vmatpush1.msra.mxu0 0.0
      %4393 = vmatprep.subr.mxu0 0.0
      %4394 = vmatpush1.msra.mxu0 0.0
      %4395 = vmatprep.subr.mxu0 0.0
      %4396 = vmatpush1.msra.mxu0 0.0
      %4397 = vmatprep.subr.mxu0 0.0
      %4398 = vmatpush1.msra.mxu0 0.0
      %4399 = vmatprep.subr.mxu0 0.0
      %4400 = vmatpush1.msra.mxu0 0.0
      %4401 = vmatprep.subr.mxu0 0.0
      %4402 = vmatpush1.msra.mxu0 0.0
      %4403 = vmatprep.subr.mxu0 0.0
      %4404 = vmatpush1.msra.mxu0 0.0
      %4405 = vmatprep.subr.mxu0 0.0
      %4406 = vmatpush1.msra.mxu0 0.0
      %4407 = vmatprep.subr.mxu0 0.0
      %4408 = vmatpush1.msra.mxu0 0.0
      %4409 = vmatprep.subr.mxu0 0.0
      %4410 = vmatpush1.msra.mxu0 0.0
      %4411 = vmatprep.subr.mxu0 0.0
      %4412 = vmatpush1.msra.mxu0 0.0
      %4413 = vmatprep.subr.mxu0 0.0
      %4414 = vmatpush1.msra.mxu0 0.0
      %4415 = vmatprep.subr.mxu0 0.0
      %4416 = vmatpush1.msra.mxu0 0.0
      %4417 = vmatprep.subr.mxu0 0.0
      %4418 = vmatpush1.msra.mxu0 0.0
      %4419 = vmatprep.subr.mxu0 0.0
      %4420 = vmatpush1.msra.mxu0 0.0
      %4421 = vmatprep.subr.mxu0 0.0
      %4422 = vmatpush1.msra.mxu0 0.0
      %4423 = vmatprep.subr.mxu0 0.0
      %4424 = vmatpush1.msra.mxu0 0.0
      %4425 = vmatprep.subr.mxu0 0.0
      %4426 = vmatpush1.msra.mxu0 0.0
      %4427 = vmatprep.subr.mxu0 0.0
      %4428 = vmatpush1.msra.mxu0 0.0
      %4429 = vmatprep.subr.mxu0 0.0
      %4430 = vmatpush1.msra.mxu0 0.0
      %4431 = vmatprep.subr.mxu0 0.0
      %4432 = vmatpush1.msra.mxu0 0.0
      %4433 = vmatprep.subr.mxu0 0.0
      %4434 = vmatpush1.msra.mxu0 0.0
      %4435 = vmatprep.subr.mxu0 0.0
      %4436 = vmatpush1.msra.mxu0 0.0
      %4437 = vmatprep.subr.mxu0 0.0
      %4438 = vmatpush1.msra.mxu0 0.0
      %4439 = vmatprep.subr.mxu0 0.0
      %4440 = vmatpush1.msra.mxu0 0.0
      %4441 = vmatprep.subr.mxu0 0.0
      %4442 = vmatpush1.msra.mxu0 0.0
      %4443 = vmatprep.subr.mxu0 0.0
      %4444 = vmatpush1.msra.mxu0 0.0
      %4445 = vmatprep.mubr.f32.mxu0 0.0
      %4446 = vmatmul.mubr.f32.gmra.mrb[0].mxu0 %v4373
      %v4447 = vpop.f32.mrb[0].mxu0
      %v4448 = vadd.f32 %v2597, %v4447
      %v4449 = vpop.f32.mrb[0].mxu0
      %4450 = vmatprep.mubr.f32.mxu0 0.0
      %4451 = vmatmul.mubr.f32.gmra.mrb[0].mxu0 %v4376
      %v4452 = vpop.f32.mrb[0].mxu0
      %v4453 = vadd.f32 %v2597, %v4452
      %v4454 = vpop.f32.mrb[0].mxu0
      %4455 = vmatprep.mubr.f32.mxu0 0.0
      %4456 = vmatmul.mubr.f32.gmra.mrb[0].mxu0 %v4379
      %v4457 = vpop.f32.mrb[0].mxu0
      %v4458 = vadd.f32 %v2597, %v4457
      %v4459 = vpop.f32.mrb[0].mxu0
      %4460 = vdwg.mxu0
      %v4461 = vmax.f32 %v4448, 0.0
      %v4462 = vmax.f32 %v4453, 0.0
      %v4463 = vmax.f32 %v4458, 0.0
      %v4464 = vmul.f32 %v2104, %v4461
      %v4465 = vmul.f32 %v2107, %v4462
      %v4466 = vmul.f32 %v2111, %v4463
      %v4468 = vsel %vm999, %v4466, 0
      %4470 = vmatprep.subr.mxu0 0.0
      %4471 = vmatpush1.msra.mxu0 %v4464
      %4472 = vmatprep.subr.mxu0 0.0
      %4473 = vmatpush1.msra.mxu0 %v4465
      %4474 = vmatprep.subr.mxu0 0.0
      %4475 = vmatpush1.msra.mxu0 %v4468
      %4476 = vmatprep.subr.mxu0 0.0
      %4477 = vmatpush1.msra.mxu0 0.0
      %4478 = vmatprep.subr.mxu0 0.0
      %4479 = vmatpush1.msra.mxu0 0.0
      %4480 = vmatprep.subr.mxu0 0.0
      %4481 = vmatpush1.msra.mxu0 0.0
      %4482 = vmatprep.subr.mxu0 0.0
      %4483 = vmatpush1.msra.mxu0 0.0
      %4484 = vmatprep.subr.mxu0 0.0
      %4485 = vmatpush1.msra.mxu0 0.0
      %4486 = vmatprep.subr.mxu0 0.0
      %4487 = vmatpush1.msra.mxu0 0.0
      %4488 = vmatprep.subr.mxu0 0.0
      %4489 = vmatpush1.msra.mxu0 0.0
      %4490 = vmatprep.subr.mxu0 0.0
      %4491 = vmatpush1.msra.mxu0 0.0
      %4492 = vmatprep.subr.mxu0 0.0
      %4493 = vmatpush1.msra.mxu0 0.0
      %4494 = vmatprep.subr.mxu0 0.0
      %4495 = vmatpush1.msra.mxu0 0.0
      %4496 = vmatprep.subr.mxu0 0.0
      %4497 = vmatpush1.msra.mxu0 0.0
      %4498 = vmatprep.subr.mxu0 0.0
      %4499 = vmatpush1.msra.mxu0 0.0
      %4500 = vmatprep.subr.mxu0 0.0
      %4501 = vmatpush1.msra.mxu0 0.0
      %4502 = vmatprep.subr.mxu0 0.0
      %4503 = vmatpush1.msra.mxu0 0.0
      %4504 = vmatprep.subr.mxu0 0.0
      %4505 = vmatpush1.msra.mxu0 0.0
      %4506 = vmatprep.subr.mxu0 0.0
      %4507 = vmatpush1.msra.mxu0 0.0
      %4508 = vmatprep.subr.mxu0 0.0
      %4509 = vmatpush1.msra.mxu0 0.0
      %4510 = vmatprep.subr.mxu0 0.0
      %4511 = vmatpush1.msra.mxu0 0.0
      %4512 = vmatprep.subr.mxu0 0.0
      %4513 = vmatpush1.msra.mxu0 0.0
      %4514 = vmatprep.subr.mxu0 0.0
      %4515 = vmatpush1.msra.mxu0 0.0
      %4516 = vmatprep.subr.mxu0 0.0
      %4517 = vmatpush1.msra.mxu0 0.0
      %4518 = vmatprep.subr.mxu0 0.0
      %4519 = vmatpush1.msra.mxu0 0.0
      %4520 = vmatprep.subr.mxu0 0.0
      %4521 = vmatpush1.msra.mxu0 0.0
      %4522 = vmatprep.subr.mxu0 0.0
      %4523 = vmatpush1.msra.mxu0 0.0
      %4524 = vmatprep.subr.mxu0 0.0
      %4525 = vmatpush1.msra.mxu0 0.0
      %4526 = vmatprep.subr.mxu0 0.0
      %4527 = vmatpush1.msra.mxu0 0.0
      %4528 = vmatprep.subr.mxu0 0.0
      %4529 = vmatpush1.msra.mxu0 0.0
      %4530 = vmatprep.subr.mxu0 0.0
      %4531 = vmatpush1.msra.mxu0 0.0
      %4532 = vmatprep.subr.mxu0 0.0
      %4533 = vmatpush1.msra.mxu0 0.0
      %4534 = vmatprep.mubr.f32.mxu0 0.0
      %4535 = vmatmul.mubr.f32.gmra.mrb[0].mxu0 %v2695
      %v4536 = vpop.f32.mrb[0].mxu0
      %v4537 = vadd.f32 0.0, %v4536
      %v4538 = vpop.f32.mrb[0].mxu0
      %4539 = vdwg.mxu0
      %v4540 = vadd.f32 %v3950, %v4537
      %v4542 = vsel %vm2133, %v4537, 0
      %4544 = vmatprep.subr.mxu0 0.0
      %4545 = vmatpush1.msra.mxu0 %v2122
      %4546 = vmatprep.subr.mxu0 0.0
      %4547 = vmatpush1.msra.mxu0 %v2123
      %4548 = vmatprep.subr.mxu0 0.0
      %4549 = vmatpush1.msra.mxu0 %v2124
      %4550 = vmatprep.subr.mxu0 0.0
      %4551 = vmatpush1.msra.mxu0 %v2125
      %4552 = vmatprep.subr.mxu0 0.0
      %4553 = vmatpush1.msra.mxu0 0.0
      %4554 = vmatprep.subr.mxu0 0.0
      %4555 = vmatpush1.msra.mxu0 0.0
      %4556 = vmatprep.subr.mxu0 0.0
      %4557 = vmatpush1.msra.mxu0 0.0
      %4558 = vmatprep.subr.mxu0 0.0
      %4559 = vmatpush1.msra.mxu0 0.0
      %4560 = vmatprep.subr.mxu0 0.0
      %4561 = vmatpush1.msra.mxu0 0.0
      %4562 = vmatprep.subr.mxu0 0.0
      %4563 = vmatpush1.msra.mxu0 0.0
      %4564 = vmatprep.subr.mxu0 0.0
      %4565 = vmatpush1.msra.mxu0 0.0
      %4566 = vmatprep.subr.mxu0 0.0
      %4567 = vmatpush1.msra.mxu0 0.0
      %4568 = vmatprep.subr.mxu0 0.0
      %4569 = vmatpush1.msra.mxu0 0.0
      %4570 = vmatprep.subr.mxu0 0.0
      %4571 = vmatpush1.msra.mxu0 0.0
      %4572 = vmatprep.subr.mxu0 0.0
      %4573 = vmatpush1.msra.mxu0 0.0
      %4574 = vmatprep.subr.mxu0 0.0
      %4575 = vmatpush1.msra.mxu0 0.0
      %4576 = vmatprep.subr.mxu0 0.0
      %4577 = vmatpush1.msra.mxu0 0.0
      %4578 = vmatprep.subr.mxu0 0.0
      %4579 = vmatpush1.msra.mxu0 0.0
      %4580 = vmatprep.subr.mxu0 0.0
      %4581 = vmatpush1.msra.mxu0 0.0
      %4582 = vmatprep.subr.mxu0 0.0
      %4583 = vmatpush1.msra.mxu0 0.0
      %4584 = vmatprep.subr.mxu0 0.0
      %4585 = vmatpush1.msra.mxu0 0.0
      %4586 = vmatprep.subr.mxu0 0.0
      %4587 = vmatpush1.msra.mxu0 0.0
      %4588 = vmatprep.subr.mxu0 0.0
      %4589 = vmatpush1.msra.mxu0 0.0
      %4590 = vmatprep.subr.mxu0 0.0
      %4591 = vmatpush1.msra.mxu0 0.0
      %4592 = vmatprep.subr.mxu0 0.0
      %4593 = vmatpush1.msra.mxu0 0.0
      %4594 = vmatprep.subr.mxu0 0.0
      %4595 = vmatpush1.msra.mxu0 0.0
      %4596 = vmatprep.subr.mxu0 0.0
      %4597 = vmatpush1.msra.mxu0 0.0
      %4598 = vmatprep.subr.mxu0 0.0
      %4599 = vmatpush1.msra.mxu0 0.0
      %4600 = vmatprep.subr.mxu0 0.0
      %4601 = vmatpush1.msra.mxu0 0.0
      %4602 = vmatprep.subr.mxu0 0.0
      %4603 = vmatpush1.msra.mxu0 0.0
      %4604 = vmatprep.subr.mxu0 0.0
      %4605 = vmatpush1.msra.mxu0 0.0
      %4606 = vmatprep.subr.mxu0 0.0
      %4607 = vmatpush1.msra.mxu0 0.0
      %4608 = vmatprep.mubr.f32.mxu0 0.0
      %4609 = vmatmul.mubr.f32.gmra.mrb[0].mxu0 %v4542
      %v4610 = vpop.f32.mrb[0].mxu0
      %v4611 = vadd.f32 %v2131, %v4610
      %v4612 = vpop.f32.mrb[0].mxu0
      %4613 = vdwg.mxu0
      %v4614 = vmax.f32 %v4611, 0.0
      %v4616 = vsel %vm806, %v4614, 0
      %4618 = vmatprep.subr.mxu0 0.0
      %4619 = vmatpush1.msra.mxu0 %v4616
      %4620 = vmatprep.subr.mxu0 0.0
      %4621 = vmatpush1.msra.mxu0 0.0
      %4622 = vmatprep.subr.mxu0 0.0
      %4623 = vmatpush1.msra.mxu0 0.0
      %4624 = vmatprep.subr.mxu0 0.0
      %4625 = vmatpush1.msra.mxu0 0.0
      %4626 = vmatprep.subr.mxu0 0.0
      %4627 = vmatpush1.msra.mxu0 0.0
      %4628 = vmatprep.subr.mxu0 0.0
      %4629 = vmatpush1.msra.mxu0 0.0
      %4630 = vmatprep.subr.mxu0 0.0
      %4631 = vmatpush1.msra.mxu0 0.0
      %4632 = vmatprep.subr.mxu0 0.0
      %4633 = vmatpush1.msra.mxu0 0.0
      %4634 = vmatprep.subr.mxu0 0.0
      %4635 = vmatpush1.msra.mxu0 0.0
      %4636 = vmatprep.subr.mxu0 0.0
      %4637 = vmatpush1.msra.mxu0 0.0
      %4638 = vmatprep.subr.mxu0 0.0
      %4639 = vmatpush1.msra.mxu0 0.0
      %4640 = vmatprep.subr.mxu0 0.0
      %4641 = vmatpush1.msra.mxu0 0.0
      %4642 = vmatprep.subr.mxu0 0.0
      %4643 = vmatpush1.msra.mxu0 0.0
      %4644 = vmatprep.subr.mxu0 0.0
      %4645 = vmatpush1.msra.mxu0 0.0
      %4646 = vmatprep.subr.mxu0 0.0
      %4647 = vmatpush1.msra.mxu0 0.0
      %4648 = vmatprep.subr.mxu0 0.0
      %4649 = vmatpush1.msra.mxu0 0.0
      %4650 = vmatprep.subr.mxu0 0.0
      %4651 = vmatpush1.msra.mxu0 0.0
      %4652 = vmatprep.subr.mxu0 0.0
      %4653 = vmatpush1.msra.mxu0 0.0
      %4654 = vmatprep.subr.mxu0 0.0
      %4655 = vmatpush1.msra.mxu0 0.0
      %4656 = vmatprep.subr.mxu0 0.0
      %4657 = vmatpush1.msra.mxu0 0.0
      %4658 = vmatprep.subr.mxu0 0.0
      %4659 = vmatpush1.msra.mxu0 0.0
      %4660 = vmatprep.subr.mxu0 0.0
      %4661 = vmatpush1.msra.mxu0 0.0
      %4662 = vmatprep.subr.mxu0 0.0
      %4663 = vmatpush1.msra.mxu0 0.0
      %4664 = vmatprep.subr.mxu0 0.0
      %4665 = vmatpush1.msra.mxu0 0.0
      %4666 = vmatprep.subr.mxu0 0.0
      %4667 = vmatpush1.msra.mxu0 0.0
      %4668 = vmatprep.subr.mxu0 0.0
      %4669 = vmatpush1.msra.mxu0 0.0
      %4670 = vmatprep.subr.mxu0 0.0
      %4671 = vmatpush1.msra.mxu0 0.0
      %4672 = vmatprep.subr.mxu0 0.0
      %4673 = vmatpush1.msra.mxu0 0.0
      %4674 = vmatprep.subr.mxu0 0.0
      %4675 = vmatpush1.msra.mxu0 0.0
      %4676 = vmatprep.subr.mxu0 0.0
      %4677 = vmatpush1.msra.mxu0 0.0
      %4678 = vmatprep.subr.mxu0 0.0
      %4679 = vmatpush1.msra.mxu0 0.0
      %4680 = vmatprep.subr.mxu0 0.0
      %4681 = vmatpush1.msra.mxu0 0.0
      %4682 = vmatprep.mubr.f32.mxu0 0.0
      %4683 = vmatmul.mubr.f32.gmra.mrb[0].mxu0 %v2209
      %v4684 = vpop.f32.mrb[0].mxu0
      %v4685 = vadd.f32 0.0, %v4684
      %v4686 = vpop.f32.mrb[0].mxu0
      %4687 = vmatprep.mubr.f32.mxu0 0.0
      %4688 = vmatmul.mubr.f32.gmra.mrb[0].mxu0 %v2212
      %v4689 = vpop.f32.mrb[0].mxu0
      %v4690 = vadd.f32 0.0, %v4689
      %v4691 = vpop.f32.mrb[0].mxu0
      %4692 = vmatprep.mubr.f32.mxu0 0.0
      %4693 = vmatmul.mubr.f32.gmra.mrb[0].mxu0 %v2215
      %v4694 = vpop.f32.mrb[0].mxu0
      %v4695 = vadd.f32 0.0, %v4694
      %v4696 = vpop.f32.mrb[0].mxu0
      %4697 = vdwg.mxu0
      %4698 = vmatprep.subr.mxu0 0.0
      %4699 = vmatpush1.msra.mxu0 %v4616
      %4700 = vmatprep.subr.mxu0 0.0
      %4701 = vmatpush1.msra.mxu0 0.0
      %4702 = vmatprep.subr.mxu0 0.0
      %4703 = vmatpush1.msra.mxu0 0.0
      %4704 = vmatprep.subr.mxu0 0.0
      %4705 = vmatpush1.msra.mxu0 0.0
      %4706 = vmatprep.subr.mxu0 0.0
      %4707 = vmatpush1.msra.mxu0 0.0
      %4708 = vmatprep.subr.mxu0 0.0
      %4709 = vmatpush1.msra.mxu0 0.0
      %4710 = vmatprep.subr.mxu0 0.0
      %4711 = vmatpush1.msra.mxu0 0.0
      %4712 = vmatprep.subr.mxu0 0.0
      %4713 = vmatpush1.msra.mxu0 0.0
      %4714 = vmatprep.subr.mxu0 0.0
      %4715 = vmatpush1.msra.mxu0 0.0
      %4716 = vmatprep.subr.mxu0 0.0
      %4717 = vmatpush1.msra.mxu0 0.0
      %4718 = vmatprep.subr.mxu0 0.0
      %4719 = vmatpush1.msra.mxu0 0.0
      %4720 = vmatprep.subr.mxu0 0.0
      %4721 = vmatpush1.msra.mxu0 0.0
      %4722 = vmatprep.subr.mxu0 0.0
      %4723 = vmatpush1.msra.mxu0 0.0
      %4724 = vmatprep.subr.mxu0 0.0
      %4725 = vmatpush1.msra.mxu0 0.0
      %4726 = vmatprep.subr.mxu0 0.0
      %4727 = vmatpush1.msra.mxu0 0.0
      %4728 = vmatprep.subr.mxu0 0.0
      %4729 = vmatpush1.msra.mxu0 0.0
      %4730 = vmatprep.subr.mxu0 0.0
      %4731 = vmatpush1.msra.mxu0 0.0
      %4732 = vmatprep.subr.mxu0 0.0
      %4733 = vmatpush1.msra.mxu0 0.0
      %4734 = vmatprep.subr.mxu0 0.0
      %4735 = vmatpush1.msra.mxu0 0.0
      %4736 = vmatprep.subr.mxu0 0.0
      %4737 = vmatpush1.msra.mxu0 0.0
      %4738 = vmatprep.subr.mxu0 0.0
      %4739 = vmatpush1.msra.mxu0 0.0
      %4740 = vmatprep.subr.mxu0 0.0
      %4741 = vmatpush1.msra.mxu0 0.0
      %4742 = vmatprep.subr.mxu0 0.0
      %4743 = vmatpush1.msra.mxu0 0.0
      %4744 = vmatprep.subr.mxu0 0.0
      %4745 = vmatpush1.msra.mxu0 0.0
      %4746 = vmatprep.subr.mxu0 0.0
      %4747 = vmatpush1.msra.mxu0 0.0
      %4748 = vmatprep.subr.mxu0 0.0
      %4749 = vmatpush1.msra.mxu0 0.0
      %4750 = vmatprep.subr.mxu0 0.0
      %4751 = vmatpush1.msra.mxu0 0.0
      %4752 = vmatprep.subr.mxu0 0.0
      %4753 = vmatpush1.msra.mxu0 0.0
      %4754 = vmatprep.subr.mxu0 0.0
      %4755 = vmatpush1.msra.mxu0 0.0
      %4756 = vmatprep.subr.mxu0 0.0
      %4757 = vmatpush1.msra.mxu0 0.0
      %4758 = vmatprep.subr.mxu0 0.0
      %4759 = vmatpush1.msra.mxu0 0.0
      %4760 = vmatprep.subr.mxu0 0.0
      %4761 = vmatpush1.msra.mxu0 0.0
      %4762 = vmatprep.mubr.f32.mxu0 0.0
      %4763 = vmatmul.mubr.f32.gmra.mrb[0].mxu0 %v2301
      %v4764 = vpop.f32.mrb[0].mxu0
      %v4765 = vadd.f32 0.0, %v4764
      %v4766 = vpop.f32.mrb[0].mxu0
      %4767 = vmatprep.mubr.f32.mxu0 0.0
      %4768 = vmatmul.mubr.f32.gmra.mrb[0].mxu0 %v2304
      %v4769 = vpop.f32.mrb[0].mxu0
      %v4770 = vadd.f32 0.0, %v4769
      %v4771 = vpop.f32.mrb[0].mxu0
      %4772 = vmatprep.mubr.f32.mxu0 0.0
      %4773 = vmatmul.mubr.f32.gmra.mrb[0].mxu0 %v2307
      %v4774 = vpop.f32.mrb[0].mxu0
      %v4775 = vadd.f32 0.0, %v4774
      %v4776 = vpop.f32.mrb[0].mxu0
      %4777 = vdwg.mxu0
      %v4779 = vsel %vm2133, %v4765, 0
      %v4782 = vsel %vm2133, %v4770, 0
      %v4785 = vsel %vm2133, %v4775, 0
      %4787 = vmatprep.subr.mxu0 0.0
      %4788 = vmatpush1.msra.mxu0 %v2393
      %4789 = vmatprep.subr.mxu0 0.0
      %4790 = vmatpush1.msra.mxu0 %v2394
      %4791 = vmatprep.subr.mxu0 0.0
      %4792 = vmatpush1.msra.mxu0 %v2395
      %4793 = vmatprep.subr.mxu0 0.0
      %4794 = vmatpush1.msra.mxu0 %v2396
      %4795 = vmatprep.subr.mxu0 0.0
      %4796 = vmatpush1.msra.mxu0 0.0
      %4797 = vmatprep.subr.mxu0 0.0
      %4798 = vmatpush1.msra.mxu0 0.0
      %4799 = vmatprep.subr.mxu0 0.0
      %4800 = vmatpush1.msra.mxu0 0.0
      %4801 = vmatprep.subr.mxu0 0.0
      %4802 = vmatpush1.msra.mxu0 0.0
      %4803 = vmatprep.subr.mxu0 0.0
      %4804 = vmatpush1.msra.mxu0 0.0
      %4805 = vmatprep.subr.mxu0 0.0
      %4806 = vmatpush1.msra.mxu0 0.0
      %4807 = vmatprep.subr.mxu0 0.0
      %4808 = vmatpush1.msra.mxu0 0.0
      %4809 = vmatprep.subr.mxu0 0.0
      %4810 = vmatpush1.msra.mxu0 0.0
      %4811 = vmatprep.subr.mxu0 0.0
      %4812 = vmatpush1.msra.mxu0 0.0
      %4813 = vmatprep.subr.mxu0 0.0
      %4814 = vmatpush1.msra.mxu0 0.0
      %4815 = vmatprep.subr.mxu0 0.0
      %4816 = vmatpush1.msra.mxu0 0.0
      %4817 = vmatprep.subr.mxu0 0.0
      %4818 = vmatpush1.msra.mxu0 0.0
      %4819 = vmatprep.subr.mxu0 0.0
      %4820 = vmatpush1.msra.mxu0 0.0
      %4821 = vmatprep.subr.mxu0 0.0
      %4822 = vmatpush1.msra.mxu0 0.0
      %4823 = vmatprep.subr.mxu0 0.0
      %4824 = vmatpush1.msra.mxu0 0.0
      %4825 = vmatprep.subr.mxu0 0.0
      %4826 = vmatpush1.msra.mxu0 0.0
      %4827 = vmatprep.subr.mxu0 0.0
      %4828 = vmatpush1.msra.mxu0 0.0
      %4829 = vmatprep.subr.mxu0 0.0
      %4830 = vmatpush1.msra.mxu0 0.0
      %4831 = vmatprep.subr.mxu0 0.0
      %4832 = vmatpush1.msra.mxu0 0.0
      %4833 = vmatprep.subr.mxu0 0.0
      %4834 = vmatpush1.msra.mxu0 0.0
      %4835 = vmatprep.subr.mxu0 0.0
      %4836 = vmatpush1.msra.mxu0 0.0
      %4837 = vmatprep.subr.mxu0 0.0
      %4838 = vmatpush1.msra.mxu0 0.0
      %4839 = vmatprep.subr.mxu0 0.0
      %4840 = vmatpush1.msra.mxu0 0.0
      %4841 = vmatprep.subr.mxu0 0.0
      %4842 = vmatpush1.msra.mxu0 0.0
      %4843 = vmatprep.subr.mxu0 0.0
      %4844 = vmatpush1.msra.mxu0 0.0
      %4845 = vmatprep.subr.mxu0 0.0
      %4846 = vmatpush1.msra.mxu0 0.0
      %4847 = vmatprep.subr.mxu0 0.0
      %4848 = vmatpush1.msra.mxu0 0.0
      %4849 = vmatprep.subr.mxu0 0.0
      %4850 = vmatpush1.msra.mxu0 0.0
      %4851 = vmatprep.mubr.f32.mxu0 0.0
      %4852 = vmatmul.mubr.f32.gmra.mrb[0].mxu0 %v4779
      %v4853 = vpop.f32.mrb[0].mxu0
      %v4854 = vadd.f32 0.0, %v4853
      %v4855 = vpop.f32.mrb[0].mxu0
      %4856 = vmatprep.mubr.f32.mxu0 0.0
      %4857 = vmatmul.mubr.f32.gmra.mrb[0].mxu0 %v4782
      %v4858 = vpop.f32.mrb[0].mxu0
      %v4859 = vadd.f32 0.0, %v4858
      %v4860 = vpop.f32.mrb[0].mxu0
      %4861 = vmatprep.mubr.f32.mxu0 0.0
      %4862 = vmatmul.mubr.f32.gmra.mrb[0].mxu0 %v4785
      %v4863 = vpop.f32.mrb[0].mxu0
      %v4864 = vadd.f32 0.0, %v4863
      %v4865 = vpop.f32.mrb[0].mxu0
      %4866 = vdwg.mxu0
      %v4868 = vsel %vm2133, %v4685, 0
      %v4871 = vsel %vm2133, %v4690, 0
      %v4874 = vsel %vm2133, %v4695, 0
      %4876 = vmatprep.subr.mxu0 0.0
      %4877 = vmatpush1.msra.mxu0 %v2389
      %4878 = vmatprep.subr.mxu0 0.0
      %4879 = vmatpush1.msra.mxu0 %v2390
      %4880 = vmatprep.subr.mxu0 0.0
      %4881 = vmatpush1.msra.mxu0 %v2391
      %4882 = vmatprep.subr.mxu0 0.0
      %4883 = vmatpush1.msra.mxu0 %v2392
      %4884 = vmatprep.subr.mxu0 0.0
      %4885 = vmatpush1.msra.mxu0 0.0
      %4886 = vmatprep.subr.mxu0 0.0
      %4887 = vmatpush1.msra.mxu0 0.0
      %4888 = vmatprep.subr.mxu0 0.0
      %4889 = vmatpush1.msra.mxu0 0.0
      %4890 = vmatprep.subr.mxu0 0.0
      %4891 = vmatpush1.msra.mxu0 0.0
      %4892 = vmatprep.subr.mxu0 0.0
      %4893 = vmatpush1.msra.mxu0 0.0
      %4894 = vmatprep.subr.mxu0 0.0
      %4895 = vmatpush1.msra.mxu0 0.0
      %4896 = vmatprep.subr.mxu0 0.0
      %4897 = vmatpush1.msra.mxu0 0.0
      %4898 = vmatprep.subr.mxu0 0.0
      %4899 = vmatpush1.msra.mxu0 0.0
      %4900 = vmatprep.subr.mxu0 0.0
      %4901 = vmatpush1.msra.mxu0 0.0
      %4902 = vmatprep.subr.mxu0 0.0
      %4903 = vmatpush1.msra.mxu0 0.0
      %4904 = vmatprep.subr.mxu0 0.0
      %4905 = vmatpush1.msra.mxu0 0.0
      %4906 = vmatprep.subr.mxu0 0.0
      %4907 = vmatpush1.msra.mxu0 0.0
      %4908 = vmatprep.subr.mxu0 0.0
      %4909 = vmatpush1.msra.mxu0 0.0
      %4910 = vmatprep.subr.mxu0 0.0
      %4911 = vmatpush1.msra.mxu0 0.0
      %4912 = vmatprep.subr.mxu0 0.0
      %4913 = vmatpush1.msra.mxu0 0.0
      %4914 = vmatprep.subr.mxu0 0.0
      %4915 = vmatpush1.msra.mxu0 0.0
      %4916 = vmatprep.subr.mxu0 0.0
      %4917 = vmatpush1.msra.mxu0 0.0
      %4918 = vmatprep.subr.mxu0 0.0
      %4919 = vmatpush1.msra.mxu0 0.0
      %4920 = vmatprep.subr.mxu0 0.0
      %4921 = vmatpush1.msra.mxu0 0.0
      %4922 = vmatprep.subr.mxu0 0.0
      %4923 = vmatpush1.msra.mxu0 0.0
      %4924 = vmatprep.subr.mxu0 0.0
      %4925 = vmatpush1.msra.mxu0 0.0
      %4926 = vmatprep.subr.mxu0 0.0
      %4927 = vmatpush1.msra.mxu0 0.0
      %4928 = vmatprep.subr.mxu0 0.0
      %4929 = vmatpush1.msra.mxu0 0.0
      %4930 = vmatprep.subr.mxu0 0.0
      %4931 = vmatpush1.msra.mxu0 0.0
      %4932 = vmatprep.subr.mxu0 0.0
      %4933 = vmatpush1.msra.mxu0 0.0
      %4934 = vmatprep.subr.mxu0 0.0
      %4935 = vmatpush1.msra.mxu0 0.0
      %4936 = vmatprep.subr.mxu0 0.0
      %4937 = vmatpush1.msra.mxu0 0.0
      %4938 = vmatprep.subr.mxu0 0.0
      %4939 = vmatpush1.msra.mxu0 0.0
      %4940 = vmatprep.mubr.f32.mxu0 0.0
      %4941 = vmatmul.mubr.f32.gmra.mrb[0].mxu0 %v4868
      %v4942 = vpop.f32.mrb[0].mxu0
      %v4943 = vadd.f32 %v4854, %v4942
      %v4944 = vpop.f32.mrb[0].mxu0
      %4945 = vmatprep.mubr.f32.mxu0 0.0
      %4946 = vmatmul.mubr.f32.gmra.mrb[0].mxu0 %v4871
      %v4947 = vpop.f32.mrb[0].mxu0
      %v4948 = vadd.f32 %v4859, %v4947
      %v4949 = vpop.f32.mrb[0].mxu0
      %4950 = vmatprep.mubr.f32.mxu0 0.0
      %4951 = vmatmul.mubr.f32.gmra.mrb[0].mxu0 %v4874
      %v4952 = vpop.f32.mrb[0].mxu0
      %v4953 = vadd.f32 %v4864, %v4952
      %v4954 = vpop.f32.mrb[0].mxu0
      %4955 = vdwg.mxu0
      %v4956 = vadd.f32 %v4943, %v2580
      %v4957 = vadd.f32 %v4948, %v2580
      %v4958 = vadd.f32 %v4953, %v2580
      %v4959 = vmax.f32 %v4956, 0.0
      %v4960 = vmax.f32 %v4957, 0.0
      %v4961 = vmax.f32 %v4958, 0.0
      %v4963 = vsel %vm2133, %v4959, 0
      %v4966 = vsel %vm2133, %v4960, 0
      %v4969 = vsel %vm2133, %v4961, 0
      %4971 = vmatprep.subr.mxu0 0.0
      %4972 = vmatpush1.msra.mxu0 %v2588
      %4973 = vmatprep.subr.mxu0 0.0
      %4974 = vmatpush1.msra.mxu0 %v2589
      %4975 = vmatprep.subr.mxu0 0.0
      %4976 = vmatpush1.msra.mxu0 %v2590
      %4977 = vmatprep.subr.mxu0 0.0
      %4978 = vmatpush1.msra.mxu0 %v2591
      %4979 = vmatprep.subr.mxu0 0.0
      %4980 = vmatpush1.msra.mxu0 0.0
      %4981 = vmatprep.subr.mxu0 0.0
      %4982 = vmatpush1.msra.mxu0 0.0
      %4983 = vmatprep.subr.mxu0 0.0
      %4984 = vmatpush1.msra.mxu0 0.0
      %4985 = vmatprep.subr.mxu0 0.0
      %4986 = vmatpush1.msra.mxu0 0.0
      %4987 = vmatprep.subr.mxu0 0.0
      %4988 = vmatpush1.msra.mxu0 0.0
      %4989 = vmatprep.subr.mxu0 0.0
      %4990 = vmatpush1.msra.mxu0 0.0
      %4991 = vmatprep.subr.mxu0 0.0
      %4992 = vmatpush1.msra.mxu0 0.0
      %4993 = vmatprep.subr.mxu0 0.0
      %4994 = vmatpush1.msra.mxu0 0.0
      %4995 = vmatprep.subr.mxu0 0.0
      %4996 = vmatpush1.msra.mxu0 0.0
      %4997 = vmatprep.subr.mxu0 0.0
      %4998 = vmatpush1.msra.mxu0 0.0
      %4999 = vmatprep.subr.mxu0 0.0
      %5000 = vmatpush1.msra.mxu0 0.0
      %5001 = vmatprep.subr.mxu0 0.0
      %5002 = vmatpush1.msra.mxu0 0.0
      %5003 = vmatprep.subr.mxu0 0.0
      %5004 = vmatpush1.msra.mxu0 0.0
      %5005 = vmatprep.subr.mxu0 0.0
      %5006 = vmatpush1.msra.mxu0 0.0
      %5007 = vmatprep.subr.mxu0 0.0
      %5008 = vmatpush1.msra.mxu0 0.0
      %5009 = vmatprep.subr.mxu0 0.0
      %5010 = vmatpush1.msra.mxu0 0.0
      %5011 = vmatprep.subr.mxu0 0.0
      %5012 = vmatpush1.msra.mxu0 0.0
      %5013 = vmatprep.subr.mxu0 0.0
      %5014 = vmatpush1.msra.mxu0 0.0
      %5015 = vmatprep.subr.mxu0 0.0
      %5016 = vmatpush1.msra.mxu0 0.0
      %5017 = vmatprep.subr.mxu0 0.0
      %5018 = vmatpush1.msra.mxu0 0.0
      %5019 = vmatprep.subr.mxu0 0.0
      %5020 = vmatpush1.msra.mxu0 0.0
      %5021 = vmatprep.subr.mxu0 0.0
      %5022 = vmatpush1.msra.mxu0 0.0
      %5023 = vmatprep.subr.mxu0 0.0
      %5024 = vmatpush1.msra.mxu0 0.0
      %5025 = vmatprep.subr.mxu0 0.0
      %5026 = vmatpush1.msra.mxu0 0.0
      %5027 = vmatprep.subr.mxu0 0.0
      %5028 = vmatpush1.msra.mxu0 0.0
      %5029 = vmatprep.subr.mxu0 0.0
      %5030 = vmatpush1.msra.mxu0 0.0
      %5031 = vmatprep.subr.mxu0 0.0
      %5032 = vmatpush1.msra.mxu0 0.0
      %5033 = vmatprep.subr.mxu0 0.0
      %5034 = vmatpush1.msra.mxu0 0.0
      %5035 = vmatprep.mubr.f32.mxu0 0.0
      %5036 = vmatmul.mubr.f32.gmra.mrb[0].mxu0 %v4963
      %v5037 = vpop.f32.mrb[0].mxu0
      %v5038 = vadd.f32 %v2597, %v5037
      %v5039 = vpop.f32.mrb[0].mxu0
      %5040 = vmatprep.mubr.f32.mxu0 0.0
      %5041 = vmatmul.mubr.f32.gmra.mrb[0].mxu0 %v4966
      %v5042 = vpop.f32.mrb[0].mxu0
      %v5043 = vadd.f32 %v2597, %v5042
      %v5044 = vpop.f32.mrb[0].mxu0
      %5045 = vmatprep.mubr.f32.mxu0 0.0
      %5046 = vmatmul.mubr.f32.gmra.mrb[0].mxu0 %v4969
      %v5047 = vpop.f32.mrb[0].mxu0
      %v5048 = vadd.f32 %v2597, %v5047
      %v5049 = vpop.f32.mrb[0].mxu0
      %5050 = vdwg.mxu0
      %v5051 = vmax.f32 %v5038, 0.0
      %v5052 = vmax.f32 %v5043, 0.0
      %v5053 = vmax.f32 %v5048, 0.0
      %v5054 = vmul.f32 %v2104, %v5051
      %v5055 = vmul.f32 %v2107, %v5052
      %v5056 = vmul.f32 %v2111, %v5053
      %v5058 = vsel %vm999, %v5056, 0
      %5060 = vmatprep.subr.mxu0 0.0
      %5061 = vmatpush1.msra.mxu0 %v5054
      %5062 = vmatprep.subr.mxu0 0.0
      %5063 = vmatpush1.msra.mxu0 %v5055
      %5064 = vmatprep.subr.mxu0 0.0
      %5065 = vmatpush1.msra.mxu0 %v5058
      %5066 = vmatprep.subr.mxu0 0.0
      %5067 = vmatpush1.msra.mxu0 0.0
      %5068 = vmatprep.subr.mxu0 0.0
      %5069 = vmatpush1.msra.mxu0 0.0
      %5070 = vmatprep.subr.mxu0 0.0
      %5071 = vmatpush1.msra.mxu0 0.0
      %5072 = vmatprep.subr.mxu0 0.0
      %5073 = vmatpush1.msra.mxu0 0.0
      %5074 = vmatprep.subr.mxu0 0.0
      %5075 = vmatpush1.msra.mxu0 0.0
      %5076 = vmatprep.subr.mxu0 0.0
      %5077 = vmatpush1.msra.mxu0 0.0
      %5078 = vmatprep.subr.mxu0 0.0
      %5079 = vmatpush1.msra.mxu0 0.0
      %5080 = vmatprep.subr.mxu0 0.0
      %5081 = vmatpush1.msra.mxu0 0.0
      %5082 = vmatprep.subr.mxu0 0.0
      %5083 = vmatpush1.msra.mxu0 0.0
      %5084 = vmatprep.subr.mxu0 0.0
      %5085 = vmatpush1.msra.mxu0 0.0
      %5086 = vmatprep.subr.mxu0 0.0
      %5087 = vmatpush1.msra.mxu0 0.0
      %5088 = vmatprep.subr.mxu0 0.0
      %5089 = vmatpush1.msra.mxu0 0.0
      %5090 = vmatprep.subr.mxu0 0.0
      %5091 = vmatpush1.msra.mxu0 0.0
      %5092 = vmatprep.subr.mxu0 0.0
      %5093 = vmatpush1.msra.mxu0 0.0
      %5094 = vmatprep.subr.mxu0 0.0
      %5095 = vmatpush1.msra.mxu0 0.0
      %5096 = vmatprep.subr.mxu0 0.0
      %5097 = vmatpush1.msra.mxu0 0.0
      %5098 = vmatprep.subr.mxu0 0.0
      %5099 = vmatpush1.msra.mxu0 0.0
      %5100 = vmatprep.subr.mxu0 0.0
      %5101 = vmatpush1.msra.mxu0 0.0
      %5102 = vmatprep.subr.mxu0 0.0
      %5103 = vmatpush1.msra.mxu0 0.0
      %5104 = vmatprep.subr.mxu0 0.0
      %5105 = vmatpush1.msra.mxu0 0.0
      %5106 = vmatprep.subr.mxu0 0.0
      %5107 = vmatpush1.msra.mxu0 0.0
      %5108 = vmatprep.subr.mxu0 0.0
      %5109 = vmatpush1.msra.mxu0 0.0
      %5110 = vmatprep.subr.mxu0 0.0
      %5111 = vmatpush1.msra.mxu0 0.0
      %5112 = vmatprep.subr.mxu0 0.0
      %5113 = vmatpush1.msra.mxu0 0.0
      %5114 = vmatprep.subr.mxu0 0.0
      %5115 = vmatpush1.msra.mxu0 0.0
      %5116 = vmatprep.subr.mxu0 0.0
      %5117 = vmatpush1.msra.mxu0 0.0
      %5118 = vmatprep.subr.mxu0 0.0
      %5119 = vmatpush1.msra.mxu0 0.0
      %5120 = vmatprep.subr.mxu0 0.0
      %5121 = vmatpush1.msra.mxu0 0.0
      %5122 = vmatprep.subr.mxu0 0.0
      %5123 = vmatpush1.msra.mxu0 0.0
      %5124 = vmatprep.mubr.f32.mxu0 0.0
      %5125 = vmatmul.mubr.f32.gmra.mrb[0].mxu0 %v2695
      %v5126 = vpop.f32.mrb[0].mxu0
      %v5127 = vadd.f32 0.0, %v5126
      %v5128 = vpop.f32.mrb[0].mxu0
      %5129 = vdwg.mxu0
      %v5130 = vadd.f32 %v4540, %v5127
      %v5131 = vsel %vm2120, 0.0, %v5130
      %vm5132 = vcmask 258048
      %5133 = vst.msk [vmem:[%s786] sm:$0x1f] %vm5132, %v5131
      %p5134 = scmp.lt.s32.totalorder %s37, 1
      %s5135 = scalar_select %p5134, %s37, 1
      %s5136 = smul.addr %s5135, 8
      %s5137 = scalar_lea.vmem %s26, %s5136
      // Predicated region
      $region125: #{encoder_graph_forward.7} parent=123 // pred_check
        %p5138 = pneg %p606
      $region126: #{encoder_graph_forward.7} parent=123 // pred_check_branch
        %5140 = sbr.rel (%p5138) target = $region128
      $region127: #{encoder_graph_forward.7} parent=123 // pred_region
        _
      $region128: #{encoder_graph_forward.7} parent=123 // pred_fallthru
        _
    $region124: #{encoder_graph_forward.7} parent=5 // pred_fallthru
      _
    %p5141 = scmp.le.s32.totalorder 2, %s32
    // Predicated region
    $region129: #{encoder_graph_forward.7} parent=5 // pred_check
      %p5142 = pneg %p5141
    $region130: #{encoder_graph_forward.7} parent=5 // pred_check_branch
      %5144 = sbr.rel (%p5142) target = $region132
    $region131: #{encoder_graph_forward.7} parent=5 // pred_region
      %s5145 = ssub.s32 %s32, 2
      // Predicated region
      $region133: #{encoder_graph_forward.7} parent=131 // pred_check
        %p5146 = pneg %p612
      $region134: #{encoder_graph_forward.7} parent=131 // pred_check_branch
        %5148 = sbr.rel (%p5146) target = $region136
      $region135: #{encoder_graph_forward.7} parent=131 // pred_region
        %p5149 = scmp.lt.s32.totalorder %s38, 1
        %s5150 = scalar_select %p5149, %s38, 1
        %s5151 = smul.addr %s5150, 8
        %s5152 = scalar_lea.vmem %s26, %s5151
      $region136: #{encoder_graph_forward.7} parent=131 // pred_fallthru
        _
    $region132: #{encoder_graph_forward.7} parent=5 // pred_fallthru
      _
  $region6: #{encoder_graph_forward.7} parent=0 // loop_footer
    %s36 = sadd.s32 1, %s32
  $region7: #{encoder_graph_forward.7} parent=0 // loop_footer_branch
    %31 = sbr.rel target = $region3
  $region8: #{encoder_graph_forward.7} parent=0 // loop_exit
    _

</llo_original>
